<compile_context>
chip_gen: v7x
topology: tpu7x:2x2x1
jax: 0.10.0
libtpu: 0.0.40
codegen_flags: <defaults>
</compile_context>

<pallas_src>
import functools

import numpy as np

import jax
import jax.numpy as jnp
from jax.experimental import pallas as pl
from jax.experimental.pallas import tpu as pltpu


# -----------------------------------------------------------------------------
# Helpers
# -----------------------------------------------------------------------------
def _round_up(x, m):
    return ((x + m - 1) // m) * m


@functools.lru_cache(maxsize=None)
def _vmem_limit_bytes():
    """Generation-aware scoped VMEM budget (v5e/v6e: 128 MiB phys, v7x: 64 MiB)."""
    try:
        cap = int(pltpu.get_tpu_info().vmem_capacity_bytes)
        if cap > 0:
            return min(cap * 3 // 4, 96 * 1024 * 1024)
    except Exception:
        pass
    return 32 * 1024 * 1024


# -----------------------------------------------------------------------------
# Fused conv + bias + InstanceNorm + LeakyReLU Pallas kernel
# -----------------------------------------------------------------------------
def _conv_norm_lrelu_kernel(x_ref, w_ref, b_ref, mask_ref, o_ref, acc_ref, *,
                            tap_offsets, n_valid, eps, apply_norm,
                            negative_slope):
    """Direct (tap-decomposed) conv over a flattened padded image.

    x_ref:    (1, P, Cin)   bf16 flattened padded rows (+ zero tail rows)
    w_ref:    (T, Cin, tn)  bf16 per-tap weight matrices
    b_ref:    (1, tn)       f32 bias
    mask_ref: (M, 1)        f32 1.0 on valid output columns, 0.0 on garbage
    o_ref:    (1, M, tn)    output block (bf16 inter-layer, f32 for last layer)
    acc_ref:  (M, tn)       f32 VMEM accumulator

    M = oh * Wz: output rows are computed over the full padded width Wz so that
    every tap's input is a contiguous row-slice; garbage columns are masked out
    of the InstanceNorm statistics and sliced off by the wrapper.
    """
    m = acc_ref.shape[0]

    # One bf16 MXU matmul per tap, accumulated in f32 VMEM.
    for t, off in enumerate(tap_offsets):
        contrib = jnp.dot(x_ref[0, off:off + m, :], w_ref[t],
                          preferred_element_type=jnp.float32)
        if t == 0:
            acc_ref[...] = contrib
        else:
            acc_ref[...] += contrib

    out = acc_ref[...] + b_ref[...]                       # (M, tn) f32

    if apply_norm:
        # InstanceNorm2d(affine=False): per-channel biased mean/var over the
        # valid spatial positions of this (batch, channel-tile) block.
        valid = mask_ref[...]                              # (M, 1) -> lane bcast
        inv_n = 1.0 / float(n_valid)
        mean = jnp.sum(out * valid, axis=0, keepdims=True) * inv_n   # (1, tn)
        cent = (out - mean) * valid
        var = jnp.sum(cent * cent, axis=0, keepdims=True) * inv_n
        out = (out - mean) * jax.lax.rsqrt(var + eps)

    if negative_slope is not None:
        out = jnp.where(out >= 0, out, negative_slope * out)

    o_ref[0, :, :] = out.astype(o_ref.dtype)


# -----------------------------------------------------------------------------
# Conv layer wrapper (layout glue in XLA, compute in Pallas)
# -----------------------------------------------------------------------------
def _space_to_depth2(x):
    """(N, H, W, C) -> (N, H//2, W//2, 4C); channel index = (a*2 + b)*C + c."""
    n, h, w, c = x.shape
    x = x.reshape(n, h // 2, 2, w // 2, 2, c)
    x = jnp.transpose(x, (0, 1, 3, 2, 4, 5))
    return x.reshape(n, h // 2, w // 2, 4 * c)


def conv_in_lrelu(x, w_packed, b_packed, *, cout, stride, apply_norm,
                  negative_slope, out_dtype=jnp.bfloat16, pad=1, ksize=4):
    """x: (N, H, W, Cin) -> (N, OH, OW, cout).  4x4 conv, stride 1 or 2, pad 1."""
    n, h, w_in, _ = x.shape

    # Cast to bf16 BEFORE any padding / layout glue (halves HBM traffic).
    xb = x.astype(jnp.bfloat16)
    xp = jnp.pad(xb, ((0, 0), (pad, pad), (pad, pad), (0, 0)))

    if stride == 2:
        assert (h + 2 * pad) % 2 == 0 and (w_in + 2 * pad) % 2 == 0, (
            "stride-2 space-to-depth path needs even padded spatial dims")
        xp = _space_to_depth2(xp)          # stride-2 4x4 conv -> stride-1 2x2
        keff = ksize // 2
    else:
        keff = ksize

    _, hz, wz, cin_eff = xp.shape
    oh, ow = hz - keff + 1, wz - keff + 1
    m = oh * wz                             # rows computed over full padded width
    tail = keff - 1                         # zero rows so the last taps stay in-bounds
    xflat = jnp.pad(xp.reshape(n, hz * wz, cin_eff), ((0, 0), (0, tail), (0, 0)))
    p = hz * wz + tail

    n_taps, wcin, cout_pad = w_packed.shape
    assert n_taps == keff * keff and wcin == cin_eff, (n_taps, wcin, cin_eff)
    tn = 256 if cout_pad % 256 == 0 else 128

    tap_offsets = tuple(i * wz + j for i in range(keff) for j in range(keff))

    # Valid-column mask (compile-time constant): flat index % Wz < OW.
    col = np.arange(m, dtype=np.int32) % wz
    mask = jnp.asarray((col < ow).astype(np.float32).reshape(m, 1))

    kernel = functools.partial(
        _conv_norm_lrelu_kernel,
        tap_offsets=tap_offsets, n_valid=oh * ow, eps=1e-5,
        apply_norm=apply_norm, negative_slope=negative_slope)

    out = pl.pallas_call(
        kernel,
        out_shape=jax.ShapeDtypeStruct((n, m, cout_pad), out_dtype),
        grid_spec=pltpu.PrefetchScalarGridSpec(
            num_scalar_prefetch=0,
            grid=(n, cout_pad // tn),
            in_specs=[
                pl.BlockSpec((1, p, cin_eff), lambda b, co: (b, 0, 0)),
                pl.BlockSpec((n_taps, cin_eff, tn), lambda b, co: (0, 0, co)),
                pl.BlockSpec((1, tn), lambda b, co: (0, co)),
                pl.BlockSpec((m, 1), lambda b, co: (0, 0)),
            ],
            out_specs=pl.BlockSpec((1, m, tn), lambda b, co: (b, 0, co)),
            scratch_shapes=[pltpu.VMEM((m, tn), jnp.float32)],
        ),
        compiler_params=pltpu.CompilerParams(
            dimension_semantics=("parallel", "parallel"),
            vmem_limit_bytes=_vmem_limit_bytes(),
        ),
    )(xflat, w_packed, b_packed, mask)

    # Drop garbage columns and padded output channels (fuses with the next
    # layer's pad / space-to-depth copy).
    return out.reshape(n, oh, wz, cout_pad)[:, :, :ow, :cout]


# -----------------------------------------------------------------------------
# Model: parameter init, one-time weight packing, forward
# -----------------------------------------------------------------------------
_LAYER_CFG = (
    # (stride, apply_norm, has_leaky_relu)
    (2, False, True),
    (2, True, True),
    (2, True, True),
    (1, True, True),
    (1, False, False),
)


def init_params(key, df_dim=64):
    """Synthetic weights in PyTorch layout: conv w (Cout, Cin, KH, KW), b (Cout,)."""
    chans = [(3, df_dim), (df_dim, df_dim * 2), (df_dim * 2, df_dim * 4),
             (df_dim * 4, df_dim * 8), (df_dim * 8, 1)]
    params = []
    for cin, cout in chans:
        key, wk, bk = jax.random.split(key, 3)
        w = 0.02 * jax.random.normal(wk, (cout, cin, 4, 4), dtype=jnp.float32)
        b = 0.01 * jax.random.normal(bk, (cout,), dtype=jnp.float32)
        params.append((w, b))
    return params


def pack_params(params):
    """One-time repack: tap-major (T, Cin_eff, Cout_pad) bf16 weights + f32 bias.

    Stride-2 layers are packed for the space-to-depth'ed input (2x2 taps over
    4*Cin channels); stride-1 layers keep 4x4 taps.  Returns (arrays, static meta).
    """
    packed, meta = [], []
    for (w, b), (stride, apply_norm, has_act) in zip(params, _LAYER_CFG):
        cout, cin, kh, kw = w.shape
        if stride == 2:
            # i = 2*di + a, j = 2*dj + b  ->  (di, dj, a, b, ci, co)
            w6 = w.reshape(cout, cin, 2, 2, 2, 2)            # (co, ci, di, a, dj, b)
            wp = jnp.transpose(w6, (2, 4, 3, 5, 1, 0)).reshape(4, 4 * cin, cout)
        else:
            wp = jnp.transpose(w, (2, 3, 1, 0)).reshape(kh * kw, cin, cout)
        cout_pad = _round_up(cout, 128)                      # lane-dense stores
        wp = jnp.pad(wp, ((0, 0), (0, 0), (0, cout_pad - cout))).astype(jnp.bfloat16)
        bp = jnp.pad(b, (0, cout_pad - cout)).reshape(1, cout_pad).astype(jnp.float32)
        packed.append((wp, bp))
        meta.append((cout, stride, apply_norm, has_act))
    return tuple(packed), tuple(meta)


def discriminator_forward(x_nchw, packed_params, layer_meta):
    """Matches SPGAN.discrimnator.forward.  Input/output: NCHW float32."""
    h = jnp.transpose(x_nchw, (0, 2, 3, 1))                  # NCHW -> NHWC
    n_layers = len(layer_meta)
    for idx, ((wp, bp), (cout, stride, apply_norm, has_act)) in enumerate(
            zip(packed_params, layer_meta)):
        last = idx == n_layers - 1
        h = conv_in_lrelu(
            h, wp, bp, cout=cout, stride=stride, apply_norm=apply_norm,
            negative_slope=0.2 if has_act else None,
            out_dtype=jnp.float32 if last else jnp.bfloat16)
    return jnp.transpose(h, (0, 3, 1, 2))                    # NHWC -> NCHW


# -----------------------------------------------------------------------------
# Pure-JAX references (for correctness check)
# -----------------------------------------------------------------------------
def _ref_conv(x_nchw, w, b, stride, pad, bf16_operands, precision=None):
    if bf16_operands:
        x_nchw = x_nchw.astype(jnp.bfloat16)
        w = w.astype(jnp.bfloat16)
    y = jax.lax.conv_general_dilated(
        x_nchw, w, window_strides=(stride, stride),
        padding=((pad, pad), (pad, pad)),
        dimension_numbers=("NCHW", "OIHW", "NCHW"),
        preferred_element_type=jnp.float32,
        precision=precision,
    )
    return y + b.reshape(1, -1, 1, 1)


def _ref_forward(x, params, bf16_operands, precision=None):
    lrelu = lambda v: jnp.where(v >= 0, v, 0.2 * v)

    def inorm(v):
        mu = jnp.mean(v, axis=(2, 3), keepdims=True)
        var = jnp.mean((v - mu) ** 2, axis=(2, 3), keepdims=True)
        return (v - mu) * jax.lax.rsqrt(var + 1e-5)

    conv = functools.partial(_ref_conv, bf16_operands=bf16_operands,
                             precision=precision)
    (w1, b1), (w2, b2), (w3, b3), (w4, b4), (w5, b5) = params
    h = lrelu(conv(x, w1, b1, 2, 1))
    h = lrelu(inorm(conv(h, w2, b2, 2, 1)))
    h = lrelu(inorm(conv(h, w3, b3, 2, 1)))
    h = lrelu(inorm(conv(h, w4, b4, 1, 1)))
    return conv(h, w5, b5, 1, 1)


# -----------------------------------------------------------------------------
if __name__ == "__main__":
    key = jax.random.PRNGKey(0)
    key, xk = jax.random.split(key)

    DF_DIM = 16                 # small df_dim (module default is 64)
    N, C, H, W = 2, 3, 32, 32   # 32x32 input -> 2x2 patch output

    x = jax.random.normal(xk, (N, C, H, W), dtype=jnp.float32)
    params = init_params(key, df_dim=DF_DIM)
    packed, meta = pack_params(params)      # one-time weight packing

    fwd = jax.jit(discriminator_forward, static_argnums=(2,))
    out = jax.block_until_ready(fwd(x, packed, meta))
    assert out.shape == (N, 1, 2, 2), out.shape

    # Tight check vs. a reference using the same bf16-operand / f32-accumulation
    # conv numerics as the kernel path.
    ref_bf16 = jax.block_until_ready(_ref_forward(x, params, bf16_operands=True))
    assert jnp.allclose(out, ref_bf16, rtol=3e-3, atol=3e-3), (
        float(jnp.max(jnp.abs(out - ref_bf16))))

    # Loose sanity check vs. a full-f32 HIGHEST-precision reference (bf16 MXU
    # operands and bf16 inter-layer activations add ~0.5% relative noise/layer).
    ref_f32 = jax.block_until_ready(
        _ref_forward(x, params, bf16_operands=False,
                     precision=jax.lax.Precision.HIGHEST))
    assert jnp.allclose(out, ref_f32, rtol=5e-2, atol=5e-2), (
        float(jnp.max(jnp.abs(out - ref_f32))))

    print("KERNEL_OK")
</pallas_src>

<mosaic_0001>
module attributes {stable_mosaic.version = 11 : i64} {
  func.func @_conv_norm_lrelu_kernel(%arg0: i32, %arg1: i32, %arg2: memref<1x290x12xbf16, #tpu.memory_space<vmem>>, %arg3: memref<4x12x128xbf16, #tpu.memory_space<vmem>>, %arg4: memref<1x128xf32, #tpu.memory_space<vmem>>, %arg5: memref<272x1xf32, #tpu.memory_space<vmem>>, %arg6: memref<1x272x128xbf16, #tpu.memory_space<vmem>>, %arg7: memref<272x128xf32, #tpu.memory_space<vmem>>) attributes {dimension_semantics = [#tpu.dimension_semantics<parallel>, #tpu.dimension_semantics<parallel>], iteration_bounds = array<i64: 2, 1>, scalar_prefetch = 0 : i64, scratch_operands = 1 : i64, tpu.core_type = #tpu.core_type<tc>, window_params = [{transform_indices = @transform_0, window_bounds = array<i64: 1, 290, 12>}, {transform_indices = @transform_1, window_bounds = array<i64: 4, 12, 128>}, {transform_indices = @transform_2, window_bounds = array<i64: 1, 128>}, {pipeline_mode = #tpu.pipeline_mode<synchronous>, transform_indices = @transform_3, window_bounds = array<i64: 272, 1>}, {transform_indices = @transform_4, window_bounds = array<i64: 1, 272, 128>}]} {
    %c0 = arith.constant 0 : index
    %c0_0 = arith.constant 0 : index
    %c0_1 = arith.constant 0 : index
    %0 = vector.load %arg2[%c0, %c0_0, %c0_1] : memref<1x290x12xbf16, #tpu.memory_space<vmem>>, vector<1x272x12xbf16>
    %1 = vector.shape_cast %0 : vector<1x272x12xbf16> to vector<272x12xbf16>
    %c0_2 = arith.constant 0 : index
    %c0_3 = arith.constant 0 : index
    %c0_4 = arith.constant 0 : index
    %2 = vector.load %arg3[%c0_2, %c0_3, %c0_4] : memref<4x12x128xbf16, #tpu.memory_space<vmem>>, vector<1x12x128xbf16>
    %3 = vector.shape_cast %2 : vector<1x12x128xbf16> to vector<12x128xbf16>
    %cst = arith.constant dense<0.000000e+00> : vector<272x128xf32>
    %4 = tpu.matmul %1, %3, %cst {dimension_numbers = #tpu.dot_dimension_numbers<[1], [0], [0], [1], [0, 0, 1, 1], [], []>} : vector<272x12xbf16>, vector<12x128xbf16>, vector<272x128xf32> -> vector<272x128xf32>
    %c0_5 = arith.constant 0 : index
    %c0_6 = arith.constant 0 : index
    %5 = vector.load %arg7[%c0_5, %c0_6] : memref<272x128xf32, #tpu.memory_space<vmem>>, vector<272x128xf32>
    tpu.vector_store %arg7[%c0_5, %c0_6], %4 {strides = array<i32>} : memref<272x128xf32, #tpu.memory_space<vmem>>, vector<272x128xf32>,
    %c0_7 = arith.constant 0 : index
    %c1 = arith.constant 1 : index
    %c0_8 = arith.constant 0 : index
    %6 = vector.load %arg2[%c0_7, %c1, %c0_8] : memref<1x290x12xbf16, #tpu.memory_space<vmem>>, vector<1x272x12xbf16>
    %7 = vector.shape_cast %6 : vector<1x272x12xbf16> to vector<272x12xbf16>
    %c1_9 = arith.constant 1 : index
    %c0_10 = arith.constant 0 : index
    %c0_11 = arith.constant 0 : index
    %8 = vector.load %arg3[%c1_9, %c0_10, %c0_11] : memref<4x12x128xbf16, #tpu.memory_space<vmem>>, vector<1x12x128xbf16>
    %9 = vector.shape_cast %8 : vector<1x12x128xbf16> to vector<12x128xbf16>
    %cst_12 = arith.constant dense<0.000000e+00> : vector<272x128xf32>
    %10 = tpu.matmul %7, %9, %cst_12 {dimension_numbers = #tpu.dot_dimension_numbers<[1], [0], [0], [1], [0, 0, 1, 1], [], []>} : vector<272x12xbf16>, vector<12x128xbf16>, vector<272x128xf32> -> vector<272x128xf32>
    %c0_13 = arith.constant 0 : index
    %c0_14 = arith.constant 0 : index
    %11 = vector.load %arg7[%c0_13, %c0_14] : memref<272x128xf32, #tpu.memory_space<vmem>>, vector<272x128xf32>
    %12 = arith.addf %11, %10 : vector<272x128xf32>
    %c0_15 = arith.constant 0 : index
    %c0_16 = arith.constant 0 : index
    %13 = vector.load %arg7[%c0_15, %c0_16] : memref<272x128xf32, #tpu.memory_space<vmem>>, vector<272x128xf32>
    tpu.vector_store %arg7[%c0_15, %c0_16], %12 {strides = array<i32>} : memref<272x128xf32, #tpu.memory_space<vmem>>, vector<272x128xf32>,
    %c0_17 = arith.constant 0 : index
    %c17 = arith.constant 17 : index
    %c0_18 = arith.constant 0 : index
    %14 = vector.load %arg2[%c0_17, %c17, %c0_18] : memref<1x290x12xbf16, #tpu.memory_space<vmem>>, vector<1x272x12xbf16>
    %15 = vector.shape_cast %14 : vector<1x272x12xbf16> to vector<272x12xbf16>
    %c2 = arith.constant 2 : index
    %c0_19 = arith.constant 0 : index
    %c0_20 = arith.constant 0 : index
    %16 = vector.load %arg3[%c2, %c0_19, %c0_20] : memref<4x12x128xbf16, #tpu.memory_space<vmem>>, vector<1x12x128xbf16>
    %17 = vector.shape_cast %16 : vector<1x12x128xbf16> to vector<12x128xbf16>
    %cst_21 = arith.constant dense<0.000000e+00> : vector<272x128xf32>
    %18 = tpu.matmul %15, %17, %cst_21 {dimension_numbers = #tpu.dot_dimension_numbers<[1], [0], [0], [1], [0, 0, 1, 1], [], []>} : vector<272x12xbf16>, vector<12x128xbf16>, vector<272x128xf32> -> vector<272x128xf32>
    %c0_22 = arith.constant 0 : index
    %c0_23 = arith.constant 0 : index
    %19 = vector.load %arg7[%c0_22, %c0_23] : memref<272x128xf32, #tpu.memory_space<vmem>>, vector<272x128xf32>
    %20 = arith.addf %19, %18 : vector<272x128xf32>
    %c0_24 = arith.constant 0 : index
    %c0_25 = arith.constant 0 : index
    %21 = vector.load %arg7[%c0_24, %c0_25] : memref<272x128xf32, #tpu.memory_space<vmem>>, vector<272x128xf32>
    tpu.vector_store %arg7[%c0_24, %c0_25], %20 {strides = array<i32>} : memref<272x128xf32, #tpu.memory_space<vmem>>, vector<272x128xf32>,
    %c0_26 = arith.constant 0 : index
    %c18 = arith.constant 18 : index
    %c0_27 = arith.constant 0 : index
    %22 = vector.load %arg2[%c0_26, %c18, %c0_27] : memref<1x290x12xbf16, #tpu.memory_space<vmem>>, vector<1x272x12xbf16>
    %23 = vector.shape_cast %22 : vector<1x272x12xbf16> to vector<272x12xbf16>
    %c3 = arith.constant 3 : index
    %c0_28 = arith.constant 0 : index
    %c0_29 = arith.constant 0 : index
    %24 = vector.load %arg3[%c3, %c0_28, %c0_29] : memref<4x12x128xbf16, #tpu.memory_space<vmem>>, vector<1x12x128xbf16>
    %25 = vector.shape_cast %24 : vector<1x12x128xbf16> to vector<12x128xbf16>
    %cst_30 = arith.constant dense<0.000000e+00> : vector<272x128xf32>
    %26 = tpu.matmul %23, %25, %cst_30 {dimension_numbers = #tpu.dot_dimension_numbers<[1], [0], [0], [1], [0, 0, 1, 1], [], []>} : vector<272x12xbf16>, vector<12x128xbf16>, vector<272x128xf32> -> vector<272x128xf32>
    %c0_31 = arith.constant 0 : index
    %c0_32 = arith.constant 0 : index
    %27 = vector.load %arg7[%c0_31, %c0_32] : memref<272x128xf32, #tpu.memory_space<vmem>>, vector<272x128xf32>
    %28 = arith.addf %27, %26 : vector<272x128xf32>
    %c0_33 = arith.constant 0 : index
    %c0_34 = arith.constant 0 : index
    %29 = vector.load %arg7[%c0_33, %c0_34] : memref<272x128xf32, #tpu.memory_space<vmem>>, vector<272x128xf32>
    tpu.vector_store %arg7[%c0_33, %c0_34], %28 {strides = array<i32>} : memref<272x128xf32, #tpu.memory_space<vmem>>, vector<272x128xf32>,
    %c0_35 = arith.constant 0 : index
    %c0_36 = arith.constant 0 : index
    %30 = vector.load %arg7[%c0_35, %c0_36] : memref<272x128xf32, #tpu.memory_space<vmem>>, vector<272x128xf32>
    %c0_37 = arith.constant 0 : index
    %c0_38 = arith.constant 0 : index
    %31 = vector.load %arg4[%c0_37, %c0_38] : memref<1x128xf32, #tpu.memory_space<vmem>>, vector<1x128xf32>
    %32 = vector.broadcast %31 : vector<1x128xf32> to vector<272x128xf32>
    %33 = arith.addf %30, %32 : vector<272x128xf32>
    %cst_39 = arith.constant 0.000000e+00 : f32
    %34 = vector.broadcast %cst_39 : f32 to vector<272x128xf32>
    %35 = arith.cmpf oge, %33, %34 : vector<272x128xf32>
    %cst_40 = arith.constant 2.000000e-01 : f32
    %36 = vector.broadcast %cst_40 : f32 to vector<272x128xf32>
    %37 = arith.mulf %36, %33 : vector<272x128xf32>
    %38 = arith.select %35, %33, %37 : vector<272x128xi1>, vector<272x128xf32>
    %39 = arith.truncf %38 : vector<272x128xf32> to vector<272x128xbf16>
    %c0_41 = arith.constant 0 : index
    %c0_42 = arith.constant 0 : index
    %c0_43 = arith.constant 0 : index
    %40 = vector.load %arg6[%c0_41, %c0_42, %c0_43] : memref<1x272x128xbf16, #tpu.memory_space<vmem>>, vector<1x272x128xbf16>
    %41 = vector.shape_cast %40 : vector<1x272x128xbf16> to vector<272x128xbf16>
    %42 = vector.shape_cast %39 : vector<272x128xbf16> to vector<1x272x128xbf16>
    tpu.vector_store %arg6[%c0_41, %c0_42, %c0_43], %42 {strides = array<i32>} : memref<1x272x128xbf16, #tpu.memory_space<vmem>>, vector<1x272x128xbf16>,
    return
  }
  func.func @transform_0(%arg0: i32, %arg1: i32) -> (i32, i32, i32) {
    %c0_i32 = arith.constant 0 : i32
    %c0_i32_0 = arith.constant 0 : i32
    %c0_i32_1 = arith.constant 0 : i32
    return %arg0, %c0_i32, %c0_i32_0 : i32, i32, i32
  }
  func.func @transform_1(%arg0: i32, %arg1: i32) -> (i32, i32, i32) {
    %c0_i32 = arith.constant 0 : i32
    %c0_i32_0 = arith.constant 0 : i32
    %c0_i32_1 = arith.constant 0 : i32
    return %c0_i32, %c0_i32_0, %arg1 : i32, i32, i32
  }
  func.func @transform_2(%arg0: i32, %arg1: i32) -> (i32, i32) {
    %c0_i32 = arith.constant 0 : i32
    %c0_i32_0 = arith.constant 0 : i32
    return %c0_i32, %arg1 : i32, i32
  }
  func.func @transform_3(%arg0: i32, %arg1: i32) -> (i32, i32) {
    %c0_i32 = arith.constant 0 : i32
    %c0_i32_0 = arith.constant 0 : i32
    %c0_i32_1 = arith.constant 0 : i32
    return %c0_i32, %c0_i32_0 : i32, i32
  }
  func.func @transform_4(%arg0: i32, %arg1: i32) -> (i32, i32, i32) {
    %c0_i32 = arith.constant 0 : i32
    %c0_i32_0 = arith.constant 0 : i32
    return %arg0, %c0_i32, %arg1 : i32, i32, i32
  }
}

module attributes {stable_mosaic.version = 11 : i64} {
  func.func @_conv_norm_lrelu_kernel(%arg0: i32, %arg1: i32, %arg2: memref<1x82x64xbf16, #tpu.memory_space<vmem>>, %arg3: memref<4x64x128xbf16, #tpu.memory_space<vmem>>, %arg4: memref<1x128xf32, #tpu.memory_space<vmem>>, %arg5: memref<72x1xf32, #tpu.memory_space<vmem>>, %arg6: memref<1x72x128xbf16, #tpu.memory_space<vmem>>, %arg7: memref<72x128xf32, #tpu.memory_space<vmem>>) attributes {dimension_semantics = [#tpu.dimension_semantics<parallel>, #tpu.dimension_semantics<parallel>], iteration_bounds = array<i64: 2, 1>, scalar_prefetch = 0 : i64, scratch_operands = 1 : i64, tpu.core_type = #tpu.core_type<tc>, window_params = [{transform_indices = @transform_0, window_bounds = array<i64: 1, 82, 64>}, {transform_indices = @transform_1, window_bounds = array<i64: 4, 64, 128>}, {transform_indices = @transform_2, window_bounds = array<i64: 1, 128>}, {pipeline_mode = #tpu.pipeline_mode<synchronous>, transform_indices = @transform_3, window_bounds = array<i64: 72, 1>}, {transform_indices = @transform_4, window_bounds = array<i64: 1, 72, 128>}]} {
    %c0 = arith.constant 0 : index
    %c0_0 = arith.constant 0 : index
    %c0_1 = arith.constant 0 : index
    %0 = vector.load %arg2[%c0, %c0_0, %c0_1] : memref<1x82x64xbf16, #tpu.memory_space<vmem>>, vector<1x72x64xbf16>
    %1 = vector.shape_cast %0 : vector<1x72x64xbf16> to vector<72x64xbf16>
    %c0_2 = arith.constant 0 : index
    %c0_3 = arith.constant 0 : index
    %c0_4 = arith.constant 0 : index
    %2 = vector.load %arg3[%c0_2, %c0_3, %c0_4] : memref<4x64x128xbf16, #tpu.memory_space<vmem>>, vector<1x64x128xbf16>
    %3 = vector.shape_cast %2 : vector<1x64x128xbf16> to vector<64x128xbf16>
    %cst = arith.constant dense<0.000000e+00> : vector<72x128xf32>
    %4 = tpu.matmul %1, %3, %cst {dimension_numbers = #tpu.dot_dimension_numbers<[1], [0], [0], [1], [0, 0, 1, 1], [], []>} : vector<72x64xbf16>, vector<64x128xbf16>, vector<72x128xf32> -> vector<72x128xf32>
    %c0_5 = arith.constant 0 : index
    %c0_6 = arith.constant 0 : index
    %5 = vector.load %arg7[%c0_5, %c0_6] : memref<72x128xf32, #tpu.memory_space<vmem>>, vector<72x128xf32>
    tpu.vector_store %arg7[%c0_5, %c0_6], %4 {strides = array<i32>} : memref<72x128xf32, #tpu.memory_space<vmem>>, vector<72x128xf32>,
    %c0_7 = arith.constant 0 : index
    %c1 = arith.constant 1 : index
    %c0_8 = arith.constant 0 : index
    %6 = vector.load %arg2[%c0_7, %c1, %c0_8] : memref<1x82x64xbf16, #tpu.memory_space<vmem>>, vector<1x72x64xbf16>
    %7 = vector.shape_cast %6 : vector<1x72x64xbf16> to vector<72x64xbf16>
    %c1_9 = arith.constant 1 : index
    %c0_10 = arith.constant 0 : index
    %c0_11 = arith.constant 0 : index
    %8 = vector.load %arg3[%c1_9, %c0_10, %c0_11] : memref<4x64x128xbf16, #tpu.memory_space<vmem>>, vector<1x64x128xbf16>
    %9 = vector.shape_cast %8 : vector<1x64x128xbf16> to vector<64x128xbf16>
    %cst_12 = arith.constant dense<0.000000e+00> : vector<72x128xf32>
    %10 = tpu.matmul %7, %9, %cst_12 {dimension_numbers = #tpu.dot_dimension_numbers<[1], [0], [0], [1], [0, 0, 1, 1], [], []>} : vector<72x64xbf16>, vector<64x128xbf16>, vector<72x128xf32> -> vector<72x128xf32>
    %c0_13 = arith.constant 0 : index
    %c0_14 = arith.constant 0 : index
    %11 = vector.load %arg7[%c0_13, %c0_14] : memref<72x128xf32, #tpu.memory_space<vmem>>, vector<72x128xf32>
    %12 = arith.addf %11, %10 : vector<72x128xf32>
    %c0_15 = arith.constant 0 : index
    %c0_16 = arith.constant 0 : index
    %13 = vector.load %arg7[%c0_15, %c0_16] : memref<72x128xf32, #tpu.memory_space<vmem>>, vector<72x128xf32>
    tpu.vector_store %arg7[%c0_15, %c0_16], %12 {strides = array<i32>} : memref<72x128xf32, #tpu.memory_space<vmem>>, vector<72x128xf32>,
    %c0_17 = arith.constant 0 : index
    %c9 = arith.constant 9 : index
    %c0_18 = arith.constant 0 : index
    %14 = vector.load %arg2[%c0_17, %c9, %c0_18] : memref<1x82x64xbf16, #tpu.memory_space<vmem>>, vector<1x72x64xbf16>
    %15 = vector.shape_cast %14 : vector<1x72x64xbf16> to vector<72x64xbf16>
    %c2 = arith.constant 2 : index
    %c0_19 = arith.constant 0 : index
    %c0_20 = arith.constant 0 : index
    %16 = vector.load %arg3[%c2, %c0_19, %c0_20] : memref<4x64x128xbf16, #tpu.memory_space<vmem>>, vector<1x64x128xbf16>
    %17 = vector.shape_cast %16 : vector<1x64x128xbf16> to vector<64x128xbf16>
    %cst_21 = arith.constant dense<0.000000e+00> : vector<72x128xf32>
    %18 = tpu.matmul %15, %17, %cst_21 {dimension_numbers = #tpu.dot_dimension_numbers<[1], [0], [0], [1], [0, 0, 1, 1], [], []>} : vector<72x64xbf16>, vector<64x128xbf16>, vector<72x128xf32> -> vector<72x128xf32>
    %c0_22 = arith.constant 0 : index
    %c0_23 = arith.constant 0 : index
    %19 = vector.load %arg7[%c0_22, %c0_23] : memref<72x128xf32, #tpu.memory_space<vmem>>, vector<72x128xf32>
    %20 = arith.addf %19, %18 : vector<72x128xf32>
    %c0_24 = arith.constant 0 : index
    %c0_25 = arith.constant 0 : index
    %21 = vector.load %arg7[%c0_24, %c0_25] : memref<72x128xf32, #tpu.memory_space<vmem>>, vector<72x128xf32>
    tpu.vector_store %arg7[%c0_24, %c0_25], %20 {strides = array<i32>} : memref<72x128xf32, #tpu.memory_space<vmem>>, vector<72x128xf32>,
    %c0_26 = arith.constant 0 : index
    %c10 = arith.constant 10 : index
    %c0_27 = arith.constant 0 : index
    %22 = vector.load %arg2[%c0_26, %c10, %c0_27] : memref<1x82x64xbf16, #tpu.memory_space<vmem>>, vector<1x72x64xbf16>
    %23 = vector.shape_cast %22 : vector<1x72x64xbf16> to vector<72x64xbf16>
    %c3 = arith.constant 3 : index
    %c0_28 = arith.constant 0 : index
    %c0_29 = arith.constant 0 : index
    %24 = vector.load %arg3[%c3, %c0_28, %c0_29] : memref<4x64x128xbf16, #tpu.memory_space<vmem>>, vector<1x64x128xbf16>
    %25 = vector.shape_cast %24 : vector<1x64x128xbf16> to vector<64x128xbf16>
    %cst_30 = arith.constant dense<0.000000e+00> : vector<72x128xf32>
    %26 = tpu.matmul %23, %25, %cst_30 {dimension_numbers = #tpu.dot_dimension_numbers<[1], [0], [0], [1], [0, 0, 1, 1], [], []>} : vector<72x64xbf16>, vector<64x128xbf16>, vector<72x128xf32> -> vector<72x128xf32>
    %c0_31 = arith.constant 0 : index
    %c0_32 = arith.constant 0 : index
    %27 = vector.load %arg7[%c0_31, %c0_32] : memref<72x128xf32, #tpu.memory_space<vmem>>, vector<72x128xf32>
    %28 = arith.addf %27, %26 : vector<72x128xf32>
    %c0_33 = arith.constant 0 : index
    %c0_34 = arith.constant 0 : index
    %29 = vector.load %arg7[%c0_33, %c0_34] : memref<72x128xf32, #tpu.memory_space<vmem>>, vector<72x128xf32>
    tpu.vector_store %arg7[%c0_33, %c0_34], %28 {strides = array<i32>} : memref<72x128xf32, #tpu.memory_space<vmem>>, vector<72x128xf32>,
    %c0_35 = arith.constant 0 : index
    %c0_36 = arith.constant 0 : index
    %30 = vector.load %arg7[%c0_35, %c0_36] : memref<72x128xf32, #tpu.memory_space<vmem>>, vector<72x128xf32>
    %c0_37 = arith.constant 0 : index
    %c0_38 = arith.constant 0 : index
    %31 = vector.load %arg4[%c0_37, %c0_38] : memref<1x128xf32, #tpu.memory_space<vmem>>, vector<1x128xf32>
    %32 = vector.broadcast %31 : vector<1x128xf32> to vector<72x128xf32>
    %33 = arith.addf %30, %32 : vector<72x128xf32>
    %c0_39 = arith.constant 0 : index
    %c0_40 = arith.constant 0 : index
    %34 = vector.load %arg5[%c0_39, %c0_40] : memref<72x1xf32, #tpu.memory_space<vmem>>, vector<72x1xf32>
    %35 = vector.broadcast %34 : vector<72x1xf32> to vector<72x128xf32>
    %36 = arith.mulf %33, %35 : vector<72x128xf32>
    %cst_41 = arith.constant dense<0.000000e+00> : vector<128xf32>
    %37 = vector.multi_reduction <add>, %36, %cst_41 [0] : vector<72x128xf32> to vector<128xf32>
    %38 = vector.shape_cast %37 : vector<128xf32> to vector<1x128xf32>
    %cst_42 = arith.constant 1.562500e-02 : f32
    %39 = vector.broadcast %cst_42 : f32 to vector<1x128xf32>
    %40 = arith.mulf %38, %39 : vector<1x128xf32>
    %41 = vector.broadcast %40 : vector<1x128xf32> to vector<72x128xf32>
    %42 = arith.subf %33, %41 : vector<72x128xf32>
    %43 = vector.broadcast %34 : vector<72x1xf32> to vector<72x128xf32>
    %44 = arith.mulf %42, %43 : vector<72x128xf32>
    %45 = arith.mulf %44, %44 : vector<72x128xf32>
    %cst_43 = arith.constant dense<0.000000e+00> : vector<128xf32>
    %46 = vector.multi_reduction <add>, %45, %cst_43 [0] : vector<72x128xf32> to vector<128xf32>
    %47 = vector.shape_cast %46 : vector<128xf32> to vector<1x128xf32>
    %cst_44 = arith.constant 1.562500e-02 : f32
    %48 = vector.broadcast %cst_44 : f32 to vector<1x128xf32>
    %49 = arith.mulf %47, %48 : vector<1x128xf32>
    %50 = vector.broadcast %40 : vector<1x128xf32> to vector<72x128xf32>
    %51 = arith.subf %33, %50 : vector<72x128xf32>
    %cst_45 = arith.constant 9.99999974E-6 : f32
    %52 = vector.broadcast %cst_45 : f32 to vector<1x128xf32>
    %53 = arith.addf %49, %52 : vector<1x128xf32>
    %54 = math.rsqrt %53 : vector<1x128xf32>
    %55 = vector.broadcast %54 : vector<1x128xf32> to vector<72x128xf32>
    %56 = arith.mulf %51, %55 : vector<72x128xf32>
    %cst_46 = arith.constant 0.000000e+00 : f32
    %57 = vector.broadcast %cst_46 : f32 to vector<72x128xf32>
    %58 = arith.cmpf oge, %56, %57 : vector<72x128xf32>
    %cst_47 = arith.constant 2.000000e-01 : f32
    %59 = vector.broadcast %cst_47 : f32 to vector<72x128xf32>
    %60 = arith.mulf %59, %56 : vector<72x128xf32>
    %61 = arith.select %58, %56, %60 : vector<72x128xi1>, vector<72x128xf32>
    %62 = arith.truncf %61 : vector<72x128xf32> to vector<72x128xbf16>
    %c0_48 = arith.constant 0 : index
    %c0_49 = arith.constant 0 : index
    %c0_50 = arith.constant 0 : index
    %63 = vector.load %arg6[%c0_48, %c0_49, %c0_50] : memref<1x72x128xbf16, #tpu.memory_space<vmem>>, vector<1x72x128xbf16>
    %64 = vector.shape_cast %63 : vector<1x72x128xbf16> to vector<72x128xbf16>
    %65 = vector.shape_cast %62 : vector<72x128xbf16> to vector<1x72x128xbf16>
    tpu.vector_store %arg6[%c0_48, %c0_49, %c0_50], %65 {strides = array<i32>} : memref<1x72x128xbf16, #tpu.memory_space<vmem>>, vector<1x72x128xbf16>,
    return
  }
  func.func @transform_0(%arg0: i32, %arg1: i32) -> (i32, i32, i32) {
    %c0_i32 = arith.constant 0 : i32
    %c0_i32_0 = arith.constant 0 : i32
    %c0_i32_1 = arith.constant 0 : i32
    return %arg0, %c0_i32, %c0_i32_0 : i32, i32, i32
  }
  func.func @transform_1(%arg0: i32, %arg1: i32) -> (i32, i32, i32) {
    %c0_i32 = arith.constant 0 : i32
    %c0_i32_0 = arith.constant 0 : i32
    %c0_i32_1 = arith.constant 0 : i32
    return %c0_i32, %c0_i32_0, %arg1 : i32, i32, i32
  }
  func.func @transform_2(%arg0: i32, %arg1: i32) -> (i32, i32) {
    %c0_i32 = arith.constant 0 : i32
    %c0_i32_0 = arith.constant 0 : i32
    return %c0_i32, %arg1 : i32, i32
  }
  func.func @transform_3(%arg0: i32, %arg1: i32) -> (i32, i32) {
    %c0_i32 = arith.constant 0 : i32
    %c0_i32_0 = arith.constant 0 : i32
    %c0_i32_1 = arith.constant 0 : i32
    return %c0_i32, %c0_i32_0 : i32, i32
  }
  func.func @transform_4(%arg0: i32, %arg1: i32) -> (i32, i32, i32) {
    %c0_i32 = arith.constant 0 : i32
    %c0_i32_0 = arith.constant 0 : i32
    return %arg0, %c0_i32, %arg1 : i32, i32, i32
  }
}

module attributes {stable_mosaic.version = 11 : i64} {
  func.func @_conv_norm_lrelu_kernel(%arg0: i32, %arg1: i32, %arg2: memref<1x26x128xbf16, #tpu.memory_space<vmem>>, %arg3: memref<4x128x128xbf16, #tpu.memory_space<vmem>>, %arg4: memref<1x128xf32, #tpu.memory_space<vmem>>, %arg5: memref<20x1xf32, #tpu.memory_space<vmem>>, %arg6: memref<1x20x128xbf16, #tpu.memory_space<vmem>>, %arg7: memref<20x128xf32, #tpu.memory_space<vmem>>) attributes {dimension_semantics = [#tpu.dimension_semantics<parallel>, #tpu.dimension_semantics<parallel>], iteration_bounds = array<i64: 2, 1>, scalar_prefetch = 0 : i64, scratch_operands = 1 : i64, tpu.core_type = #tpu.core_type<tc>, window_params = [{transform_indices = @transform_0, window_bounds = array<i64: 1, 26, 128>}, {transform_indices = @transform_1, window_bounds = array<i64: 4, 128, 128>}, {transform_indices = @transform_2, window_bounds = array<i64: 1, 128>}, {pipeline_mode = #tpu.pipeline_mode<synchronous>, transform_indices = @transform_3, window_bounds = array<i64: 20, 1>}, {transform_indices = @transform_4, window_bounds = array<i64: 1, 20, 128>}]} {
    %c0 = arith.constant 0 : index
    %c0_0 = arith.constant 0 : index
    %c0_1 = arith.constant 0 : index
    %0 = vector.load %arg2[%c0, %c0_0, %c0_1] : memref<1x26x128xbf16, #tpu.memory_space<vmem>>, vector<1x20x128xbf16>
    %1 = vector.shape_cast %0 : vector<1x20x128xbf16> to vector<20x128xbf16>
    %c0_2 = arith.constant 0 : index
    %c0_3 = arith.constant 0 : index
    %c0_4 = arith.constant 0 : index
    %2 = vector.load %arg3[%c0_2, %c0_3, %c0_4] : memref<4x128x128xbf16, #tpu.memory_space<vmem>>, vector<1x128x128xbf16>
    %3 = vector.shape_cast %2 : vector<1x128x128xbf16> to vector<128x128xbf16>
    %cst = arith.constant dense<0.000000e+00> : vector<20x128xf32>
    %4 = tpu.matmul %1, %3, %cst {dimension_numbers = #tpu.dot_dimension_numbers<[1], [0], [0], [1], [0, 0, 1, 1], [], []>} : vector<20x128xbf16>, vector<128x128xbf16>, vector<20x128xf32> -> vector<20x128xf32>
    %c0_5 = arith.constant 0 : index
    %c0_6 = arith.constant 0 : index
    %5 = vector.load %arg7[%c0_5, %c0_6] : memref<20x128xf32, #tpu.memory_space<vmem>>, vector<20x128xf32>
    tpu.vector_store %arg7[%c0_5, %c0_6], %4 {strides = array<i32>} : memref<20x128xf32, #tpu.memory_space<vmem>>, vector<20x128xf32>,
    %c0_7 = arith.constant 0 : index
    %c1 = arith.constant 1 : index
    %c0_8 = arith.constant 0 : index
    %6 = vector.load %arg2[%c0_7, %c1, %c0_8] : memref<1x26x128xbf16, #tpu.memory_space<vmem>>, vector<1x20x128xbf16>
    %7 = vector.shape_cast %6 : vector<1x20x128xbf16> to vector<20x128xbf16>
    %c1_9 = arith.constant 1 : index
    %c0_10 = arith.constant 0 : index
    %c0_11 = arith.constant 0 : index
    %8 = vector.load %arg3[%c1_9, %c0_10, %c0_11] : memref<4x128x128xbf16, #tpu.memory_space<vmem>>, vector<1x128x128xbf16>
    %9 = vector.shape_cast %8 : vector<1x128x128xbf16> to vector<128x128xbf16>
    %cst_12 = arith.constant dense<0.000000e+00> : vector<20x128xf32>
    %10 = tpu.matmul %7, %9, %cst_12 {dimension_numbers = #tpu.dot_dimension_numbers<[1], [0], [0], [1], [0, 0, 1, 1], [], []>} : vector<20x128xbf16>, vector<128x128xbf16>, vector<20x128xf32> -> vector<20x128xf32>
    %c0_13 = arith.constant 0 : index
    %c0_14 = arith.constant 0 : index
    %11 = vector.load %arg7[%c0_13, %c0_14] : memref<20x128xf32, #tpu.memory_space<vmem>>, vector<20x128xf32>
    %12 = arith.addf %11, %10 : vector<20x128xf32>
    %c0_15 = arith.constant 0 : index
    %c0_16 = arith.constant 0 : index
    %13 = vector.load %arg7[%c0_15, %c0_16] : memref<20x128xf32, #tpu.memory_space<vmem>>, vector<20x128xf32>
    tpu.vector_store %arg7[%c0_15, %c0_16], %12 {strides = array<i32>} : memref<20x128xf32, #tpu.memory_space<vmem>>, vector<20x128xf32>,
    %c0_17 = arith.constant 0 : index
    %c5 = arith.constant 5 : index
    %c0_18 = arith.constant 0 : index
    %14 = vector.load %arg2[%c0_17, %c5, %c0_18] : memref<1x26x128xbf16, #tpu.memory_space<vmem>>, vector<1x20x128xbf16>
    %15 = vector.shape_cast %14 : vector<1x20x128xbf16> to vector<20x128xbf16>
    %c2 = arith.constant 2 : index
    %c0_19 = arith.constant 0 : index
    %c0_20 = arith.constant 0 : index
    %16 = vector.load %arg3[%c2, %c0_19, %c0_20] : memref<4x128x128xbf16, #tpu.memory_space<vmem>>, vector<1x128x128xbf16>
    %17 = vector.shape_cast %16 : vector<1x128x128xbf16> to vector<128x128xbf16>
    %cst_21 = arith.constant dense<0.000000e+00> : vector<20x128xf32>
    %18 = tpu.matmul %15, %17, %cst_21 {dimension_numbers = #tpu.dot_dimension_numbers<[1], [0], [0], [1], [0, 0, 1, 1], [], []>} : vector<20x128xbf16>, vector<128x128xbf16>, vector<20x128xf32> -> vector<20x128xf32>
    %c0_22 = arith.constant 0 : index
    %c0_23 = arith.constant 0 : index
    %19 = vector.load %arg7[%c0_22, %c0_23] : memref<20x128xf32, #tpu.memory_space<vmem>>, vector<20x128xf32>
    %20 = arith.addf %19, %18 : vector<20x128xf32>
    %c0_24 = arith.constant 0 : index
    %c0_25 = arith.constant 0 : index
    %21 = vector.load %arg7[%c0_24, %c0_25] : memref<20x128xf32, #tpu.memory_space<vmem>>, vector<20x128xf32>
    tpu.vector_store %arg7[%c0_24, %c0_25], %20 {strides = array<i32>} : memref<20x128xf32, #tpu.memory_space<vmem>>, vector<20x128xf32>,
    %c0_26 = arith.constant 0 : index
    %c6 = arith.constant 6 : index
    %c0_27 = arith.constant 0 : index
    %22 = vector.load %arg2[%c0_26, %c6, %c0_27] : memref<1x26x128xbf16, #tpu.memory_space<vmem>>, vector<1x20x128xbf16>
    %23 = vector.shape_cast %22 : vector<1x20x128xbf16> to vector<20x128xbf16>
    %c3 = arith.constant 3 : index
    %c0_28 = arith.constant 0 : index
    %c0_29 = arith.constant 0 : index
    %24 = vector.load %arg3[%c3, %c0_28, %c0_29] : memref<4x128x128xbf16, #tpu.memory_space<vmem>>, vector<1x128x128xbf16>
    %25 = vector.shape_cast %24 : vector<1x128x128xbf16> to vector<128x128xbf16>
    %cst_30 = arith.constant dense<0.000000e+00> : vector<20x128xf32>
    %26 = tpu.matmul %23, %25, %cst_30 {dimension_numbers = #tpu.dot_dimension_numbers<[1], [0], [0], [1], [0, 0, 1, 1], [], []>} : vector<20x128xbf16>, vector<128x128xbf16>, vector<20x128xf32> -> vector<20x128xf32>
    %c0_31 = arith.constant 0 : index
    %c0_32 = arith.constant 0 : index
    %27 = vector.load %arg7[%c0_31, %c0_32] : memref<20x128xf32, #tpu.memory_space<vmem>>, vector<20x128xf32>
    %28 = arith.addf %27, %26 : vector<20x128xf32>
    %c0_33 = arith.constant 0 : index
    %c0_34 = arith.constant 0 : index
    %29 = vector.load %arg7[%c0_33, %c0_34] : memref<20x128xf32, #tpu.memory_space<vmem>>, vector<20x128xf32>
    tpu.vector_store %arg7[%c0_33, %c0_34], %28 {strides = array<i32>} : memref<20x128xf32, #tpu.memory_space<vmem>>, vector<20x128xf32>,
    %c0_35 = arith.constant 0 : index
    %c0_36 = arith.constant 0 : index
    %30 = vector.load %arg7[%c0_35, %c0_36] : memref<20x128xf32, #tpu.memory_space<vmem>>, vector<20x128xf32>
    %c0_37 = arith.constant 0 : index
    %c0_38 = arith.constant 0 : index
    %31 = vector.load %arg4[%c0_37, %c0_38] : memref<1x128xf32, #tpu.memory_space<vmem>>, vector<1x128xf32>
    %32 = vector.broadcast %31 : vector<1x128xf32> to vector<20x128xf32>
    %33 = arith.addf %30, %32 : vector<20x128xf32>
    %c0_39 = arith.constant 0 : index
    %c0_40 = arith.constant 0 : index
    %34 = vector.load %arg5[%c0_39, %c0_40] : memref<20x1xf32, #tpu.memory_space<vmem>>, vector<20x1xf32>
    %35 = vector.broadcast %34 : vector<20x1xf32> to vector<20x128xf32>
    %36 = arith.mulf %33, %35 : vector<20x128xf32>
    %cst_41 = arith.constant dense<0.000000e+00> : vector<128xf32>
    %37 = vector.multi_reduction <add>, %36, %cst_41 [0] : vector<20x128xf32> to vector<128xf32>
    %38 = vector.shape_cast %37 : vector<128xf32> to vector<1x128xf32>
    %cst_42 = arith.constant 6.250000e-02 : f32
    %39 = vector.broadcast %cst_42 : f32 to vector<1x128xf32>
    %40 = arith.mulf %38, %39 : vector<1x128xf32>
    %41 = vector.broadcast %40 : vector<1x128xf32> to vector<20x128xf32>
    %42 = arith.subf %33, %41 : vector<20x128xf32>
    %43 = vector.broadcast %34 : vector<20x1xf32> to vector<20x128xf32>
    %44 = arith.mulf %42, %43 : vector<20x128xf32>
    %45 = arith.mulf %44, %44 : vector<20x128xf32>
    %cst_43 = arith.constant dense<0.000000e+00> : vector<128xf32>
    %46 = vector.multi_reduction <add>, %45, %cst_43 [0] : vector<20x128xf32> to vector<128xf32>
    %47 = vector.shape_cast %46 : vector<128xf32> to vector<1x128xf32>
    %cst_44 = arith.constant 6.250000e-02 : f32
    %48 = vector.broadcast %cst_44 : f32 to vector<1x128xf32>
    %49 = arith.mulf %47, %48 : vector<1x128xf32>
    %50 = vector.broadcast %40 : vector<1x128xf32> to vector<20x128xf32>
    %51 = arith.subf %33, %50 : vector<20x128xf32>
    %cst_45 = arith.constant 9.99999974E-6 : f32
    %52 = vector.broadcast %cst_45 : f32 to vector<1x128xf32>
    %53 = arith.addf %49, %52 : vector<1x128xf32>
    %54 = math.rsqrt %53 : vector<1x128xf32>
    %55 = vector.broadcast %54 : vector<1x128xf32> to vector<20x128xf32>
    %56 = arith.mulf %51, %55 : vector<20x128xf32>
    %cst_46 = arith.constant 0.000000e+00 : f32
    %57 = vector.broadcast %cst_46 : f32 to vector<20x128xf32>
    %58 = arith.cmpf oge, %56, %57 : vector<20x128xf32>
    %cst_47 = arith.constant 2.000000e-01 : f32
    %59 = vector.broadcast %cst_47 : f32 to vector<20x128xf32>
    %60 = arith.mulf %59, %56 : vector<20x128xf32>
    %61 = arith.select %58, %56, %60 : vector<20x128xi1>, vector<20x128xf32>
    %62 = arith.truncf %61 : vector<20x128xf32> to vector<20x128xbf16>
    %c0_48 = arith.constant 0 : index
    %c0_49 = arith.constant 0 : index
    %c0_50 = arith.constant 0 : index
    %63 = vector.load %arg6[%c0_48, %c0_49, %c0_50] : memref<1x20x128xbf16, #tpu.memory_space<vmem>>, vector<1x20x128xbf16>
    %64 = vector.shape_cast %63 : vector<1x20x128xbf16> to vector<20x128xbf16>
    %65 = vector.shape_cast %62 : vector<20x128xbf16> to vector<1x20x128xbf16>
    tpu.vector_store %arg6[%c0_48, %c0_49, %c0_50], %65 {strides = array<i32>} : memref<1x20x128xbf16, #tpu.memory_space<vmem>>, vector<1x20x128xbf16>,
    return
  }
  func.func @transform_0(%arg0: i32, %arg1: i32) -> (i32, i32, i32) {
    %c0_i32 = arith.constant 0 : i32
    %c0_i32_0 = arith.constant 0 : i32
    %c0_i32_1 = arith.constant 0 : i32
    return %arg0, %c0_i32, %c0_i32_0 : i32, i32, i32
  }
  func.func @transform_1(%arg0: i32, %arg1: i32) -> (i32, i32, i32) {
    %c0_i32 = arith.constant 0 : i32
    %c0_i32_0 = arith.constant 0 : i32
    %c0_i32_1 = arith.constant 0 : i32
    return %c0_i32, %c0_i32_0, %arg1 : i32, i32, i32
  }
  func.func @transform_2(%arg0: i32, %arg1: i32) -> (i32, i32) {
    %c0_i32 = arith.constant 0 : i32
    %c0_i32_0 = arith.constant 0 : i32
    return %c0_i32, %arg1 : i32, i32
  }
  func.func @transform_3(%arg0: i32, %arg1: i32) -> (i32, i32) {
    %c0_i32 = arith.constant 0 : i32
    %c0_i32_0 = arith.constant 0 : i32
    %c0_i32_1 = arith.constant 0 : i32
    return %c0_i32, %c0_i32_0 : i32, i32
  }
  func.func @transform_4(%arg0: i32, %arg1: i32) -> (i32, i32, i32) {
    %c0_i32 = arith.constant 0 : i32
    %c0_i32_0 = arith.constant 0 : i32
    return %arg0, %c0_i32, %arg1 : i32, i32, i32
  }
}

module attributes {stable_mosaic.version = 11 : i64} {
  func.func @_conv_norm_lrelu_kernel(%arg0: i32, %arg1: i32, %arg2: memref<1x39x64xbf16, #tpu.memory_space<vmem>>, %arg3: memref<16x64x128xbf16, #tpu.memory_space<vmem>>, %arg4: memref<1x128xf32, #tpu.memory_space<vmem>>, %arg5: memref<18x1xf32, #tpu.memory_space<vmem>>, %arg6: memref<1x18x128xbf16, #tpu.memory_space<vmem>>, %arg7: memref<18x128xf32, #tpu.memory_space<vmem>>) attributes {dimension_semantics = [#tpu.dimension_semantics<parallel>, #tpu.dimension_semantics<parallel>], iteration_bounds = array<i64: 2, 1>, scalar_prefetch = 0 : i64, scratch_operands = 1 : i64, tpu.core_type = #tpu.core_type<tc>, window_params = [{transform_indices = @transform_0, window_bounds = array<i64: 1, 39, 64>}, {transform_indices = @transform_1, window_bounds = array<i64: 16, 64, 128>}, {transform_indices = @transform_2, window_bounds = array<i64: 1, 128>}, {pipeline_mode = #tpu.pipeline_mode<synchronous>, transform_indices = @transform_3, window_bounds = array<i64: 18, 1>}, {transform_indices = @transform_4, window_bounds = array<i64: 1, 18, 128>}]} {
    %c0 = arith.constant 0 : index
    %c0_0 = arith.constant 0 : index
    %c0_1 = arith.constant 0 : index
    %0 = vector.load %arg2[%c0, %c0_0, %c0_1] : memref<1x39x64xbf16, #tpu.memory_space<vmem>>, vector<1x18x64xbf16>
    %1 = vector.shape_cast %0 : vector<1x18x64xbf16> to vector<18x64xbf16>
    %c0_2 = arith.constant 0 : index
    %c0_3 = arith.constant 0 : index
    %c0_4 = arith.constant 0 : index
    %2 = vector.load %arg3[%c0_2, %c0_3, %c0_4] : memref<16x64x128xbf16, #tpu.memory_space<vmem>>, vector<1x64x128xbf16>
    %3 = vector.shape_cast %2 : vector<1x64x128xbf16> to vector<64x128xbf16>
    %cst = arith.constant dense<0.000000e+00> : vector<18x128xf32>
    %4 = tpu.matmul %1, %3, %cst {dimension_numbers = #tpu.dot_dimension_numbers<[1], [0], [0], [1], [0, 0, 1, 1], [], []>} : vector<18x64xbf16>, vector<64x128xbf16>, vector<18x128xf32> -> vector<18x128xf32>
    %c0_5 = arith.constant 0 : index
    %c0_6 = arith.constant 0 : index
    %5 = vector.load %arg7[%c0_5, %c0_6] : memref<18x128xf32, #tpu.memory_space<vmem>>, vector<18x128xf32>
    tpu.vector_store %arg7[%c0_5, %c0_6], %4 {strides = array<i32>} : memref<18x128xf32, #tpu.memory_space<vmem>>, vector<18x128xf32>,
    %c0_7 = arith.constant 0 : index
    %c1 = arith.constant 1 : index
    %c0_8 = arith.constant 0 : index
    %6 = vector.load %arg2[%c0_7, %c1, %c0_8] : memref<1x39x64xbf16, #tpu.memory_space<vmem>>, vector<1x18x64xbf16>
    %7 = vector.shape_cast %6 : vector<1x18x64xbf16> to vector<18x64xbf16>
    %c1_9 = arith.constant 1 : index
    %c0_10 = arith.constant 0 : index
    %c0_11 = arith.constant 0 : index
    %8 = vector.load %arg3[%c1_9, %c0_10, %c0_11] : memref<16x64x128xbf16, #tpu.memory_space<vmem>>, vector<1x64x128xbf16>
    %9 = vector.shape_cast %8 : vector<1x64x128xbf16> to vector<64x128xbf16>
    %cst_12 = arith.constant dense<0.000000e+00> : vector<18x128xf32>
    %10 = tpu.matmul %7, %9, %cst_12 {dimension_numbers = #tpu.dot_dimension_numbers<[1], [0], [0], [1], [0, 0, 1, 1], [], []>} : vector<18x64xbf16>, vector<64x128xbf16>, vector<18x128xf32> -> vector<18x128xf32>
    %c0_13 = arith.constant 0 : index
    %c0_14 = arith.constant 0 : index
    %11 = vector.load %arg7[%c0_13, %c0_14] : memref<18x128xf32, #tpu.memory_space<vmem>>, vector<18x128xf32>
    %12 = arith.addf %11, %10 : vector<18x128xf32>
    %c0_15 = arith.constant 0 : index
    %c0_16 = arith.constant 0 : index
    %13 = vector.load %arg7[%c0_15, %c0_16] : memref<18x128xf32, #tpu.memory_space<vmem>>, vector<18x128xf32>
    tpu.vector_store %arg7[%c0_15, %c0_16], %12 {strides = array<i32>} : memref<18x128xf32, #tpu.memory_space<vmem>>, vector<18x128xf32>,
    %c0_17 = arith.constant 0 : index
    %c2 = arith.constant 2 : index
    %c0_18 = arith.constant 0 : index
    %14 = vector.load %arg2[%c0_17, %c2, %c0_18] : memref<1x39x64xbf16, #tpu.memory_space<vmem>>, vector<1x18x64xbf16>
    %15 = vector.shape_cast %14 : vector<1x18x64xbf16> to vector<18x64xbf16>
    %c2_19 = arith.constant 2 : index
    %c0_20 = arith.constant 0 : index
    %c0_21 = arith.constant 0 : index
    %16 = vector.load %arg3[%c2_19, %c0_20, %c0_21] : memref<16x64x128xbf16, #tpu.memory_space<vmem>>, vector<1x64x128xbf16>
    %17 = vector.shape_cast %16 : vector<1x64x128xbf16> to vector<64x128xbf16>
    %cst_22 = arith.constant dense<0.000000e+00> : vector<18x128xf32>
    %18 = tpu.matmul %15, %17, %cst_22 {dimension_numbers = #tpu.dot_dimension_numbers<[1], [0], [0], [1], [0, 0, 1, 1], [], []>} : vector<18x64xbf16>, vector<64x128xbf16>, vector<18x128xf32> -> vector<18x128xf32>
    %c0_23 = arith.constant 0 : index
    %c0_24 = arith.constant 0 : index
    %19 = vector.load %arg7[%c0_23, %c0_24] : memref<18x128xf32, #tpu.memory_space<vmem>>, vector<18x128xf32>
    %20 = arith.addf %19, %18 : vector<18x128xf32>
    %c0_25 = arith.constant 0 : index
    %c0_26 = arith.constant 0 : index
    %21 = vector.load %arg7[%c0_25, %c0_26] : memref<18x128xf32, #tpu.memory_space<vmem>>, vector<18x128xf32>
    tpu.vector_store %arg7[%c0_25, %c0_26], %20 {strides = array<i32>} : memref<18x128xf32, #tpu.memory_space<vmem>>, vector<18x128xf32>,
    %c0_27 = arith.constant 0 : index
    %c3 = arith.constant 3 : index
    %c0_28 = arith.constant 0 : index
    %22 = vector.load %arg2[%c0_27, %c3, %c0_28] : memref<1x39x64xbf16, #tpu.memory_space<vmem>>, vector<1x18x64xbf16>
    %23 = vector.shape_cast %22 : vector<1x18x64xbf16> to vector<18x64xbf16>
    %c3_29 = arith.constant 3 : index
    %c0_30 = arith.constant 0 : index
    %c0_31 = arith.constant 0 : index
    %24 = vector.load %arg3[%c3_29, %c0_30, %c0_31] : memref<16x64x128xbf16, #tpu.memory_space<vmem>>, vector<1x64x128xbf16>
    %25 = vector.shape_cast %24 : vector<1x64x128xbf16> to vector<64x128xbf16>
    %cst_32 = arith.constant dense<0.000000e+00> : vector<18x128xf32>
    %26 = tpu.matmul %23, %25, %cst_32 {dimension_numbers = #tpu.dot_dimension_numbers<[1], [0], [0], [1], [0, 0, 1, 1], [], []>} : vector<18x64xbf16>, vector<64x128xbf16>, vector<18x128xf32> -> vector<18x128xf32>
    %c0_33 = arith.constant 0 : index
    %c0_34 = arith.constant 0 : index
    %27 = vector.load %arg7[%c0_33, %c0_34] : memref<18x128xf32, #tpu.memory_space<vmem>>, vector<18x128xf32>
    %28 = arith.addf %27, %26 : vector<18x128xf32>
    %c0_35 = arith.constant 0 : index
    %c0_36 = arith.constant 0 : index
    %29 = vector.load %arg7[%c0_35, %c0_36] : memref<18x128xf32, #tpu.memory_space<vmem>>, vector<18x128xf32>
    tpu.vector_store %arg7[%c0_35, %c0_36], %28 {strides = array<i32>} : memref<18x128xf32, #tpu.memory_space<vmem>>, vector<18x128xf32>,
    %c0_37 = arith.constant 0 : index
    %c6 = arith.constant 6 : index
    %c0_38 = arith.constant 0 : index
    %30 = vector.load %arg2[%c0_37, %c6, %c0_38] : memref<1x39x64xbf16, #tpu.memory_space<vmem>>, vector<1x18x64xbf16>
    %31 = vector.shape_cast %30 : vector<1x18x64xbf16> to vector<18x64xbf16>
    %c4 = arith.constant 4 : index
    %c0_39 = arith.constant 0 : index
    %c0_40 = arith.constant 0 : index
    %32 = vector.load %arg3[%c4, %c0_39, %c0_40] : memref<16x64x128xbf16, #tpu.memory_space<vmem>>, vector<1x64x128xbf16>
    %33 = vector.shape_cast %32 : vector<1x64x128xbf16> to vector<64x128xbf16>
    %cst_41 = arith.constant dense<0.000000e+00> : vector<18x128xf32>
    %34 = tpu.matmul %31, %33, %cst_41 {dimension_numbers = #tpu.dot_dimension_numbers<[1], [0], [0], [1], [0, 0, 1, 1], [], []>} : vector<18x64xbf16>, vector<64x128xbf16>, vector<18x128xf32> -> vector<18x128xf32>
    %c0_42 = arith.constant 0 : index
    %c0_43 = arith.constant 0 : index
    %35 = vector.load %arg7[%c0_42, %c0_43] : memref<18x128xf32, #tpu.memory_space<vmem>>, vector<18x128xf32>
    %36 = arith.addf %35, %34 : vector<18x128xf32>
    %c0_44 = arith.constant 0 : index
    %c0_45 = arith.constant 0 : index
    %37 = vector.load %arg7[%c0_44, %c0_45] : memref<18x128xf32, #tpu.memory_space<vmem>>, vector<18x128xf32>
    tpu.vector_store %arg7[%c0_44, %c0_45], %36 {strides = array<i32>} : memref<18x128xf32, #tpu.memory_space<vmem>>, vector<18x128xf32>,
    %c0_46 = arith.constant 0 : index
    %c7 = arith.constant 7 : index
    %c0_47 = arith.constant 0 : index
    %38 = vector.load %arg2[%c0_46, %c7, %c0_47] : memref<1x39x64xbf16, #tpu.memory_space<vmem>>, vector<1x18x64xbf16>
    %39 = vector.shape_cast %38 : vector<1x18x64xbf16> to vector<18x64xbf16>
    %c5 = arith.constant 5 : index
    %c0_48 = arith.constant 0 : index
    %c0_49 = arith.constant 0 : index
    %40 = vector.load %arg3[%c5, %c0_48, %c0_49] : memref<16x64x128xbf16, #tpu.memory_space<vmem>>, vector<1x64x128xbf16>
    %41 = vector.shape_cast %40 : vector<1x64x128xbf16> to vector<64x128xbf16>
    %cst_50 = arith.constant dense<0.000000e+00> : vector<18x128xf32>
    %42 = tpu.matmul %39, %41, %cst_50 {dimension_numbers = #tpu.dot_dimension_numbers<[1], [0], [0], [1], [0, 0, 1, 1], [], []>} : vector<18x64xbf16>, vector<64x128xbf16>, vector<18x128xf32> -> vector<18x128xf32>
    %c0_51 = arith.constant 0 : index
    %c0_52 = arith.constant 0 : index
    %43 = vector.load %arg7[%c0_51, %c0_52] : memref<18x128xf32, #tpu.memory_space<vmem>>, vector<18x128xf32>
    %44 = arith.addf %43, %42 : vector<18x128xf32>
    %c0_53 = arith.constant 0 : index
    %c0_54 = arith.constant 0 : index
    %45 = vector.load %arg7[%c0_53, %c0_54] : memref<18x128xf32, #tpu.memory_space<vmem>>, vector<18x128xf32>
    tpu.vector_store %arg7[%c0_53, %c0_54], %44 {strides = array<i32>} : memref<18x128xf32, #tpu.memory_space<vmem>>, vector<18x128xf32>,
    %c0_55 = arith.constant 0 : index
    %c8 = arith.constant 8 : index
    %c0_56 = arith.constant 0 : index
    %46 = vector.load %arg2[%c0_55, %c8, %c0_56] : memref<1x39x64xbf16, #tpu.memory_space<vmem>>, vector<1x18x64xbf16>
    %47 = vector.shape_cast %46 : vector<1x18x64xbf16> to vector<18x64xbf16>
    %c6_57 = arith.constant 6 : index
    %c0_58 = arith.constant 0 : index
    %c0_59 = arith.constant 0 : index
    %48 = vector.load %arg3[%c6_57, %c0_58, %c0_59] : memref<16x64x128xbf16, #tpu.memory_space<vmem>>, vector<1x64x128xbf16>
    %49 = vector.shape_cast %48 : vector<1x64x128xbf16> to vector<64x128xbf16>
    %cst_60 = arith.constant dense<0.000000e+00> : vector<18x128xf32>
    %50 = tpu.matmul %47, %49, %cst_60 {dimension_numbers = #tpu.dot_dimension_numbers<[1], [0], [0], [1], [0, 0, 1, 1], [], []>} : vector<18x64xbf16>, vector<64x128xbf16>, vector<18x128xf32> -> vector<18x128xf32>
    %c0_61 = arith.constant 0 : index
    %c0_62 = arith.constant 0 : index
    %51 = vector.load %arg7[%c0_61, %c0_62] : memref<18x128xf32, #tpu.memory_space<vmem>>, vector<18x128xf32>
    %52 = arith.addf %51, %50 : vector<18x128xf32>
    %c0_63 = arith.constant 0 : index
    %c0_64 = arith.constant 0 : index
    %53 = vector.load %arg7[%c0_63, %c0_64] : memref<18x128xf32, #tpu.memory_space<vmem>>, vector<18x128xf32>
    tpu.vector_store %arg7[%c0_63, %c0_64], %52 {strides = array<i32>} : memref<18x128xf32, #tpu.memory_space<vmem>>, vector<18x128xf32>,
    %c0_65 = arith.constant 0 : index
    %c9 = arith.constant 9 : index
    %c0_66 = arith.constant 0 : index
    %54 = vector.load %arg2[%c0_65, %c9, %c0_66] : memref<1x39x64xbf16, #tpu.memory_space<vmem>>, vector<1x18x64xbf16>
    %55 = vector.shape_cast %54 : vector<1x18x64xbf16> to vector<18x64xbf16>
    %c7_67 = arith.constant 7 : index
    %c0_68 = arith.constant 0 : index
    %c0_69 = arith.constant 0 : index
    %56 = vector.load %arg3[%c7_67, %c0_68, %c0_69] : memref<16x64x128xbf16, #tpu.memory_space<vmem>>, vector<1x64x128xbf16>
    %57 = vector.shape_cast %56 : vector<1x64x128xbf16> to vector<64x128xbf16>
    %cst_70 = arith.constant dense<0.000000e+00> : vector<18x128xf32>
    %58 = tpu.matmul %55, %57, %cst_70 {dimension_numbers = #tpu.dot_dimension_numbers<[1], [0], [0], [1], [0, 0, 1, 1], [], []>} : vector<18x64xbf16>, vector<64x128xbf16>, vector<18x128xf32> -> vector<18x128xf32>
    %c0_71 = arith.constant 0 : index
    %c0_72 = arith.constant 0 : index
    %59 = vector.load %arg7[%c0_71, %c0_72] : memref<18x128xf32, #tpu.memory_space<vmem>>, vector<18x128xf32>
    %60 = arith.addf %59, %58 : vector<18x128xf32>
    %c0_73 = arith.constant 0 : index
    %c0_74 = arith.constant 0 : index
    %61 = vector.load %arg7[%c0_73, %c0_74] : memref<18x128xf32, #tpu.memory_space<vmem>>, vector<18x128xf32>
    tpu.vector_store %arg7[%c0_73, %c0_74], %60 {strides = array<i32>} : memref<18x128xf32, #tpu.memory_space<vmem>>, vector<18x128xf32>,
    %c0_75 = arith.constant 0 : index
    %c12 = arith.constant 12 : index
    %c0_76 = arith.constant 0 : index
    %62 = vector.load %arg2[%c0_75, %c12, %c0_76] : memref<1x39x64xbf16, #tpu.memory_space<vmem>>, vector<1x18x64xbf16>
    %63 = vector.shape_cast %62 : vector<1x18x64xbf16> to vector<18x64xbf16>
    %c8_77 = arith.constant 8 : index
    %c0_78 = arith.constant 0 : index
    %c0_79 = arith.constant 0 : index
    %64 = vector.load %arg3[%c8_77, %c0_78, %c0_79] : memref<16x64x128xbf16, #tpu.memory_space<vmem>>, vector<1x64x128xbf16>
    %65 = vector.shape_cast %64 : vector<1x64x128xbf16> to vector<64x128xbf16>
    %cst_80 = arith.constant dense<0.000000e+00> : vector<18x128xf32>
    %66 = tpu.matmul %63, %65, %cst_80 {dimension_numbers = #tpu.dot_dimension_numbers<[1], [0], [0], [1], [0, 0, 1, 1], [], []>} : vector<18x64xbf16>, vector<64x128xbf16>, vector<18x128xf32> -> vector<18x128xf32>
    %c0_81 = arith.constant 0 : index
    %c0_82 = arith.constant 0 : index
    %67 = vector.load %arg7[%c0_81, %c0_82] : memref<18x128xf32, #tpu.memory_space<vmem>>, vector<18x128xf32>
    %68 = arith.addf %67, %66 : vector<18x128xf32>
    %c0_83 = arith.constant 0 : index
    %c0_84 = arith.constant 0 : index
    %69 = vector.load %arg7[%c0_83, %c0_84] : memref<18x128xf32, #tpu.memory_space<vmem>>, vector<18x128xf32>
    tpu.vector_store %arg7[%c0_83, %c0_84], %68 {strides = array<i32>} : memref<18x128xf32, #tpu.memory_space<vmem>>, vector<18x128xf32>,
    %c0_85 = arith.constant 0 : index
    %c13 = arith.constant 13 : index
    %c0_86 = arith.constant 0 : index
    %70 = vector.load %arg2[%c0_85, %c13, %c0_86] : memref<1x39x64xbf16, #tpu.memory_space<vmem>>, vector<1x18x64xbf16>
    %71 = vector.shape_cast %70 : vector<1x18x64xbf16> to vector<18x64xbf16>
    %c9_87 = arith.constant 9 : index
    %c0_88 = arith.constant 0 : index
    %c0_89 = arith.constant 0 : index
    %72 = vector.load %arg3[%c9_87, %c0_88, %c0_89] : memref<16x64x128xbf16, #tpu.memory_space<vmem>>, vector<1x64x128xbf16>
    %73 = vector.shape_cast %72 : vector<1x64x128xbf16> to vector<64x128xbf16>
    %cst_90 = arith.constant dense<0.000000e+00> : vector<18x128xf32>
    %74 = tpu.matmul %71, %73, %cst_90 {dimension_numbers = #tpu.dot_dimension_numbers<[1], [0], [0], [1], [0, 0, 1, 1], [], []>} : vector<18x64xbf16>, vector<64x128xbf16>, vector<18x128xf32> -> vector<18x128xf32>
    %c0_91 = arith.constant 0 : index
    %c0_92 = arith.constant 0 : index
    %75 = vector.load %arg7[%c0_91, %c0_92] : memref<18x128xf32, #tpu.memory_space<vmem>>, vector<18x128xf32>
    %76 = arith.addf %75, %74 : vector<18x128xf32>
    %c0_93 = arith.constant 0 : index
    %c0_94 = arith.constant 0 : index
    %77 = vector.load %arg7[%c0_93, %c0_94] : memref<18x128xf32, #tpu.memory_space<vmem>>, vector<18x128xf32>
    tpu.vector_store %arg7[%c0_93, %c0_94], %76 {strides = array<i32>} : memref<18x128xf32, #tpu.memory_space<vmem>>, vector<18x128xf32>,
    %c0_95 = arith.constant 0 : index
    %c14 = arith.constant 14 : index
    %c0_96 = arith.constant 0 : index
    %78 = vector.load %arg2[%c0_95, %c14, %c0_96] : memref<1x39x64xbf16, #tpu.memory_space<vmem>>, vector<1x18x64xbf16>
    %79 = vector.shape_cast %78 : vector<1x18x64xbf16> to vector<18x64xbf16>
    %c10 = arith.constant 10 : index
    %c0_97 = arith.constant 0 : index
    %c0_98 = arith.constant 0 : index
    %80 = vector.load %arg3[%c10, %c0_97, %c0_98] : memref<16x64x128xbf16, #tpu.memory_space<vmem>>, vector<1x64x128xbf16>
    %81 = vector.shape_cast %80 : vector<1x64x128xbf16> to vector<64x128xbf16>
    %cst_99 = arith.constant dense<0.000000e+00> : vector<18x128xf32>
    %82 = tpu.matmul %79, %81, %cst_99 {dimension_numbers = #tpu.dot_dimension_numbers<[1], [0], [0], [1], [0, 0, 1, 1], [], []>} : vector<18x64xbf16>, vector<64x128xbf16>, vector<18x128xf32> -> vector<18x128xf32>
    %c0_100 = arith.constant 0 : index
    %c0_101 = arith.constant 0 : index
    %83 = vector.load %arg7[%c0_100, %c0_101] : memref<18x128xf32, #tpu.memory_space<vmem>>, vector<18x128xf32>
    %84 = arith.addf %83, %82 : vector<18x128xf32>
    %c0_102 = arith.constant 0 : index
    %c0_103 = arith.constant 0 : index
    %85 = vector.load %arg7[%c0_102, %c0_103] : memref<18x128xf32, #tpu.memory_space<vmem>>, vector<18x128xf32>
    tpu.vector_store %arg7[%c0_102, %c0_103], %84 {strides = array<i32>} : memref<18x128xf32, #tpu.memory_space<vmem>>, vector<18x128xf32>,
    %c0_104 = arith.constant 0 : index
    %c15 = arith.constant 15 : index
    %c0_105 = arith.constant 0 : index
    %86 = vector.load %arg2[%c0_104, %c15, %c0_105] : memref<1x39x64xbf16, #tpu.memory_space<vmem>>, vector<1x18x64xbf16>
    %87 = vector.shape_cast %86 : vector<1x18x64xbf16> to vector<18x64xbf16>
    %c11 = arith.constant 11 : index
    %c0_106 = arith.constant 0 : index
    %c0_107 = arith.constant 0 : index
    %88 = vector.load %arg3[%c11, %c0_106, %c0_107] : memref<16x64x128xbf16, #tpu.memory_space<vmem>>, vector<1x64x128xbf16>
    %89 = vector.shape_cast %88 : vector<1x64x128xbf16> to vector<64x128xbf16>
    %cst_108 = arith.constant dense<0.000000e+00> : vector<18x128xf32>
    %90 = tpu.matmul %87, %89, %cst_108 {dimension_numbers = #tpu.dot_dimension_numbers<[1], [0], [0], [1], [0, 0, 1, 1], [], []>} : vector<18x64xbf16>, vector<64x128xbf16>, vector<18x128xf32> -> vector<18x128xf32>
    %c0_109 = arith.constant 0 : index
    %c0_110 = arith.constant 0 : index
    %91 = vector.load %arg7[%c0_109, %c0_110] : memref<18x128xf32, #tpu.memory_space<vmem>>, vector<18x128xf32>
    %92 = arith.addf %91, %90 : vector<18x128xf32>
    %c0_111 = arith.constant 0 : index
    %c0_112 = arith.constant 0 : index
    %93 = vector.load %arg7[%c0_111, %c0_112] : memref<18x128xf32, #tpu.memory_space<vmem>>, vector<18x128xf32>
    tpu.vector_store %arg7[%c0_111, %c0_112], %92 {strides = array<i32>} : memref<18x128xf32, #tpu.memory_space<vmem>>, vector<18x128xf32>,
    %c0_113 = arith.constant 0 : index
    %c18 = arith.constant 18 : index
    %c0_114 = arith.constant 0 : index
    %94 = vector.load %arg2[%c0_113, %c18, %c0_114] : memref<1x39x64xbf16, #tpu.memory_space<vmem>>, vector<1x18x64xbf16>
    %95 = vector.shape_cast %94 : vector<1x18x64xbf16> to vector<18x64xbf16>
    %c12_115 = arith.constant 12 : index
    %c0_116 = arith.constant 0 : index
    %c0_117 = arith.constant 0 : index
    %96 = vector.load %arg3[%c12_115, %c0_116, %c0_117] : memref<16x64x128xbf16, #tpu.memory_space<vmem>>, vector<1x64x128xbf16>
    %97 = vector.shape_cast %96 : vector<1x64x128xbf16> to vector<64x128xbf16>
    %cst_118 = arith.constant dense<0.000000e+00> : vector<18x128xf32>
    %98 = tpu.matmul %95, %97, %cst_118 {dimension_numbers = #tpu.dot_dimension_numbers<[1], [0], [0], [1], [0, 0, 1, 1], [], []>} : vector<18x64xbf16>, vector<64x128xbf16>, vector<18x128xf32> -> vector<18x128xf32>
    %c0_119 = arith.constant 0 : index
    %c0_120 = arith.constant 0 : index
    %99 = vector.load %arg7[%c0_119, %c0_120] : memref<18x128xf32, #tpu.memory_space<vmem>>, vector<18x128xf32>
    %100 = arith.addf %99, %98 : vector<18x128xf32>
    %c0_121 = arith.constant 0 : index
    %c0_122 = arith.constant 0 : index
    %101 = vector.load %arg7[%c0_121, %c0_122] : memref<18x128xf32, #tpu.memory_space<vmem>>, vector<18x128xf32>
    tpu.vector_store %arg7[%c0_121, %c0_122], %100 {strides = array<i32>} : memref<18x128xf32, #tpu.memory_space<vmem>>, vector<18x128xf32>,
    %c0_123 = arith.constant 0 : index
    %c19 = arith.constant 19 : index
    %c0_124 = arith.constant 0 : index
    %102 = vector.load %arg2[%c0_123, %c19, %c0_124] : memref<1x39x64xbf16, #tpu.memory_space<vmem>>, vector<1x18x64xbf16>
    %103 = vector.shape_cast %102 : vector<1x18x64xbf16> to vector<18x64xbf16>
    %c13_125 = arith.constant 13 : index
    %c0_126 = arith.constant 0 : index
    %c0_127 = arith.constant 0 : index
    %104 = vector.load %arg3[%c13_125, %c0_126, %c0_127] : memref<16x64x128xbf16, #tpu.memory_space<vmem>>, vector<1x64x128xbf16>
    %105 = vector.shape_cast %104 : vector<1x64x128xbf16> to vector<64x128xbf16>
    %cst_128 = arith.constant dense<0.000000e+00> : vector<18x128xf32>
    %106 = tpu.matmul %103, %105, %cst_128 {dimension_numbers = #tpu.dot_dimension_numbers<[1], [0], [0], [1], [0, 0, 1, 1], [], []>} : vector<18x64xbf16>, vector<64x128xbf16>, vector<18x128xf32> -> vector<18x128xf32>
    %c0_129 = arith.constant 0 : index
    %c0_130 = arith.constant 0 : index
    %107 = vector.load %arg7[%c0_129, %c0_130] : memref<18x128xf32, #tpu.memory_space<vmem>>, vector<18x128xf32>
    %108 = arith.addf %107, %106 : vector<18x128xf32>
    %c0_131 = arith.constant 0 : index
    %c0_132 = arith.constant 0 : index
    %109 = vector.load %arg7[%c0_131, %c0_132] : memref<18x128xf32, #tpu.memory_space<vmem>>, vector<18x128xf32>
    tpu.vector_store %arg7[%c0_131, %c0_132], %108 {strides = array<i32>} : memref<18x128xf32, #tpu.memory_space<vmem>>, vector<18x128xf32>,
    %c0_133 = arith.constant 0 : index
    %c20 = arith.constant 20 : index
    %c0_134 = arith.constant 0 : index
    %110 = vector.load %arg2[%c0_133, %c20, %c0_134] : memref<1x39x64xbf16, #tpu.memory_space<vmem>>, vector<1x18x64xbf16>
    %111 = vector.shape_cast %110 : vector<1x18x64xbf16> to vector<18x64xbf16>
    %c14_135 = arith.constant 14 : index
    %c0_136 = arith.constant 0 : index
    %c0_137 = arith.constant 0 : index
    %112 = vector.load %arg3[%c14_135, %c0_136, %c0_137] : memref<16x64x128xbf16, #tpu.memory_space<vmem>>, vector<1x64x128xbf16>
    %113 = vector.shape_cast %112 : vector<1x64x128xbf16> to vector<64x128xbf16>
    %cst_138 = arith.constant dense<0.000000e+00> : vector<18x128xf32>
    %114 = tpu.matmul %111, %113, %cst_138 {dimension_numbers = #tpu.dot_dimension_numbers<[1], [0], [0], [1], [0, 0, 1, 1], [], []>} : vector<18x64xbf16>, vector<64x128xbf16>, vector<18x128xf32> -> vector<18x128xf32>
    %c0_139 = arith.constant 0 : index
    %c0_140 = arith.constant 0 : index
    %115 = vector.load %arg7[%c0_139, %c0_140] : memref<18x128xf32, #tpu.memory_space<vmem>>, vector<18x128xf32>
    %116 = arith.addf %115, %114 : vector<18x128xf32>
    %c0_141 = arith.constant 0 : index
    %c0_142 = arith.constant 0 : index
    %117 = vector.load %arg7[%c0_141, %c0_142] : memref<18x128xf32, #tpu.memory_space<vmem>>, vector<18x128xf32>
    tpu.vector_store %arg7[%c0_141, %c0_142], %116 {strides = array<i32>} : memref<18x128xf32, #tpu.memory_space<vmem>>, vector<18x128xf32>,
    %c0_143 = arith.constant 0 : index
    %c21 = arith.constant 21 : index
    %c0_144 = arith.constant 0 : index
    %118 = vector.load %arg2[%c0_143, %c21, %c0_144] : memref<1x39x64xbf16, #tpu.memory_space<vmem>>, vector<1x18x64xbf16>
    %119 = vector.shape_cast %118 : vector<1x18x64xbf16> to vector<18x64xbf16>
    %c15_145 = arith.constant 15 : index
    %c0_146 = arith.constant 0 : index
    %c0_147 = arith.constant 0 : index
    %120 = vector.load %arg3[%c15_145, %c0_146, %c0_147] : memref<16x64x128xbf16, #tpu.memory_space<vmem>>, vector<1x64x128xbf16>
    %121 = vector.shape_cast %120 : vector<1x64x128xbf16> to vector<64x128xbf16>
    %cst_148 = arith.constant dense<0.000000e+00> : vector<18x128xf32>
    %122 = tpu.matmul %119, %121, %cst_148 {dimension_numbers = #tpu.dot_dimension_numbers<[1], [0], [0], [1], [0, 0, 1, 1], [], []>} : vector<18x64xbf16>, vector<64x128xbf16>, vector<18x128xf32> -> vector<18x128xf32>
    %c0_149 = arith.constant 0 : index
    %c0_150 = arith.constant 0 : index
    %123 = vector.load %arg7[%c0_149, %c0_150] : memref<18x128xf32, #tpu.memory_space<vmem>>, vector<18x128xf32>
    %124 = arith.addf %123, %122 : vector<18x128xf32>
    %c0_151 = arith.constant 0 : index
    %c0_152 = arith.constant 0 : index
    %125 = vector.load %arg7[%c0_151, %c0_152] : memref<18x128xf32, #tpu.memory_space<vmem>>, vector<18x128xf32>
    tpu.vector_store %arg7[%c0_151, %c0_152], %124 {strides = array<i32>} : memref<18x128xf32, #tpu.memory_space<vmem>>, vector<18x128xf32>,
    %c0_153 = arith.constant 0 : index
    %c0_154 = arith.constant 0 : index
    %126 = vector.load %arg7[%c0_153, %c0_154] : memref<18x128xf32, #tpu.memory_space<vmem>>, vector<18x128xf32>
    %c0_155 = arith.constant 0 : index
    %c0_156 = arith.constant 0 : index
    %127 = vector.load %arg4[%c0_155, %c0_156] : memref<1x128xf32, #tpu.memory_space<vmem>>, vector<1x128xf32>
    %128 = vector.broadcast %127 : vector<1x128xf32> to vector<18x128xf32>
    %129 = arith.addf %126, %128 : vector<18x128xf32>
    %c0_157 = arith.constant 0 : index
    %c0_158 = arith.constant 0 : index
    %130 = vector.load %arg5[%c0_157, %c0_158] : memref<18x1xf32, #tpu.memory_space<vmem>>, vector<18x1xf32>
    %131 = vector.broadcast %130 : vector<18x1xf32> to vector<18x128xf32>
    %132 = arith.mulf %129, %131 : vector<18x128xf32>
    %cst_159 = arith.constant dense<0.000000e+00> : vector<128xf32>
    %133 = vector.multi_reduction <add>, %132, %cst_159 [0] : vector<18x128xf32> to vector<128xf32>
    %134 = vector.shape_cast %133 : vector<128xf32> to vector<1x128xf32>
    %cst_160 = arith.constant 0.111111112 : f32
    %135 = vector.broadcast %cst_160 : f32 to vector<1x128xf32>
    %136 = arith.mulf %134, %135 : vector<1x128xf32>
    %137 = vector.broadcast %136 : vector<1x128xf32> to vector<18x128xf32>
    %138 = arith.subf %129, %137 : vector<18x128xf32>
    %139 = vector.broadcast %130 : vector<18x1xf32> to vector<18x128xf32>
    %140 = arith.mulf %138, %139 : vector<18x128xf32>
    %141 = arith.mulf %140, %140 : vector<18x128xf32>
    %cst_161 = arith.constant dense<0.000000e+00> : vector<128xf32>
    %142 = vector.multi_reduction <add>, %141, %cst_161 [0] : vector<18x128xf32> to vector<128xf32>
    %143 = vector.shape_cast %142 : vector<128xf32> to vector<1x128xf32>
    %cst_162 = arith.constant 0.111111112 : f32
    %144 = vector.broadcast %cst_162 : f32 to vector<1x128xf32>
    %145 = arith.mulf %143, %144 : vector<1x128xf32>
    %146 = vector.broadcast %136 : vector<1x128xf32> to vector<18x128xf32>
    %147 = arith.subf %129, %146 : vector<18x128xf32>
    %cst_163 = arith.constant 9.99999974E-6 : f32
    %148 = vector.broadcast %cst_163 : f32 to vector<1x128xf32>
    %149 = arith.addf %145, %148 : vector<1x128xf32>
    %150 = math.rsqrt %149 : vector<1x128xf32>
    %151 = vector.broadcast %150 : vector<1x128xf32> to vector<18x128xf32>
    %152 = arith.mulf %147, %151 : vector<18x128xf32>
    %cst_164 = arith.constant 0.000000e+00 : f32
    %153 = vector.broadcast %cst_164 : f32 to vector<18x128xf32>
    %154 = arith.cmpf oge, %152, %153 : vector<18x128xf32>
    %cst_165 = arith.constant 2.000000e-01 : f32
    %155 = vector.broadcast %cst_165 : f32 to vector<18x128xf32>
    %156 = arith.mulf %155, %152 : vector<18x128xf32>
    %157 = arith.select %154, %152, %156 : vector<18x128xi1>, vector<18x128xf32>
    %158 = arith.truncf %157 : vector<18x128xf32> to vector<18x128xbf16>
    %c0_166 = arith.constant 0 : index
    %c0_167 = arith.constant 0 : index
    %c0_168 = arith.constant 0 : index
    %159 = vector.load %arg6[%c0_166, %c0_167, %c0_168] : memref<1x18x128xbf16, #tpu.memory_space<vmem>>, vector<1x18x128xbf16>
    %160 = vector.shape_cast %159 : vector<1x18x128xbf16> to vector<18x128xbf16>
    %161 = vector.shape_cast %158 : vector<18x128xbf16> to vector<1x18x128xbf16>
    tpu.vector_store %arg6[%c0_166, %c0_167, %c0_168], %161 {strides = array<i32>} : memref<1x18x128xbf16, #tpu.memory_space<vmem>>, vector<1x18x128xbf16>,
    return
  }
  func.func @transform_0(%arg0: i32, %arg1: i32) -> (i32, i32, i32) {
    %c0_i32 = arith.constant 0 : i32
    %c0_i32_0 = arith.constant 0 : i32
    %c0_i32_1 = arith.constant 0 : i32
    return %arg0, %c0_i32, %c0_i32_0 : i32, i32, i32
  }
  func.func @transform_1(%arg0: i32, %arg1: i32) -> (i32, i32, i32) {
    %c0_i32 = arith.constant 0 : i32
    %c0_i32_0 = arith.constant 0 : i32
    %c0_i32_1 = arith.constant 0 : i32
    return %c0_i32, %c0_i32_0, %arg1 : i32, i32, i32
  }
  func.func @transform_2(%arg0: i32, %arg1: i32) -> (i32, i32) {
    %c0_i32 = arith.constant 0 : i32
    %c0_i32_0 = arith.constant 0 : i32
    return %c0_i32, %arg1 : i32, i32
  }
  func.func @transform_3(%arg0: i32, %arg1: i32) -> (i32, i32) {
    %c0_i32 = arith.constant 0 : i32
    %c0_i32_0 = arith.constant 0 : i32
    %c0_i32_1 = arith.constant 0 : i32
    return %c0_i32, %c0_i32_0 : i32, i32
  }
  func.func @transform_4(%arg0: i32, %arg1: i32) -> (i32, i32, i32) {
    %c0_i32 = arith.constant 0 : i32
    %c0_i32_0 = arith.constant 0 : i32
    return %arg0, %c0_i32, %arg1 : i32, i32, i32
  }
}

module attributes {stable_mosaic.version = 11 : i64} {
  func.func @_conv_norm_lrelu_kernel(%arg0: i32, %arg1: i32, %arg2: memref<1x28x128xbf16, #tpu.memory_space<vmem>>, %arg3: memref<16x128x128xbf16, #tpu.memory_space<vmem>>, %arg4: memref<1x128xf32, #tpu.memory_space<vmem>>, %arg5: memref<10x1xf32, #tpu.memory_space<vmem>>, %arg6: memref<1x10x128xf32, #tpu.memory_space<vmem>>, %arg7: memref<10x128xf32, #tpu.memory_space<vmem>>) attributes {dimension_semantics = [#tpu.dimension_semantics<parallel>, #tpu.dimension_semantics<parallel>], iteration_bounds = array<i64: 2, 1>, scalar_prefetch = 0 : i64, scratch_operands = 1 : i64, tpu.core_type = #tpu.core_type<tc>, window_params = [{transform_indices = @transform_0, window_bounds = array<i64: 1, 28, 128>}, {transform_indices = @transform_1, window_bounds = array<i64: 16, 128, 128>}, {transform_indices = @transform_2, window_bounds = array<i64: 1, 128>}, {pipeline_mode = #tpu.pipeline_mode<synchronous>, transform_indices = @transform_3, window_bounds = array<i64: 10, 1>}, {transform_indices = @transform_4, window_bounds = array<i64: 1, 10, 128>}]} {
    %c0 = arith.constant 0 : index
    %c0_0 = arith.constant 0 : index
    %c0_1 = arith.constant 0 : index
    %0 = vector.load %arg2[%c0, %c0_0, %c0_1] : memref<1x28x128xbf16, #tpu.memory_space<vmem>>, vector<1x10x128xbf16>
    %1 = vector.shape_cast %0 : vector<1x10x128xbf16> to vector<10x128xbf16>
    %c0_2 = arith.constant 0 : index
    %c0_3 = arith.constant 0 : index
    %c0_4 = arith.constant 0 : index
    %2 = vector.load %arg3[%c0_2, %c0_3, %c0_4] : memref<16x128x128xbf16, #tpu.memory_space<vmem>>, vector<1x128x128xbf16>
    %3 = vector.shape_cast %2 : vector<1x128x128xbf16> to vector<128x128xbf16>
    %cst = arith.constant dense<0.000000e+00> : vector<10x128xf32>
    %4 = tpu.matmul %1, %3, %cst {dimension_numbers = #tpu.dot_dimension_numbers<[1], [0], [0], [1], [0, 0, 1, 1], [], []>} : vector<10x128xbf16>, vector<128x128xbf16>, vector<10x128xf32> -> vector<10x128xf32>
    %c0_5 = arith.constant 0 : index
    %c0_6 = arith.constant 0 : index
    %5 = vector.load %arg7[%c0_5, %c0_6] : memref<10x128xf32, #tpu.memory_space<vmem>>, vector<10x128xf32>
    tpu.vector_store %arg7[%c0_5, %c0_6], %4 {strides = array<i32>} : memref<10x128xf32, #tpu.memory_space<vmem>>, vector<10x128xf32>,
    %c0_7 = arith.constant 0 : index
    %c1 = arith.constant 1 : index
    %c0_8 = arith.constant 0 : index
    %6 = vector.load %arg2[%c0_7, %c1, %c0_8] : memref<1x28x128xbf16, #tpu.memory_space<vmem>>, vector<1x10x128xbf16>
    %7 = vector.shape_cast %6 : vector<1x10x128xbf16> to vector<10x128xbf16>
    %c1_9 = arith.constant 1 : index
    %c0_10 = arith.constant 0 : index
    %c0_11 = arith.constant 0 : index
    %8 = vector.load %arg3[%c1_9, %c0_10, %c0_11] : memref<16x128x128xbf16, #tpu.memory_space<vmem>>, vector<1x128x128xbf16>
    %9 = vector.shape_cast %8 : vector<1x128x128xbf16> to vector<128x128xbf16>
    %cst_12 = arith.constant dense<0.000000e+00> : vector<10x128xf32>
    %10 = tpu.matmul %7, %9, %cst_12 {dimension_numbers = #tpu.dot_dimension_numbers<[1], [0], [0], [1], [0, 0, 1, 1], [], []>} : vector<10x128xbf16>, vector<128x128xbf16>, vector<10x128xf32> -> vector<10x128xf32>
    %c0_13 = arith.constant 0 : index
    %c0_14 = arith.constant 0 : index
    %11 = vector.load %arg7[%c0_13, %c0_14] : memref<10x128xf32, #tpu.memory_space<vmem>>, vector<10x128xf32>
    %12 = arith.addf %11, %10 : vector<10x128xf32>
    %c0_15 = arith.constant 0 : index
    %c0_16 = arith.constant 0 : index
    %13 = vector.load %arg7[%c0_15, %c0_16] : memref<10x128xf32, #tpu.memory_space<vmem>>, vector<10x128xf32>
    tpu.vector_store %arg7[%c0_15, %c0_16], %12 {strides = array<i32>} : memref<10x128xf32, #tpu.memory_space<vmem>>, vector<10x128xf32>,
    %c0_17 = arith.constant 0 : index
    %c2 = arith.constant 2 : index
    %c0_18 = arith.constant 0 : index
    %14 = vector.load %arg2[%c0_17, %c2, %c0_18] : memref<1x28x128xbf16, #tpu.memory_space<vmem>>, vector<1x10x128xbf16>
    %15 = vector.shape_cast %14 : vector<1x10x128xbf16> to vector<10x128xbf16>
    %c2_19 = arith.constant 2 : index
    %c0_20 = arith.constant 0 : index
    %c0_21 = arith.constant 0 : index
    %16 = vector.load %arg3[%c2_19, %c0_20, %c0_21] : memref<16x128x128xbf16, #tpu.memory_space<vmem>>, vector<1x128x128xbf16>
    %17 = vector.shape_cast %16 : vector<1x128x128xbf16> to vector<128x128xbf16>
    %cst_22 = arith.constant dense<0.000000e+00> : vector<10x128xf32>
    %18 = tpu.matmul %15, %17, %cst_22 {dimension_numbers = #tpu.dot_dimension_numbers<[1], [0], [0], [1], [0, 0, 1, 1], [], []>} : vector<10x128xbf16>, vector<128x128xbf16>, vector<10x128xf32> -> vector<10x128xf32>
    %c0_23 = arith.constant 0 : index
    %c0_24 = arith.constant 0 : index
    %19 = vector.load %arg7[%c0_23, %c0_24] : memref<10x128xf32, #tpu.memory_space<vmem>>, vector<10x128xf32>
    %20 = arith.addf %19, %18 : vector<10x128xf32>
    %c0_25 = arith.constant 0 : index
    %c0_26 = arith.constant 0 : index
    %21 = vector.load %arg7[%c0_25, %c0_26] : memref<10x128xf32, #tpu.memory_space<vmem>>, vector<10x128xf32>
    tpu.vector_store %arg7[%c0_25, %c0_26], %20 {strides = array<i32>} : memref<10x128xf32, #tpu.memory_space<vmem>>, vector<10x128xf32>,
    %c0_27 = arith.constant 0 : index
    %c3 = arith.constant 3 : index
    %c0_28 = arith.constant 0 : index
    %22 = vector.load %arg2[%c0_27, %c3, %c0_28] : memref<1x28x128xbf16, #tpu.memory_space<vmem>>, vector<1x10x128xbf16>
    %23 = vector.shape_cast %22 : vector<1x10x128xbf16> to vector<10x128xbf16>
    %c3_29 = arith.constant 3 : index
    %c0_30 = arith.constant 0 : index
    %c0_31 = arith.constant 0 : index
    %24 = vector.load %arg3[%c3_29, %c0_30, %c0_31] : memref<16x128x128xbf16, #tpu.memory_space<vmem>>, vector<1x128x128xbf16>
    %25 = vector.shape_cast %24 : vector<1x128x128xbf16> to vector<128x128xbf16>
    %cst_32 = arith.constant dense<0.000000e+00> : vector<10x128xf32>
    %26 = tpu.matmul %23, %25, %cst_32 {dimension_numbers = #tpu.dot_dimension_numbers<[1], [0], [0], [1], [0, 0, 1, 1], [], []>} : vector<10x128xbf16>, vector<128x128xbf16>, vector<10x128xf32> -> vector<10x128xf32>
    %c0_33 = arith.constant 0 : index
    %c0_34 = arith.constant 0 : index
    %27 = vector.load %arg7[%c0_33, %c0_34] : memref<10x128xf32, #tpu.memory_space<vmem>>, vector<10x128xf32>
    %28 = arith.addf %27, %26 : vector<10x128xf32>
    %c0_35 = arith.constant 0 : index
    %c0_36 = arith.constant 0 : index
    %29 = vector.load %arg7[%c0_35, %c0_36] : memref<10x128xf32, #tpu.memory_space<vmem>>, vector<10x128xf32>
    tpu.vector_store %arg7[%c0_35, %c0_36], %28 {strides = array<i32>} : memref<10x128xf32, #tpu.memory_space<vmem>>, vector<10x128xf32>,
    %c0_37 = arith.constant 0 : index
    %c5 = arith.constant 5 : index
    %c0_38 = arith.constant 0 : index
    %30 = vector.load %arg2[%c0_37, %c5, %c0_38] : memref<1x28x128xbf16, #tpu.memory_space<vmem>>, vector<1x10x128xbf16>
    %31 = vector.shape_cast %30 : vector<1x10x128xbf16> to vector<10x128xbf16>
    %c4 = arith.constant 4 : index
    %c0_39 = arith.constant 0 : index
    %c0_40 = arith.constant 0 : index
    %32 = vector.load %arg3[%c4, %c0_39, %c0_40] : memref<16x128x128xbf16, #tpu.memory_space<vmem>>, vector<1x128x128xbf16>
    %33 = vector.shape_cast %32 : vector<1x128x128xbf16> to vector<128x128xbf16>
    %cst_41 = arith.constant dense<0.000000e+00> : vector<10x128xf32>
    %34 = tpu.matmul %31, %33, %cst_41 {dimension_numbers = #tpu.dot_dimension_numbers<[1], [0], [0], [1], [0, 0, 1, 1], [], []>} : vector<10x128xbf16>, vector<128x128xbf16>, vector<10x128xf32> -> vector<10x128xf32>
    %c0_42 = arith.constant 0 : index
    %c0_43 = arith.constant 0 : index
    %35 = vector.load %arg7[%c0_42, %c0_43] : memref<10x128xf32, #tpu.memory_space<vmem>>, vector<10x128xf32>
    %36 = arith.addf %35, %34 : vector<10x128xf32>
    %c0_44 = arith.constant 0 : index
    %c0_45 = arith.constant 0 : index
    %37 = vector.load %arg7[%c0_44, %c0_45] : memref<10x128xf32, #tpu.memory_space<vmem>>, vector<10x128xf32>
    tpu.vector_store %arg7[%c0_44, %c0_45], %36 {strides = array<i32>} : memref<10x128xf32, #tpu.memory_space<vmem>>, vector<10x128xf32>,
    %c0_46 = arith.constant 0 : index
    %c6 = arith.constant 6 : index
    %c0_47 = arith.constant 0 : index
    %38 = vector.load %arg2[%c0_46, %c6, %c0_47] : memref<1x28x128xbf16, #tpu.memory_space<vmem>>, vector<1x10x128xbf16>
    %39 = vector.shape_cast %38 : vector<1x10x128xbf16> to vector<10x128xbf16>
    %c5_48 = arith.constant 5 : index
    %c0_49 = arith.constant 0 : index
    %c0_50 = arith.constant 0 : index
    %40 = vector.load %arg3[%c5_48, %c0_49, %c0_50] : memref<16x128x128xbf16, #tpu.memory_space<vmem>>, vector<1x128x128xbf16>
    %41 = vector.shape_cast %40 : vector<1x128x128xbf16> to vector<128x128xbf16>
    %cst_51 = arith.constant dense<0.000000e+00> : vector<10x128xf32>
    %42 = tpu.matmul %39, %41, %cst_51 {dimension_numbers = #tpu.dot_dimension_numbers<[1], [0], [0], [1], [0, 0, 1, 1], [], []>} : vector<10x128xbf16>, vector<128x128xbf16>, vector<10x128xf32> -> vector<10x128xf32>
    %c0_52 = arith.constant 0 : index
    %c0_53 = arith.constant 0 : index
    %43 = vector.load %arg7[%c0_52, %c0_53] : memref<10x128xf32, #tpu.memory_space<vmem>>, vector<10x128xf32>
    %44 = arith.addf %43, %42 : vector<10x128xf32>
    %c0_54 = arith.constant 0 : index
    %c0_55 = arith.constant 0 : index
    %45 = vector.load %arg7[%c0_54, %c0_55] : memref<10x128xf32, #tpu.memory_space<vmem>>, vector<10x128xf32>
    tpu.vector_store %arg7[%c0_54, %c0_55], %44 {strides = array<i32>} : memref<10x128xf32, #tpu.memory_space<vmem>>, vector<10x128xf32>,
    %c0_56 = arith.constant 0 : index
    %c7 = arith.constant 7 : index
    %c0_57 = arith.constant 0 : index
    %46 = vector.load %arg2[%c0_56, %c7, %c0_57] : memref<1x28x128xbf16, #tpu.memory_space<vmem>>, vector<1x10x128xbf16>
    %47 = vector.shape_cast %46 : vector<1x10x128xbf16> to vector<10x128xbf16>
    %c6_58 = arith.constant 6 : index
    %c0_59 = arith.constant 0 : index
    %c0_60 = arith.constant 0 : index
    %48 = vector.load %arg3[%c6_58, %c0_59, %c0_60] : memref<16x128x128xbf16, #tpu.memory_space<vmem>>, vector<1x128x128xbf16>
    %49 = vector.shape_cast %48 : vector<1x128x128xbf16> to vector<128x128xbf16>
    %cst_61 = arith.constant dense<0.000000e+00> : vector<10x128xf32>
    %50 = tpu.matmul %47, %49, %cst_61 {dimension_numbers = #tpu.dot_dimension_numbers<[1], [0], [0], [1], [0, 0, 1, 1], [], []>} : vector<10x128xbf16>, vector<128x128xbf16>, vector<10x128xf32> -> vector<10x128xf32>
    %c0_62 = arith.constant 0 : index
    %c0_63 = arith.constant 0 : index
    %51 = vector.load %arg7[%c0_62, %c0_63] : memref<10x128xf32, #tpu.memory_space<vmem>>, vector<10x128xf32>
    %52 = arith.addf %51, %50 : vector<10x128xf32>
    %c0_64 = arith.constant 0 : index
    %c0_65 = arith.constant 0 : index
    %53 = vector.load %arg7[%c0_64, %c0_65] : memref<10x128xf32, #tpu.memory_space<vmem>>, vector<10x128xf32>
    tpu.vector_store %arg7[%c0_64, %c0_65], %52 {strides = array<i32>} : memref<10x128xf32, #tpu.memory_space<vmem>>, vector<10x128xf32>,
    %c0_66 = arith.constant 0 : index
    %c8 = arith.constant 8 : index
    %c0_67 = arith.constant 0 : index
    %54 = vector.load %arg2[%c0_66, %c8, %c0_67] : memref<1x28x128xbf16, #tpu.memory_space<vmem>>, vector<1x10x128xbf16>
    %55 = vector.shape_cast %54 : vector<1x10x128xbf16> to vector<10x128xbf16>
    %c7_68 = arith.constant 7 : index
    %c0_69 = arith.constant 0 : index
    %c0_70 = arith.constant 0 : index
    %56 = vector.load %arg3[%c7_68, %c0_69, %c0_70] : memref<16x128x128xbf16, #tpu.memory_space<vmem>>, vector<1x128x128xbf16>
    %57 = vector.shape_cast %56 : vector<1x128x128xbf16> to vector<128x128xbf16>
    %cst_71 = arith.constant dense<0.000000e+00> : vector<10x128xf32>
    %58 = tpu.matmul %55, %57, %cst_71 {dimension_numbers = #tpu.dot_dimension_numbers<[1], [0], [0], [1], [0, 0, 1, 1], [], []>} : vector<10x128xbf16>, vector<128x128xbf16>, vector<10x128xf32> -> vector<10x128xf32>
    %c0_72 = arith.constant 0 : index
    %c0_73 = arith.constant 0 : index
    %59 = vector.load %arg7[%c0_72, %c0_73] : memref<10x128xf32, #tpu.memory_space<vmem>>, vector<10x128xf32>
    %60 = arith.addf %59, %58 : vector<10x128xf32>
    %c0_74 = arith.constant 0 : index
    %c0_75 = arith.constant 0 : index
    %61 = vector.load %arg7[%c0_74, %c0_75] : memref<10x128xf32, #tpu.memory_space<vmem>>, vector<10x128xf32>
    tpu.vector_store %arg7[%c0_74, %c0_75], %60 {strides = array<i32>} : memref<10x128xf32, #tpu.memory_space<vmem>>, vector<10x128xf32>,
    %c0_76 = arith.constant 0 : index
    %c10 = arith.constant 10 : index
    %c0_77 = arith.constant 0 : index
    %62 = vector.load %arg2[%c0_76, %c10, %c0_77] : memref<1x28x128xbf16, #tpu.memory_space<vmem>>, vector<1x10x128xbf16>
    %63 = vector.shape_cast %62 : vector<1x10x128xbf16> to vector<10x128xbf16>
    %c8_78 = arith.constant 8 : index
    %c0_79 = arith.constant 0 : index
    %c0_80 = arith.constant 0 : index
    %64 = vector.load %arg3[%c8_78, %c0_79, %c0_80] : memref<16x128x128xbf16, #tpu.memory_space<vmem>>, vector<1x128x128xbf16>
    %65 = vector.shape_cast %64 : vector<1x128x128xbf16> to vector<128x128xbf16>
    %cst_81 = arith.constant dense<0.000000e+00> : vector<10x128xf32>
    %66 = tpu.matmul %63, %65, %cst_81 {dimension_numbers = #tpu.dot_dimension_numbers<[1], [0], [0], [1], [0, 0, 1, 1], [], []>} : vector<10x128xbf16>, vector<128x128xbf16>, vector<10x128xf32> -> vector<10x128xf32>
    %c0_82 = arith.constant 0 : index
    %c0_83 = arith.constant 0 : index
    %67 = vector.load %arg7[%c0_82, %c0_83] : memref<10x128xf32, #tpu.memory_space<vmem>>, vector<10x128xf32>
    %68 = arith.addf %67, %66 : vector<10x128xf32>
    %c0_84 = arith.constant 0 : index
    %c0_85 = arith.constant 0 : index
    %69 = vector.load %arg7[%c0_84, %c0_85] : memref<10x128xf32, #tpu.memory_space<vmem>>, vector<10x128xf32>
    tpu.vector_store %arg7[%c0_84, %c0_85], %68 {strides = array<i32>} : memref<10x128xf32, #tpu.memory_space<vmem>>, vector<10x128xf32>,
    %c0_86 = arith.constant 0 : index
    %c11 = arith.constant 11 : index
    %c0_87 = arith.constant 0 : index
    %70 = vector.load %arg2[%c0_86, %c11, %c0_87] : memref<1x28x128xbf16, #tpu.memory_space<vmem>>, vector<1x10x128xbf16>
    %71 = vector.shape_cast %70 : vector<1x10x128xbf16> to vector<10x128xbf16>
    %c9 = arith.constant 9 : index
    %c0_88 = arith.constant 0 : index
    %c0_89 = arith.constant 0 : index
    %72 = vector.load %arg3[%c9, %c0_88, %c0_89] : memref<16x128x128xbf16, #tpu.memory_space<vmem>>, vector<1x128x128xbf16>
    %73 = vector.shape_cast %72 : vector<1x128x128xbf16> to vector<128x128xbf16>
    %cst_90 = arith.constant dense<0.000000e+00> : vector<10x128xf32>
    %74 = tpu.matmul %71, %73, %cst_90 {dimension_numbers = #tpu.dot_dimension_numbers<[1], [0], [0], [1], [0, 0, 1, 1], [], []>} : vector<10x128xbf16>, vector<128x128xbf16>, vector<10x128xf32> -> vector<10x128xf32>
    %c0_91 = arith.constant 0 : index
    %c0_92 = arith.constant 0 : index
    %75 = vector.load %arg7[%c0_91, %c0_92] : memref<10x128xf32, #tpu.memory_space<vmem>>, vector<10x128xf32>
    %76 = arith.addf %75, %74 : vector<10x128xf32>
    %c0_93 = arith.constant 0 : index
    %c0_94 = arith.constant 0 : index
    %77 = vector.load %arg7[%c0_93, %c0_94] : memref<10x128xf32, #tpu.memory_space<vmem>>, vector<10x128xf32>
    tpu.vector_store %arg7[%c0_93, %c0_94], %76 {strides = array<i32>} : memref<10x128xf32, #tpu.memory_space<vmem>>, vector<10x128xf32>,
    %c0_95 = arith.constant 0 : index
    %c12 = arith.constant 12 : index
    %c0_96 = arith.constant 0 : index
    %78 = vector.load %arg2[%c0_95, %c12, %c0_96] : memref<1x28x128xbf16, #tpu.memory_space<vmem>>, vector<1x10x128xbf16>
    %79 = vector.shape_cast %78 : vector<1x10x128xbf16> to vector<10x128xbf16>
    %c10_97 = arith.constant 10 : index
    %c0_98 = arith.constant 0 : index
    %c0_99 = arith.constant 0 : index
    %80 = vector.load %arg3[%c10_97, %c0_98, %c0_99] : memref<16x128x128xbf16, #tpu.memory_space<vmem>>, vector<1x128x128xbf16>
    %81 = vector.shape_cast %80 : vector<1x128x128xbf16> to vector<128x128xbf16>
    %cst_100 = arith.constant dense<0.000000e+00> : vector<10x128xf32>
    %82 = tpu.matmul %79, %81, %cst_100 {dimension_numbers = #tpu.dot_dimension_numbers<[1], [0], [0], [1], [0, 0, 1, 1], [], []>} : vector<10x128xbf16>, vector<128x128xbf16>, vector<10x128xf32> -> vector<10x128xf32>
    %c0_101 = arith.constant 0 : index
    %c0_102 = arith.constant 0 : index
    %83 = vector.load %arg7[%c0_101, %c0_102] : memref<10x128xf32, #tpu.memory_space<vmem>>, vector<10x128xf32>
    %84 = arith.addf %83, %82 : vector<10x128xf32>
    %c0_103 = arith.constant 0 : index
    %c0_104 = arith.constant 0 : index
    %85 = vector.load %arg7[%c0_103, %c0_104] : memref<10x128xf32, #tpu.memory_space<vmem>>, vector<10x128xf32>
    tpu.vector_store %arg7[%c0_103, %c0_104], %84 {strides = array<i32>} : memref<10x128xf32, #tpu.memory_space<vmem>>, vector<10x128xf32>,
    %c0_105 = arith.constant 0 : index
    %c13 = arith.constant 13 : index
    %c0_106 = arith.constant 0 : index
    %86 = vector.load %arg2[%c0_105, %c13, %c0_106] : memref<1x28x128xbf16, #tpu.memory_space<vmem>>, vector<1x10x128xbf16>
    %87 = vector.shape_cast %86 : vector<1x10x128xbf16> to vector<10x128xbf16>
    %c11_107 = arith.constant 11 : index
    %c0_108 = arith.constant 0 : index
    %c0_109 = arith.constant 0 : index
    %88 = vector.load %arg3[%c11_107, %c0_108, %c0_109] : memref<16x128x128xbf16, #tpu.memory_space<vmem>>, vector<1x128x128xbf16>
    %89 = vector.shape_cast %88 : vector<1x128x128xbf16> to vector<128x128xbf16>
    %cst_110 = arith.constant dense<0.000000e+00> : vector<10x128xf32>
    %90 = tpu.matmul %87, %89, %cst_110 {dimension_numbers = #tpu.dot_dimension_numbers<[1], [0], [0], [1], [0, 0, 1, 1], [], []>} : vector<10x128xbf16>, vector<128x128xbf16>, vector<10x128xf32> -> vector<10x128xf32>
    %c0_111 = arith.constant 0 : index
    %c0_112 = arith.constant 0 : index
    %91 = vector.load %arg7[%c0_111, %c0_112] : memref<10x128xf32, #tpu.memory_space<vmem>>, vector<10x128xf32>
    %92 = arith.addf %91, %90 : vector<10x128xf32>
    %c0_113 = arith.constant 0 : index
    %c0_114 = arith.constant 0 : index
    %93 = vector.load %arg7[%c0_113, %c0_114] : memref<10x128xf32, #tpu.memory_space<vmem>>, vector<10x128xf32>
    tpu.vector_store %arg7[%c0_113, %c0_114], %92 {strides = array<i32>} : memref<10x128xf32, #tpu.memory_space<vmem>>, vector<10x128xf32>,
    %c0_115 = arith.constant 0 : index
    %c15 = arith.constant 15 : index
    %c0_116 = arith.constant 0 : index
    %94 = vector.load %arg2[%c0_115, %c15, %c0_116] : memref<1x28x128xbf16, #tpu.memory_space<vmem>>, vector<1x10x128xbf16>
    %95 = vector.shape_cast %94 : vector<1x10x128xbf16> to vector<10x128xbf16>
    %c12_117 = arith.constant 12 : index
    %c0_118 = arith.constant 0 : index
    %c0_119 = arith.constant 0 : index
    %96 = vector.load %arg3[%c12_117, %c0_118, %c0_119] : memref<16x128x128xbf16, #tpu.memory_space<vmem>>, vector<1x128x128xbf16>
    %97 = vector.shape_cast %96 : vector<1x128x128xbf16> to vector<128x128xbf16>
    %cst_120 = arith.constant dense<0.000000e+00> : vector<10x128xf32>
    %98 = tpu.matmul %95, %97, %cst_120 {dimension_numbers = #tpu.dot_dimension_numbers<[1], [0], [0], [1], [0, 0, 1, 1], [], []>} : vector<10x128xbf16>, vector<128x128xbf16>, vector<10x128xf32> -> vector<10x128xf32>
    %c0_121 = arith.constant 0 : index
    %c0_122 = arith.constant 0 : index
    %99 = vector.load %arg7[%c0_121, %c0_122] : memref<10x128xf32, #tpu.memory_space<vmem>>, vector<10x128xf32>
    %100 = arith.addf %99, %98 : vector<10x128xf32>
    %c0_123 = arith.constant 0 : index
    %c0_124 = arith.constant 0 : index
    %101 = vector.load %arg7[%c0_123, %c0_124] : memref<10x128xf32, #tpu.memory_space<vmem>>, vector<10x128xf32>
    tpu.vector_store %arg7[%c0_123, %c0_124], %100 {strides = array<i32>} : memref<10x128xf32, #tpu.memory_space<vmem>>, vector<10x128xf32>,
    %c0_125 = arith.constant 0 : index
    %c16 = arith.constant 16 : index
    %c0_126 = arith.constant 0 : index
    %102 = vector.load %arg2[%c0_125, %c16, %c0_126] : memref<1x28x128xbf16, #tpu.memory_space<vmem>>, vector<1x10x128xbf16>
    %103 = vector.shape_cast %102 : vector<1x10x128xbf16> to vector<10x128xbf16>
    %c13_127 = arith.constant 13 : index
    %c0_128 = arith.constant 0 : index
    %c0_129 = arith.constant 0 : index
    %104 = vector.load %arg3[%c13_127, %c0_128, %c0_129] : memref<16x128x128xbf16, #tpu.memory_space<vmem>>, vector<1x128x128xbf16>
    %105 = vector.shape_cast %104 : vector<1x128x128xbf16> to vector<128x128xbf16>
    %cst_130 = arith.constant dense<0.000000e+00> : vector<10x128xf32>
    %106 = tpu.matmul %103, %105, %cst_130 {dimension_numbers = #tpu.dot_dimension_numbers<[1], [0], [0], [1], [0, 0, 1, 1], [], []>} : vector<10x128xbf16>, vector<128x128xbf16>, vector<10x128xf32> -> vector<10x128xf32>
    %c0_131 = arith.constant 0 : index
    %c0_132 = arith.constant 0 : index
    %107 = vector.load %arg7[%c0_131, %c0_132] : memref<10x128xf32, #tpu.memory_space<vmem>>, vector<10x128xf32>
    %108 = arith.addf %107, %106 : vector<10x128xf32>
    %c0_133 = arith.constant 0 : index
    %c0_134 = arith.constant 0 : index
    %109 = vector.load %arg7[%c0_133, %c0_134] : memref<10x128xf32, #tpu.memory_space<vmem>>, vector<10x128xf32>
    tpu.vector_store %arg7[%c0_133, %c0_134], %108 {strides = array<i32>} : memref<10x128xf32, #tpu.memory_space<vmem>>, vector<10x128xf32>,
    %c0_135 = arith.constant 0 : index
    %c17 = arith.constant 17 : index
    %c0_136 = arith.constant 0 : index
    %110 = vector.load %arg2[%c0_135, %c17, %c0_136] : memref<1x28x128xbf16, #tpu.memory_space<vmem>>, vector<1x10x128xbf16>
    %111 = vector.shape_cast %110 : vector<1x10x128xbf16> to vector<10x128xbf16>
    %c14 = arith.constant 14 : index
    %c0_137 = arith.constant 0 : index
    %c0_138 = arith.constant 0 : index
    %112 = vector.load %arg3[%c14, %c0_137, %c0_138] : memref<16x128x128xbf16, #tpu.memory_space<vmem>>, vector<1x128x128xbf16>
    %113 = vector.shape_cast %112 : vector<1x128x128xbf16> to vector<128x128xbf16>
    %cst_139 = arith.constant dense<0.000000e+00> : vector<10x128xf32>
    %114 = tpu.matmul %111, %113, %cst_139 {dimension_numbers = #tpu.dot_dimension_numbers<[1], [0], [0], [1], [0, 0, 1, 1], [], []>} : vector<10x128xbf16>, vector<128x128xbf16>, vector<10x128xf32> -> vector<10x128xf32>
    %c0_140 = arith.constant 0 : index
    %c0_141 = arith.constant 0 : index
    %115 = vector.load %arg7[%c0_140, %c0_141] : memref<10x128xf32, #tpu.memory_space<vmem>>, vector<10x128xf32>
    %116 = arith.addf %115, %114 : vector<10x128xf32>
    %c0_142 = arith.constant 0 : index
    %c0_143 = arith.constant 0 : index
    %117 = vector.load %arg7[%c0_142, %c0_143] : memref<10x128xf32, #tpu.memory_space<vmem>>, vector<10x128xf32>
    tpu.vector_store %arg7[%c0_142, %c0_143], %116 {strides = array<i32>} : memref<10x128xf32, #tpu.memory_space<vmem>>, vector<10x128xf32>,
    %c0_144 = arith.constant 0 : index
    %c18 = arith.constant 18 : index
    %c0_145 = arith.constant 0 : index
    %118 = vector.load %arg2[%c0_144, %c18, %c0_145] : memref<1x28x128xbf16, #tpu.memory_space<vmem>>, vector<1x10x128xbf16>
    %119 = vector.shape_cast %118 : vector<1x10x128xbf16> to vector<10x128xbf16>
    %c15_146 = arith.constant 15 : index
    %c0_147 = arith.constant 0 : index
    %c0_148 = arith.constant 0 : index
    %120 = vector.load %arg3[%c15_146, %c0_147, %c0_148] : memref<16x128x128xbf16, #tpu.memory_space<vmem>>, vector<1x128x128xbf16>
    %121 = vector.shape_cast %120 : vector<1x128x128xbf16> to vector<128x128xbf16>
    %cst_149 = arith.constant dense<0.000000e+00> : vector<10x128xf32>
    %122 = tpu.matmul %119, %121, %cst_149 {dimension_numbers = #tpu.dot_dimension_numbers<[1], [0], [0], [1], [0, 0, 1, 1], [], []>} : vector<10x128xbf16>, vector<128x128xbf16>, vector<10x128xf32> -> vector<10x128xf32>
    %c0_150 = arith.constant 0 : index
    %c0_151 = arith.constant 0 : index
    %123 = vector.load %arg7[%c0_150, %c0_151] : memref<10x128xf32, #tpu.memory_space<vmem>>, vector<10x128xf32>
    %124 = arith.addf %123, %122 : vector<10x128xf32>
    %c0_152 = arith.constant 0 : index
    %c0_153 = arith.constant 0 : index
    %125 = vector.load %arg7[%c0_152, %c0_153] : memref<10x128xf32, #tpu.memory_space<vmem>>, vector<10x128xf32>
    tpu.vector_store %arg7[%c0_152, %c0_153], %124 {strides = array<i32>} : memref<10x128xf32, #tpu.memory_space<vmem>>, vector<10x128xf32>,
    %c0_154 = arith.constant 0 : index
    %c0_155 = arith.constant 0 : index
    %126 = vector.load %arg7[%c0_154, %c0_155] : memref<10x128xf32, #tpu.memory_space<vmem>>, vector<10x128xf32>
    %c0_156 = arith.constant 0 : index
    %c0_157 = arith.constant 0 : index
    %127 = vector.load %arg4[%c0_156, %c0_157] : memref<1x128xf32, #tpu.memory_space<vmem>>, vector<1x128xf32>
    %128 = vector.broadcast %127 : vector<1x128xf32> to vector<10x128xf32>
    %129 = arith.addf %126, %128 : vector<10x128xf32>
    %c0_158 = arith.constant 0 : index
    %c0_159 = arith.constant 0 : index
    %c0_160 = arith.constant 0 : index
    %130 = vector.load %arg6[%c0_158, %c0_159, %c0_160] : memref<1x10x128xf32, #tpu.memory_space<vmem>>, vector<1x10x128xf32>
    %131 = vector.shape_cast %130 : vector<1x10x128xf32> to vector<10x128xf32>
    %132 = vector.shape_cast %129 : vector<10x128xf32> to vector<1x10x128xf32>
    tpu.vector_store %arg6[%c0_158, %c0_159, %c0_160], %132 {strides = array<i32>} : memref<1x10x128xf32, #tpu.memory_space<vmem>>, vector<1x10x128xf32>,
    return
  }
  func.func @transform_0(%arg0: i32, %arg1: i32) -> (i32, i32, i32) {
    %c0_i32 = arith.constant 0 : i32
    %c0_i32_0 = arith.constant 0 : i32
    %c0_i32_1 = arith.constant 0 : i32
    return %arg0, %c0_i32, %c0_i32_0 : i32, i32, i32
  }
  func.func @transform_1(%arg0: i32, %arg1: i32) -> (i32, i32, i32) {
    %c0_i32 = arith.constant 0 : i32
    %c0_i32_0 = arith.constant 0 : i32
    %c0_i32_1 = arith.constant 0 : i32
    return %c0_i32, %c0_i32_0, %arg1 : i32, i32, i32
  }
  func.func @transform_2(%arg0: i32, %arg1: i32) -> (i32, i32) {
    %c0_i32 = arith.constant 0 : i32
    %c0_i32_0 = arith.constant 0 : i32
    return %c0_i32, %arg1 : i32, i32
  }
  func.func @transform_3(%arg0: i32, %arg1: i32) -> (i32, i32) {
    %c0_i32 = arith.constant 0 : i32
    %c0_i32_0 = arith.constant 0 : i32
    %c0_i32_1 = arith.constant 0 : i32
    return %c0_i32, %c0_i32_0 : i32, i32
  }
  func.func @transform_4(%arg0: i32, %arg1: i32) -> (i32, i32, i32) {
    %c0_i32 = arith.constant 0 : i32
    %c0_i32_0 = arith.constant 0 : i32
    return %arg0, %c0_i32, %arg1 : i32, i32, i32
  }
}

</mosaic_0001>

<llo_original>
// kernel: discriminator_forward.5
$region0: #{discriminator_forward.5}
  #allocation0 [shape = 'u32[]', space=smem, size = 0x4, offset = 0x4, fixed_abs, tag = 'smem constant byte address 0x4 - core index']
  #allocation1 [shape = 'u32[144,128]{1,0:T(1,128)}', space=vmem, size = 0x12000, scoped, tag = 'internal scratch']
  #allocation2 [shape = 'f32[272,128]{1,0:T(8,128)}', space=vmem, size = 0x22000, scoped, tag = 'scratch operand']
  %s0 = inlined_call_operand.vmem [shape: bf16[2,290,12], index: 0, kind: input, shape index: {}]
  %s1 = inlined_call_operand.vmem [shape: bf16[4,12,128], index: 1, kind: input, shape index: {}]
  %s2 = inlined_call_operand.vmem [shape: f32[1,128], index: 2, kind: input, shape index: {}]
  %s3 = inlined_call_operand.vmem [shape: f32[272,1], index: 3, kind: input, shape index: {}]
  %s4 = inlined_call_operand.vmem [shape: bf16[2,272,128], index: 4, kind: output, shape index: {}]
  %s5 = sld [smem:[#allocation0]]
  $region49: #{discriminator_forward.5} parent=0
    _
  %s7 = ssub.s32 1, %s5
  %s8 = scalar_select 0, %s7, %s5
  loop: start=0, step=1, limit=4
  $region2: #{discriminator_forward.5} parent=0 // loop_pre_header
    _
  $region3: #{discriminator_forward.5} parent=0 // loop_header
    %s10 = sphi 0, %s14
    %p11 = scmp.ge.s32.totalorder %s10, 4
    %s17 = sphi 0, %s29
    %s18 = sphi 0, %s25
    %s19 = sphi 0, %s17
    %s20 = sphi 0, %s18
    %s21 = sphi 0, %s19
    %s22 = sphi 0, %s20
    %s32 = sphi 0, %s34
    %s35 = sphi 0, %s32
    %s36 = sphi 0, %s35
    %s52 = sphi 0, %s36
    %s58 = sphi 0, %s60
    %s61 = sphi 0, %s58
    %s62 = sphi 0, %s61
    %s78 = sphi 0, %s62
    %s84 = sphi 0, %s86
    %s87 = sphi 0, %s84
    %s88 = sphi 0, %s87
    %s104 = sphi 0, %s88
    %s108 = sphi 0, %s108
    %s110 = sphi 0, %s108
    %s111 = sphi 0, %s110
    %s125 = sphi 0, %s111
    %s133 = sphi 0, %s135
    %s136 = sphi 0, %s133
    %s137 = sphi 0, %s136
    %s153 = sphi 0, %s137
  $region4: #{discriminator_forward.5} parent=0 // loop_header_branch
    %13 = sbr.rel (%p11) target = $region8
  $region5: #{discriminator_forward.5} parent=0 // loop_body
    %s15 = ssub.s32 %s10, 1
    %s16 = ssub.s32 %s10, 2
    %s23 = sadd.s32 1, %s18
    %p24 = scmp.ge.s32.totalorder %s23, 1
    %s25 = scalar_select %p24, 0, %s23
    %s26 = sadd.s32 1, %s17
    %s27 = scalar_select %p24, %s26, %s17
    %p28 = scmp.ge.s32.totalorder %s27, 2
    %s29 = scalar_select %p28, 0, %s27
    %s30 = ssub.s32 %s17, %s29
    %p31 = scmp.eq.s32.totalorder %s30, 0
    %s33 = sadd.s32 %s32, 1
    %s34 = scalar_select %p31, %s32, %s33
    %p37 = pneg %p31
    %p38 = scmp.eq.s32.totalorder %s10, 1
    %p39 = por %p37, %p38
    %p40 = scmp.ne.s32.totalorder %s32, %s35
    %p41 = scmp.eq.s32.totalorder %s10, 0
    %p42 = por %p40, %p41
    %p43 = scmp.ne.s32.totalorder %s32, %s35
    %p44 = scmp.eq.s32.totalorder %s15, 1
    %p45 = por %p43, %p44
    %p46 = scmp.ne.s32.totalorder %s35, %s36
    %p47 = scmp.eq.s32.totalorder %s15, 0
    %p48 = por %p46, %p47
    %p49 = scmp.ne.s32.totalorder %s35, %s36
    %p50 = scmp.eq.s32.totalorder %s16, 1
    %p51 = por %p49, %p50
    %p53 = scmp.ne.s32.totalorder %s36, %s52
    %p54 = scmp.eq.s32.totalorder %s16, 0
    %p55 = por %p53, %p54
    %s56 = ssub.s32 %s18, %s25
    %p57 = scmp.eq.s32.totalorder %s56, 0
    %s59 = sadd.s32 %s58, 1
    %s60 = scalar_select %p57, %s58, %s59
    %p63 = pneg %p57
    %p64 = scmp.eq.s32.totalorder %s10, 1
    %p65 = por %p63, %p64
    %p66 = scmp.ne.s32.totalorder %s58, %s61
    %p67 = scmp.eq.s32.totalorder %s10, 0
    %p68 = por %p66, %p67
    %p69 = scmp.ne.s32.totalorder %s58, %s61
    %p70 = scmp.eq.s32.totalorder %s15, 1
    %p71 = por %p69, %p70
    %p72 = scmp.ne.s32.totalorder %s61, %s62
    %p73 = scmp.eq.s32.totalorder %s15, 0
    %p74 = por %p72, %p73
    %p75 = scmp.ne.s32.totalorder %s61, %s62
    %p76 = scmp.eq.s32.totalorder %s16, 1
    %p77 = por %p75, %p76
    %p79 = scmp.ne.s32.totalorder %s62, %s78
    %p80 = scmp.eq.s32.totalorder %s16, 0
    %p81 = por %p79, %p80
    %s82 = ssub.s32 %s18, %s25
    %p83 = scmp.eq.s32.totalorder %s82, 0
    %s85 = sadd.s32 %s84, 1
    %s86 = scalar_select %p83, %s84, %s85
    %p89 = pneg %p83
    %p90 = scmp.eq.s32.totalorder %s10, 1
    %p91 = por %p89, %p90
    %p92 = scmp.ne.s32.totalorder %s84, %s87
    %p93 = scmp.eq.s32.totalorder %s10, 0
    %p94 = por %p92, %p93
    %p95 = scmp.ne.s32.totalorder %s84, %s87
    %p96 = scmp.eq.s32.totalorder %s15, 1
    %p97 = por %p95, %p96
    %p98 = scmp.ne.s32.totalorder %s87, %s88
    %p99 = scmp.eq.s32.totalorder %s15, 0
    %p100 = por %p98, %p99
    %p101 = scmp.ne.s32.totalorder %s87, %s88
    %p102 = scmp.eq.s32.totalorder %s16, 1
    %p103 = por %p101, %p102
    %p105 = scmp.ne.s32.totalorder %s88, %s104
    %p106 = scmp.eq.s32.totalorder %s16, 0
    %p107 = por %p105, %p106
    %s109 = sadd.s32 %s108, 1
    %p112 = scmp.eq.s32.totalorder %s10, 1
    %p113 = scmp.ne.s32.totalorder %s108, %s110
    %p114 = scmp.eq.s32.totalorder %s10, 0
    %p115 = por %p113, %p114
    %p116 = scmp.ne.s32.totalorder %s108, %s110
    %p117 = scmp.eq.s32.totalorder %s15, 1
    %p118 = por %p116, %p117
    %p119 = scmp.ne.s32.totalorder %s110, %s111
    %p120 = scmp.eq.s32.totalorder %s15, 0
    %p121 = por %p119, %p120
    %p122 = scmp.ne.s32.totalorder %s110, %s111
    %p123 = scmp.eq.s32.totalorder %s16, 1
    %p124 = por %p122, %p123
    %p126 = scmp.ne.s32.totalorder %s111, %s125
    %p127 = scmp.eq.s32.totalorder %s16, 0
    %p128 = por %p126, %p127
    %s129 = ssub.s32 %s17, %s29
    %s130 = ssub.s32 %s18, %s25
    %s131 = sor.u32 %s129, %s130
    %p132 = scmp.eq.s32.totalorder %s131, 0
    %s134 = sadd.s32 %s133, 1
    %s135 = scalar_select %p132, %s133, %s134
    %p138 = pneg %p132
    %p139 = scmp.eq.s32.totalorder %s10, 1
    %p140 = por %p138, %p139
    %p141 = scmp.ne.s32.totalorder %s133, %s136
    %p142 = scmp.eq.s32.totalorder %s10, 0
    %p143 = por %p141, %p142
    %p144 = scmp.ne.s32.totalorder %s133, %s136
    %p145 = scmp.eq.s32.totalorder %s15, 1
    %p146 = por %p144, %p145
    %p147 = scmp.ne.s32.totalorder %s136, %s137
    %p148 = scmp.eq.s32.totalorder %s15, 0
    %p149 = por %p147, %p148
    %p150 = scmp.ne.s32.totalorder %s136, %s137
    %p151 = scmp.eq.s32.totalorder %s16, 1
    %p152 = por %p150, %p151
    %p154 = scmp.ne.s32.totalorder %s137, %s153
    %p155 = scmp.eq.s32.totalorder %s16, 0
    %p156 = por %p154, %p155
    %p157 = scmp.le.s32.totalorder 1, %s10
    %p158 = scmp.lt.s32.totalorder %s10, 3
    %p159 = pnand %p157, %p158
    %p160 = pneg %p159
    // Predicated region
    $region9: #{discriminator_forward.5} parent=5 // pred_check
      _
    $region10: #{discriminator_forward.5} parent=5 // pred_check_branch
      %162 = sbr.rel (%p159) target = $region12
    $region11: #{discriminator_forward.5} parent=5 // pred_region
      %s163 = ssub.s32 %s10, 1
      // Predicated region
      $region13: #{discriminator_forward.5} parent=11 // pred_check
        %p164 = pneg %p74
      $region14: #{discriminator_forward.5} parent=11 // pred_check_branch
        %166 = sbr.rel (%p164) target = $region16
      $region15: #{discriminator_forward.5} parent=11 // pred_region
        %p167 = scmp.lt.s32.totalorder %s20, 0
        %s168 = scalar_select %p167, %s20, 0
        %s169 = smul.addr %s168, 4
        %s170 = scalar_lea.vmem %s1, %s169
      $region16: #{discriminator_forward.5} parent=11 // pred_fallthru
        _
      // Predicated region
      $region17: #{discriminator_forward.5} parent=11 // pred_check
        %p171 = pneg %p100
      $region18: #{discriminator_forward.5} parent=11 // pred_check_branch
        %173 = sbr.rel (%p171) target = $region20
      $region19: #{discriminator_forward.5} parent=11 // pred_region
        %p174 = scmp.lt.s32.totalorder %s20, 0
        %s175 = scalar_select %p174, %s20, 0
        %s176 = scalar_lea.vmem %s2, %s175
      $region20: #{discriminator_forward.5} parent=11 // pred_fallthru
        _
      // Predicated region
      $region21: #{discriminator_forward.5} parent=11 // pred_check
        %p177 = pneg %p121
      $region22: #{discriminator_forward.5} parent=11 // pred_check_branch
        %179 = sbr.rel (%p177) target = $region24
      $region23: #{discriminator_forward.5} parent=11 // pred_region
        _
      $region24: #{discriminator_forward.5} parent=11 // pred_fallthru
        _
    $region12: #{discriminator_forward.5} parent=5 // pred_fallthru
      _
    %p180 = scmp.lt.s32.totalorder %s10, 2
    // Predicated region
    $region25: #{discriminator_forward.5} parent=5 // pred_check
      %p181 = pneg %p180
    $region26: #{discriminator_forward.5} parent=5 // pred_check_branch
      %183 = sbr.rel (%p181) target = $region28
    $region27: #{discriminator_forward.5} parent=5 // pred_region
      // Predicated region
      $region29: #{discriminator_forward.5} parent=27 // pred_check
        %p184 = pneg %p42
      $region30: #{discriminator_forward.5} parent=27 // pred_check_branch
        %186 = sbr.rel (%p184) target = $region32
      $region31: #{discriminator_forward.5} parent=27 // pred_region
        %p187 = scmp.lt.s32.totalorder %s17, 1
        %s188 = scalar_select %p187, %s17, 1
        %s189 = smul.addr %s188, 37
        %s190 = smul.addr %s189, 4
        %s191 = scalar_lea.vmem %s0, %s190
      $region32: #{discriminator_forward.5} parent=27 // pred_fallthru
        _
    $region28: #{discriminator_forward.5} parent=5 // pred_fallthru
      _
    %p192 = scmp.le.s32.totalorder 1, %s10
    %p193 = scmp.lt.s32.totalorder %s10, 3
    %p194 = pnand %p192, %p193
    %p195 = pneg %p194
    // Predicated region
    $region33: #{discriminator_forward.5} parent=5 // pred_check
      _
    $region34: #{discriminator_forward.5} parent=5 // pred_check_branch
      %197 = sbr.rel (%p194) target = $region36
    $region35: #{discriminator_forward.5} parent=5 // pred_region
      %s198 = ssub.s32 %s10, 1
      %p199 = scmp.lt.s32.totalorder %s19, 1
      %s200 = scalar_select %p199, %s19, 1
      %s201 = smul.addr %s200, 37
      %s202 = smul.addr %s201, 4
      %s203 = scalar_lea.vmem %s0, %s202
      %p204 = pneg %p48
      %p205 = pneg %p45
      %p206 = scmp.lt.s32.totalorder %s20, 0
      %s207 = scalar_select %p206, %s20, 0
      %s208 = smul.addr %s207, 4
      %s209 = scalar_lea.vmem %s1, %s208
      %p210 = pneg %p74
      %p211 = pneg %p71
      %p212 = scmp.lt.s32.totalorder %s20, 0
      %s213 = scalar_select %p212, %s20, 0
      %s214 = scalar_lea.vmem %s2, %s213
      %p215 = pneg %p100
      %p216 = pneg %p97
      %p217 = pneg %p121
      %p218 = pneg %p118
      %p219 = pneg %p149
      %p220 = pneg %p146
      %p221 = scmp.lt.s32.totalorder %s19, 1
      %s222 = scalar_select %p221, %s19, 1
      %p223 = scmp.lt.s32.totalorder %s20, 0
      %s224 = scalar_select %p223, %s20, 0
      %s225 = smul.addr %s222, 34
      %s226 = sadd.s32 %s224, %s225
      %s227 = smul.addr %s226, 4
      %s228 = scalar_lea.vmem %s4, %s227
      %p229 = scmp.lt.s32.totalorder %s19, 1
      %s230 = scalar_select %p229, %s19, 1
      %s231 = smul.addr %s230, 37
      %s232 = smul.addr %s231, 4
      %s233 = scalar_lea.vmem %s0, %s232
      %p234 = scmp.lt.s32.totalorder %s20, 0
      %s235 = scalar_select %p234, %s20, 0
      %s236 = smul.addr %s235, 4
      %s237 = scalar_lea.vmem %s1, %s236
      %p238 = scmp.lt.s32.totalorder %s20, 0
      %s239 = scalar_select %p238, %s20, 0
      %s240 = scalar_lea.vmem %s2, %s239
      %p241 = scmp.lt.s32.totalorder %s19, 1
      %s242 = scalar_select %p241, %s19, 1
      %p243 = scmp.lt.s32.totalorder %s20, 0
      %s244 = scalar_select %p243, %s20, 0
      %s245 = smul.addr %s242, 34
      %s246 = sadd.s32 %s244, %s245
      %s247 = smul.addr %s246, 4
      %s248 = scalar_lea.vmem %s4, %s247
      %v250 = vld [vmem:[%s233] sm:$0xf]
      %v251 = vld [vmem:[%s233 + $0x4] sm:$0xf]
      %v252 = vld [vmem:[%s233 + $0x8] sm:$0xf]
      %v253 = vld [vmem:[%s233 + $0xc] sm:$0xf]
      %v254 = vld [vmem:[%s233 + $0x10] sm:$0xf]
      %v255 = vld [vmem:[%s233 + $0x14] sm:$0xf]
      %v256 = vld [vmem:[%s233 + $0x18] sm:$0xf]
      %v257 = vld [vmem:[%s233 + $0x1c] sm:$0xf]
      %v258 = vld [vmem:[%s233 + $0x20] sm:$0xf]
      %v259 = vld [vmem:[%s233 + $0x24] sm:$0xf]
      %v260 = vld [vmem:[%s233 + $0x28] sm:$0xf]
      %v261 = vld [vmem:[%s233 + $0x2c] sm:$0xf]
      %v262 = vld [vmem:[%s233 + $0x30] sm:$0xf]
      %v263 = vld [vmem:[%s233 + $0x34] sm:$0xf]
      %v264 = vld [vmem:[%s233 + $0x38] sm:$0xf]
      %v265 = vld [vmem:[%s233 + $0x3c] sm:$0xf]
      %v266 = vld [vmem:[%s233 + $0x40] sm:$0xf]
      %v267 = vld [vmem:[%s233 + $0x44] sm:$0xf]
      %v268 = vld [vmem:[%s233 + $0x48] sm:$0xf]
      %v269 = vld [vmem:[%s233 + $0x4c] sm:$0xf]
      %v270 = vld [vmem:[%s233 + $0x50] sm:$0xf]
      %v271 = vld [vmem:[%s233 + $0x54] sm:$0xf]
      %v272 = vld [vmem:[%s233 + $0x58] sm:$0xf]
      %v273 = vld [vmem:[%s233 + $0x5c] sm:$0xf]
      %v274 = vld [vmem:[%s233 + $0x60] sm:$0xf]
      %v275 = vld [vmem:[%s233 + $0x64] sm:$0xf]
      %v276 = vld [vmem:[%s233 + $0x68] sm:$0xf]
      %v277 = vld [vmem:[%s233 + $0x6c] sm:$0xf]
      %v278 = vld [vmem:[%s233 + $0x70] sm:$0xf]
      %v279 = vld [vmem:[%s233 + $0x74] sm:$0xf]
      %v280 = vld [vmem:[%s233 + $0x78] sm:$0xf]
      %v281 = vld [vmem:[%s233 + $0x7c] sm:$0xf]
      %v282 = vld [vmem:[%s233 + $0x80] sm:$0xf]
      %v283 = vld [vmem:[%s233 + $0x84] sm:$0xf]
      %v284 = vld [vmem:[%s237] sm:$0xf]
      %v285 = vld [vmem:[%s237 + $0x4] sm:$0x3]
      %v320 = vunpack.c.l.b16 %v250
      %v321 = vunpack.c.l.b16 %v251
      %v322 = vunpack.c.l.b16 %v252
      %v323 = vunpack.c.l.b16 %v253
      %v324 = vunpack.c.l.b16 %v254
      %v325 = vunpack.c.l.b16 %v255
      %v326 = vunpack.c.l.b16 %v256
      %v327 = vunpack.c.l.b16 %v257
      %v328 = vunpack.c.l.b16 %v258
      %v329 = vunpack.c.l.b16 %v259
      %v330 = vunpack.c.l.b16 %v260
      %v331 = vunpack.c.l.b16 %v261
      %v332 = vunpack.c.l.b16 %v262
      %v333 = vunpack.c.l.b16 %v263
      %v334 = vunpack.c.l.b16 %v264
      %v335 = vunpack.c.l.b16 %v265
      %v336 = vunpack.c.l.b16 %v266
      %v337 = vunpack.c.l.b16 %v267
      %v338 = vunpack.c.l.b16 %v268
      %v339 = vunpack.c.l.b16 %v269
      %v340 = vunpack.c.l.b16 %v270
      %v341 = vunpack.c.l.b16 %v271
      %v342 = vunpack.c.l.b16 %v272
      %v343 = vunpack.c.l.b16 %v273
      %v344 = vunpack.c.l.b16 %v274
      %v345 = vunpack.c.l.b16 %v275
      %v346 = vunpack.c.l.b16 %v276
      %v347 = vunpack.c.l.b16 %v277
      %v348 = vunpack.c.l.b16 %v278
      %v349 = vunpack.c.l.b16 %v279
      %v350 = vunpack.c.l.b16 %v280
      %v351 = vunpack.c.l.b16 %v281
      %v352 = vunpack.c.l.b16 %v282
      %v353 = vunpack.c.l.b16 %v283
      %v354 = vpack.c.b16 %v321, %v320
      %v355 = vpack.c.b16 %v323, %v322
      %v356 = vpack.c.b16 %v325, %v324
      %v357 = vpack.c.b16 %v327, %v326
      %v358 = vpack.c.b16 %v329, %v328
      %v359 = vpack.c.b16 %v331, %v330
      %v360 = vpack.c.b16 %v333, %v332
      %v361 = vpack.c.b16 %v335, %v334
      %v362 = vpack.c.b16 %v337, %v336
      %v363 = vpack.c.b16 %v339, %v338
      %v364 = vpack.c.b16 %v341, %v340
      %v365 = vpack.c.b16 %v343, %v342
      %v366 = vpack.c.b16 %v345, %v344
      %v367 = vpack.c.b16 %v347, %v346
      %v368 = vpack.c.b16 %v349, %v348
      %v369 = vpack.c.b16 %v351, %v350
      %v370 = vpack.c.b16 %v353, %v352
      %v373 = vunpack.c.l.b16 %v284
      %v374 = vunpack.c.l.b16 %v285
      %v375 = vpack.c.b16 %v374, %v373
      %vm376 = vcmask 97280
      %v378 = vsel %vm376, %v354, 0
      %v381 = vsel %vm376, %v355, 0
      %v384 = vsel %vm376, %v356, 0
      %v387 = vsel %vm376, %v357, 0
      %v390 = vsel %vm376, %v358, 0
      %v393 = vsel %vm376, %v359, 0
      %v396 = vsel %vm376, %v360, 0
      %v399 = vsel %vm376, %v361, 0
      %v402 = vsel %vm376, %v362, 0
      %v405 = vsel %vm376, %v363, 0
      %v408 = vsel %vm376, %v364, 0
      %v411 = vsel %vm376, %v365, 0
      %v414 = vsel %vm376, %v366, 0
      %v417 = vsel %vm376, %v367, 0
      %v420 = vsel %vm376, %v368, 0
      %v423 = vsel %vm376, %v369, 0
      %v426 = vsel %vm376, %v370, 0
      %vm428 = vcmask 1045504
      %v430 = vsel %vm428, %v375, 0
      %432 = vmatprep.subr.bf16.mxu0 0
      %433 = vmatpush1.bf16.msra.mxu0 %v430
      %434 = vmatprep.subr.bf16.mxu0 0
      %435 = vmatpush1.bf16.msra.mxu0 0
      %436 = vmatprep.subr.bf16.mxu0 0
      %437 = vmatpush1.bf16.msra.mxu0 0
      %438 = vmatprep.subr.bf16.mxu0 0
      %439 = vmatpush1.bf16.msra.mxu0 0
      %440 = vmatprep.subr.bf16.mxu0 0
      %441 = vmatpush1.bf16.msra.mxu0 0
      %442 = vmatprep.subr.bf16.mxu0 0
      %443 = vmatpush1.bf16.msra.mxu0 0
      %444 = vmatprep.subr.bf16.mxu0 0
      %445 = vmatpush1.bf16.msra.mxu0 0
      %446 = vmatprep.subr.bf16.mxu0 0
      %447 = vmatpush1.bf16.msra.mxu0 0
      %448 = vmatprep.subr.bf16.mxu0 0
      %449 = vmatpush1.bf16.msra.mxu0 0
      %450 = vmatprep.subr.bf16.mxu0 0
      %451 = vmatpush1.bf16.msra.mxu0 0
      %452 = vmatprep.subr.bf16.mxu0 0
      %453 = vmatpush1.bf16.msra.mxu0 0
      %454 = vmatprep.subr.bf16.mxu0 0
      %455 = vmatpush1.bf16.msra.mxu0 0
      %456 = vmatprep.subr.bf16.mxu0 0
      %457 = vmatpush1.bf16.msra.mxu0 0
      %458 = vmatprep.subr.bf16.mxu0 0
      %459 = vmatpush1.bf16.msra.mxu0 0
      %460 = vmatprep.subr.bf16.mxu0 0
      %461 = vmatpush1.bf16.msra.mxu0 0
      %462 = vmatprep.subr.bf16.mxu0 0
      %463 = vmatpush1.bf16.msra.mxu0 0
      %464 = vmatprep.mubr.bf16.mxu0 0
      %465 = vmatmul.mubr.bf16.gmra.mrb[0].mxu0 %v378
      %v466 = vpop.f32.mrb[0].mxu0
      %v467 = vadd.f32 0.0, %v466
      %v468 = vpop.f32.mrb[0].mxu0
      %v469 = vpop.f32.mrb[0].mxu0
      %v470 = vadd.f32 0.0, %v469
      %v471 = vpop.f32.mrb[0].mxu0
      %472 = vmatprep.mubr.bf16.mxu0 0
      %473 = vmatmul.mubr.bf16.gmra.mrb[0].mxu0 %v381
      %v474 = vpop.f32.mrb[0].mxu0
      %v475 = vadd.f32 0.0, %v474
      %v476 = vpop.f32.mrb[0].mxu0
      %v477 = vpop.f32.mrb[0].mxu0
      %v478 = vadd.f32 0.0, %v477
      %v479 = vpop.f32.mrb[0].mxu0
      %480 = vmatprep.mubr.bf16.mxu0 0
      %481 = vmatmul.mubr.bf16.gmra.mrb[0].mxu0 %v384
      %v482 = vpop.f32.mrb[0].mxu0
      %v483 = vadd.f32 0.0, %v482
      %v484 = vpop.f32.mrb[0].mxu0
      %v485 = vpop.f32.mrb[0].mxu0
      %v486 = vadd.f32 0.0, %v485
      %v487 = vpop.f32.mrb[0].mxu0
      %488 = vmatprep.mubr.bf16.mxu0 0
      %489 = vmatmul.mubr.bf16.gmra.mrb[0].mxu0 %v387
      %v490 = vpop.f32.mrb[0].mxu0
      %v491 = vadd.f32 0.0, %v490
      %v492 = vpop.f32.mrb[0].mxu0
      %v493 = vpop.f32.mrb[0].mxu0
      %v494 = vadd.f32 0.0, %v493
      %v495 = vpop.f32.mrb[0].mxu0
      %496 = vmatprep.mubr.bf16.mxu0 0
      %497 = vmatmul.mubr.bf16.gmra.mrb[0].mxu0 %v390
      %v498 = vpop.f32.mrb[0].mxu0
      %v499 = vadd.f32 0.0, %v498
      %v500 = vpop.f32.mrb[0].mxu0
      %v501 = vpop.f32.mrb[0].mxu0
      %v502 = vadd.f32 0.0, %v501
      %v503 = vpop.f32.mrb[0].mxu0
      %504 = vmatprep.mubr.bf16.mxu0 0
      %505 = vmatmul.mubr.bf16.gmra.mrb[0].mxu0 %v393
      %v506 = vpop.f32.mrb[0].mxu0
      %v507 = vadd.f32 0.0, %v506
      %v508 = vpop.f32.mrb[0].mxu0
      %v509 = vpop.f32.mrb[0].mxu0
      %v510 = vadd.f32 0.0, %v509
      %v511 = vpop.f32.mrb[0].mxu0
      %512 = vmatprep.mubr.bf16.mxu0 0
      %513 = vmatmul.mubr.bf16.gmra.mrb[0].mxu0 %v396
      %v514 = vpop.f32.mrb[0].mxu0
      %v515 = vadd.f32 0.0, %v514
      %v516 = vpop.f32.mrb[0].mxu0
      %v517 = vpop.f32.mrb[0].mxu0
      %v518 = vadd.f32 0.0, %v517
      %v519 = vpop.f32.mrb[0].mxu0
      %520 = vmatprep.mubr.bf16.mxu0 0
      %521 = vmatmul.mubr.bf16.gmra.mrb[0].mxu0 %v399
      %v522 = vpop.f32.mrb[0].mxu0
      %v523 = vadd.f32 0.0, %v522
      %v524 = vpop.f32.mrb[0].mxu0
      %v525 = vpop.f32.mrb[0].mxu0
      %v526 = vadd.f32 0.0, %v525
      %v527 = vpop.f32.mrb[0].mxu0
      %528 = vmatprep.mubr.bf16.mxu0 0
      %529 = vmatmul.mubr.bf16.gmra.mrb[0].mxu0 %v402
      %v530 = vpop.f32.mrb[0].mxu0
      %v531 = vadd.f32 0.0, %v530
      %v532 = vpop.f32.mrb[0].mxu0
      %v533 = vpop.f32.mrb[0].mxu0
      %v534 = vadd.f32 0.0, %v533
      %v535 = vpop.f32.mrb[0].mxu0
      %536 = vmatprep.mubr.bf16.mxu0 0
      %537 = vmatmul.mubr.bf16.gmra.mrb[0].mxu0 %v405
      %v538 = vpop.f32.mrb[0].mxu0
      %v539 = vadd.f32 0.0, %v538
      %v540 = vpop.f32.mrb[0].mxu0
      %v541 = vpop.f32.mrb[0].mxu0
      %v542 = vadd.f32 0.0, %v541
      %v543 = vpop.f32.mrb[0].mxu0
      %544 = vmatprep.mubr.bf16.mxu0 0
      %545 = vmatmul.mubr.bf16.gmra.mrb[0].mxu0 %v408
      %v546 = vpop.f32.mrb[0].mxu0
      %v547 = vadd.f32 0.0, %v546
      %v548 = vpop.f32.mrb[0].mxu0
      %v549 = vpop.f32.mrb[0].mxu0
      %v550 = vadd.f32 0.0, %v549
      %v551 = vpop.f32.mrb[0].mxu0
      %552 = vmatprep.mubr.bf16.mxu0 0
      %553 = vmatmul.mubr.bf16.gmra.mrb[0].mxu0 %v411
      %v554 = vpop.f32.mrb[0].mxu0
      %v555 = vadd.f32 0.0, %v554
      %v556 = vpop.f32.mrb[0].mxu0
      %v557 = vpop.f32.mrb[0].mxu0
      %v558 = vadd.f32 0.0, %v557
      %v559 = vpop.f32.mrb[0].mxu0
      %560 = vmatprep.mubr.bf16.mxu0 0
      %561 = vmatmul.mubr.bf16.gmra.mrb[0].mxu0 %v414
      %v562 = vpop.f32.mrb[0].mxu0
      %v563 = vadd.f32 0.0, %v562
      %v564 = vpop.f32.mrb[0].mxu0
      %v565 = vpop.f32.mrb[0].mxu0
      %v566 = vadd.f32 0.0, %v565
      %v567 = vpop.f32.mrb[0].mxu0
      %568 = vmatprep.mubr.bf16.mxu0 0
      %569 = vmatmul.mubr.bf16.gmra.mrb[0].mxu0 %v417
      %v570 = vpop.f32.mrb[0].mxu0
      %v571 = vadd.f32 0.0, %v570
      %v572 = vpop.f32.mrb[0].mxu0
      %v573 = vpop.f32.mrb[0].mxu0
      %v574 = vadd.f32 0.0, %v573
      %v575 = vpop.f32.mrb[0].mxu0
      %576 = vmatprep.mubr.bf16.mxu0 0
      %577 = vmatmul.mubr.bf16.gmra.mrb[0].mxu0 %v420
      %v578 = vpop.f32.mrb[0].mxu0
      %v579 = vadd.f32 0.0, %v578
      %v580 = vpop.f32.mrb[0].mxu0
      %v581 = vpop.f32.mrb[0].mxu0
      %v582 = vadd.f32 0.0, %v581
      %v583 = vpop.f32.mrb[0].mxu0
      %584 = vmatprep.mubr.bf16.mxu0 0
      %585 = vmatmul.mubr.bf16.gmra.mrb[0].mxu0 %v423
      %v586 = vpop.f32.mrb[0].mxu0
      %v587 = vadd.f32 0.0, %v586
      %v588 = vpop.f32.mrb[0].mxu0
      %v589 = vpop.f32.mrb[0].mxu0
      %v590 = vadd.f32 0.0, %v589
      %v591 = vpop.f32.mrb[0].mxu0
      %592 = vmatprep.mubr.bf16.mxu0 0
      %593 = vmatmul.mubr.bf16.gmra.mrb[0].mxu0 %v426
      %v594 = vpop.f32.mrb[0].mxu0
      %v595 = vadd.f32 0.0, %v594
      %v596 = vpop.f32.mrb[0].mxu0
      %v597 = vpop.f32.mrb[0].mxu0
      %v598 = vadd.f32 0.0, %v597
      %v599 = vpop.f32.mrb[0].mxu0
      %600 = vdwg.mxu0
      %601 = vst [vmem:[#allocation2] sm:$0xff] %v467
      %602 = vst [vmem:[#allocation2 + $0x8] sm:$0xff] %v470
      %603 = vst [vmem:[#allocation2 + $0x10] sm:$0xff] %v475
      %604 = vst [vmem:[#allocation2 + $0x18] sm:$0xff] %v478
      %605 = vst [vmem:[#allocation2 + $0x20] sm:$0xff] %v483
      %606 = vst [vmem:[#allocation2 + $0x28] sm:$0xff] %v486
      %607 = vst [vmem:[#allocation2 + $0x30] sm:$0xff] %v491
      %608 = vst [vmem:[#allocation2 + $0x38] sm:$0xff] %v494
      %609 = vst [vmem:[#allocation2 + $0x40] sm:$0xff] %v499
      %610 = vst [vmem:[#allocation2 + $0x48] sm:$0xff] %v502
      %611 = vst [vmem:[#allocation2 + $0x50] sm:$0xff] %v507
      %612 = vst [vmem:[#allocation2 + $0x58] sm:$0xff] %v510
      %613 = vst [vmem:[#allocation2 + $0x60] sm:$0xff] %v515
      %614 = vst [vmem:[#allocation2 + $0x68] sm:$0xff] %v518
      %615 = vst [vmem:[#allocation2 + $0x70] sm:$0xff] %v523
      %616 = vst [vmem:[#allocation2 + $0x78] sm:$0xff] %v526
      %617 = vst [vmem:[#allocation2 + $0x80] sm:$0xff] %v531
      %618 = vst [vmem:[#allocation2 + $0x88] sm:$0xff] %v534
      %619 = vst [vmem:[#allocation2 + $0x90] sm:$0xff] %v539
      %620 = vst [vmem:[#allocation2 + $0x98] sm:$0xff] %v542
      %621 = vst [vmem:[#allocation2 + $0xa0] sm:$0xff] %v547
      %622 = vst [vmem:[#allocation2 + $0xa8] sm:$0xff] %v550
      %623 = vst [vmem:[#allocation2 + $0xb0] sm:$0xff] %v555
      %624 = vst [vmem:[#allocation2 + $0xb8] sm:$0xff] %v558
      %625 = vst [vmem:[#allocation2 + $0xc0] sm:$0xff] %v563
      %626 = vst [vmem:[#allocation2 + $0xc8] sm:$0xff] %v566
      %627 = vst [vmem:[#allocation2 + $0xd0] sm:$0xff] %v571
      %628 = vst [vmem:[#allocation2 + $0xd8] sm:$0xff] %v574
      %629 = vst [vmem:[#allocation2 + $0xe0] sm:$0xff] %v579
      %630 = vst [vmem:[#allocation2 + $0xe8] sm:$0xff] %v582
      %631 = vst [vmem:[#allocation2 + $0xf0] sm:$0xff] %v587
      %632 = vst [vmem:[#allocation2 + $0xf8] sm:$0xff] %v590
      %633 = vst [vmem:[#allocation2 + $0x100] sm:$0xff] %v595
      %634 = vst [vmem:[#allocation2 + $0x108] sm:$0xff] %v598
      %v635 = vld [vmem:[%s233] sm:$0xf]
      %v636 = vld [vmem:[%s233 + $0x4] sm:$0xf]
      %v637 = vld [vmem:[%s233 + $0x8] sm:$0xf]
      %v638 = vld [vmem:[%s233 + $0xc] sm:$0xf]
      %v639 = vld [vmem:[%s233 + $0x10] sm:$0xf]
      %v640 = vld [vmem:[%s233 + $0x14] sm:$0xf]
      %v641 = vld [vmem:[%s233 + $0x18] sm:$0xf]
      %v642 = vld [vmem:[%s233 + $0x1c] sm:$0xf]
      %v643 = vld [vmem:[%s233 + $0x20] sm:$0xf]
      %v644 = vld [vmem:[%s233 + $0x24] sm:$0xf]
      %v645 = vld [vmem:[%s233 + $0x28] sm:$0xf]
      %v646 = vld [vmem:[%s233 + $0x2c] sm:$0xf]
      %v647 = vld [vmem:[%s233 + $0x30] sm:$0xf]
      %v648 = vld [vmem:[%s233 + $0x34] sm:$0xf]
      %v649 = vld [vmem:[%s233 + $0x38] sm:$0xf]
      %v650 = vld [vmem:[%s233 + $0x3c] sm:$0xf]
      %v651 = vld [vmem:[%s233 + $0x40] sm:$0xf]
      %v652 = vld [vmem:[%s233 + $0x44] sm:$0xf]
      %v653 = vld [vmem:[%s233 + $0x48] sm:$0xf]
      %v654 = vld [vmem:[%s233 + $0x4c] sm:$0xf]
      %v655 = vld [vmem:[%s233 + $0x50] sm:$0xf]
      %v656 = vld [vmem:[%s233 + $0x54] sm:$0xf]
      %v657 = vld [vmem:[%s233 + $0x58] sm:$0xf]
      %v658 = vld [vmem:[%s233 + $0x5c] sm:$0xf]
      %v659 = vld [vmem:[%s233 + $0x60] sm:$0xf]
      %v660 = vld [vmem:[%s233 + $0x64] sm:$0xf]
      %v661 = vld [vmem:[%s233 + $0x68] sm:$0xf]
      %v662 = vld [vmem:[%s233 + $0x6c] sm:$0xf]
      %v663 = vld [vmem:[%s233 + $0x70] sm:$0xf]
      %v664 = vld [vmem:[%s233 + $0x74] sm:$0xf]
      %v665 = vld [vmem:[%s233 + $0x78] sm:$0xf]
      %v666 = vld [vmem:[%s233 + $0x7c] sm:$0xf]
      %v667 = vld [vmem:[%s233 + $0x80] sm:$0xf]
      %v668 = vld [vmem:[%s233 + $0x84] sm:$0xf]
      %v669 = vld [vmem:[%s233 + $0x88] sm:$0x1]
      %s670 = scalar_lea.vmem %s237, 8
      %v671 = vld [vmem:[%s670] sm:$0xf]
      %v672 = vld [vmem:[%s670 + $0x4] sm:$0x3]
      %v708 = vunpack.c.l.b16 %v635
      %v709 = vunpack.c.l.b16 %v636
      %v710 = vunpack.c.l.b16 %v637
      %v711 = vunpack.c.l.b16 %v638
      %v712 = vunpack.c.l.b16 %v639
      %v713 = vunpack.c.l.b16 %v640
      %v714 = vunpack.c.l.b16 %v641
      %v715 = vunpack.c.l.b16 %v642
      %v716 = vunpack.c.l.b16 %v643
      %v717 = vunpack.c.l.b16 %v644
      %v718 = vunpack.c.l.b16 %v645
      %v719 = vunpack.c.l.b16 %v646
      %v720 = vunpack.c.l.b16 %v647
      %v721 = vunpack.c.l.b16 %v648
      %v722 = vunpack.c.l.b16 %v649
      %v723 = vunpack.c.l.b16 %v650
      %v724 = vunpack.c.l.b16 %v651
      %v725 = vunpack.c.l.b16 %v652
      %v726 = vunpack.c.l.b16 %v653
      %v727 = vunpack.c.l.b16 %v654
      %v728 = vunpack.c.l.b16 %v655
      %v729 = vunpack.c.l.b16 %v656
      %v730 = vunpack.c.l.b16 %v657
      %v731 = vunpack.c.l.b16 %v658
      %v732 = vunpack.c.l.b16 %v659
      %v733 = vunpack.c.l.b16 %v660
      %v734 = vunpack.c.l.b16 %v661
      %v735 = vunpack.c.l.b16 %v662
      %v736 = vunpack.c.l.b16 %v663
      %v737 = vunpack.c.l.b16 %v664
      %v738 = vunpack.c.l.b16 %v665
      %v739 = vunpack.c.l.b16 %v666
      %v740 = vunpack.c.l.b16 %v667
      %v741 = vunpack.c.l.b16 %v668
      %v742 = vunpack.c.l.b16 %v669
      %v743 = vpack.c.b16 %v709, %v708
      %v744 = vpack.c.b16 %v711, %v710
      %v745 = vpack.c.b16 %v713, %v712
      %v746 = vpack.c.b16 %v715, %v714
      %v747 = vpack.c.b16 %v717, %v716
      %v748 = vpack.c.b16 %v719, %v718
      %v749 = vpack.c.b16 %v721, %v720
      %v750 = vpack.c.b16 %v723, %v722
      %v751 = vpack.c.b16 %v725, %v724
      %v752 = vpack.c.b16 %v727, %v726
      %v753 = vpack.c.b16 %v729, %v728
      %v754 = vpack.c.b16 %v731, %v730
      %v755 = vpack.c.b16 %v733, %v732
      %v756 = vpack.c.b16 %v735, %v734
      %v757 = vpack.c.b16 %v737, %v736
      %v758 = vpack.c.b16 %v739, %v738
      %v759 = vpack.c.b16 %v741, %v740
      %v760 = vpack.c.b16 %v742, %v742
      %vm761 = vsmask.f32 7424
      %v763 = vshrl.u32 %v743, 16
      %v765 = vshll.u32 %v743, 16
      %v767 = vrot.slane %v765, 1
      %v768 = vor.u32 %v763, %v767
      %v770 = vshll.u32 %v744, 16
      %v772 = vrot.slane %v770, 1
      %v773 = vsel %vm761, %v768, %v772
      %v774 = vshrl.u32 %v744, 16
      %v776 = vor.u32 %v774, %v772
      %v778 = vshll.u32 %v745, 16
      %v780 = vrot.slane %v778, 1
      %v781 = vsel %vm761, %v776, %v780
      %v782 = vshrl.u32 %v745, 16
      %v784 = vor.u32 %v782, %v780
      %v786 = vshll.u32 %v746, 16
      %v788 = vrot.slane %v786, 1
      %v789 = vsel %vm761, %v784, %v788
      %v790 = vshrl.u32 %v746, 16
      %v792 = vor.u32 %v790, %v788
      %v794 = vshll.u32 %v747, 16
      %v796 = vrot.slane %v794, 1
      %v797 = vsel %vm761, %v792, %v796
      %v798 = vshrl.u32 %v747, 16
      %v800 = vor.u32 %v798, %v796
      %v802 = vshll.u32 %v748, 16
      %v804 = vrot.slane %v802, 1
      %v805 = vsel %vm761, %v800, %v804
      %v806 = vshrl.u32 %v748, 16
      %v808 = vor.u32 %v806, %v804
      %v810 = vshll.u32 %v749, 16
      %v812 = vrot.slane %v810, 1
      %v813 = vsel %vm761, %v808, %v812
      %v814 = vshrl.u32 %v749, 16
      %v816 = vor.u32 %v814, %v812
      %v818 = vshll.u32 %v750, 16
      %v820 = vrot.slane %v818, 1
      %v821 = vsel %vm761, %v816, %v820
      %v822 = vshrl.u32 %v750, 16
      %v824 = vor.u32 %v822, %v820
      %v826 = vshll.u32 %v751, 16
      %v828 = vrot.slane %v826, 1
      %v829 = vsel %vm761, %v824, %v828
      %v830 = vshrl.u32 %v751, 16
      %v832 = vor.u32 %v830, %v828
      %v834 = vshll.u32 %v752, 16
      %v836 = vrot.slane %v834, 1
      %v837 = vsel %vm761, %v832, %v836
      %v838 = vshrl.u32 %v752, 16
      %v840 = vor.u32 %v838, %v836
      %v842 = vshll.u32 %v753, 16
      %v844 = vrot.slane %v842, 1
      %v845 = vsel %vm761, %v840, %v844
      %v846 = vshrl.u32 %v753, 16
      %v848 = vor.u32 %v846, %v844
      %v850 = vshll.u32 %v754, 16
      %v852 = vrot.slane %v850, 1
      %v853 = vsel %vm761, %v848, %v852
      %v854 = vshrl.u32 %v754, 16
      %v856 = vor.u32 %v854, %v852
      %v858 = vshll.u32 %v755, 16
      %v860 = vrot.slane %v858, 1
      %v861 = vsel %vm761, %v856, %v860
      %v862 = vshrl.u32 %v755, 16
      %v864 = vor.u32 %v862, %v860
      %v866 = vshll.u32 %v756, 16
      %v868 = vrot.slane %v866, 1
      %v869 = vsel %vm761, %v864, %v868
      %v870 = vshrl.u32 %v756, 16
      %v872 = vor.u32 %v870, %v868
      %v874 = vshll.u32 %v757, 16
      %v876 = vrot.slane %v874, 1
      %v877 = vsel %vm761, %v872, %v876
      %v878 = vshrl.u32 %v757, 16
      %v880 = vor.u32 %v878, %v876
      %v882 = vshll.u32 %v758, 16
      %v884 = vrot.slane %v882, 1
      %v885 = vsel %vm761, %v880, %v884
      %v886 = vshrl.u32 %v758, 16
      %v888 = vor.u32 %v886, %v884
      %v890 = vshll.u32 %v759, 16
      %v892 = vrot.slane %v890, 1
      %v893 = vsel %vm761, %v888, %v892
      %v894 = vshrl.u32 %v759, 16
      %v896 = vor.u32 %v894, %v892
      %v898 = vshll.u32 %v760, 16
      %v900 = vrot.slane %v898, 1
      %v901 = vsel %vm761, %v896, %v900
      %v904 = vunpack.c.l.b16 %v671
      %v905 = vunpack.c.l.b16 %v672
      %v906 = vpack.c.b16 %v905, %v904
      %v908 = vsel %vm376, %v773, 0
      %v911 = vsel %vm376, %v781, 0
      %v914 = vsel %vm376, %v789, 0
      %v917 = vsel %vm376, %v797, 0
      %v920 = vsel %vm376, %v805, 0
      %v923 = vsel %vm376, %v813, 0
      %v926 = vsel %vm376, %v821, 0
      %v929 = vsel %vm376, %v829, 0
      %v932 = vsel %vm376, %v837, 0
      %v935 = vsel %vm376, %v845, 0
      %v938 = vsel %vm376, %v853, 0
      %v941 = vsel %vm376, %v861, 0
      %v944 = vsel %vm376, %v869, 0
      %v947 = vsel %vm376, %v877, 0
      %v950 = vsel %vm376, %v885, 0
      %v953 = vsel %vm376, %v893, 0
      %v956 = vsel %vm376, %v901, 0
      %v959 = vsel %vm428, %v906, 0
      %961 = vmatprep.subr.bf16.mxu0 0
      %962 = vmatpush1.bf16.msra.mxu0 %v959
      %963 = vmatprep.subr.bf16.mxu0 0
      %964 = vmatpush1.bf16.msra.mxu0 0
      %965 = vmatprep.subr.bf16.mxu0 0
      %966 = vmatpush1.bf16.msra.mxu0 0
      %967 = vmatprep.subr.bf16.mxu0 0
      %968 = vmatpush1.bf16.msra.mxu0 0
      %969 = vmatprep.subr.bf16.mxu0 0
      %970 = vmatpush1.bf16.msra.mxu0 0
      %971 = vmatprep.subr.bf16.mxu0 0
      %972 = vmatpush1.bf16.msra.mxu0 0
      %973 = vmatprep.subr.bf16.mxu0 0
      %974 = vmatpush1.bf16.msra.mxu0 0
      %975 = vmatprep.subr.bf16.mxu0 0
      %976 = vmatpush1.bf16.msra.mxu0 0
      %977 = vmatprep.subr.bf16.mxu0 0
      %978 = vmatpush1.bf16.msra.mxu0 0
      %979 = vmatprep.subr.bf16.mxu0 0
      %980 = vmatpush1.bf16.msra.mxu0 0
      %981 = vmatprep.subr.bf16.mxu0 0
      %982 = vmatpush1.bf16.msra.mxu0 0
      %983 = vmatprep.subr.bf16.mxu0 0
      %984 = vmatpush1.bf16.msra.mxu0 0
      %985 = vmatprep.subr.bf16.mxu0 0
      %986 = vmatpush1.bf16.msra.mxu0 0
      %987 = vmatprep.subr.bf16.mxu0 0
      %988 = vmatpush1.bf16.msra.mxu0 0
      %989 = vmatprep.subr.bf16.mxu0 0
      %990 = vmatpush1.bf16.msra.mxu0 0
      %991 = vmatprep.subr.bf16.mxu0 0
      %992 = vmatpush1.bf16.msra.mxu0 0
      %993 = vmatprep.mubr.bf16.mxu0 0
      %994 = vmatmul.mubr.bf16.gmra.mrb[0].mxu0 %v908
      %v995 = vpop.f32.mrb[0].mxu0
      %v996 = vadd.f32 0.0, %v995
      %v997 = vpop.f32.mrb[0].mxu0
      %v998 = vpop.f32.mrb[0].mxu0
      %v999 = vadd.f32 0.0, %v998
      %v1000 = vpop.f32.mrb[0].mxu0
      %1001 = vmatprep.mubr.bf16.mxu0 0
      %1002 = vmatmul.mubr.bf16.gmra.mrb[0].mxu0 %v911
      %v1003 = vpop.f32.mrb[0].mxu0
      %v1004 = vadd.f32 0.0, %v1003
      %v1005 = vpop.f32.mrb[0].mxu0
      %v1006 = vpop.f32.mrb[0].mxu0
      %v1007 = vadd.f32 0.0, %v1006
      %v1008 = vpop.f32.mrb[0].mxu0
      %1009 = vmatprep.mubr.bf16.mxu0 0
      %1010 = vmatmul.mubr.bf16.gmra.mrb[0].mxu0 %v914
      %v1011 = vpop.f32.mrb[0].mxu0
      %v1012 = vadd.f32 0.0, %v1011
      %v1013 = vpop.f32.mrb[0].mxu0
      %v1014 = vpop.f32.mrb[0].mxu0
      %v1015 = vadd.f32 0.0, %v1014
      %v1016 = vpop.f32.mrb[0].mxu0
      %1017 = vmatprep.mubr.bf16.mxu0 0
      %1018 = vmatmul.mubr.bf16.gmra.mrb[0].mxu0 %v917
      %v1019 = vpop.f32.mrb[0].mxu0
      %v1020 = vadd.f32 0.0, %v1019
      %v1021 = vpop.f32.mrb[0].mxu0
      %v1022 = vpop.f32.mrb[0].mxu0
      %v1023 = vadd.f32 0.0, %v1022
      %v1024 = vpop.f32.mrb[0].mxu0
      %1025 = vmatprep.mubr.bf16.mxu0 0
      %1026 = vmatmul.mubr.bf16.gmra.mrb[0].mxu0 %v920
      %v1027 = vpop.f32.mrb[0].mxu0
      %v1028 = vadd.f32 0.0, %v1027
      %v1029 = vpop.f32.mrb[0].mxu0
      %v1030 = vpop.f32.mrb[0].mxu0
      %v1031 = vadd.f32 0.0, %v1030
      %v1032 = vpop.f32.mrb[0].mxu0
      %1033 = vmatprep.mubr.bf16.mxu0 0
      %1034 = vmatmul.mubr.bf16.gmra.mrb[0].mxu0 %v923
      %v1035 = vpop.f32.mrb[0].mxu0
      %v1036 = vadd.f32 0.0, %v1035
      %v1037 = vpop.f32.mrb[0].mxu0
      %v1038 = vpop.f32.mrb[0].mxu0
      %v1039 = vadd.f32 0.0, %v1038
      %v1040 = vpop.f32.mrb[0].mxu0
      %1041 = vmatprep.mubr.bf16.mxu0 0
      %1042 = vmatmul.mubr.bf16.gmra.mrb[0].mxu0 %v926
      %v1043 = vpop.f32.mrb[0].mxu0
      %v1044 = vadd.f32 0.0, %v1043
      %v1045 = vpop.f32.mrb[0].mxu0
      %v1046 = vpop.f32.mrb[0].mxu0
      %v1047 = vadd.f32 0.0, %v1046
      %v1048 = vpop.f32.mrb[0].mxu0
      %1049 = vmatprep.mubr.bf16.mxu0 0
      %1050 = vmatmul.mubr.bf16.gmra.mrb[0].mxu0 %v929
      %v1051 = vpop.f32.mrb[0].mxu0
      %v1052 = vadd.f32 0.0, %v1051
      %v1053 = vpop.f32.mrb[0].mxu0
      %v1054 = vpop.f32.mrb[0].mxu0
      %v1055 = vadd.f32 0.0, %v1054
      %v1056 = vpop.f32.mrb[0].mxu0
      %1057 = vmatprep.mubr.bf16.mxu0 0
      %1058 = vmatmul.mubr.bf16.gmra.mrb[0].mxu0 %v932
      %v1059 = vpop.f32.mrb[0].mxu0
      %v1060 = vadd.f32 0.0, %v1059
      %v1061 = vpop.f32.mrb[0].mxu0
      %v1062 = vpop.f32.mrb[0].mxu0
      %v1063 = vadd.f32 0.0, %v1062
      %v1064 = vpop.f32.mrb[0].mxu0
      %1065 = vmatprep.mubr.bf16.mxu0 0
      %1066 = vmatmul.mubr.bf16.gmra.mrb[0].mxu0 %v935
      %v1067 = vpop.f32.mrb[0].mxu0
      %v1068 = vadd.f32 0.0, %v1067
      %v1069 = vpop.f32.mrb[0].mxu0
      %v1070 = vpop.f32.mrb[0].mxu0
      %v1071 = vadd.f32 0.0, %v1070
      %v1072 = vpop.f32.mrb[0].mxu0
      %1073 = vmatprep.mubr.bf16.mxu0 0
      %1074 = vmatmul.mubr.bf16.gmra.mrb[0].mxu0 %v938
      %v1075 = vpop.f32.mrb[0].mxu0
      %v1076 = vadd.f32 0.0, %v1075
      %v1077 = vpop.f32.mrb[0].mxu0
      %v1078 = vpop.f32.mrb[0].mxu0
      %v1079 = vadd.f32 0.0, %v1078
      %v1080 = vpop.f32.mrb[0].mxu0
      %1081 = vmatprep.mubr.bf16.mxu0 0
      %1082 = vmatmul.mubr.bf16.gmra.mrb[0].mxu0 %v941
      %v1083 = vpop.f32.mrb[0].mxu0
      %v1084 = vadd.f32 0.0, %v1083
      %v1085 = vpop.f32.mrb[0].mxu0
      %v1086 = vpop.f32.mrb[0].mxu0
      %v1087 = vadd.f32 0.0, %v1086
      %v1088 = vpop.f32.mrb[0].mxu0
      %1089 = vmatprep.mubr.bf16.mxu0 0
      %1090 = vmatmul.mubr.bf16.gmra.mrb[0].mxu0 %v944
      %v1091 = vpop.f32.mrb[0].mxu0
      %v1092 = vadd.f32 0.0, %v1091
      %v1093 = vpop.f32.mrb[0].mxu0
      %v1094 = vpop.f32.mrb[0].mxu0
      %v1095 = vadd.f32 0.0, %v1094
      %v1096 = vpop.f32.mrb[0].mxu0
      %1097 = vmatprep.mubr.bf16.mxu0 0
      %1098 = vmatmul.mubr.bf16.gmra.mrb[0].mxu0 %v947
      %v1099 = vpop.f32.mrb[0].mxu0
      %v1100 = vadd.f32 0.0, %v1099
      %v1101 = vpop.f32.mrb[0].mxu0
      %v1102 = vpop.f32.mrb[0].mxu0
      %v1103 = vadd.f32 0.0, %v1102
      %v1104 = vpop.f32.mrb[0].mxu0
      %1105 = vmatprep.mubr.bf16.mxu0 0
      %1106 = vmatmul.mubr.bf16.gmra.mrb[0].mxu0 %v950
      %v1107 = vpop.f32.mrb[0].mxu0
      %v1108 = vadd.f32 0.0, %v1107
      %v1109 = vpop.f32.mrb[0].mxu0
      %v1110 = vpop.f32.mrb[0].mxu0
      %v1111 = vadd.f32 0.0, %v1110
      %v1112 = vpop.f32.mrb[0].mxu0
      %1113 = vmatprep.mubr.bf16.mxu0 0
      %1114 = vmatmul.mubr.bf16.gmra.mrb[0].mxu0 %v953
      %v1115 = vpop.f32.mrb[0].mxu0
      %v1116 = vadd.f32 0.0, %v1115
      %v1117 = vpop.f32.mrb[0].mxu0
      %v1118 = vpop.f32.mrb[0].mxu0
      %v1119 = vadd.f32 0.0, %v1118
      %v1120 = vpop.f32.mrb[0].mxu0
      %1121 = vmatprep.mubr.bf16.mxu0 0
      %1122 = vmatmul.mubr.bf16.gmra.mrb[0].mxu0 %v956
      %v1123 = vpop.f32.mrb[0].mxu0
      %v1124 = vadd.f32 0.0, %v1123
      %v1125 = vpop.f32.mrb[0].mxu0
      %v1126 = vpop.f32.mrb[0].mxu0
      %v1127 = vadd.f32 0.0, %v1126
      %v1128 = vpop.f32.mrb[0].mxu0
      %1129 = vdwg.mxu0
      %v1130 = vld [vmem:[#allocation2] sm:$0xff]
      %v1131 = vld [vmem:[#allocation2 + $0x8] sm:$0xff]
      %v1132 = vld [vmem:[#allocation2 + $0x10] sm:$0xff]
      %v1133 = vld [vmem:[#allocation2 + $0x18] sm:$0xff]
      %v1134 = vld [vmem:[#allocation2 + $0x20] sm:$0xff]
      %v1135 = vld [vmem:[#allocation2 + $0x28] sm:$0xff]
      %v1136 = vld [vmem:[#allocation2 + $0x30] sm:$0xff]
      %v1137 = vld [vmem:[#allocation2 + $0x38] sm:$0xff]
      %v1138 = vld [vmem:[#allocation2 + $0x40] sm:$0xff]
      %v1139 = vld [vmem:[#allocation2 + $0x48] sm:$0xff]
      %v1140 = vld [vmem:[#allocation2 + $0x50] sm:$0xff]
      %v1141 = vld [vmem:[#allocation2 + $0x58] sm:$0xff]
      %v1142 = vld [vmem:[#allocation2 + $0x60] sm:$0xff]
      %v1143 = vld [vmem:[#allocation2 + $0x68] sm:$0xff]
      %v1144 = vld [vmem:[#allocation2 + $0x70] sm:$0xff]
      %v1145 = vld [vmem:[#allocation2 + $0x78] sm:$0xff]
      %v1146 = vld [vmem:[#allocation2 + $0x80] sm:$0xff]
      %v1147 = vld [vmem:[#allocation2 + $0x88] sm:$0xff]
      %v1148 = vld [vmem:[#allocation2 + $0x90] sm:$0xff]
      %v1149 = vld [vmem:[#allocation2 + $0x98] sm:$0xff]
      %v1150 = vld [vmem:[#allocation2 + $0xa0] sm:$0xff]
      %v1151 = vld [vmem:[#allocation2 + $0xa8] sm:$0xff]
      %v1152 = vld [vmem:[#allocation2 + $0xb0] sm:$0xff]
      %v1153 = vld [vmem:[#allocation2 + $0xb8] sm:$0xff]
      %v1154 = vld [vmem:[#allocation2 + $0xc0] sm:$0xff]
      %v1155 = vld [vmem:[#allocation2 + $0xc8] sm:$0xff]
      %v1156 = vld [vmem:[#allocation2 + $0xd0] sm:$0xff]
      %v1157 = vld [vmem:[#allocation2 + $0xd8] sm:$0xff]
      %v1158 = vld [vmem:[#allocation2 + $0xe0] sm:$0xff]
      %v1159 = vld [vmem:[#allocation2 + $0xe8] sm:$0xff]
      %v1160 = vld [vmem:[#allocation2 + $0xf0] sm:$0xff]
      %v1161 = vld [vmem:[#allocation2 + $0xf8] sm:$0xff]
      %v1162 = vld [vmem:[#allocation2 + $0x100] sm:$0xff]
      %v1163 = vld [vmem:[#allocation2 + $0x108] sm:$0xff]
      %v1164 = vadd.f32 %v1130, %v996
      %v1165 = vadd.f32 %v1131, %v999
      %v1166 = vadd.f32 %v1132, %v1004
      %v1167 = vadd.f32 %v1133, %v1007
      %v1168 = vadd.f32 %v1134, %v1012
      %v1169 = vadd.f32 %v1135, %v1015
      %v1170 = vadd.f32 %v1136, %v1020
      %v1171 = vadd.f32 %v1137, %v1023
      %v1172 = vadd.f32 %v1138, %v1028
      %v1173 = vadd.f32 %v1139, %v1031
      %v1174 = vadd.f32 %v1140, %v1036
      %v1175 = vadd.f32 %v1141, %v1039
      %v1176 = vadd.f32 %v1142, %v1044
      %v1177 = vadd.f32 %v1143, %v1047
      %v1178 = vadd.f32 %v1144, %v1052
      %v1179 = vadd.f32 %v1145, %v1055
      %v1180 = vadd.f32 %v1146, %v1060
      %v1181 = vadd.f32 %v1147, %v1063
      %v1182 = vadd.f32 %v1148, %v1068
      %v1183 = vadd.f32 %v1149, %v1071
      %v1184 = vadd.f32 %v1150, %v1076
      %v1185 = vadd.f32 %v1151, %v1079
      %v1186 = vadd.f32 %v1152, %v1084
      %v1187 = vadd.f32 %v1153, %v1087
      %v1188 = vadd.f32 %v1154, %v1092
      %v1189 = vadd.f32 %v1155, %v1095
      %v1190 = vadd.f32 %v1156, %v1100
      %v1191 = vadd.f32 %v1157, %v1103
      %v1192 = vadd.f32 %v1158, %v1108
      %v1193 = vadd.f32 %v1159, %v1111
      %v1194 = vadd.f32 %v1160, %v1116
      %v1195 = vadd.f32 %v1161, %v1119
      %v1196 = vadd.f32 %v1162, %v1124
      %v1197 = vadd.f32 %v1163, %v1127
      %1198 = vst [vmem:[#allocation2] sm:$0xff] %v1164
      %1199 = vst [vmem:[#allocation2 + $0x8] sm:$0xff] %v1165
      %1200 = vst [vmem:[#allocation2 + $0x10] sm:$0xff] %v1166
      %1201 = vst [vmem:[#allocation2 + $0x18] sm:$0xff] %v1167
      %1202 = vst [vmem:[#allocation2 + $0x20] sm:$0xff] %v1168
      %1203 = vst [vmem:[#allocation2 + $0x28] sm:$0xff] %v1169
      %1204 = vst [vmem:[#allocation2 + $0x30] sm:$0xff] %v1170
      %1205 = vst [vmem:[#allocation2 + $0x38] sm:$0xff] %v1171
      %1206 = vst [vmem:[#allocation2 + $0x40] sm:$0xff] %v1172
      %1207 = vst [vmem:[#allocation2 + $0x48] sm:$0xff] %v1173
      %1208 = vst [vmem:[#allocation2 + $0x50] sm:$0xff] %v1174
      %1209 = vst [vmem:[#allocation2 + $0x58] sm:$0xff] %v1175
      %1210 = vst [vmem:[#allocation2 + $0x60] sm:$0xff] %v1176
      %1211 = vst [vmem:[#allocation2 + $0x68] sm:$0xff] %v1177
      %1212 = vst [vmem:[#allocation2 + $0x70] sm:$0xff] %v1178
      %1213 = vst [vmem:[#allocation2 + $0x78] sm:$0xff] %v1179
      %1214 = vst [vmem:[#allocation2 + $0x80] sm:$0xff] %v1180
      %1215 = vst [vmem:[#allocation2 + $0x88] sm:$0xff] %v1181
      %1216 = vst [vmem:[#allocation2 + $0x90] sm:$0xff] %v1182
      %1217 = vst [vmem:[#allocation2 + $0x98] sm:$0xff] %v1183
      %1218 = vst [vmem:[#allocation2 + $0xa0] sm:$0xff] %v1184
      %1219 = vst [vmem:[#allocation2 + $0xa8] sm:$0xff] %v1185
      %1220 = vst [vmem:[#allocation2 + $0xb0] sm:$0xff] %v1186
      %1221 = vst [vmem:[#allocation2 + $0xb8] sm:$0xff] %v1187
      %1222 = vst [vmem:[#allocation2 + $0xc0] sm:$0xff] %v1188
      %1223 = vst [vmem:[#allocation2 + $0xc8] sm:$0xff] %v1189
      %1224 = vst [vmem:[#allocation2 + $0xd0] sm:$0xff] %v1190
      %1225 = vst [vmem:[#allocation2 + $0xd8] sm:$0xff] %v1191
      %1226 = vst [vmem:[#allocation2 + $0xe0] sm:$0xff] %v1192
      %1227 = vst [vmem:[#allocation2 + $0xe8] sm:$0xff] %v1193
      %1228 = vst [vmem:[#allocation2 + $0xf0] sm:$0xff] %v1194
      %1229 = vst [vmem:[#allocation2 + $0xf8] sm:$0xff] %v1195
      %1230 = vst [vmem:[#allocation2 + $0x100] sm:$0xff] %v1196
      %1231 = vst [vmem:[#allocation2 + $0x108] sm:$0xff] %v1197
      %v1232 = vld [vmem:[%s233 + $0x8] sm:$0xf]
      %v1233 = vld [vmem:[%s233 + $0xc] sm:$0xf]
      %v1234 = vld [vmem:[%s233 + $0x10] sm:$0xf]
      %v1235 = vld [vmem:[%s233 + $0x14] sm:$0xf]
      %v1236 = vld [vmem:[%s233 + $0x18] sm:$0xf]
      %v1237 = vld [vmem:[%s233 + $0x1c] sm:$0xf]
      %v1238 = vld [vmem:[%s233 + $0x20] sm:$0xf]
      %v1239 = vld [vmem:[%s233 + $0x24] sm:$0xf]
      %v1240 = vld [vmem:[%s233 + $0x28] sm:$0xf]
      %v1241 = vld [vmem:[%s233 + $0x2c] sm:$0xf]
      %v1242 = vld [vmem:[%s233 + $0x30] sm:$0xf]
      %v1243 = vld [vmem:[%s233 + $0x34] sm:$0xf]
      %v1244 = vld [vmem:[%s233 + $0x38] sm:$0xf]
      %v1245 = vld [vmem:[%s233 + $0x3c] sm:$0xf]
      %v1246 = vld [vmem:[%s233 + $0x40] sm:$0xf]
      %v1247 = vld [vmem:[%s233 + $0x44] sm:$0xf]
      %v1248 = vld [vmem:[%s233 + $0x48] sm:$0xf]
      %v1249 = vld [vmem:[%s233 + $0x4c] sm:$0xf]
      %v1250 = vld [vmem:[%s233 + $0x50] sm:$0xf]
      %v1251 = vld [vmem:[%s233 + $0x54] sm:$0xf]
      %v1252 = vld [vmem:[%s233 + $0x58] sm:$0xf]
      %v1253 = vld [vmem:[%s233 + $0x5c] sm:$0xf]
      %v1254 = vld [vmem:[%s233 + $0x60] sm:$0xf]
      %v1255 = vld [vmem:[%s233 + $0x64] sm:$0xf]
      %v1256 = vld [vmem:[%s233 + $0x68] sm:$0xf]
      %v1257 = vld [vmem:[%s233 + $0x6c] sm:$0xf]
      %v1258 = vld [vmem:[%s233 + $0x70] sm:$0xf]
      %v1259 = vld [vmem:[%s233 + $0x74] sm:$0xf]
      %v1260 = vld [vmem:[%s233 + $0x78] sm:$0xf]
      %v1261 = vld [vmem:[%s233 + $0x7c] sm:$0xf]
      %v1262 = vld [vmem:[%s233 + $0x80] sm:$0xf]
      %v1263 = vld [vmem:[%s233 + $0x84] sm:$0xf]
      %v1264 = vld [vmem:[%s233 + $0x88] sm:$0xf]
      %v1265 = vld [vmem:[%s233 + $0x8c] sm:$0xf]
      %v1266 = vld [vmem:[%s233 + $0x90] sm:$0x1]
      %s1267 = scalar_lea.vmem %s237, 16
      %v1268 = vld [vmem:[%s1267] sm:$0xf]
      %v1269 = vld [vmem:[%s1267 + $0x4] sm:$0x3]
      %v1305 = vunpack.c.l.b16 %v1232
      %v1306 = vunpack.c.l.b16 %v1233
      %v1307 = vunpack.c.l.b16 %v1234
      %v1308 = vunpack.c.l.b16 %v1235
      %v1309 = vunpack.c.l.b16 %v1236
      %v1310 = vunpack.c.l.b16 %v1237
      %v1311 = vunpack.c.l.b16 %v1238
      %v1312 = vunpack.c.l.b16 %v1239
      %v1313 = vunpack.c.l.b16 %v1240
      %v1314 = vunpack.c.l.b16 %v1241
      %v1315 = vunpack.c.l.b16 %v1242
      %v1316 = vunpack.c.l.b16 %v1243
      %v1317 = vunpack.c.l.b16 %v1244
      %v1318 = vunpack.c.l.b16 %v1245
      %v1319 = vunpack.c.l.b16 %v1246
      %v1320 = vunpack.c.l.b16 %v1247
      %v1321 = vunpack.c.l.b16 %v1248
      %v1322 = vunpack.c.l.b16 %v1249
      %v1323 = vunpack.c.l.b16 %v1250
      %v1324 = vunpack.c.l.b16 %v1251
      %v1325 = vunpack.c.l.b16 %v1252
      %v1326 = vunpack.c.l.b16 %v1253
      %v1327 = vunpack.c.l.b16 %v1254
      %v1328 = vunpack.c.l.b16 %v1255
      %v1329 = vunpack.c.l.b16 %v1256
      %v1330 = vunpack.c.l.b16 %v1257
      %v1331 = vunpack.c.l.b16 %v1258
      %v1332 = vunpack.c.l.b16 %v1259
      %v1333 = vunpack.c.l.b16 %v1260
      %v1334 = vunpack.c.l.b16 %v1261
      %v1335 = vunpack.c.l.b16 %v1262
      %v1336 = vunpack.c.l.b16 %v1263
      %v1337 = vunpack.c.l.b16 %v1264
      %v1338 = vunpack.c.l.b16 %v1265
      %v1339 = vunpack.c.l.b16 %v1266
      %v1340 = vpack.c.b16 %v1306, %v1305
      %v1341 = vpack.c.b16 %v1308, %v1307
      %v1342 = vpack.c.b16 %v1310, %v1309
      %v1343 = vpack.c.b16 %v1312, %v1311
      %v1344 = vpack.c.b16 %v1314, %v1313
      %v1345 = vpack.c.b16 %v1316, %v1315
      %v1346 = vpack.c.b16 %v1318, %v1317
      %v1347 = vpack.c.b16 %v1320, %v1319
      %v1348 = vpack.c.b16 %v1322, %v1321
      %v1349 = vpack.c.b16 %v1324, %v1323
      %v1350 = vpack.c.b16 %v1326, %v1325
      %v1351 = vpack.c.b16 %v1328, %v1327
      %v1352 = vpack.c.b16 %v1330, %v1329
      %v1353 = vpack.c.b16 %v1332, %v1331
      %v1354 = vpack.c.b16 %v1334, %v1333
      %v1355 = vpack.c.b16 %v1336, %v1335
      %v1356 = vpack.c.b16 %v1338, %v1337
      %v1357 = vpack.c.b16 %v1339, %v1339
      %v1359 = vshrl.u32 %v1340, 16
      %v1361 = vshll.u32 %v1340, 16
      %v1363 = vrot.slane %v1361, 1
      %v1364 = vor.u32 %v1359, %v1363
      %v1366 = vshll.u32 %v1341, 16
      %v1368 = vrot.slane %v1366, 1
      %v1369 = vsel %vm761, %v1364, %v1368
      %v1370 = vshrl.u32 %v1341, 16
      %v1372 = vor.u32 %v1370, %v1368
      %v1374 = vshll.u32 %v1342, 16
      %v1376 = vrot.slane %v1374, 1
      %v1377 = vsel %vm761, %v1372, %v1376
      %v1378 = vshrl.u32 %v1342, 16
      %v1380 = vor.u32 %v1378, %v1376
      %v1382 = vshll.u32 %v1343, 16
      %v1384 = vrot.slane %v1382, 1
      %v1385 = vsel %vm761, %v1380, %v1384
      %v1386 = vshrl.u32 %v1343, 16
      %v1388 = vor.u32 %v1386, %v1384
      %v1390 = vshll.u32 %v1344, 16
      %v1392 = vrot.slane %v1390, 1
      %v1393 = vsel %vm761, %v1388, %v1392
      %v1394 = vshrl.u32 %v1344, 16
      %v1396 = vor.u32 %v1394, %v1392
      %v1398 = vshll.u32 %v1345, 16
      %v1400 = vrot.slane %v1398, 1
      %v1401 = vsel %vm761, %v1396, %v1400
      %v1402 = vshrl.u32 %v1345, 16
      %v1404 = vor.u32 %v1402, %v1400
      %v1406 = vshll.u32 %v1346, 16
      %v1408 = vrot.slane %v1406, 1
      %v1409 = vsel %vm761, %v1404, %v1408
      %v1410 = vshrl.u32 %v1346, 16
      %v1412 = vor.u32 %v1410, %v1408
      %v1414 = vshll.u32 %v1347, 16
      %v1416 = vrot.slane %v1414, 1
      %v1417 = vsel %vm761, %v1412, %v1416
      %v1418 = vshrl.u32 %v1347, 16
      %v1420 = vor.u32 %v1418, %v1416
      %v1422 = vshll.u32 %v1348, 16
      %v1424 = vrot.slane %v1422, 1
      %v1425 = vsel %vm761, %v1420, %v1424
      %v1426 = vshrl.u32 %v1348, 16
      %v1428 = vor.u32 %v1426, %v1424
      %v1430 = vshll.u32 %v1349, 16
      %v1432 = vrot.slane %v1430, 1
      %v1433 = vsel %vm761, %v1428, %v1432
      %v1434 = vshrl.u32 %v1349, 16
      %v1436 = vor.u32 %v1434, %v1432
      %v1438 = vshll.u32 %v1350, 16
      %v1440 = vrot.slane %v1438, 1
      %v1441 = vsel %vm761, %v1436, %v1440
      %v1442 = vshrl.u32 %v1350, 16
      %v1444 = vor.u32 %v1442, %v1440
      %v1446 = vshll.u32 %v1351, 16
      %v1448 = vrot.slane %v1446, 1
      %v1449 = vsel %vm761, %v1444, %v1448
      %v1450 = vshrl.u32 %v1351, 16
      %v1452 = vor.u32 %v1450, %v1448
      %v1454 = vshll.u32 %v1352, 16
      %v1456 = vrot.slane %v1454, 1
      %v1457 = vsel %vm761, %v1452, %v1456
      %v1458 = vshrl.u32 %v1352, 16
      %v1460 = vor.u32 %v1458, %v1456
      %v1462 = vshll.u32 %v1353, 16
      %v1464 = vrot.slane %v1462, 1
      %v1465 = vsel %vm761, %v1460, %v1464
      %v1466 = vshrl.u32 %v1353, 16
      %v1468 = vor.u32 %v1466, %v1464
      %v1470 = vshll.u32 %v1354, 16
      %v1472 = vrot.slane %v1470, 1
      %v1473 = vsel %vm761, %v1468, %v1472
      %v1474 = vshrl.u32 %v1354, 16
      %v1476 = vor.u32 %v1474, %v1472
      %v1478 = vshll.u32 %v1355, 16
      %v1480 = vrot.slane %v1478, 1
      %v1481 = vsel %vm761, %v1476, %v1480
      %v1482 = vshrl.u32 %v1355, 16
      %v1484 = vor.u32 %v1482, %v1480
      %v1486 = vshll.u32 %v1356, 16
      %v1488 = vrot.slane %v1486, 1
      %v1489 = vsel %vm761, %v1484, %v1488
      %v1490 = vshrl.u32 %v1356, 16
      %v1492 = vor.u32 %v1490, %v1488
      %v1494 = vshll.u32 %v1357, 16
      %v1496 = vrot.slane %v1494, 1
      %v1497 = vsel %vm761, %v1492, %v1496
      %v1500 = vunpack.c.l.b16 %v1268
      %v1501 = vunpack.c.l.b16 %v1269
      %v1502 = vpack.c.b16 %v1501, %v1500
      %v1504 = vsel %vm376, %v1369, 0
      %v1507 = vsel %vm376, %v1377, 0
      %v1510 = vsel %vm376, %v1385, 0
      %v1513 = vsel %vm376, %v1393, 0
      %v1516 = vsel %vm376, %v1401, 0
      %v1519 = vsel %vm376, %v1409, 0
      %v1522 = vsel %vm376, %v1417, 0
      %v1525 = vsel %vm376, %v1425, 0
      %v1528 = vsel %vm376, %v1433, 0
      %v1531 = vsel %vm376, %v1441, 0
      %v1534 = vsel %vm376, %v1449, 0
      %v1537 = vsel %vm376, %v1457, 0
      %v1540 = vsel %vm376, %v1465, 0
      %v1543 = vsel %vm376, %v1473, 0
      %v1546 = vsel %vm376, %v1481, 0
      %v1549 = vsel %vm376, %v1489, 0
      %v1552 = vsel %vm376, %v1497, 0
      %v1555 = vsel %vm428, %v1502, 0
      %1557 = vmatprep.subr.bf16.mxu0 0
      %1558 = vmatpush1.bf16.msra.mxu0 %v1555
      %1559 = vmatprep.subr.bf16.mxu0 0
      %1560 = vmatpush1.bf16.msra.mxu0 0
      %1561 = vmatprep.subr.bf16.mxu0 0
      %1562 = vmatpush1.bf16.msra.mxu0 0
      %1563 = vmatprep.subr.bf16.mxu0 0
      %1564 = vmatpush1.bf16.msra.mxu0 0
      %1565 = vmatprep.subr.bf16.mxu0 0
      %1566 = vmatpush1.bf16.msra.mxu0 0
      %1567 = vmatprep.subr.bf16.mxu0 0
      %1568 = vmatpush1.bf16.msra.mxu0 0
      %1569 = vmatprep.subr.bf16.mxu0 0
      %1570 = vmatpush1.bf16.msra.mxu0 0
      %1571 = vmatprep.subr.bf16.mxu0 0
      %1572 = vmatpush1.bf16.msra.mxu0 0
      %1573 = vmatprep.subr.bf16.mxu0 0
      %1574 = vmatpush1.bf16.msra.mxu0 0
      %1575 = vmatprep.subr.bf16.mxu0 0
      %1576 = vmatpush1.bf16.msra.mxu0 0
      %1577 = vmatprep.subr.bf16.mxu0 0
      %1578 = vmatpush1.bf16.msra.mxu0 0
      %1579 = vmatprep.subr.bf16.mxu0 0
      %1580 = vmatpush1.bf16.msra.mxu0 0
      %1581 = vmatprep.subr.bf16.mxu0 0
      %1582 = vmatpush1.bf16.msra.mxu0 0
      %1583 = vmatprep.subr.bf16.mxu0 0
      %1584 = vmatpush1.bf16.msra.mxu0 0
      %1585 = vmatprep.subr.bf16.mxu0 0
      %1586 = vmatpush1.bf16.msra.mxu0 0
      %1587 = vmatprep.subr.bf16.mxu0 0
      %1588 = vmatpush1.bf16.msra.mxu0 0
      %1589 = vmatprep.mubr.bf16.mxu0 0
      %1590 = vmatmul.mubr.bf16.gmra.mrb[0].mxu0 %v1504
      %v1591 = vpop.f32.mrb[0].mxu0
      %v1592 = vadd.f32 0.0, %v1591
      %v1593 = vpop.f32.mrb[0].mxu0
      %v1594 = vpop.f32.mrb[0].mxu0
      %v1595 = vadd.f32 0.0, %v1594
      %v1596 = vpop.f32.mrb[0].mxu0
      %1597 = vmatprep.mubr.bf16.mxu0 0
      %1598 = vmatmul.mubr.bf16.gmra.mrb[0].mxu0 %v1507
      %v1599 = vpop.f32.mrb[0].mxu0
      %v1600 = vadd.f32 0.0, %v1599
      %v1601 = vpop.f32.mrb[0].mxu0
      %v1602 = vpop.f32.mrb[0].mxu0
      %v1603 = vadd.f32 0.0, %v1602
      %v1604 = vpop.f32.mrb[0].mxu0
      %1605 = vmatprep.mubr.bf16.mxu0 0
      %1606 = vmatmul.mubr.bf16.gmra.mrb[0].mxu0 %v1510
      %v1607 = vpop.f32.mrb[0].mxu0
      %v1608 = vadd.f32 0.0, %v1607
      %v1609 = vpop.f32.mrb[0].mxu0
      %v1610 = vpop.f32.mrb[0].mxu0
      %v1611 = vadd.f32 0.0, %v1610
      %v1612 = vpop.f32.mrb[0].mxu0
      %1613 = vmatprep.mubr.bf16.mxu0 0
      %1614 = vmatmul.mubr.bf16.gmra.mrb[0].mxu0 %v1513
      %v1615 = vpop.f32.mrb[0].mxu0
      %v1616 = vadd.f32 0.0, %v1615
      %v1617 = vpop.f32.mrb[0].mxu0
      %v1618 = vpop.f32.mrb[0].mxu0
      %v1619 = vadd.f32 0.0, %v1618
      %v1620 = vpop.f32.mrb[0].mxu0
      %1621 = vmatprep.mubr.bf16.mxu0 0
      %1622 = vmatmul.mubr.bf16.gmra.mrb[0].mxu0 %v1516
      %v1623 = vpop.f32.mrb[0].mxu0
      %v1624 = vadd.f32 0.0, %v1623
      %v1625 = vpop.f32.mrb[0].mxu0
      %v1626 = vpop.f32.mrb[0].mxu0
      %v1627 = vadd.f32 0.0, %v1626
      %v1628 = vpop.f32.mrb[0].mxu0
      %1629 = vmatprep.mubr.bf16.mxu0 0
      %1630 = vmatmul.mubr.bf16.gmra.mrb[0].mxu0 %v1519
      %v1631 = vpop.f32.mrb[0].mxu0
      %v1632 = vadd.f32 0.0, %v1631
      %v1633 = vpop.f32.mrb[0].mxu0
      %v1634 = vpop.f32.mrb[0].mxu0
      %v1635 = vadd.f32 0.0, %v1634
      %v1636 = vpop.f32.mrb[0].mxu0
      %1637 = vmatprep.mubr.bf16.mxu0 0
      %1638 = vmatmul.mubr.bf16.gmra.mrb[0].mxu0 %v1522
      %v1639 = vpop.f32.mrb[0].mxu0
      %v1640 = vadd.f32 0.0, %v1639
      %v1641 = vpop.f32.mrb[0].mxu0
      %v1642 = vpop.f32.mrb[0].mxu0
      %v1643 = vadd.f32 0.0, %v1642
      %v1644 = vpop.f32.mrb[0].mxu0
      %1645 = vmatprep.mubr.bf16.mxu0 0
      %1646 = vmatmul.mubr.bf16.gmra.mrb[0].mxu0 %v1525
      %v1647 = vpop.f32.mrb[0].mxu0
      %v1648 = vadd.f32 0.0, %v1647
      %v1649 = vpop.f32.mrb[0].mxu0
      %v1650 = vpop.f32.mrb[0].mxu0
      %v1651 = vadd.f32 0.0, %v1650
      %v1652 = vpop.f32.mrb[0].mxu0
      %1653 = vmatprep.mubr.bf16.mxu0 0
      %1654 = vmatmul.mubr.bf16.gmra.mrb[0].mxu0 %v1528
      %v1655 = vpop.f32.mrb[0].mxu0
      %v1656 = vadd.f32 0.0, %v1655
      %v1657 = vpop.f32.mrb[0].mxu0
      %v1658 = vpop.f32.mrb[0].mxu0
      %v1659 = vadd.f32 0.0, %v1658
      %v1660 = vpop.f32.mrb[0].mxu0
      %1661 = vmatprep.mubr.bf16.mxu0 0
      %1662 = vmatmul.mubr.bf16.gmra.mrb[0].mxu0 %v1531
      %v1663 = vpop.f32.mrb[0].mxu0
      %v1664 = vadd.f32 0.0, %v1663
      %v1665 = vpop.f32.mrb[0].mxu0
      %v1666 = vpop.f32.mrb[0].mxu0
      %v1667 = vadd.f32 0.0, %v1666
      %v1668 = vpop.f32.mrb[0].mxu0
      %1669 = vmatprep.mubr.bf16.mxu0 0
      %1670 = vmatmul.mubr.bf16.gmra.mrb[0].mxu0 %v1534
      %v1671 = vpop.f32.mrb[0].mxu0
      %v1672 = vadd.f32 0.0, %v1671
      %v1673 = vpop.f32.mrb[0].mxu0
      %v1674 = vpop.f32.mrb[0].mxu0
      %v1675 = vadd.f32 0.0, %v1674
      %v1676 = vpop.f32.mrb[0].mxu0
      %1677 = vmatprep.mubr.bf16.mxu0 0
      %1678 = vmatmul.mubr.bf16.gmra.mrb[0].mxu0 %v1537
      %v1679 = vpop.f32.mrb[0].mxu0
      %v1680 = vadd.f32 0.0, %v1679
      %v1681 = vpop.f32.mrb[0].mxu0
      %v1682 = vpop.f32.mrb[0].mxu0
      %v1683 = vadd.f32 0.0, %v1682
      %v1684 = vpop.f32.mrb[0].mxu0
      %1685 = vmatprep.mubr.bf16.mxu0 0
      %1686 = vmatmul.mubr.bf16.gmra.mrb[0].mxu0 %v1540
      %v1687 = vpop.f32.mrb[0].mxu0
      %v1688 = vadd.f32 0.0, %v1687
      %v1689 = vpop.f32.mrb[0].mxu0
      %v1690 = vpop.f32.mrb[0].mxu0
      %v1691 = vadd.f32 0.0, %v1690
      %v1692 = vpop.f32.mrb[0].mxu0
      %1693 = vmatprep.mubr.bf16.mxu0 0
      %1694 = vmatmul.mubr.bf16.gmra.mrb[0].mxu0 %v1543
      %v1695 = vpop.f32.mrb[0].mxu0
      %v1696 = vadd.f32 0.0, %v1695
      %v1697 = vpop.f32.mrb[0].mxu0
      %v1698 = vpop.f32.mrb[0].mxu0
      %v1699 = vadd.f32 0.0, %v1698
      %v1700 = vpop.f32.mrb[0].mxu0
      %1701 = vmatprep.mubr.bf16.mxu0 0
      %1702 = vmatmul.mubr.bf16.gmra.mrb[0].mxu0 %v1546
      %v1703 = vpop.f32.mrb[0].mxu0
      %v1704 = vadd.f32 0.0, %v1703
      %v1705 = vpop.f32.mrb[0].mxu0
      %v1706 = vpop.f32.mrb[0].mxu0
      %v1707 = vadd.f32 0.0, %v1706
      %v1708 = vpop.f32.mrb[0].mxu0
      %1709 = vmatprep.mubr.bf16.mxu0 0
      %1710 = vmatmul.mubr.bf16.gmra.mrb[0].mxu0 %v1549
      %v1711 = vpop.f32.mrb[0].mxu0
      %v1712 = vadd.f32 0.0, %v1711
      %v1713 = vpop.f32.mrb[0].mxu0
      %v1714 = vpop.f32.mrb[0].mxu0
      %v1715 = vadd.f32 0.0, %v1714
      %v1716 = vpop.f32.mrb[0].mxu0
      %1717 = vmatprep.mubr.bf16.mxu0 0
      %1718 = vmatmul.mubr.bf16.gmra.mrb[0].mxu0 %v1552
      %v1719 = vpop.f32.mrb[0].mxu0
      %v1720 = vadd.f32 0.0, %v1719
      %v1721 = vpop.f32.mrb[0].mxu0
      %v1722 = vpop.f32.mrb[0].mxu0
      %v1723 = vadd.f32 0.0, %v1722
      %v1724 = vpop.f32.mrb[0].mxu0
      %1725 = vdwg.mxu0
      %v1726 = vld [vmem:[#allocation2] sm:$0xff]
      %v1727 = vld [vmem:[#allocation2 + $0x8] sm:$0xff]
      %v1728 = vld [vmem:[#allocation2 + $0x10] sm:$0xff]
      %v1729 = vld [vmem:[#allocation2 + $0x18] sm:$0xff]
      %v1730 = vld [vmem:[#allocation2 + $0x20] sm:$0xff]
      %v1731 = vld [vmem:[#allocation2 + $0x28] sm:$0xff]
      %v1732 = vld [vmem:[#allocation2 + $0x30] sm:$0xff]
      %v1733 = vld [vmem:[#allocation2 + $0x38] sm:$0xff]
      %v1734 = vld [vmem:[#allocation2 + $0x40] sm:$0xff]
      %v1735 = vld [vmem:[#allocation2 + $0x48] sm:$0xff]
      %v1736 = vld [vmem:[#allocation2 + $0x50] sm:$0xff]
      %v1737 = vld [vmem:[#allocation2 + $0x58] sm:$0xff]
      %v1738 = vld [vmem:[#allocation2 + $0x60] sm:$0xff]
      %v1739 = vld [vmem:[#allocation2 + $0x68] sm:$0xff]
      %v1740 = vld [vmem:[#allocation2 + $0x70] sm:$0xff]
      %v1741 = vld [vmem:[#allocation2 + $0x78] sm:$0xff]
      %v1742 = vld [vmem:[#allocation2 + $0x80] sm:$0xff]
      %v1743 = vld [vmem:[#allocation2 + $0x88] sm:$0xff]
      %v1744 = vld [vmem:[#allocation2 + $0x90] sm:$0xff]
      %v1745 = vld [vmem:[#allocation2 + $0x98] sm:$0xff]
      %v1746 = vld [vmem:[#allocation2 + $0xa0] sm:$0xff]
      %v1747 = vld [vmem:[#allocation2 + $0xa8] sm:$0xff]
      %v1748 = vld [vmem:[#allocation2 + $0xb0] sm:$0xff]
      %v1749 = vld [vmem:[#allocation2 + $0xb8] sm:$0xff]
      %v1750 = vld [vmem:[#allocation2 + $0xc0] sm:$0xff]
      %v1751 = vld [vmem:[#allocation2 + $0xc8] sm:$0xff]
      %v1752 = vld [vmem:[#allocation2 + $0xd0] sm:$0xff]
      %v1753 = vld [vmem:[#allocation2 + $0xd8] sm:$0xff]
      %v1754 = vld [vmem:[#allocation2 + $0xe0] sm:$0xff]
      %v1755 = vld [vmem:[#allocation2 + $0xe8] sm:$0xff]
      %v1756 = vld [vmem:[#allocation2 + $0xf0] sm:$0xff]
      %v1757 = vld [vmem:[#allocation2 + $0xf8] sm:$0xff]
      %v1758 = vld [vmem:[#allocation2 + $0x100] sm:$0xff]
      %v1759 = vld [vmem:[#allocation2 + $0x108] sm:$0xff]
      %v1760 = vadd.f32 %v1726, %v1592
      %v1761 = vadd.f32 %v1727, %v1595
      %v1762 = vadd.f32 %v1728, %v1600
      %v1763 = vadd.f32 %v1729, %v1603
      %v1764 = vadd.f32 %v1730, %v1608
      %v1765 = vadd.f32 %v1731, %v1611
      %v1766 = vadd.f32 %v1732, %v1616
      %v1767 = vadd.f32 %v1733, %v1619
      %v1768 = vadd.f32 %v1734, %v1624
      %v1769 = vadd.f32 %v1735, %v1627
      %v1770 = vadd.f32 %v1736, %v1632
      %v1771 = vadd.f32 %v1737, %v1635
      %v1772 = vadd.f32 %v1738, %v1640
      %v1773 = vadd.f32 %v1739, %v1643
      %v1774 = vadd.f32 %v1740, %v1648
      %v1775 = vadd.f32 %v1741, %v1651
      %v1776 = vadd.f32 %v1742, %v1656
      %v1777 = vadd.f32 %v1743, %v1659
      %v1778 = vadd.f32 %v1744, %v1664
      %v1779 = vadd.f32 %v1745, %v1667
      %v1780 = vadd.f32 %v1746, %v1672
      %v1781 = vadd.f32 %v1747, %v1675
      %v1782 = vadd.f32 %v1748, %v1680
      %v1783 = vadd.f32 %v1749, %v1683
      %v1784 = vadd.f32 %v1750, %v1688
      %v1785 = vadd.f32 %v1751, %v1691
      %v1786 = vadd.f32 %v1752, %v1696
      %v1787 = vadd.f32 %v1753, %v1699
      %v1788 = vadd.f32 %v1754, %v1704
      %v1789 = vadd.f32 %v1755, %v1707
      %v1790 = vadd.f32 %v1756, %v1712
      %v1791 = vadd.f32 %v1757, %v1715
      %v1792 = vadd.f32 %v1758, %v1720
      %v1793 = vadd.f32 %v1759, %v1723
      %1794 = vst [vmem:[#allocation2] sm:$0xff] %v1760
      %1795 = vst [vmem:[#allocation2 + $0x8] sm:$0xff] %v1761
      %1796 = vst [vmem:[#allocation2 + $0x10] sm:$0xff] %v1762
      %1797 = vst [vmem:[#allocation2 + $0x18] sm:$0xff] %v1763
      %1798 = vst [vmem:[#allocation2 + $0x20] sm:$0xff] %v1764
      %1799 = vst [vmem:[#allocation2 + $0x28] sm:$0xff] %v1765
      %1800 = vst [vmem:[#allocation2 + $0x30] sm:$0xff] %v1766
      %1801 = vst [vmem:[#allocation2 + $0x38] sm:$0xff] %v1767
      %1802 = vst [vmem:[#allocation2 + $0x40] sm:$0xff] %v1768
      %1803 = vst [vmem:[#allocation2 + $0x48] sm:$0xff] %v1769
      %1804 = vst [vmem:[#allocation2 + $0x50] sm:$0xff] %v1770
      %1805 = vst [vmem:[#allocation2 + $0x58] sm:$0xff] %v1771
      %1806 = vst [vmem:[#allocation2 + $0x60] sm:$0xff] %v1772
      %1807 = vst [vmem:[#allocation2 + $0x68] sm:$0xff] %v1773
      %1808 = vst [vmem:[#allocation2 + $0x70] sm:$0xff] %v1774
      %1809 = vst [vmem:[#allocation2 + $0x78] sm:$0xff] %v1775
      %1810 = vst [vmem:[#allocation2 + $0x80] sm:$0xff] %v1776
      %1811 = vst [vmem:[#allocation2 + $0x88] sm:$0xff] %v1777
      %1812 = vst [vmem:[#allocation2 + $0x90] sm:$0xff] %v1778
      %1813 = vst [vmem:[#allocation2 + $0x98] sm:$0xff] %v1779
      %1814 = vst [vmem:[#allocation2 + $0xa0] sm:$0xff] %v1780
      %1815 = vst [vmem:[#allocation2 + $0xa8] sm:$0xff] %v1781
      %1816 = vst [vmem:[#allocation2 + $0xb0] sm:$0xff] %v1782
      %1817 = vst [vmem:[#allocation2 + $0xb8] sm:$0xff] %v1783
      %1818 = vst [vmem:[#allocation2 + $0xc0] sm:$0xff] %v1784
      %1819 = vst [vmem:[#allocation2 + $0xc8] sm:$0xff] %v1785
      %1820 = vst [vmem:[#allocation2 + $0xd0] sm:$0xff] %v1786
      %1821 = vst [vmem:[#allocation2 + $0xd8] sm:$0xff] %v1787
      %1822 = vst [vmem:[#allocation2 + $0xe0] sm:$0xff] %v1788
      %1823 = vst [vmem:[#allocation2 + $0xe8] sm:$0xff] %v1789
      %1824 = vst [vmem:[#allocation2 + $0xf0] sm:$0xff] %v1790
      %1825 = vst [vmem:[#allocation2 + $0xf8] sm:$0xff] %v1791
      %1826 = vst [vmem:[#allocation2 + $0x100] sm:$0xff] %v1792
      %1827 = vst [vmem:[#allocation2 + $0x108] sm:$0xff] %v1793
      %v1828 = vld [vmem:[%s233 + $0x8] sm:$0xe]
      %v1829 = vld [vmem:[%s233 + $0xc] sm:$0xf]
      %v1830 = vld [vmem:[%s233 + $0x10] sm:$0xf]
      %v1831 = vld [vmem:[%s233 + $0x14] sm:$0xf]
      %v1832 = vld [vmem:[%s233 + $0x18] sm:$0xf]
      %v1833 = vld [vmem:[%s233 + $0x1c] sm:$0xf]
      %v1834 = vld [vmem:[%s233 + $0x20] sm:$0xf]
      %v1835 = vld [vmem:[%s233 + $0x24] sm:$0xf]
      %v1836 = vld [vmem:[%s233 + $0x28] sm:$0xf]
      %v1837 = vld [vmem:[%s233 + $0x2c] sm:$0xf]
      %v1838 = vld [vmem:[%s233 + $0x30] sm:$0xf]
      %v1839 = vld [vmem:[%s233 + $0x34] sm:$0xf]
      %v1840 = vld [vmem:[%s233 + $0x38] sm:$0xf]
      %v1841 = vld [vmem:[%s233 + $0x3c] sm:$0xf]
      %v1842 = vld [vmem:[%s233 + $0x40] sm:$0xf]
      %v1843 = vld [vmem:[%s233 + $0x44] sm:$0xf]
      %v1844 = vld [vmem:[%s233 + $0x48] sm:$0xf]
      %v1845 = vld [vmem:[%s233 + $0x4c] sm:$0xf]
      %v1846 = vld [vmem:[%s233 + $0x50] sm:$0xf]
      %v1847 = vld [vmem:[%s233 + $0x54] sm:$0xf]
      %v1848 = vld [vmem:[%s233 + $0x58] sm:$0xf]
      %v1849 = vld [vmem:[%s233 + $0x5c] sm:$0xf]
      %v1850 = vld [vmem:[%s233 + $0x60] sm:$0xf]
      %v1851 = vld [vmem:[%s233 + $0x64] sm:$0xf]
      %v1852 = vld [vmem:[%s233 + $0x68] sm:$0xf]
      %v1853 = vld [vmem:[%s233 + $0x6c] sm:$0xf]
      %v1854 = vld [vmem:[%s233 + $0x70] sm:$0xf]
      %v1855 = vld [vmem:[%s233 + $0x74] sm:$0xf]
      %v1856 = vld [vmem:[%s233 + $0x78] sm:$0xf]
      %v1857 = vld [vmem:[%s233 + $0x7c] sm:$0xf]
      %v1858 = vld [vmem:[%s233 + $0x80] sm:$0xf]
      %v1859 = vld [vmem:[%s233 + $0x84] sm:$0xf]
      %v1860 = vld [vmem:[%s233 + $0x88] sm:$0xf]
      %v1861 = vld [vmem:[%s233 + $0x8c] sm:$0xf]
      %v1862 = vld [vmem:[%s233 + $0x90] sm:$0x1]
      %s1863 = scalar_lea.vmem %s237, 24
      %v1864 = vld [vmem:[%s1863] sm:$0xf]
      %v1865 = vld [vmem:[%s1863 + $0x4] sm:$0x3]
      %v1901 = vunpack.c.l.b16 %v1828
      %v1902 = vunpack.c.l.b16 %v1829
      %v1903 = vunpack.c.l.b16 %v1830
      %v1904 = vunpack.c.l.b16 %v1831
      %v1905 = vunpack.c.l.b16 %v1832
      %v1906 = vunpack.c.l.b16 %v1833
      %v1907 = vunpack.c.l.b16 %v1834
      %v1908 = vunpack.c.l.b16 %v1835
      %v1909 = vunpack.c.l.b16 %v1836
      %v1910 = vunpack.c.l.b16 %v1837
      %v1911 = vunpack.c.l.b16 %v1838
      %v1912 = vunpack.c.l.b16 %v1839
      %v1913 = vunpack.c.l.b16 %v1840
      %v1914 = vunpack.c.l.b16 %v1841
      %v1915 = vunpack.c.l.b16 %v1842
      %v1916 = vunpack.c.l.b16 %v1843
      %v1917 = vunpack.c.l.b16 %v1844
      %v1918 = vunpack.c.l.b16 %v1845
      %v1919 = vunpack.c.l.b16 %v1846
      %v1920 = vunpack.c.l.b16 %v1847
      %v1921 = vunpack.c.l.b16 %v1848
      %v1922 = vunpack.c.l.b16 %v1849
      %v1923 = vunpack.c.l.b16 %v1850
      %v1924 = vunpack.c.l.b16 %v1851
      %v1925 = vunpack.c.l.b16 %v1852
      %v1926 = vunpack.c.l.b16 %v1853
      %v1927 = vunpack.c.l.b16 %v1854
      %v1928 = vunpack.c.l.b16 %v1855
      %v1929 = vunpack.c.l.b16 %v1856
      %v1930 = vunpack.c.l.b16 %v1857
      %v1931 = vunpack.c.l.b16 %v1858
      %v1932 = vunpack.c.l.b16 %v1859
      %v1933 = vunpack.c.l.b16 %v1860
      %v1934 = vunpack.c.l.b16 %v1861
      %v1935 = vunpack.c.l.b16 %v1862
      %v1936 = vpack.c.b16 %v1902, %v1901
      %v1937 = vpack.c.b16 %v1904, %v1903
      %v1938 = vpack.c.b16 %v1906, %v1905
      %v1939 = vpack.c.b16 %v1908, %v1907
      %v1940 = vpack.c.b16 %v1910, %v1909
      %v1941 = vpack.c.b16 %v1912, %v1911
      %v1942 = vpack.c.b16 %v1914, %v1913
      %v1943 = vpack.c.b16 %v1916, %v1915
      %v1944 = vpack.c.b16 %v1918, %v1917
      %v1945 = vpack.c.b16 %v1920, %v1919
      %v1946 = vpack.c.b16 %v1922, %v1921
      %v1947 = vpack.c.b16 %v1924, %v1923
      %v1948 = vpack.c.b16 %v1926, %v1925
      %v1949 = vpack.c.b16 %v1928, %v1927
      %v1950 = vpack.c.b16 %v1930, %v1929
      %v1951 = vpack.c.b16 %v1932, %v1931
      %v1952 = vpack.c.b16 %v1934, %v1933
      %v1953 = vpack.c.b16 %v1935, %v1935
      %vm1954 = vcmask 1046528
      %v1955 = vrot.slane %v1936, 1
      %v1956 = vrot.slane %v1937, 1
      %v1957 = vsel %vm1954, %v1955, %v1956
      %v1958 = vrot.slane %v1938, 1
      %v1959 = vsel %vm1954, %v1956, %v1958
      %v1960 = vrot.slane %v1939, 1
      %v1961 = vsel %vm1954, %v1958, %v1960
      %v1962 = vrot.slane %v1940, 1
      %v1963 = vsel %vm1954, %v1960, %v1962
      %v1964 = vrot.slane %v1941, 1
      %v1965 = vsel %vm1954, %v1962, %v1964
      %v1966 = vrot.slane %v1942, 1
      %v1967 = vsel %vm1954, %v1964, %v1966
      %v1968 = vrot.slane %v1943, 1
      %v1969 = vsel %vm1954, %v1966, %v1968
      %v1970 = vrot.slane %v1944, 1
      %v1971 = vsel %vm1954, %v1968, %v1970
      %v1972 = vrot.slane %v1945, 1
      %v1973 = vsel %vm1954, %v1970, %v1972
      %v1974 = vrot.slane %v1946, 1
      %v1975 = vsel %vm1954, %v1972, %v1974
      %v1976 = vrot.slane %v1947, 1
      %v1977 = vsel %vm1954, %v1974, %v1976
      %v1978 = vrot.slane %v1948, 1
      %v1979 = vsel %vm1954, %v1976, %v1978
      %v1980 = vrot.slane %v1949, 1
      %v1981 = vsel %vm1954, %v1978, %v1980
      %v1982 = vrot.slane %v1950, 1
      %v1983 = vsel %vm1954, %v1980, %v1982
      %v1984 = vrot.slane %v1951, 1
      %v1985 = vsel %vm1954, %v1982, %v1984
      %v1986 = vrot.slane %v1952, 1
      %v1987 = vsel %vm1954, %v1984, %v1986
      %v1988 = vrot.slane %v1953, 1
      %v1989 = vsel %vm1954, %v1986, %v1988
      %v1992 = vunpack.c.l.b16 %v1864
      %v1993 = vunpack.c.l.b16 %v1865
      %v1994 = vpack.c.b16 %v1993, %v1992
      %v1996 = vsel %vm376, %v1957, 0
      %v1999 = vsel %vm376, %v1959, 0
      %v2002 = vsel %vm376, %v1961, 0
      %v2005 = vsel %vm376, %v1963, 0
      %v2008 = vsel %vm376, %v1965, 0
      %v2011 = vsel %vm376, %v1967, 0
      %v2014 = vsel %vm376, %v1969, 0
      %v2017 = vsel %vm376, %v1971, 0
      %v2020 = vsel %vm376, %v1973, 0
      %v2023 = vsel %vm376, %v1975, 0
      %v2026 = vsel %vm376, %v1977, 0
      %v2029 = vsel %vm376, %v1979, 0
      %v2032 = vsel %vm376, %v1981, 0
      %v2035 = vsel %vm376, %v1983, 0
      %v2038 = vsel %vm376, %v1985, 0
      %v2041 = vsel %vm376, %v1987, 0
      %v2044 = vsel %vm376, %v1989, 0
      %v2047 = vsel %vm428, %v1994, 0
      %2049 = vmatprep.subr.bf16.mxu0 0
      %2050 = vmatpush1.bf16.msra.mxu0 %v2047
      %2051 = vmatprep.subr.bf16.mxu0 0
      %2052 = vmatpush1.bf16.msra.mxu0 0
      %2053 = vmatprep.subr.bf16.mxu0 0
      %2054 = vmatpush1.bf16.msra.mxu0 0
      %2055 = vmatprep.subr.bf16.mxu0 0
      %2056 = vmatpush1.bf16.msra.mxu0 0
      %2057 = vmatprep.subr.bf16.mxu0 0
      %2058 = vmatpush1.bf16.msra.mxu0 0
      %2059 = vmatprep.subr.bf16.mxu0 0
      %2060 = vmatpush1.bf16.msra.mxu0 0
      %2061 = vmatprep.subr.bf16.mxu0 0
      %2062 = vmatpush1.bf16.msra.mxu0 0
      %2063 = vmatprep.subr.bf16.mxu0 0
      %2064 = vmatpush1.bf16.msra.mxu0 0
      %2065 = vmatprep.subr.bf16.mxu0 0
      %2066 = vmatpush1.bf16.msra.mxu0 0
      %2067 = vmatprep.subr.bf16.mxu0 0
      %2068 = vmatpush1.bf16.msra.mxu0 0
      %2069 = vmatprep.subr.bf16.mxu0 0
      %2070 = vmatpush1.bf16.msra.mxu0 0
      %2071 = vmatprep.subr.bf16.mxu0 0
      %2072 = vmatpush1.bf16.msra.mxu0 0
      %2073 = vmatprep.subr.bf16.mxu0 0
      %2074 = vmatpush1.bf16.msra.mxu0 0
      %2075 = vmatprep.subr.bf16.mxu0 0
      %2076 = vmatpush1.bf16.msra.mxu0 0
      %2077 = vmatprep.subr.bf16.mxu0 0
      %2078 = vmatpush1.bf16.msra.mxu0 0
      %2079 = vmatprep.subr.bf16.mxu0 0
      %2080 = vmatpush1.bf16.msra.mxu0 0
      %2081 = vmatprep.mubr.bf16.mxu0 0
      %2082 = vmatmul.mubr.bf16.gmra.mrb[0].mxu0 %v1996
      %v2083 = vpop.f32.mrb[0].mxu0
      %v2084 = vadd.f32 0.0, %v2083
      %v2085 = vpop.f32.mrb[0].mxu0
      %v2086 = vpop.f32.mrb[0].mxu0
      %v2087 = vadd.f32 0.0, %v2086
      %v2088 = vpop.f32.mrb[0].mxu0
      %2089 = vmatprep.mubr.bf16.mxu0 0
      %2090 = vmatmul.mubr.bf16.gmra.mrb[0].mxu0 %v1999
      %v2091 = vpop.f32.mrb[0].mxu0
      %v2092 = vadd.f32 0.0, %v2091
      %v2093 = vpop.f32.mrb[0].mxu0
      %v2094 = vpop.f32.mrb[0].mxu0
      %v2095 = vadd.f32 0.0, %v2094
      %v2096 = vpop.f32.mrb[0].mxu0
      %2097 = vmatprep.mubr.bf16.mxu0 0
      %2098 = vmatmul.mubr.bf16.gmra.mrb[0].mxu0 %v2002
      %v2099 = vpop.f32.mrb[0].mxu0
      %v2100 = vadd.f32 0.0, %v2099
      %v2101 = vpop.f32.mrb[0].mxu0
      %v2102 = vpop.f32.mrb[0].mxu0
      %v2103 = vadd.f32 0.0, %v2102
      %v2104 = vpop.f32.mrb[0].mxu0
      %2105 = vmatprep.mubr.bf16.mxu0 0
      %2106 = vmatmul.mubr.bf16.gmra.mrb[0].mxu0 %v2005
      %v2107 = vpop.f32.mrb[0].mxu0
      %v2108 = vadd.f32 0.0, %v2107
      %v2109 = vpop.f32.mrb[0].mxu0
      %v2110 = vpop.f32.mrb[0].mxu0
      %v2111 = vadd.f32 0.0, %v2110
      %v2112 = vpop.f32.mrb[0].mxu0
      %2113 = vmatprep.mubr.bf16.mxu0 0
      %2114 = vmatmul.mubr.bf16.gmra.mrb[0].mxu0 %v2008
      %v2115 = vpop.f32.mrb[0].mxu0
      %v2116 = vadd.f32 0.0, %v2115
      %v2117 = vpop.f32.mrb[0].mxu0
      %v2118 = vpop.f32.mrb[0].mxu0
      %v2119 = vadd.f32 0.0, %v2118
      %v2120 = vpop.f32.mrb[0].mxu0
      %2121 = vmatprep.mubr.bf16.mxu0 0
      %2122 = vmatmul.mubr.bf16.gmra.mrb[0].mxu0 %v2011
      %v2123 = vpop.f32.mrb[0].mxu0
      %v2124 = vadd.f32 0.0, %v2123
      %v2125 = vpop.f32.mrb[0].mxu0
      %v2126 = vpop.f32.mrb[0].mxu0
      %v2127 = vadd.f32 0.0, %v2126
      %v2128 = vpop.f32.mrb[0].mxu0
      %2129 = vmatprep.mubr.bf16.mxu0 0
      %2130 = vmatmul.mubr.bf16.gmra.mrb[0].mxu0 %v2014
      %v2131 = vpop.f32.mrb[0].mxu0
      %v2132 = vadd.f32 0.0, %v2131
      %v2133 = vpop.f32.mrb[0].mxu0
      %v2134 = vpop.f32.mrb[0].mxu0
      %v2135 = vadd.f32 0.0, %v2134
      %v2136 = vpop.f32.mrb[0].mxu0
      %2137 = vmatprep.mubr.bf16.mxu0 0
      %2138 = vmatmul.mubr.bf16.gmra.mrb[0].mxu0 %v2017
      %v2139 = vpop.f32.mrb[0].mxu0
      %v2140 = vadd.f32 0.0, %v2139
      %v2141 = vpop.f32.mrb[0].mxu0
      %v2142 = vpop.f32.mrb[0].mxu0
      %v2143 = vadd.f32 0.0, %v2142
      %v2144 = vpop.f32.mrb[0].mxu0
      %2145 = vmatprep.mubr.bf16.mxu0 0
      %2146 = vmatmul.mubr.bf16.gmra.mrb[0].mxu0 %v2020
      %v2147 = vpop.f32.mrb[0].mxu0
      %v2148 = vadd.f32 0.0, %v2147
      %v2149 = vpop.f32.mrb[0].mxu0
      %v2150 = vpop.f32.mrb[0].mxu0
      %v2151 = vadd.f32 0.0, %v2150
      %v2152 = vpop.f32.mrb[0].mxu0
      %2153 = vmatprep.mubr.bf16.mxu0 0
      %2154 = vmatmul.mubr.bf16.gmra.mrb[0].mxu0 %v2023
      %v2155 = vpop.f32.mrb[0].mxu0
      %v2156 = vadd.f32 0.0, %v2155
      %v2157 = vpop.f32.mrb[0].mxu0
      %v2158 = vpop.f32.mrb[0].mxu0
      %v2159 = vadd.f32 0.0, %v2158
      %v2160 = vpop.f32.mrb[0].mxu0
      %2161 = vmatprep.mubr.bf16.mxu0 0
      %2162 = vmatmul.mubr.bf16.gmra.mrb[0].mxu0 %v2026
      %v2163 = vpop.f32.mrb[0].mxu0
      %v2164 = vadd.f32 0.0, %v2163
      %v2165 = vpop.f32.mrb[0].mxu0
      %v2166 = vpop.f32.mrb[0].mxu0
      %v2167 = vadd.f32 0.0, %v2166
      %v2168 = vpop.f32.mrb[0].mxu0
      %2169 = vmatprep.mubr.bf16.mxu0 0
      %2170 = vmatmul.mubr.bf16.gmra.mrb[0].mxu0 %v2029
      %v2171 = vpop.f32.mrb[0].mxu0
      %v2172 = vadd.f32 0.0, %v2171
      %v2173 = vpop.f32.mrb[0].mxu0
      %v2174 = vpop.f32.mrb[0].mxu0
      %v2175 = vadd.f32 0.0, %v2174
      %v2176 = vpop.f32.mrb[0].mxu0
      %2177 = vmatprep.mubr.bf16.mxu0 0
      %2178 = vmatmul.mubr.bf16.gmra.mrb[0].mxu0 %v2032
      %v2179 = vpop.f32.mrb[0].mxu0
      %v2180 = vadd.f32 0.0, %v2179
      %v2181 = vpop.f32.mrb[0].mxu0
      %v2182 = vpop.f32.mrb[0].mxu0
      %v2183 = vadd.f32 0.0, %v2182
      %v2184 = vpop.f32.mrb[0].mxu0
      %2185 = vmatprep.mubr.bf16.mxu0 0
      %2186 = vmatmul.mubr.bf16.gmra.mrb[0].mxu0 %v2035
      %v2187 = vpop.f32.mrb[0].mxu0
      %v2188 = vadd.f32 0.0, %v2187
      %v2189 = vpop.f32.mrb[0].mxu0
      %v2190 = vpop.f32.mrb[0].mxu0
      %v2191 = vadd.f32 0.0, %v2190
      %v2192 = vpop.f32.mrb[0].mxu0
      %2193 = vmatprep.mubr.bf16.mxu0 0
      %2194 = vmatmul.mubr.bf16.gmra.mrb[0].mxu0 %v2038
      %v2195 = vpop.f32.mrb[0].mxu0
      %v2196 = vadd.f32 0.0, %v2195
      %v2197 = vpop.f32.mrb[0].mxu0
      %v2198 = vpop.f32.mrb[0].mxu0
      %v2199 = vadd.f32 0.0, %v2198
      %v2200 = vpop.f32.mrb[0].mxu0
      %2201 = vmatprep.mubr.bf16.mxu0 0
      %2202 = vmatmul.mubr.bf16.gmra.mrb[0].mxu0 %v2041
      %v2203 = vpop.f32.mrb[0].mxu0
      %v2204 = vadd.f32 0.0, %v2203
      %v2205 = vpop.f32.mrb[0].mxu0
      %v2206 = vpop.f32.mrb[0].mxu0
      %v2207 = vadd.f32 0.0, %v2206
      %v2208 = vpop.f32.mrb[0].mxu0
      %2209 = vmatprep.mubr.bf16.mxu0 0
      %2210 = vmatmul.mubr.bf16.gmra.mrb[0].mxu0 %v2044
      %v2211 = vpop.f32.mrb[0].mxu0
      %v2212 = vadd.f32 0.0, %v2211
      %v2213 = vpop.f32.mrb[0].mxu0
      %v2214 = vpop.f32.mrb[0].mxu0
      %v2215 = vadd.f32 0.0, %v2214
      %v2216 = vpop.f32.mrb[0].mxu0
      %2217 = vdwg.mxu0
      %v2218 = vld [vmem:[#allocation2] sm:$0xff]
      %v2219 = vld [vmem:[#allocation2 + $0x8] sm:$0xff]
      %v2220 = vld [vmem:[#allocation2 + $0x10] sm:$0xff]
      %v2221 = vld [vmem:[#allocation2 + $0x18] sm:$0xff]
      %v2222 = vld [vmem:[#allocation2 + $0x20] sm:$0xff]
      %v2223 = vld [vmem:[#allocation2 + $0x28] sm:$0xff]
      %v2224 = vld [vmem:[#allocation2 + $0x30] sm:$0xff]
      %v2225 = vld [vmem:[#allocation2 + $0x38] sm:$0xff]
      %v2226 = vld [vmem:[#allocation2 + $0x40] sm:$0xff]
      %v2227 = vld [vmem:[#allocation2 + $0x48] sm:$0xff]
      %v2228 = vld [vmem:[#allocation2 + $0x50] sm:$0xff]
      %v2229 = vld [vmem:[#allocation2 + $0x58] sm:$0xff]
      %v2230 = vld [vmem:[#allocation2 + $0x60] sm:$0xff]
      %v2231 = vld [vmem:[#allocation2 + $0x68] sm:$0xff]
      %v2232 = vld [vmem:[#allocation2 + $0x70] sm:$0xff]
      %v2233 = vld [vmem:[#allocation2 + $0x78] sm:$0xff]
      %v2234 = vld [vmem:[#allocation2 + $0x80] sm:$0xff]
      %v2235 = vld [vmem:[#allocation2 + $0x88] sm:$0xff]
      %v2236 = vld [vmem:[#allocation2 + $0x90] sm:$0xff]
      %v2237 = vld [vmem:[#allocation2 + $0x98] sm:$0xff]
      %v2238 = vld [vmem:[#allocation2 + $0xa0] sm:$0xff]
      %v2239 = vld [vmem:[#allocation2 + $0xa8] sm:$0xff]
      %v2240 = vld [vmem:[#allocation2 + $0xb0] sm:$0xff]
      %v2241 = vld [vmem:[#allocation2 + $0xb8] sm:$0xff]
      %v2242 = vld [vmem:[#allocation2 + $0xc0] sm:$0xff]
      %v2243 = vld [vmem:[#allocation2 + $0xc8] sm:$0xff]
      %v2244 = vld [vmem:[#allocation2 + $0xd0] sm:$0xff]
      %v2245 = vld [vmem:[#allocation2 + $0xd8] sm:$0xff]
      %v2246 = vld [vmem:[#allocation2 + $0xe0] sm:$0xff]
      %v2247 = vld [vmem:[#allocation2 + $0xe8] sm:$0xff]
      %v2248 = vld [vmem:[#allocation2 + $0xf0] sm:$0xff]
      %v2249 = vld [vmem:[#allocation2 + $0xf8] sm:$0xff]
      %v2250 = vld [vmem:[#allocation2 + $0x100] sm:$0xff]
      %v2251 = vld [vmem:[#allocation2 + $0x108] sm:$0xff]
      %v2252 = vadd.f32 %v2218, %v2084
      %v2253 = vadd.f32 %v2219, %v2087
      %v2254 = vadd.f32 %v2220, %v2092
      %v2255 = vadd.f32 %v2221, %v2095
      %v2256 = vadd.f32 %v2222, %v2100
      %v2257 = vadd.f32 %v2223, %v2103
      %v2258 = vadd.f32 %v2224, %v2108
      %v2259 = vadd.f32 %v2225, %v2111
      %v2260 = vadd.f32 %v2226, %v2116
      %v2261 = vadd.f32 %v2227, %v2119
      %v2262 = vadd.f32 %v2228, %v2124
      %v2263 = vadd.f32 %v2229, %v2127
      %v2264 = vadd.f32 %v2230, %v2132
      %v2265 = vadd.f32 %v2231, %v2135
      %v2266 = vadd.f32 %v2232, %v2140
      %v2267 = vadd.f32 %v2233, %v2143
      %v2268 = vadd.f32 %v2234, %v2148
      %v2269 = vadd.f32 %v2235, %v2151
      %v2270 = vadd.f32 %v2236, %v2156
      %v2271 = vadd.f32 %v2237, %v2159
      %v2272 = vadd.f32 %v2238, %v2164
      %v2273 = vadd.f32 %v2239, %v2167
      %v2274 = vadd.f32 %v2240, %v2172
      %v2275 = vadd.f32 %v2241, %v2175
      %v2276 = vadd.f32 %v2242, %v2180
      %v2277 = vadd.f32 %v2243, %v2183
      %v2278 = vadd.f32 %v2244, %v2188
      %v2279 = vadd.f32 %v2245, %v2191
      %v2280 = vadd.f32 %v2246, %v2196
      %v2281 = vadd.f32 %v2247, %v2199
      %v2282 = vadd.f32 %v2248, %v2204
      %v2283 = vadd.f32 %v2249, %v2207
      %v2284 = vadd.f32 %v2250, %v2212
      %v2285 = vadd.f32 %v2251, %v2215
      %2286 = vst [vmem:[#allocation2] sm:$0xff] %v2252
      %2287 = vst [vmem:[#allocation2 + $0x8] sm:$0xff] %v2253
      %2288 = vst [vmem:[#allocation2 + $0x10] sm:$0xff] %v2254
      %2289 = vst [vmem:[#allocation2 + $0x18] sm:$0xff] %v2255
      %2290 = vst [vmem:[#allocation2 + $0x20] sm:$0xff] %v2256
      %2291 = vst [vmem:[#allocation2 + $0x28] sm:$0xff] %v2257
      %2292 = vst [vmem:[#allocation2 + $0x30] sm:$0xff] %v2258
      %2293 = vst [vmem:[#allocation2 + $0x38] sm:$0xff] %v2259
      %2294 = vst [vmem:[#allocation2 + $0x40] sm:$0xff] %v2260
      %2295 = vst [vmem:[#allocation2 + $0x48] sm:$0xff] %v2261
      %2296 = vst [vmem:[#allocation2 + $0x50] sm:$0xff] %v2262
      %2297 = vst [vmem:[#allocation2 + $0x58] sm:$0xff] %v2263
      %2298 = vst [vmem:[#allocation2 + $0x60] sm:$0xff] %v2264
      %2299 = vst [vmem:[#allocation2 + $0x68] sm:$0xff] %v2265
      %2300 = vst [vmem:[#allocation2 + $0x70] sm:$0xff] %v2266
      %2301 = vst [vmem:[#allocation2 + $0x78] sm:$0xff] %v2267
      %2302 = vst [vmem:[#allocation2 + $0x80] sm:$0xff] %v2268
      %2303 = vst [vmem:[#allocation2 + $0x88] sm:$0xff] %v2269
      %2304 = vst [vmem:[#allocation2 + $0x90] sm:$0xff] %v2270
      %2305 = vst [vmem:[#allocation2 + $0x98] sm:$0xff] %v2271
      %2306 = vst [vmem:[#allocation2 + $0xa0] sm:$0xff] %v2272
      %2307 = vst [vmem:[#allocation2 + $0xa8] sm:$0xff] %v2273
      %2308 = vst [vmem:[#allocation2 + $0xb0] sm:$0xff] %v2274
      %2309 = vst [vmem:[#allocation2 + $0xb8] sm:$0xff] %v2275
      %2310 = vst [vmem:[#allocation2 + $0xc0] sm:$0xff] %v2276
      %2311 = vst [vmem:[#allocation2 + $0xc8] sm:$0xff] %v2277
      %2312 = vst [vmem:[#allocation2 + $0xd0] sm:$0xff] %v2278
      %2313 = vst [vmem:[#allocation2 + $0xd8] sm:$0xff] %v2279
      %2314 = vst [vmem:[#allocation2 + $0xe0] sm:$0xff] %v2280
      %2315 = vst [vmem:[#allocation2 + $0xe8] sm:$0xff] %v2281
      %2316 = vst [vmem:[#allocation2 + $0xf0] sm:$0xff] %v2282
      %2317 = vst [vmem:[#allocation2 + $0xf8] sm:$0xff] %v2283
      %2318 = vst [vmem:[#allocation2 + $0x100] sm:$0xff] %v2284
      %2319 = vst [vmem:[#allocation2 + $0x108] sm:$0xff] %v2285
      %v2320 = vld [vmem:[#allocation2] sm:$0xff]
      %v2321 = vld [vmem:[#allocation2 + $0x8] sm:$0xff]
      %v2322 = vld [vmem:[#allocation2 + $0x10] sm:$0xff]
      %v2323 = vld [vmem:[#allocation2 + $0x18] sm:$0xff]
      %v2324 = vld [vmem:[#allocation2 + $0x20] sm:$0xff]
      %v2325 = vld [vmem:[#allocation2 + $0x28] sm:$0xff]
      %v2326 = vld [vmem:[#allocation2 + $0x30] sm:$0xff]
      %v2327 = vld [vmem:[#allocation2 + $0x38] sm:$0xff]
      %v2328 = vld [vmem:[#allocation2 + $0x40] sm:$0xff]
      %v2329 = vld [vmem:[#allocation2 + $0x48] sm:$0xff]
      %v2330 = vld [vmem:[#allocation2 + $0x50] sm:$0xff]
      %v2331 = vld [vmem:[#allocation2 + $0x58] sm:$0xff]
      %v2332 = vld [vmem:[#allocation2 + $0x60] sm:$0xff]
      %v2333 = vld [vmem:[#allocation2 + $0x68] sm:$0xff]
      %v2334 = vld [vmem:[#allocation2 + $0x70] sm:$0xff]
      %v2335 = vld [vmem:[#allocation2 + $0x78] sm:$0xff]
      %v2336 = vld [vmem:[#allocation2 + $0x80] sm:$0xff]
      %v2337 = vld [vmem:[#allocation2 + $0x88] sm:$0xff]
      %v2338 = vld [vmem:[#allocation2 + $0x90] sm:$0xff]
      %v2339 = vld [vmem:[#allocation2 + $0x98] sm:$0xff]
      %v2340 = vld [vmem:[#allocation2 + $0xa0] sm:$0xff]
      %v2341 = vld [vmem:[#allocation2 + $0xa8] sm:$0xff]
      %v2342 = vld [vmem:[#allocation2 + $0xb0] sm:$0xff]
      %v2343 = vld [vmem:[#allocation2 + $0xb8] sm:$0xff]
      %v2344 = vld [vmem:[#allocation2 + $0xc0] sm:$0xff]
      %v2345 = vld [vmem:[#allocation2 + $0xc8] sm:$0xff]
      %v2346 = vld [vmem:[#allocation2 + $0xd0] sm:$0xff]
      %v2347 = vld [vmem:[#allocation2 + $0xd8] sm:$0xff]
      %v2348 = vld [vmem:[#allocation2 + $0xe0] sm:$0xff]
      %v2349 = vld [vmem:[#allocation2 + $0xe8] sm:$0xff]
      %v2350 = vld [vmem:[#allocation2 + $0xf0] sm:$0xff]
      %v2351 = vld [vmem:[#allocation2 + $0xf8] sm:$0xff]
      %v2352 = vld [vmem:[#allocation2 + $0x100] sm:$0xff]
      %v2353 = vld [vmem:[#allocation2 + $0x108] sm:$0xff]
      %v2354 = vld [vmem:[%s240] sm:$0x1]
      %v2356 = vlaneseq
      %v2357 = vshrl.u32 %v2356, 7
      %v2358 = vsub.s32 0, %v2357
      %v2359 = vrot.slane %v2354, %v2358
      %v2361 = vadd.f32 %v2320, %v2359
      %v2362 = vadd.f32 %v2321, %v2359
      %v2363 = vadd.f32 %v2322, %v2359
      %v2364 = vadd.f32 %v2323, %v2359
      %v2365 = vadd.f32 %v2324, %v2359
      %v2366 = vadd.f32 %v2325, %v2359
      %v2367 = vadd.f32 %v2326, %v2359
      %v2368 = vadd.f32 %v2327, %v2359
      %v2369 = vadd.f32 %v2328, %v2359
      %v2370 = vadd.f32 %v2329, %v2359
      %v2371 = vadd.f32 %v2330, %v2359
      %v2372 = vadd.f32 %v2331, %v2359
      %v2373 = vadd.f32 %v2332, %v2359
      %v2374 = vadd.f32 %v2333, %v2359
      %v2375 = vadd.f32 %v2334, %v2359
      %v2376 = vadd.f32 %v2335, %v2359
      %v2377 = vadd.f32 %v2336, %v2359
      %v2378 = vadd.f32 %v2337, %v2359
      %v2379 = vadd.f32 %v2338, %v2359
      %v2380 = vadd.f32 %v2339, %v2359
      %v2381 = vadd.f32 %v2340, %v2359
      %v2382 = vadd.f32 %v2341, %v2359
      %v2383 = vadd.f32 %v2342, %v2359
      %v2384 = vadd.f32 %v2343, %v2359
      %v2385 = vadd.f32 %v2344, %v2359
      %v2386 = vadd.f32 %v2345, %v2359
      %v2387 = vadd.f32 %v2346, %v2359
      %v2388 = vadd.f32 %v2347, %v2359
      %v2389 = vadd.f32 %v2348, %v2359
      %v2390 = vadd.f32 %v2349, %v2359
      %v2391 = vadd.f32 %v2350, %v2359
      %v2392 = vadd.f32 %v2351, %v2359
      %v2393 = vadd.f32 %v2352, %v2359
      %v2394 = vadd.f32 %v2353, %v2359
      %vm2395 = vcmp.ge.f32.partialorder %v2361, 0.0
      %vm2396 = vcmp.ge.f32.partialorder %v2362, 0.0
      %vm2397 = vcmp.ge.f32.partialorder %v2363, 0.0
      %vm2398 = vcmp.ge.f32.partialorder %v2364, 0.0
      %vm2399 = vcmp.ge.f32.partialorder %v2365, 0.0
      %vm2400 = vcmp.ge.f32.partialorder %v2366, 0.0
      %vm2401 = vcmp.ge.f32.partialorder %v2367, 0.0
      %vm2402 = vcmp.ge.f32.partialorder %v2368, 0.0
      %vm2403 = vcmp.ge.f32.partialorder %v2369, 0.0
      %vm2404 = vcmp.ge.f32.partialorder %v2370, 0.0
      %vm2405 = vcmp.ge.f32.partialorder %v2371, 0.0
      %vm2406 = vcmp.ge.f32.partialorder %v2372, 0.0
      %vm2407 = vcmp.ge.f32.partialorder %v2373, 0.0
      %vm2408 = vcmp.ge.f32.partialorder %v2374, 0.0
      %vm2409 = vcmp.ge.f32.partialorder %v2375, 0.0
      %vm2410 = vcmp.ge.f32.partialorder %v2376, 0.0
      %vm2411 = vcmp.ge.f32.partialorder %v2377, 0.0
      %vm2412 = vcmp.ge.f32.partialorder %v2378, 0.0
      %vm2413 = vcmp.ge.f32.partialorder %v2379, 0.0
      %vm2414 = vcmp.ge.f32.partialorder %v2380, 0.0
      %vm2415 = vcmp.ge.f32.partialorder %v2381, 0.0
      %vm2416 = vcmp.ge.f32.partialorder %v2382, 0.0
      %vm2417 = vcmp.ge.f32.partialorder %v2383, 0.0
      %vm2418 = vcmp.ge.f32.partialorder %v2384, 0.0
      %vm2419 = vcmp.ge.f32.partialorder %v2385, 0.0
      %vm2420 = vcmp.ge.f32.partialorder %v2386, 0.0
      %vm2421 = vcmp.ge.f32.partialorder %v2387, 0.0
      %vm2422 = vcmp.ge.f32.partialorder %v2388, 0.0
      %vm2423 = vcmp.ge.f32.partialorder %v2389, 0.0
      %vm2424 = vcmp.ge.f32.partialorder %v2390, 0.0
      %vm2425 = vcmp.ge.f32.partialorder %v2391, 0.0
      %vm2426 = vcmp.ge.f32.partialorder %v2392, 0.0
      %vm2427 = vcmp.ge.f32.partialorder %v2393, 0.0
      %vm2428 = vcmp.ge.f32.partialorder %v2394, 0.0
      %v2429 = vmul.f32 %v2361, 0.2
      %v2430 = vmul.f32 %v2362, 0.2
      %v2431 = vmul.f32 %v2363, 0.2
      %v2432 = vmul.f32 %v2364, 0.2
      %v2433 = vmul.f32 %v2365, 0.2
      %v2434 = vmul.f32 %v2366, 0.2
      %v2435 = vmul.f32 %v2367, 0.2
      %v2436 = vmul.f32 %v2368, 0.2
      %v2437 = vmul.f32 %v2369, 0.2
      %v2438 = vmul.f32 %v2370, 0.2
      %v2439 = vmul.f32 %v2371, 0.2
      %v2440 = vmul.f32 %v2372, 0.2
      %v2441 = vmul.f32 %v2373, 0.2
      %v2442 = vmul.f32 %v2374, 0.2
      %v2443 = vmul.f32 %v2375, 0.2
      %v2444 = vmul.f32 %v2376, 0.2
      %v2445 = vmul.f32 %v2377, 0.2
      %v2446 = vmul.f32 %v2378, 0.2
      %v2447 = vmul.f32 %v2379, 0.2
      %v2448 = vmul.f32 %v2380, 0.2
      %v2449 = vmul.f32 %v2381, 0.2
      %v2450 = vmul.f32 %v2382, 0.2
      %v2451 = vmul.f32 %v2383, 0.2
      %v2452 = vmul.f32 %v2384, 0.2
      %v2453 = vmul.f32 %v2385, 0.2
      %v2454 = vmul.f32 %v2386, 0.2
      %v2455 = vmul.f32 %v2387, 0.2
      %v2456 = vmul.f32 %v2388, 0.2
      %v2457 = vmul.f32 %v2389, 0.2
      %v2458 = vmul.f32 %v2390, 0.2
      %v2459 = vmul.f32 %v2391, 0.2
      %v2460 = vmul.f32 %v2392, 0.2
      %v2461 = vmul.f32 %v2393, 0.2
      %v2462 = vmul.f32 %v2394, 0.2
      %v2463 = vsel %vm2395, %v2361, %v2429
      %v2464 = vsel %vm2396, %v2362, %v2430
      %v2465 = vsel %vm2397, %v2363, %v2431
      %v2466 = vsel %vm2398, %v2364, %v2432
      %v2467 = vsel %vm2399, %v2365, %v2433
      %v2468 = vsel %vm2400, %v2366, %v2434
      %v2469 = vsel %vm2401, %v2367, %v2435
      %v2470 = vsel %vm2402, %v2368, %v2436
      %v2471 = vsel %vm2403, %v2369, %v2437
      %v2472 = vsel %vm2404, %v2370, %v2438
      %v2473 = vsel %vm2405, %v2371, %v2439
      %v2474 = vsel %vm2406, %v2372, %v2440
      %v2475 = vsel %vm2407, %v2373, %v2441
      %v2476 = vsel %vm2408, %v2374, %v2442
      %v2477 = vsel %vm2409, %v2375, %v2443
      %v2478 = vsel %vm2410, %v2376, %v2444
      %v2479 = vsel %vm2411, %v2377, %v2445
      %v2480 = vsel %vm2412, %v2378, %v2446
      %v2481 = vsel %vm2413, %v2379, %v2447
      %v2482 = vsel %vm2414, %v2380, %v2448
      %v2483 = vsel %vm2415, %v2381, %v2449
      %v2484 = vsel %vm2416, %v2382, %v2450
      %v2485 = vsel %vm2417, %v2383, %v2451
      %v2486 = vsel %vm2418, %v2384, %v2452
      %v2487 = vsel %vm2419, %v2385, %v2453
      %v2488 = vsel %vm2420, %v2386, %v2454
      %v2489 = vsel %vm2421, %v2387, %v2455
      %v2490 = vsel %vm2422, %v2388, %v2456
      %v2491 = vsel %vm2423, %v2389, %v2457
      %v2492 = vsel %vm2424, %v2390, %v2458
      %v2493 = vsel %vm2425, %v2391, %v2459
      %v2494 = vsel %vm2426, %v2392, %v2460
      %v2495 = vsel %vm2427, %v2393, %v2461
      %v2496 = vsel %vm2428, %v2394, %v2462
      %v2497 = vpack.c.bf16 %v2464, %v2463
      %v2498 = vpack.c.bf16 %v2466, %v2465
      %v2499 = vpack.c.bf16 %v2468, %v2467
      %v2500 = vpack.c.bf16 %v2470, %v2469
      %v2501 = vpack.c.bf16 %v2472, %v2471
      %v2502 = vpack.c.bf16 %v2474, %v2473
      %v2503 = vpack.c.bf16 %v2476, %v2475
      %v2504 = vpack.c.bf16 %v2478, %v2477
      %v2505 = vpack.c.bf16 %v2480, %v2479
      %v2506 = vpack.c.bf16 %v2482, %v2481
      %v2507 = vpack.c.bf16 %v2484, %v2483
      %v2508 = vpack.c.bf16 %v2486, %v2485
      %v2509 = vpack.c.bf16 %v2488, %v2487
      %v2510 = vpack.c.bf16 %v2490, %v2489
      %v2511 = vpack.c.bf16 %v2492, %v2491
      %v2512 = vpack.c.bf16 %v2494, %v2493
      %v2513 = vpack.c.bf16 %v2496, %v2495
      %v2531 = vunpack.c.l.b16 %v2497
      %v2532 = vunpack.c.h.b16 %v2497
      %v2533 = vunpack.c.l.b16 %v2498
      %v2534 = vunpack.c.h.b16 %v2498
      %v2535 = vunpack.c.l.b16 %v2499
      %v2536 = vunpack.c.h.b16 %v2499
      %v2537 = vunpack.c.l.b16 %v2500
      %v2538 = vunpack.c.h.b16 %v2500
      %v2539 = vunpack.c.l.b16 %v2501
      %v2540 = vunpack.c.h.b16 %v2501
      %v2541 = vunpack.c.l.b16 %v2502
      %v2542 = vunpack.c.h.b16 %v2502
      %v2543 = vunpack.c.l.b16 %v2503
      %v2544 = vunpack.c.h.b16 %v2503
      %v2545 = vunpack.c.l.b16 %v2504
      %v2546 = vunpack.c.h.b16 %v2504
      %v2547 = vunpack.c.l.b16 %v2505
      %v2548 = vunpack.c.h.b16 %v2505
      %v2549 = vunpack.c.l.b16 %v2506
      %v2550 = vunpack.c.h.b16 %v2506
      %v2551 = vunpack.c.l.b16 %v2507
      %v2552 = vunpack.c.h.b16 %v2507
      %v2553 = vunpack.c.l.b16 %v2508
      %v2554 = vunpack.c.h.b16 %v2508
      %v2555 = vunpack.c.l.b16 %v2509
      %v2556 = vunpack.c.h.b16 %v2509
      %v2557 = vunpack.c.l.b16 %v2510
      %v2558 = vunpack.c.h.b16 %v2510
      %v2559 = vunpack.c.l.b16 %v2511
      %v2560 = vunpack.c.h.b16 %v2511
      %v2561 = vunpack.c.l.b16 %v2512
      %v2562 = vunpack.c.h.b16 %v2512
      %v2563 = vunpack.c.l.b16 %v2513
      %v2564 = vunpack.c.h.b16 %v2513
      %v2565 = vpack.c.b16 %v2531, %v2531
      %v2566 = vpack.c.b16 %v2532, %v2532
      %v2567 = vpack.c.b16 %v2533, %v2533
      %v2568 = vpack.c.b16 %v2534, %v2534
      %v2569 = vpack.c.b16 %v2535, %v2535
      %v2570 = vpack.c.b16 %v2536, %v2536
      %v2571 = vpack.c.b16 %v2537, %v2537
      %v2572 = vpack.c.b16 %v2538, %v2538
      %v2573 = vpack.c.b16 %v2539, %v2539
      %v2574 = vpack.c.b16 %v2540, %v2540
      %v2575 = vpack.c.b16 %v2541, %v2541
      %v2576 = vpack.c.b16 %v2542, %v2542
      %v2577 = vpack.c.b16 %v2543, %v2543
      %v2578 = vpack.c.b16 %v2544, %v2544
      %v2579 = vpack.c.b16 %v2545, %v2545
      %v2580 = vpack.c.b16 %v2546, %v2546
      %v2581 = vpack.c.b16 %v2547, %v2547
      %v2582 = vpack.c.b16 %v2548, %v2548
      %v2583 = vpack.c.b16 %v2549, %v2549
      %v2584 = vpack.c.b16 %v2550, %v2550
      %v2585 = vpack.c.b16 %v2551, %v2551
      %v2586 = vpack.c.b16 %v2552, %v2552
      %v2587 = vpack.c.b16 %v2553, %v2553
      %v2588 = vpack.c.b16 %v2554, %v2554
      %v2589 = vpack.c.b16 %v2555, %v2555
      %v2590 = vpack.c.b16 %v2556, %v2556
      %v2591 = vpack.c.b16 %v2557, %v2557
      %v2592 = vpack.c.b16 %v2558, %v2558
      %v2593 = vpack.c.b16 %v2559, %v2559
      %v2594 = vpack.c.b16 %v2560, %v2560
      %v2595 = vpack.c.b16 %v2561, %v2561
      %v2596 = vpack.c.b16 %v2562, %v2562
      %v2597 = vpack.c.b16 %v2563, %v2563
      %v2598 = vpack.c.b16 %v2564, %v2564
      %2633 = vst [vmem:[%s248] sm:$0xf] %v2565
      %2634 = vst [vmem:[%s248 + $0x4] sm:$0xf] %v2566
      %2635 = vst [vmem:[%s248 + $0x8] sm:$0xf] %v2567
      %2636 = vst [vmem:[%s248 + $0xc] sm:$0xf] %v2568
      %2637 = vst [vmem:[%s248 + $0x10] sm:$0xf] %v2569
      %2638 = vst [vmem:[%s248 + $0x14] sm:$0xf] %v2570
      %2639 = vst [vmem:[%s248 + $0x18] sm:$0xf] %v2571
      %2640 = vst [vmem:[%s248 + $0x1c] sm:$0xf] %v2572
      %2641 = vst [vmem:[%s248 + $0x20] sm:$0xf] %v2573
      %2642 = vst [vmem:[%s248 + $0x24] sm:$0xf] %v2574
      %2643 = vst [vmem:[%s248 + $0x28] sm:$0xf] %v2575
      %2644 = vst [vmem:[%s248 + $0x2c] sm:$0xf] %v2576
      %2645 = vst [vmem:[%s248 + $0x30] sm:$0xf] %v2577
      %2646 = vst [vmem:[%s248 + $0x34] sm:$0xf] %v2578
      %2647 = vst [vmem:[%s248 + $0x38] sm:$0xf] %v2579
      %2648 = vst [vmem:[%s248 + $0x3c] sm:$0xf] %v2580
      %2649 = vst [vmem:[%s248 + $0x40] sm:$0xf] %v2581
      %2650 = vst [vmem:[%s248 + $0x44] sm:$0xf] %v2582
      %2651 = vst [vmem:[%s248 + $0x48] sm:$0xf] %v2583
      %2652 = vst [vmem:[%s248 + $0x4c] sm:$0xf] %v2584
      %2653 = vst [vmem:[%s248 + $0x50] sm:$0xf] %v2585
      %2654 = vst [vmem:[%s248 + $0x54] sm:$0xf] %v2586
      %2655 = vst [vmem:[%s248 + $0x58] sm:$0xf] %v2587
      %2656 = vst [vmem:[%s248 + $0x5c] sm:$0xf] %v2588
      %2657 = vst [vmem:[%s248 + $0x60] sm:$0xf] %v2589
      %2658 = vst [vmem:[%s248 + $0x64] sm:$0xf] %v2590
      %2659 = vst [vmem:[%s248 + $0x68] sm:$0xf] %v2591
      %2660 = vst [vmem:[%s248 + $0x6c] sm:$0xf] %v2592
      %2661 = vst [vmem:[%s248 + $0x70] sm:$0xf] %v2593
      %2662 = vst [vmem:[%s248 + $0x74] sm:$0xf] %v2594
      %2663 = vst [vmem:[%s248 + $0x78] sm:$0xf] %v2595
      %2664 = vst [vmem:[%s248 + $0x7c] sm:$0xf] %v2596
      %2665 = vst [vmem:[%s248 + $0x80] sm:$0xf] %v2597
      %2666 = vst [vmem:[%s248 + $0x84] sm:$0xf] %v2598
      %p2667 = scmp.lt.s32.totalorder %s19, 1
      %s2668 = scalar_select %p2667, %s19, 1
      %p2669 = scmp.lt.s32.totalorder %s20, 0
      %s2670 = scalar_select %p2669, %s20, 0
      %s2671 = smul.addr %s2668, 34
      %s2672 = sadd.s32 %s2670, %s2671
      %s2673 = smul.addr %s2672, 4
      %s2674 = scalar_lea.vmem %s4, %s2673
      // Predicated region
      $region37: #{discriminator_forward.5} parent=35 // pred_check
        %p2675 = pneg %p146
      $region38: #{discriminator_forward.5} parent=35 // pred_check_branch
        %2677 = sbr.rel (%p2675) target = $region40
      $region39: #{discriminator_forward.5} parent=35 // pred_region
        _
      $region40: #{discriminator_forward.5} parent=35 // pred_fallthru
        _
    $region36: #{discriminator_forward.5} parent=5 // pred_fallthru
      _
    %p2678 = scmp.le.s32.totalorder 2, %s10
    // Predicated region
    $region41: #{discriminator_forward.5} parent=5 // pred_check
      %p2679 = pneg %p2678
    $region42: #{discriminator_forward.5} parent=5 // pred_check_branch
      %2681 = sbr.rel (%p2679) target = $region44
    $region43: #{discriminator_forward.5} parent=5 // pred_region
      %s2682 = ssub.s32 %s10, 2
      // Predicated region
      $region45: #{discriminator_forward.5} parent=43 // pred_check
        %p2683 = pneg %p152
      $region46: #{discriminator_forward.5} parent=43 // pred_check_branch
        %2685 = sbr.rel (%p2683) target = $region48
      $region47: #{discriminator_forward.5} parent=43 // pred_region
        %p2686 = scmp.lt.s32.totalorder %s21, 1
        %s2687 = scalar_select %p2686, %s21, 1
        %p2688 = scmp.lt.s32.totalorder %s22, 0
        %s2689 = scalar_select %p2688, %s22, 0
        %s2690 = smul.addr %s2687, 34
        %s2691 = sadd.s32 %s2689, %s2690
        %s2692 = smul.addr %s2691, 4
        %s2693 = scalar_lea.vmem %s4, %s2692
      $region48: #{discriminator_forward.5} parent=43 // pred_fallthru
        _
    $region44: #{discriminator_forward.5} parent=5 // pred_fallthru
      _
  $region6: #{discriminator_forward.5} parent=0 // loop_footer
    %s14 = sadd.s32 1, %s10
  $region7: #{discriminator_forward.5} parent=0 // loop_footer_branch
    %9 = sbr.rel target = $region3
  $region8: #{discriminator_forward.5} parent=0 // loop_exit
    _

// kernel: discriminator_forward.6
$region0: #{discriminator_forward.6}
  #allocation0 [shape = 'u32[]', space=smem, size = 0x4, offset = 0x4, fixed_abs, tag = 'smem constant byte address 0x4 - core index']
  #allocation1 [shape = 'u32[144,128]{1,0:T(1,128)}', space=vmem, size = 0x12000, scoped, tag = 'internal scratch']
  #allocation2 [shape = 'f32[72,128]{1,0:T(8,128)}', space=vmem, size = 0x9000, scoped, tag = 'scratch operand']
  %s0 = inlined_call_operand.vmem [shape: bf16[2,82,64], index: 0, kind: input, shape index: {}]
  %s1 = inlined_call_operand.vmem [shape: bf16[4,64,128], index: 1, kind: input, shape index: {}]
  %s2 = inlined_call_operand.vmem [shape: f32[1,128], index: 2, kind: input, shape index: {}]
  %s3 = inlined_call_operand.vmem [shape: f32[72,1], index: 3, kind: input, shape index: {}]
  %s4 = inlined_call_operand.vmem [shape: bf16[2,72,128], index: 4, kind: output, shape index: {}]
  %s5 = sld [smem:[#allocation0]]
  $region49: #{discriminator_forward.6} parent=0
    _
  %s7 = ssub.s32 1, %s5
  %s8 = scalar_select 0, %s7, %s5
  loop: start=0, step=1, limit=4
  $region2: #{discriminator_forward.6} parent=0 // loop_pre_header
    _
  $region3: #{discriminator_forward.6} parent=0 // loop_header
    %s10 = sphi 0, %s14
    %p11 = scmp.ge.s32.totalorder %s10, 4
    %s17 = sphi 0, %s29
    %s18 = sphi 0, %s25
    %s19 = sphi 0, %s17
    %s20 = sphi 0, %s18
    %s21 = sphi 0, %s19
    %s22 = sphi 0, %s20
    %s32 = sphi 0, %s34
    %s35 = sphi 0, %s32
    %s36 = sphi 0, %s35
    %s52 = sphi 0, %s36
    %s58 = sphi 0, %s60
    %s61 = sphi 0, %s58
    %s62 = sphi 0, %s61
    %s78 = sphi 0, %s62
    %s84 = sphi 0, %s86
    %s87 = sphi 0, %s84
    %s88 = sphi 0, %s87
    %s104 = sphi 0, %s88
    %s108 = sphi 0, %s108
    %s110 = sphi 0, %s108
    %s111 = sphi 0, %s110
    %s125 = sphi 0, %s111
    %s133 = sphi 0, %s135
    %s136 = sphi 0, %s133
    %s137 = sphi 0, %s136
    %s153 = sphi 0, %s137
  $region4: #{discriminator_forward.6} parent=0 // loop_header_branch
    %13 = sbr.rel (%p11) target = $region8
  $region5: #{discriminator_forward.6} parent=0 // loop_body
    %s15 = ssub.s32 %s10, 1
    %s16 = ssub.s32 %s10, 2
    %s23 = sadd.s32 1, %s18
    %p24 = scmp.ge.s32.totalorder %s23, 1
    %s25 = scalar_select %p24, 0, %s23
    %s26 = sadd.s32 1, %s17
    %s27 = scalar_select %p24, %s26, %s17
    %p28 = scmp.ge.s32.totalorder %s27, 2
    %s29 = scalar_select %p28, 0, %s27
    %s30 = ssub.s32 %s17, %s29
    %p31 = scmp.eq.s32.totalorder %s30, 0
    %s33 = sadd.s32 %s32, 1
    %s34 = scalar_select %p31, %s32, %s33
    %p37 = pneg %p31
    %p38 = scmp.eq.s32.totalorder %s10, 1
    %p39 = por %p37, %p38
    %p40 = scmp.ne.s32.totalorder %s32, %s35
    %p41 = scmp.eq.s32.totalorder %s10, 0
    %p42 = por %p40, %p41
    %p43 = scmp.ne.s32.totalorder %s32, %s35
    %p44 = scmp.eq.s32.totalorder %s15, 1
    %p45 = por %p43, %p44
    %p46 = scmp.ne.s32.totalorder %s35, %s36
    %p47 = scmp.eq.s32.totalorder %s15, 0
    %p48 = por %p46, %p47
    %p49 = scmp.ne.s32.totalorder %s35, %s36
    %p50 = scmp.eq.s32.totalorder %s16, 1
    %p51 = por %p49, %p50
    %p53 = scmp.ne.s32.totalorder %s36, %s52
    %p54 = scmp.eq.s32.totalorder %s16, 0
    %p55 = por %p53, %p54
    %s56 = ssub.s32 %s18, %s25
    %p57 = scmp.eq.s32.totalorder %s56, 0
    %s59 = sadd.s32 %s58, 1
    %s60 = scalar_select %p57, %s58, %s59
    %p63 = pneg %p57
    %p64 = scmp.eq.s32.totalorder %s10, 1
    %p65 = por %p63, %p64
    %p66 = scmp.ne.s32.totalorder %s58, %s61
    %p67 = scmp.eq.s32.totalorder %s10, 0
    %p68 = por %p66, %p67
    %p69 = scmp.ne.s32.totalorder %s58, %s61
    %p70 = scmp.eq.s32.totalorder %s15, 1
    %p71 = por %p69, %p70
    %p72 = scmp.ne.s32.totalorder %s61, %s62
    %p73 = scmp.eq.s32.totalorder %s15, 0
    %p74 = por %p72, %p73
    %p75 = scmp.ne.s32.totalorder %s61, %s62
    %p76 = scmp.eq.s32.totalorder %s16, 1
    %p77 = por %p75, %p76
    %p79 = scmp.ne.s32.totalorder %s62, %s78
    %p80 = scmp.eq.s32.totalorder %s16, 0
    %p81 = por %p79, %p80
    %s82 = ssub.s32 %s18, %s25
    %p83 = scmp.eq.s32.totalorder %s82, 0
    %s85 = sadd.s32 %s84, 1
    %s86 = scalar_select %p83, %s84, %s85
    %p89 = pneg %p83
    %p90 = scmp.eq.s32.totalorder %s10, 1
    %p91 = por %p89, %p90
    %p92 = scmp.ne.s32.totalorder %s84, %s87
    %p93 = scmp.eq.s32.totalorder %s10, 0
    %p94 = por %p92, %p93
    %p95 = scmp.ne.s32.totalorder %s84, %s87
    %p96 = scmp.eq.s32.totalorder %s15, 1
    %p97 = por %p95, %p96
    %p98 = scmp.ne.s32.totalorder %s87, %s88
    %p99 = scmp.eq.s32.totalorder %s15, 0
    %p100 = por %p98, %p99
    %p101 = scmp.ne.s32.totalorder %s87, %s88
    %p102 = scmp.eq.s32.totalorder %s16, 1
    %p103 = por %p101, %p102
    %p105 = scmp.ne.s32.totalorder %s88, %s104
    %p106 = scmp.eq.s32.totalorder %s16, 0
    %p107 = por %p105, %p106
    %s109 = sadd.s32 %s108, 1
    %p112 = scmp.eq.s32.totalorder %s10, 1
    %p113 = scmp.ne.s32.totalorder %s108, %s110
    %p114 = scmp.eq.s32.totalorder %s10, 0
    %p115 = por %p113, %p114
    %p116 = scmp.ne.s32.totalorder %s108, %s110
    %p117 = scmp.eq.s32.totalorder %s15, 1
    %p118 = por %p116, %p117
    %p119 = scmp.ne.s32.totalorder %s110, %s111
    %p120 = scmp.eq.s32.totalorder %s15, 0
    %p121 = por %p119, %p120
    %p122 = scmp.ne.s32.totalorder %s110, %s111
    %p123 = scmp.eq.s32.totalorder %s16, 1
    %p124 = por %p122, %p123
    %p126 = scmp.ne.s32.totalorder %s111, %s125
    %p127 = scmp.eq.s32.totalorder %s16, 0
    %p128 = por %p126, %p127
    %s129 = ssub.s32 %s17, %s29
    %s130 = ssub.s32 %s18, %s25
    %s131 = sor.u32 %s129, %s130
    %p132 = scmp.eq.s32.totalorder %s131, 0
    %s134 = sadd.s32 %s133, 1
    %s135 = scalar_select %p132, %s133, %s134
    %p138 = pneg %p132
    %p139 = scmp.eq.s32.totalorder %s10, 1
    %p140 = por %p138, %p139
    %p141 = scmp.ne.s32.totalorder %s133, %s136
    %p142 = scmp.eq.s32.totalorder %s10, 0
    %p143 = por %p141, %p142
    %p144 = scmp.ne.s32.totalorder %s133, %s136
    %p145 = scmp.eq.s32.totalorder %s15, 1
    %p146 = por %p144, %p145
    %p147 = scmp.ne.s32.totalorder %s136, %s137
    %p148 = scmp.eq.s32.totalorder %s15, 0
    %p149 = por %p147, %p148
    %p150 = scmp.ne.s32.totalorder %s136, %s137
    %p151 = scmp.eq.s32.totalorder %s16, 1
    %p152 = por %p150, %p151
    %p154 = scmp.ne.s32.totalorder %s137, %s153
    %p155 = scmp.eq.s32.totalorder %s16, 0
    %p156 = por %p154, %p155
    %p157 = scmp.le.s32.totalorder 1, %s10
    %p158 = scmp.lt.s32.totalorder %s10, 3
    %p159 = pnand %p157, %p158
    %p160 = pneg %p159
    // Predicated region
    $region9: #{discriminator_forward.6} parent=5 // pred_check
      _
    $region10: #{discriminator_forward.6} parent=5 // pred_check_branch
      %162 = sbr.rel (%p159) target = $region12
    $region11: #{discriminator_forward.6} parent=5 // pred_region
      %s163 = ssub.s32 %s10, 1
      // Predicated region
      $region13: #{discriminator_forward.6} parent=11 // pred_check
        %p164 = pneg %p74
      $region14: #{discriminator_forward.6} parent=11 // pred_check_branch
        %166 = sbr.rel (%p164) target = $region16
      $region15: #{discriminator_forward.6} parent=11 // pred_region
        %p167 = scmp.lt.s32.totalorder %s20, 0
        %s168 = scalar_select %p167, %s20, 0
        %s169 = smul.addr %s168, 4
        %s170 = scalar_lea.vmem %s1, %s169
      $region16: #{discriminator_forward.6} parent=11 // pred_fallthru
        _
      // Predicated region
      $region17: #{discriminator_forward.6} parent=11 // pred_check
        %p171 = pneg %p100
      $region18: #{discriminator_forward.6} parent=11 // pred_check_branch
        %173 = sbr.rel (%p171) target = $region20
      $region19: #{discriminator_forward.6} parent=11 // pred_region
        %p174 = scmp.lt.s32.totalorder %s20, 0
        %s175 = scalar_select %p174, %s20, 0
        %s176 = scalar_lea.vmem %s2, %s175
      $region20: #{discriminator_forward.6} parent=11 // pred_fallthru
        _
      // Predicated region
      $region21: #{discriminator_forward.6} parent=11 // pred_check
        %p177 = pneg %p121
      $region22: #{discriminator_forward.6} parent=11 // pred_check_branch
        %179 = sbr.rel (%p177) target = $region24
      $region23: #{discriminator_forward.6} parent=11 // pred_region
        _
      $region24: #{discriminator_forward.6} parent=11 // pred_fallthru
        _
    $region12: #{discriminator_forward.6} parent=5 // pred_fallthru
      _
    %p180 = scmp.lt.s32.totalorder %s10, 2
    // Predicated region
    $region25: #{discriminator_forward.6} parent=5 // pred_check
      %p181 = pneg %p180
    $region26: #{discriminator_forward.6} parent=5 // pred_check_branch
      %183 = sbr.rel (%p181) target = $region28
    $region27: #{discriminator_forward.6} parent=5 // pred_region
      // Predicated region
      $region29: #{discriminator_forward.6} parent=27 // pred_check
        %p184 = pneg %p42
      $region30: #{discriminator_forward.6} parent=27 // pred_check_branch
        %186 = sbr.rel (%p184) target = $region32
      $region31: #{discriminator_forward.6} parent=27 // pred_region
        %p187 = scmp.lt.s32.totalorder %s17, 1
        %s188 = scalar_select %p187, %s17, 1
        %s189 = smul.addr %s188, 11
        %s190 = smul.addr %s189, 4
        %s191 = scalar_lea.vmem %s0, %s190
      $region32: #{discriminator_forward.6} parent=27 // pred_fallthru
        _
    $region28: #{discriminator_forward.6} parent=5 // pred_fallthru
      _
    %p192 = scmp.le.s32.totalorder 1, %s10
    %p193 = scmp.lt.s32.totalorder %s10, 3
    %p194 = pnand %p192, %p193
    %p195 = pneg %p194
    // Predicated region
    $region33: #{discriminator_forward.6} parent=5 // pred_check
      _
    $region34: #{discriminator_forward.6} parent=5 // pred_check_branch
      %197 = sbr.rel (%p194) target = $region36
    $region35: #{discriminator_forward.6} parent=5 // pred_region
      %s198 = ssub.s32 %s10, 1
      %p199 = scmp.lt.s32.totalorder %s19, 1
      %s200 = scalar_select %p199, %s19, 1
      %s201 = smul.addr %s200, 11
      %s202 = smul.addr %s201, 4
      %s203 = scalar_lea.vmem %s0, %s202
      %p204 = pneg %p48
      %p205 = pneg %p45
      %p206 = scmp.lt.s32.totalorder %s20, 0
      %s207 = scalar_select %p206, %s20, 0
      %s208 = smul.addr %s207, 4
      %s209 = scalar_lea.vmem %s1, %s208
      %p210 = pneg %p74
      %p211 = pneg %p71
      %p212 = scmp.lt.s32.totalorder %s20, 0
      %s213 = scalar_select %p212, %s20, 0
      %s214 = scalar_lea.vmem %s2, %s213
      %p215 = pneg %p100
      %p216 = pneg %p97
      %p217 = pneg %p121
      %p218 = pneg %p118
      %p219 = pneg %p149
      %p220 = pneg %p146
      %p221 = scmp.lt.s32.totalorder %s19, 1
      %s222 = scalar_select %p221, %s19, 1
      %p223 = scmp.lt.s32.totalorder %s20, 0
      %s224 = scalar_select %p223, %s20, 0
      %s225 = smul.addr %s222, 9
      %s226 = sadd.s32 %s224, %s225
      %s227 = smul.addr %s226, 4
      %s228 = scalar_lea.vmem %s4, %s227
      %p229 = scmp.lt.s32.totalorder %s19, 1
      %s230 = scalar_select %p229, %s19, 1
      %s231 = smul.addr %s230, 11
      %s232 = smul.addr %s231, 4
      %s233 = scalar_lea.vmem %s0, %s232
      %p234 = scmp.lt.s32.totalorder %s20, 0
      %s235 = scalar_select %p234, %s20, 0
      %s236 = smul.addr %s235, 4
      %s237 = scalar_lea.vmem %s1, %s236
      %p238 = scmp.lt.s32.totalorder %s20, 0
      %s239 = scalar_select %p238, %s20, 0
      %s240 = scalar_lea.vmem %s2, %s239
      %p241 = scmp.lt.s32.totalorder %s19, 1
      %s242 = scalar_select %p241, %s19, 1
      %p243 = scmp.lt.s32.totalorder %s20, 0
      %s244 = scalar_select %p243, %s20, 0
      %s245 = smul.addr %s242, 9
      %s246 = sadd.s32 %s244, %s245
      %s247 = smul.addr %s246, 4
      %s248 = scalar_lea.vmem %s4, %s247
      %v250 = vld [vmem:[%s233] sm:$0xf]
      %v251 = vld [vmem:[%s233 + $0x4] sm:$0xf]
      %v252 = vld [vmem:[%s233 + $0x8] sm:$0xf]
      %v253 = vld [vmem:[%s233 + $0xc] sm:$0xf]
      %v254 = vld [vmem:[%s233 + $0x10] sm:$0xf]
      %v255 = vld [vmem:[%s233 + $0x14] sm:$0xf]
      %v256 = vld [vmem:[%s233 + $0x18] sm:$0xf]
      %v257 = vld [vmem:[%s233 + $0x1c] sm:$0xf]
      %v258 = vld [vmem:[%s233 + $0x20] sm:$0xf]
      %v259 = vld [vmem:[%s237] sm:$0xf]
      %v260 = vld [vmem:[%s237 + $0x4] sm:$0xf]
      %v261 = vld [vmem:[%s237 + $0x8] sm:$0xf]
      %v262 = vld [vmem:[%s237 + $0xc] sm:$0xf]
      %v263 = vld [vmem:[%s237 + $0x10] sm:$0xf]
      %v264 = vld [vmem:[%s237 + $0x14] sm:$0xf]
      %v265 = vld [vmem:[%s237 + $0x18] sm:$0xf]
      %v266 = vld [vmem:[%s237 + $0x1c] sm:$0xf]
      %v276 = vunpack.c.l.b16 %v250
      %v277 = vunpack.c.l.b16 %v251
      %v278 = vunpack.c.l.b16 %v252
      %v279 = vunpack.c.l.b16 %v253
      %v280 = vunpack.c.l.b16 %v254
      %v281 = vunpack.c.l.b16 %v255
      %v282 = vunpack.c.l.b16 %v256
      %v283 = vunpack.c.l.b16 %v257
      %v284 = vunpack.c.l.b16 %v258
      %v285 = vpack.c.b16 %v277, %v276
      %v286 = vpack.c.b16 %v279, %v278
      %v287 = vpack.c.b16 %v281, %v280
      %v288 = vpack.c.b16 %v283, %v282
      %v289 = vpack.c.b16 %v284, %v284
      %v298 = vunpack.c.l.b16 %v259
      %v299 = vunpack.c.l.b16 %v260
      %v300 = vunpack.c.l.b16 %v261
      %v301 = vunpack.c.l.b16 %v262
      %v302 = vunpack.c.l.b16 %v263
      %v303 = vunpack.c.l.b16 %v264
      %v304 = vunpack.c.l.b16 %v265
      %v305 = vunpack.c.l.b16 %v266
      %v306 = vpack.c.b16 %v299, %v298
      %v307 = vpack.c.b16 %v301, %v300
      %v308 = vpack.c.b16 %v303, %v302
      %v309 = vpack.c.b16 %v305, %v304
      %vm314 = vcmask 523264
      %v316 = vsel %vm314, %v285, 0
      %v319 = vsel %vm314, %v286, 0
      %v322 = vsel %vm314, %v287, 0
      %v325 = vsel %vm314, %v288, 0
      %v328 = vsel %vm314, %v289, 0
      %330 = vmatprep.subr.bf16.mxu0 0
      %331 = vmatpush1.bf16.msra.mxu0 %v306
      %332 = vmatprep.subr.bf16.mxu0 0
      %333 = vmatpush1.bf16.msra.mxu0 %v307
      %334 = vmatprep.subr.bf16.mxu0 0
      %335 = vmatpush1.bf16.msra.mxu0 %v308
      %336 = vmatprep.subr.bf16.mxu0 0
      %337 = vmatpush1.bf16.msra.mxu0 %v309
      %338 = vmatprep.subr.bf16.mxu0 0
      %339 = vmatpush1.bf16.msra.mxu0 0
      %340 = vmatprep.subr.bf16.mxu0 0
      %341 = vmatpush1.bf16.msra.mxu0 0
      %342 = vmatprep.subr.bf16.mxu0 0
      %343 = vmatpush1.bf16.msra.mxu0 0
      %344 = vmatprep.subr.bf16.mxu0 0
      %345 = vmatpush1.bf16.msra.mxu0 0
      %346 = vmatprep.subr.bf16.mxu0 0
      %347 = vmatpush1.bf16.msra.mxu0 0
      %348 = vmatprep.subr.bf16.mxu0 0
      %349 = vmatpush1.bf16.msra.mxu0 0
      %350 = vmatprep.subr.bf16.mxu0 0
      %351 = vmatpush1.bf16.msra.mxu0 0
      %352 = vmatprep.subr.bf16.mxu0 0
      %353 = vmatpush1.bf16.msra.mxu0 0
      %354 = vmatprep.subr.bf16.mxu0 0
      %355 = vmatpush1.bf16.msra.mxu0 0
      %356 = vmatprep.subr.bf16.mxu0 0
      %357 = vmatpush1.bf16.msra.mxu0 0
      %358 = vmatprep.subr.bf16.mxu0 0
      %359 = vmatpush1.bf16.msra.mxu0 0
      %360 = vmatprep.subr.bf16.mxu0 0
      %361 = vmatpush1.bf16.msra.mxu0 0
      %362 = vmatprep.mubr.bf16.mxu0 0
      %363 = vmatmul.mubr.bf16.gmra.mrb[0].mxu0 %v316
      %v364 = vpop.f32.mrb[0].mxu0
      %v365 = vadd.f32 0.0, %v364
      %v366 = vpop.f32.mrb[0].mxu0
      %v367 = vpop.f32.mrb[0].mxu0
      %v368 = vadd.f32 0.0, %v367
      %v369 = vpop.f32.mrb[0].mxu0
      %370 = vmatprep.mubr.bf16.mxu0 0
      %371 = vmatmul.mubr.bf16.gmra.mrb[0].mxu0 %v319
      %v372 = vpop.f32.mrb[0].mxu0
      %v373 = vadd.f32 0.0, %v372
      %v374 = vpop.f32.mrb[0].mxu0
      %v375 = vpop.f32.mrb[0].mxu0
      %v376 = vadd.f32 0.0, %v375
      %v377 = vpop.f32.mrb[0].mxu0
      %378 = vmatprep.mubr.bf16.mxu0 0
      %379 = vmatmul.mubr.bf16.gmra.mrb[0].mxu0 %v322
      %v380 = vpop.f32.mrb[0].mxu0
      %v381 = vadd.f32 0.0, %v380
      %v382 = vpop.f32.mrb[0].mxu0
      %v383 = vpop.f32.mrb[0].mxu0
      %v384 = vadd.f32 0.0, %v383
      %v385 = vpop.f32.mrb[0].mxu0
      %386 = vmatprep.mubr.bf16.mxu0 0
      %387 = vmatmul.mubr.bf16.gmra.mrb[0].mxu0 %v325
      %v388 = vpop.f32.mrb[0].mxu0
      %v389 = vadd.f32 0.0, %v388
      %v390 = vpop.f32.mrb[0].mxu0
      %v391 = vpop.f32.mrb[0].mxu0
      %v392 = vadd.f32 0.0, %v391
      %v393 = vpop.f32.mrb[0].mxu0
      %394 = vmatprep.mubr.bf16.mxu0 0
      %395 = vmatmul.mubr.bf16.gmra.mrb[0].mxu0 %v328
      %v396 = vpop.f32.mrb[0].mxu0
      %v397 = vadd.f32 0.0, %v396
      %v398 = vpop.f32.mrb[0].mxu0
      %v399 = vpop.f32.mrb[0].mxu0
      %v400 = vpop.f32.mrb[0].mxu0
      %401 = vdwg.mxu0
      %402 = vst [vmem:[#allocation2] sm:$0xff] %v365
      %403 = vst [vmem:[#allocation2 + $0x8] sm:$0xff] %v368
      %404 = vst [vmem:[#allocation2 + $0x10] sm:$0xff] %v373
      %405 = vst [vmem:[#allocation2 + $0x18] sm:$0xff] %v376
      %406 = vst [vmem:[#allocation2 + $0x20] sm:$0xff] %v381
      %407 = vst [vmem:[#allocation2 + $0x28] sm:$0xff] %v384
      %408 = vst [vmem:[#allocation2 + $0x30] sm:$0xff] %v389
      %409 = vst [vmem:[#allocation2 + $0x38] sm:$0xff] %v392
      %410 = vst [vmem:[#allocation2 + $0x40] sm:$0xff] %v397
      %v411 = vld [vmem:[%s233] sm:$0xf]
      %v412 = vld [vmem:[%s233 + $0x4] sm:$0xf]
      %v413 = vld [vmem:[%s233 + $0x8] sm:$0xf]
      %v414 = vld [vmem:[%s233 + $0xc] sm:$0xf]
      %v415 = vld [vmem:[%s233 + $0x10] sm:$0xf]
      %v416 = vld [vmem:[%s233 + $0x14] sm:$0xf]
      %v417 = vld [vmem:[%s233 + $0x18] sm:$0xf]
      %v418 = vld [vmem:[%s233 + $0x1c] sm:$0xf]
      %v419 = vld [vmem:[%s233 + $0x20] sm:$0xf]
      %v420 = vld [vmem:[%s233 + $0x24] sm:$0x1]
      %s421 = scalar_lea.vmem %s237, 32
      %v422 = vld [vmem:[%s421] sm:$0xf]
      %v423 = vld [vmem:[%s421 + $0x4] sm:$0xf]
      %v424 = vld [vmem:[%s421 + $0x8] sm:$0xf]
      %v425 = vld [vmem:[%s421 + $0xc] sm:$0xf]
      %v426 = vld [vmem:[%s421 + $0x10] sm:$0xf]
      %v427 = vld [vmem:[%s421 + $0x14] sm:$0xf]
      %v428 = vld [vmem:[%s421 + $0x18] sm:$0xf]
      %v429 = vld [vmem:[%s421 + $0x1c] sm:$0xf]
      %v440 = vunpack.c.l.b16 %v411
      %v441 = vunpack.c.l.b16 %v412
      %v442 = vunpack.c.l.b16 %v413
      %v443 = vunpack.c.l.b16 %v414
      %v444 = vunpack.c.l.b16 %v415
      %v445 = vunpack.c.l.b16 %v416
      %v446 = vunpack.c.l.b16 %v417
      %v447 = vunpack.c.l.b16 %v418
      %v448 = vunpack.c.l.b16 %v419
      %v449 = vunpack.c.l.b16 %v420
      %v450 = vpack.c.b16 %v441, %v440
      %v451 = vpack.c.b16 %v443, %v442
      %v452 = vpack.c.b16 %v445, %v444
      %v453 = vpack.c.b16 %v447, %v446
      %v454 = vpack.c.b16 %v449, %v448
      %vm455 = vsmask.f32 7424
      %v457 = vshrl.u32 %v450, 16
      %v459 = vshll.u32 %v450, 16
      %v461 = vrot.slane %v459, 1
      %v462 = vor.u32 %v457, %v461
      %v464 = vshll.u32 %v451, 16
      %v466 = vrot.slane %v464, 1
      %v467 = vsel %vm455, %v462, %v466
      %v468 = vshrl.u32 %v451, 16
      %v470 = vor.u32 %v468, %v466
      %v472 = vshll.u32 %v452, 16
      %v474 = vrot.slane %v472, 1
      %v475 = vsel %vm455, %v470, %v474
      %v476 = vshrl.u32 %v452, 16
      %v478 = vor.u32 %v476, %v474
      %v480 = vshll.u32 %v453, 16
      %v482 = vrot.slane %v480, 1
      %v483 = vsel %vm455, %v478, %v482
      %v484 = vshrl.u32 %v453, 16
      %v486 = vor.u32 %v484, %v482
      %v488 = vshll.u32 %v454, 16
      %v490 = vrot.slane %v488, 1
      %v491 = vsel %vm455, %v486, %v490
      %v492 = vshrl.u32 %v454, 16
      %v494 = vor.u32 %v492, %v490
      %v503 = vunpack.c.l.b16 %v422
      %v504 = vunpack.c.l.b16 %v423
      %v505 = vunpack.c.l.b16 %v424
      %v506 = vunpack.c.l.b16 %v425
      %v507 = vunpack.c.l.b16 %v426
      %v508 = vunpack.c.l.b16 %v427
      %v509 = vunpack.c.l.b16 %v428
      %v510 = vunpack.c.l.b16 %v429
      %v511 = vpack.c.b16 %v504, %v503
      %v512 = vpack.c.b16 %v506, %v505
      %v513 = vpack.c.b16 %v508, %v507
      %v514 = vpack.c.b16 %v510, %v509
      %v520 = vsel %vm314, %v467, 0
      %v523 = vsel %vm314, %v475, 0
      %v526 = vsel %vm314, %v483, 0
      %v529 = vsel %vm314, %v491, 0
      %v532 = vsel %vm314, %v494, 0
      %534 = vmatprep.subr.bf16.mxu0 0
      %535 = vmatpush1.bf16.msra.mxu0 %v511
      %536 = vmatprep.subr.bf16.mxu0 0
      %537 = vmatpush1.bf16.msra.mxu0 %v512
      %538 = vmatprep.subr.bf16.mxu0 0
      %539 = vmatpush1.bf16.msra.mxu0 %v513
      %540 = vmatprep.subr.bf16.mxu0 0
      %541 = vmatpush1.bf16.msra.mxu0 %v514
      %542 = vmatprep.subr.bf16.mxu0 0
      %543 = vmatpush1.bf16.msra.mxu0 0
      %544 = vmatprep.subr.bf16.mxu0 0
      %545 = vmatpush1.bf16.msra.mxu0 0
      %546 = vmatprep.subr.bf16.mxu0 0
      %547 = vmatpush1.bf16.msra.mxu0 0
      %548 = vmatprep.subr.bf16.mxu0 0
      %549 = vmatpush1.bf16.msra.mxu0 0
      %550 = vmatprep.subr.bf16.mxu0 0
      %551 = vmatpush1.bf16.msra.mxu0 0
      %552 = vmatprep.subr.bf16.mxu0 0
      %553 = vmatpush1.bf16.msra.mxu0 0
      %554 = vmatprep.subr.bf16.mxu0 0
      %555 = vmatpush1.bf16.msra.mxu0 0
      %556 = vmatprep.subr.bf16.mxu0 0
      %557 = vmatpush1.bf16.msra.mxu0 0
      %558 = vmatprep.subr.bf16.mxu0 0
      %559 = vmatpush1.bf16.msra.mxu0 0
      %560 = vmatprep.subr.bf16.mxu0 0
      %561 = vmatpush1.bf16.msra.mxu0 0
      %562 = vmatprep.subr.bf16.mxu0 0
      %563 = vmatpush1.bf16.msra.mxu0 0
      %564 = vmatprep.subr.bf16.mxu0 0
      %565 = vmatpush1.bf16.msra.mxu0 0
      %566 = vmatprep.mubr.bf16.mxu0 0
      %567 = vmatmul.mubr.bf16.gmra.mrb[0].mxu0 %v520
      %v568 = vpop.f32.mrb[0].mxu0
      %v569 = vadd.f32 0.0, %v568
      %v570 = vpop.f32.mrb[0].mxu0
      %v571 = vpop.f32.mrb[0].mxu0
      %v572 = vadd.f32 0.0, %v571
      %v573 = vpop.f32.mrb[0].mxu0
      %574 = vmatprep.mubr.bf16.mxu0 0
      %575 = vmatmul.mubr.bf16.gmra.mrb[0].mxu0 %v523
      %v576 = vpop.f32.mrb[0].mxu0
      %v577 = vadd.f32 0.0, %v576
      %v578 = vpop.f32.mrb[0].mxu0
      %v579 = vpop.f32.mrb[0].mxu0
      %v580 = vadd.f32 0.0, %v579
      %v581 = vpop.f32.mrb[0].mxu0
      %582 = vmatprep.mubr.bf16.mxu0 0
      %583 = vmatmul.mubr.bf16.gmra.mrb[0].mxu0 %v526
      %v584 = vpop.f32.mrb[0].mxu0
      %v585 = vadd.f32 0.0, %v584
      %v586 = vpop.f32.mrb[0].mxu0
      %v587 = vpop.f32.mrb[0].mxu0
      %v588 = vadd.f32 0.0, %v587
      %v589 = vpop.f32.mrb[0].mxu0
      %590 = vmatprep.mubr.bf16.mxu0 0
      %591 = vmatmul.mubr.bf16.gmra.mrb[0].mxu0 %v529
      %v592 = vpop.f32.mrb[0].mxu0
      %v593 = vadd.f32 0.0, %v592
      %v594 = vpop.f32.mrb[0].mxu0
      %v595 = vpop.f32.mrb[0].mxu0
      %v596 = vadd.f32 0.0, %v595
      %v597 = vpop.f32.mrb[0].mxu0
      %598 = vmatprep.mubr.bf16.mxu0 0
      %599 = vmatmul.mubr.bf16.gmra.mrb[0].mxu0 %v532
      %v600 = vpop.f32.mrb[0].mxu0
      %v601 = vadd.f32 0.0, %v600
      %v602 = vpop.f32.mrb[0].mxu0
      %v603 = vpop.f32.mrb[0].mxu0
      %v604 = vpop.f32.mrb[0].mxu0
      %605 = vdwg.mxu0
      %v606 = vld [vmem:[#allocation2] sm:$0xff]
      %v607 = vld [vmem:[#allocation2 + $0x8] sm:$0xff]
      %v608 = vld [vmem:[#allocation2 + $0x10] sm:$0xff]
      %v609 = vld [vmem:[#allocation2 + $0x18] sm:$0xff]
      %v610 = vld [vmem:[#allocation2 + $0x20] sm:$0xff]
      %v611 = vld [vmem:[#allocation2 + $0x28] sm:$0xff]
      %v612 = vld [vmem:[#allocation2 + $0x30] sm:$0xff]
      %v613 = vld [vmem:[#allocation2 + $0x38] sm:$0xff]
      %v614 = vld [vmem:[#allocation2 + $0x40] sm:$0xff]
      %v615 = vadd.f32 %v606, %v569
      %v616 = vadd.f32 %v607, %v572
      %v617 = vadd.f32 %v608, %v577
      %v618 = vadd.f32 %v609, %v580
      %v619 = vadd.f32 %v610, %v585
      %v620 = vadd.f32 %v611, %v588
      %v621 = vadd.f32 %v612, %v593
      %v622 = vadd.f32 %v613, %v596
      %v623 = vadd.f32 %v614, %v601
      %624 = vst [vmem:[#allocation2] sm:$0xff] %v615
      %625 = vst [vmem:[#allocation2 + $0x8] sm:$0xff] %v616
      %626 = vst [vmem:[#allocation2 + $0x10] sm:$0xff] %v617
      %627 = vst [vmem:[#allocation2 + $0x18] sm:$0xff] %v618
      %628 = vst [vmem:[#allocation2 + $0x20] sm:$0xff] %v619
      %629 = vst [vmem:[#allocation2 + $0x28] sm:$0xff] %v620
      %630 = vst [vmem:[#allocation2 + $0x30] sm:$0xff] %v621
      %631 = vst [vmem:[#allocation2 + $0x38] sm:$0xff] %v622
      %632 = vst [vmem:[#allocation2 + $0x40] sm:$0xff] %v623
      %v633 = vld [vmem:[%s233 + $0x4] sm:$0xf]
      %v634 = vld [vmem:[%s233 + $0x8] sm:$0xf]
      %v635 = vld [vmem:[%s233 + $0xc] sm:$0xf]
      %v636 = vld [vmem:[%s233 + $0x10] sm:$0xf]
      %v637 = vld [vmem:[%s233 + $0x14] sm:$0xf]
      %v638 = vld [vmem:[%s233 + $0x18] sm:$0xf]
      %v639 = vld [vmem:[%s233 + $0x1c] sm:$0xf]
      %v640 = vld [vmem:[%s233 + $0x20] sm:$0xf]
      %v641 = vld [vmem:[%s233 + $0x24] sm:$0xf]
      %v642 = vld [vmem:[%s233 + $0x28] sm:$0x1]
      %s643 = scalar_lea.vmem %s237, 64
      %v644 = vld [vmem:[%s643] sm:$0xf]
      %v645 = vld [vmem:[%s643 + $0x4] sm:$0xf]
      %v646 = vld [vmem:[%s643 + $0x8] sm:$0xf]
      %v647 = vld [vmem:[%s643 + $0xc] sm:$0xf]
      %v648 = vld [vmem:[%s643 + $0x10] sm:$0xf]
      %v649 = vld [vmem:[%s643 + $0x14] sm:$0xf]
      %v650 = vld [vmem:[%s643 + $0x18] sm:$0xf]
      %v651 = vld [vmem:[%s643 + $0x1c] sm:$0xf]
      %v662 = vunpack.c.l.b16 %v633
      %v663 = vunpack.c.l.b16 %v634
      %v664 = vunpack.c.l.b16 %v635
      %v665 = vunpack.c.l.b16 %v636
      %v666 = vunpack.c.l.b16 %v637
      %v667 = vunpack.c.l.b16 %v638
      %v668 = vunpack.c.l.b16 %v639
      %v669 = vunpack.c.l.b16 %v640
      %v670 = vunpack.c.l.b16 %v641
      %v671 = vunpack.c.l.b16 %v642
      %v672 = vpack.c.b16 %v663, %v662
      %v673 = vpack.c.b16 %v665, %v664
      %v674 = vpack.c.b16 %v667, %v666
      %v675 = vpack.c.b16 %v669, %v668
      %v676 = vpack.c.b16 %v671, %v670
      %v678 = vshrl.u32 %v672, 16
      %v680 = vshll.u32 %v672, 16
      %v682 = vrot.slane %v680, 1
      %v683 = vor.u32 %v678, %v682
      %v685 = vshll.u32 %v673, 16
      %v687 = vrot.slane %v685, 1
      %v688 = vsel %vm455, %v683, %v687
      %v689 = vshrl.u32 %v673, 16
      %v691 = vor.u32 %v689, %v687
      %v693 = vshll.u32 %v674, 16
      %v695 = vrot.slane %v693, 1
      %v696 = vsel %vm455, %v691, %v695
      %v697 = vshrl.u32 %v674, 16
      %v699 = vor.u32 %v697, %v695
      %v701 = vshll.u32 %v675, 16
      %v703 = vrot.slane %v701, 1
      %v704 = vsel %vm455, %v699, %v703
      %v705 = vshrl.u32 %v675, 16
      %v707 = vor.u32 %v705, %v703
      %v709 = vshll.u32 %v676, 16
      %v711 = vrot.slane %v709, 1
      %v712 = vsel %vm455, %v707, %v711
      %v713 = vshrl.u32 %v676, 16
      %v715 = vor.u32 %v713, %v711
      %v724 = vunpack.c.l.b16 %v644
      %v725 = vunpack.c.l.b16 %v645
      %v726 = vunpack.c.l.b16 %v646
      %v727 = vunpack.c.l.b16 %v647
      %v728 = vunpack.c.l.b16 %v648
      %v729 = vunpack.c.l.b16 %v649
      %v730 = vunpack.c.l.b16 %v650
      %v731 = vunpack.c.l.b16 %v651
      %v732 = vpack.c.b16 %v725, %v724
      %v733 = vpack.c.b16 %v727, %v726
      %v734 = vpack.c.b16 %v729, %v728
      %v735 = vpack.c.b16 %v731, %v730
      %v741 = vsel %vm314, %v688, 0
      %v744 = vsel %vm314, %v696, 0
      %v747 = vsel %vm314, %v704, 0
      %v750 = vsel %vm314, %v712, 0
      %v753 = vsel %vm314, %v715, 0
      %755 = vmatprep.subr.bf16.mxu0 0
      %756 = vmatpush1.bf16.msra.mxu0 %v732
      %757 = vmatprep.subr.bf16.mxu0 0
      %758 = vmatpush1.bf16.msra.mxu0 %v733
      %759 = vmatprep.subr.bf16.mxu0 0
      %760 = vmatpush1.bf16.msra.mxu0 %v734
      %761 = vmatprep.subr.bf16.mxu0 0
      %762 = vmatpush1.bf16.msra.mxu0 %v735
      %763 = vmatprep.subr.bf16.mxu0 0
      %764 = vmatpush1.bf16.msra.mxu0 0
      %765 = vmatprep.subr.bf16.mxu0 0
      %766 = vmatpush1.bf16.msra.mxu0 0
      %767 = vmatprep.subr.bf16.mxu0 0
      %768 = vmatpush1.bf16.msra.mxu0 0
      %769 = vmatprep.subr.bf16.mxu0 0
      %770 = vmatpush1.bf16.msra.mxu0 0
      %771 = vmatprep.subr.bf16.mxu0 0
      %772 = vmatpush1.bf16.msra.mxu0 0
      %773 = vmatprep.subr.bf16.mxu0 0
      %774 = vmatpush1.bf16.msra.mxu0 0
      %775 = vmatprep.subr.bf16.mxu0 0
      %776 = vmatpush1.bf16.msra.mxu0 0
      %777 = vmatprep.subr.bf16.mxu0 0
      %778 = vmatpush1.bf16.msra.mxu0 0
      %779 = vmatprep.subr.bf16.mxu0 0
      %780 = vmatpush1.bf16.msra.mxu0 0
      %781 = vmatprep.subr.bf16.mxu0 0
      %782 = vmatpush1.bf16.msra.mxu0 0
      %783 = vmatprep.subr.bf16.mxu0 0
      %784 = vmatpush1.bf16.msra.mxu0 0
      %785 = vmatprep.subr.bf16.mxu0 0
      %786 = vmatpush1.bf16.msra.mxu0 0
      %787 = vmatprep.mubr.bf16.mxu0 0
      %788 = vmatmul.mubr.bf16.gmra.mrb[0].mxu0 %v741
      %v789 = vpop.f32.mrb[0].mxu0
      %v790 = vadd.f32 0.0, %v789
      %v791 = vpop.f32.mrb[0].mxu0
      %v792 = vpop.f32.mrb[0].mxu0
      %v793 = vadd.f32 0.0, %v792
      %v794 = vpop.f32.mrb[0].mxu0
      %795 = vmatprep.mubr.bf16.mxu0 0
      %796 = vmatmul.mubr.bf16.gmra.mrb[0].mxu0 %v744
      %v797 = vpop.f32.mrb[0].mxu0
      %v798 = vadd.f32 0.0, %v797
      %v799 = vpop.f32.mrb[0].mxu0
      %v800 = vpop.f32.mrb[0].mxu0
      %v801 = vadd.f32 0.0, %v800
      %v802 = vpop.f32.mrb[0].mxu0
      %803 = vmatprep.mubr.bf16.mxu0 0
      %804 = vmatmul.mubr.bf16.gmra.mrb[0].mxu0 %v747
      %v805 = vpop.f32.mrb[0].mxu0
      %v806 = vadd.f32 0.0, %v805
      %v807 = vpop.f32.mrb[0].mxu0
      %v808 = vpop.f32.mrb[0].mxu0
      %v809 = vadd.f32 0.0, %v808
      %v810 = vpop.f32.mrb[0].mxu0
      %811 = vmatprep.mubr.bf16.mxu0 0
      %812 = vmatmul.mubr.bf16.gmra.mrb[0].mxu0 %v750
      %v813 = vpop.f32.mrb[0].mxu0
      %v814 = vadd.f32 0.0, %v813
      %v815 = vpop.f32.mrb[0].mxu0
      %v816 = vpop.f32.mrb[0].mxu0
      %v817 = vadd.f32 0.0, %v816
      %v818 = vpop.f32.mrb[0].mxu0
      %819 = vmatprep.mubr.bf16.mxu0 0
      %820 = vmatmul.mubr.bf16.gmra.mrb[0].mxu0 %v753
      %v821 = vpop.f32.mrb[0].mxu0
      %v822 = vadd.f32 0.0, %v821
      %v823 = vpop.f32.mrb[0].mxu0
      %v824 = vpop.f32.mrb[0].mxu0
      %v825 = vpop.f32.mrb[0].mxu0
      %826 = vdwg.mxu0
      %v827 = vld [vmem:[#allocation2] sm:$0xff]
      %v828 = vld [vmem:[#allocation2 + $0x8] sm:$0xff]
      %v829 = vld [vmem:[#allocation2 + $0x10] sm:$0xff]
      %v830 = vld [vmem:[#allocation2 + $0x18] sm:$0xff]
      %v831 = vld [vmem:[#allocation2 + $0x20] sm:$0xff]
      %v832 = vld [vmem:[#allocation2 + $0x28] sm:$0xff]
      %v833 = vld [vmem:[#allocation2 + $0x30] sm:$0xff]
      %v834 = vld [vmem:[#allocation2 + $0x38] sm:$0xff]
      %v835 = vld [vmem:[#allocation2 + $0x40] sm:$0xff]
      %v836 = vadd.f32 %v827, %v790
      %v837 = vadd.f32 %v828, %v793
      %v838 = vadd.f32 %v829, %v798
      %v839 = vadd.f32 %v830, %v801
      %v840 = vadd.f32 %v831, %v806
      %v841 = vadd.f32 %v832, %v809
      %v842 = vadd.f32 %v833, %v814
      %v843 = vadd.f32 %v834, %v817
      %v844 = vadd.f32 %v835, %v822
      %845 = vst [vmem:[#allocation2] sm:$0xff] %v836
      %846 = vst [vmem:[#allocation2 + $0x8] sm:$0xff] %v837
      %847 = vst [vmem:[#allocation2 + $0x10] sm:$0xff] %v838
      %848 = vst [vmem:[#allocation2 + $0x18] sm:$0xff] %v839
      %849 = vst [vmem:[#allocation2 + $0x20] sm:$0xff] %v840
      %850 = vst [vmem:[#allocation2 + $0x28] sm:$0xff] %v841
      %851 = vst [vmem:[#allocation2 + $0x30] sm:$0xff] %v842
      %852 = vst [vmem:[#allocation2 + $0x38] sm:$0xff] %v843
      %853 = vst [vmem:[#allocation2 + $0x40] sm:$0xff] %v844
      %v854 = vld [vmem:[%s233 + $0x4] sm:$0xe]
      %v855 = vld [vmem:[%s233 + $0x8] sm:$0xf]
      %v856 = vld [vmem:[%s233 + $0xc] sm:$0xf]
      %v857 = vld [vmem:[%s233 + $0x10] sm:$0xf]
      %v858 = vld [vmem:[%s233 + $0x14] sm:$0xf]
      %v859 = vld [vmem:[%s233 + $0x18] sm:$0xf]
      %v860 = vld [vmem:[%s233 + $0x1c] sm:$0xf]
      %v861 = vld [vmem:[%s233 + $0x20] sm:$0xf]
      %v862 = vld [vmem:[%s233 + $0x24] sm:$0xf]
      %v863 = vld [vmem:[%s233 + $0x28] sm:$0x1]
      %s864 = scalar_lea.vmem %s237, 96
      %v865 = vld [vmem:[%s864] sm:$0xf]
      %v866 = vld [vmem:[%s864 + $0x4] sm:$0xf]
      %v867 = vld [vmem:[%s864 + $0x8] sm:$0xf]
      %v868 = vld [vmem:[%s864 + $0xc] sm:$0xf]
      %v869 = vld [vmem:[%s864 + $0x10] sm:$0xf]
      %v870 = vld [vmem:[%s864 + $0x14] sm:$0xf]
      %v871 = vld [vmem:[%s864 + $0x18] sm:$0xf]
      %v872 = vld [vmem:[%s864 + $0x1c] sm:$0xf]
      %v883 = vunpack.c.l.b16 %v854
      %v884 = vunpack.c.l.b16 %v855
      %v885 = vunpack.c.l.b16 %v856
      %v886 = vunpack.c.l.b16 %v857
      %v887 = vunpack.c.l.b16 %v858
      %v888 = vunpack.c.l.b16 %v859
      %v889 = vunpack.c.l.b16 %v860
      %v890 = vunpack.c.l.b16 %v861
      %v891 = vunpack.c.l.b16 %v862
      %v892 = vunpack.c.l.b16 %v863
      %v893 = vpack.c.b16 %v884, %v883
      %v894 = vpack.c.b16 %v886, %v885
      %v895 = vpack.c.b16 %v888, %v887
      %v896 = vpack.c.b16 %v890, %v889
      %v897 = vpack.c.b16 %v892, %v891
      %vm898 = vcmask 1046528
      %v899 = vrot.slane %v893, 1
      %v900 = vrot.slane %v894, 1
      %v901 = vsel %vm898, %v899, %v900
      %v902 = vrot.slane %v895, 1
      %v903 = vsel %vm898, %v900, %v902
      %v904 = vrot.slane %v896, 1
      %v905 = vsel %vm898, %v902, %v904
      %v906 = vrot.slane %v897, 1
      %v907 = vsel %vm898, %v904, %v906
      %v916 = vunpack.c.l.b16 %v865
      %v917 = vunpack.c.l.b16 %v866
      %v918 = vunpack.c.l.b16 %v867
      %v919 = vunpack.c.l.b16 %v868
      %v920 = vunpack.c.l.b16 %v869
      %v921 = vunpack.c.l.b16 %v870
      %v922 = vunpack.c.l.b16 %v871
      %v923 = vunpack.c.l.b16 %v872
      %v924 = vpack.c.b16 %v917, %v916
      %v925 = vpack.c.b16 %v919, %v918
      %v926 = vpack.c.b16 %v921, %v920
      %v927 = vpack.c.b16 %v923, %v922
      %v933 = vsel %vm314, %v901, 0
      %v936 = vsel %vm314, %v903, 0
      %v939 = vsel %vm314, %v905, 0
      %v942 = vsel %vm314, %v907, 0
      %v945 = vsel %vm314, %v906, 0
      %947 = vmatprep.subr.bf16.mxu0 0
      %948 = vmatpush1.bf16.msra.mxu0 %v924
      %949 = vmatprep.subr.bf16.mxu0 0
      %950 = vmatpush1.bf16.msra.mxu0 %v925
      %951 = vmatprep.subr.bf16.mxu0 0
      %952 = vmatpush1.bf16.msra.mxu0 %v926
      %953 = vmatprep.subr.bf16.mxu0 0
      %954 = vmatpush1.bf16.msra.mxu0 %v927
      %955 = vmatprep.subr.bf16.mxu0 0
      %956 = vmatpush1.bf16.msra.mxu0 0
      %957 = vmatprep.subr.bf16.mxu0 0
      %958 = vmatpush1.bf16.msra.mxu0 0
      %959 = vmatprep.subr.bf16.mxu0 0
      %960 = vmatpush1.bf16.msra.mxu0 0
      %961 = vmatprep.subr.bf16.mxu0 0
      %962 = vmatpush1.bf16.msra.mxu0 0
      %963 = vmatprep.subr.bf16.mxu0 0
      %964 = vmatpush1.bf16.msra.mxu0 0
      %965 = vmatprep.subr.bf16.mxu0 0
      %966 = vmatpush1.bf16.msra.mxu0 0
      %967 = vmatprep.subr.bf16.mxu0 0
      %968 = vmatpush1.bf16.msra.mxu0 0
      %969 = vmatprep.subr.bf16.mxu0 0
      %970 = vmatpush1.bf16.msra.mxu0 0
      %971 = vmatprep.subr.bf16.mxu0 0
      %972 = vmatpush1.bf16.msra.mxu0 0
      %973 = vmatprep.subr.bf16.mxu0 0
      %974 = vmatpush1.bf16.msra.mxu0 0
      %975 = vmatprep.subr.bf16.mxu0 0
      %976 = vmatpush1.bf16.msra.mxu0 0
      %977 = vmatprep.subr.bf16.mxu0 0
      %978 = vmatpush1.bf16.msra.mxu0 0
      %979 = vmatprep.mubr.bf16.mxu0 0
      %980 = vmatmul.mubr.bf16.gmra.mrb[0].mxu0 %v933
      %v981 = vpop.f32.mrb[0].mxu0
      %v982 = vadd.f32 0.0, %v981
      %v983 = vpop.f32.mrb[0].mxu0
      %v984 = vpop.f32.mrb[0].mxu0
      %v985 = vadd.f32 0.0, %v984
      %v986 = vpop.f32.mrb[0].mxu0
      %987 = vmatprep.mubr.bf16.mxu0 0
      %988 = vmatmul.mubr.bf16.gmra.mrb[0].mxu0 %v936
      %v989 = vpop.f32.mrb[0].mxu0
      %v990 = vadd.f32 0.0, %v989
      %v991 = vpop.f32.mrb[0].mxu0
      %v992 = vpop.f32.mrb[0].mxu0
      %v993 = vadd.f32 0.0, %v992
      %v994 = vpop.f32.mrb[0].mxu0
      %995 = vmatprep.mubr.bf16.mxu0 0
      %996 = vmatmul.mubr.bf16.gmra.mrb[0].mxu0 %v939
      %v997 = vpop.f32.mrb[0].mxu0
      %v998 = vadd.f32 0.0, %v997
      %v999 = vpop.f32.mrb[0].mxu0
      %v1000 = vpop.f32.mrb[0].mxu0
      %v1001 = vadd.f32 0.0, %v1000
      %v1002 = vpop.f32.mrb[0].mxu0
      %1003 = vmatprep.mubr.bf16.mxu0 0
      %1004 = vmatmul.mubr.bf16.gmra.mrb[0].mxu0 %v942
      %v1005 = vpop.f32.mrb[0].mxu0
      %v1006 = vadd.f32 0.0, %v1005
      %v1007 = vpop.f32.mrb[0].mxu0
      %v1008 = vpop.f32.mrb[0].mxu0
      %v1009 = vadd.f32 0.0, %v1008
      %v1010 = vpop.f32.mrb[0].mxu0
      %1011 = vmatprep.mubr.bf16.mxu0 0
      %1012 = vmatmul.mubr.bf16.gmra.mrb[0].mxu0 %v945
      %v1013 = vpop.f32.mrb[0].mxu0
      %v1014 = vadd.f32 0.0, %v1013
      %v1015 = vpop.f32.mrb[0].mxu0
      %v1016 = vpop.f32.mrb[0].mxu0
      %v1017 = vpop.f32.mrb[0].mxu0
      %1018 = vdwg.mxu0
      %v1019 = vld [vmem:[#allocation2] sm:$0xff]
      %v1020 = vld [vmem:[#allocation2 + $0x8] sm:$0xff]
      %v1021 = vld [vmem:[#allocation2 + $0x10] sm:$0xff]
      %v1022 = vld [vmem:[#allocation2 + $0x18] sm:$0xff]
      %v1023 = vld [vmem:[#allocation2 + $0x20] sm:$0xff]
      %v1024 = vld [vmem:[#allocation2 + $0x28] sm:$0xff]
      %v1025 = vld [vmem:[#allocation2 + $0x30] sm:$0xff]
      %v1026 = vld [vmem:[#allocation2 + $0x38] sm:$0xff]
      %v1027 = vld [vmem:[#allocation2 + $0x40] sm:$0xff]
      %v1028 = vadd.f32 %v1019, %v982
      %v1029 = vadd.f32 %v1020, %v985
      %v1030 = vadd.f32 %v1021, %v990
      %v1031 = vadd.f32 %v1022, %v993
      %v1032 = vadd.f32 %v1023, %v998
      %v1033 = vadd.f32 %v1024, %v1001
      %v1034 = vadd.f32 %v1025, %v1006
      %v1035 = vadd.f32 %v1026, %v1009
      %v1036 = vadd.f32 %v1027, %v1014
      %1037 = vst [vmem:[#allocation2] sm:$0xff] %v1028
      %1038 = vst [vmem:[#allocation2 + $0x8] sm:$0xff] %v1029
      %1039 = vst [vmem:[#allocation2 + $0x10] sm:$0xff] %v1030
      %1040 = vst [vmem:[#allocation2 + $0x18] sm:$0xff] %v1031
      %1041 = vst [vmem:[#allocation2 + $0x20] sm:$0xff] %v1032
      %1042 = vst [vmem:[#allocation2 + $0x28] sm:$0xff] %v1033
      %1043 = vst [vmem:[#allocation2 + $0x30] sm:$0xff] %v1034
      %1044 = vst [vmem:[#allocation2 + $0x38] sm:$0xff] %v1035
      %1045 = vst [vmem:[#allocation2 + $0x40] sm:$0xff] %v1036
      %v1046 = vld [vmem:[#allocation2] sm:$0xff]
      %v1047 = vld [vmem:[#allocation2 + $0x8] sm:$0xff]
      %v1048 = vld [vmem:[#allocation2 + $0x10] sm:$0xff]
      %v1049 = vld [vmem:[#allocation2 + $0x18] sm:$0xff]
      %v1050 = vld [vmem:[#allocation2 + $0x20] sm:$0xff]
      %v1051 = vld [vmem:[#allocation2 + $0x28] sm:$0xff]
      %v1052 = vld [vmem:[#allocation2 + $0x30] sm:$0xff]
      %v1053 = vld [vmem:[#allocation2 + $0x38] sm:$0xff]
      %v1054 = vld [vmem:[#allocation2 + $0x40] sm:$0xff]
      %v1055 = vld [vmem:[%s240] sm:$0x1]
      %v1057 = vlaneseq
      %v1058 = vshrl.u32 %v1057, 7
      %v1059 = vsub.s32 0, %v1058
      %v1060 = vrot.slane %v1055, %v1059
      %v1062 = vadd.f32 %v1046, %v1060
      %v1063 = vadd.f32 %v1047, %v1060
      %v1064 = vadd.f32 %v1048, %v1060
      %v1065 = vadd.f32 %v1049, %v1060
      %v1066 = vadd.f32 %v1050, %v1060
      %v1067 = vadd.f32 %v1051, %v1060
      %v1068 = vadd.f32 %v1052, %v1060
      %v1069 = vadd.f32 %v1053, %v1060
      %v1070 = vadd.f32 %v1054, %v1060
      %v1071 = vld [vmem:[%s3] sm:$0xff]
      %v1072 = vld [vmem:[%s3 + $0x8] sm:$0xff]
      %v1073 = vld [vmem:[%s3 + $0x10] sm:$0xff]
      %v1074 = vld [vmem:[%s3 + $0x18] sm:$0xff]
      %v1075 = vld [vmem:[%s3 + $0x20] sm:$0xff]
      %v1076 = vld [vmem:[%s3 + $0x28] sm:$0xff]
      %v1077 = vld [vmem:[%s3 + $0x30] sm:$0xff]
      %v1078 = vld [vmem:[%s3 + $0x38] sm:$0xff]
      %v1079 = vld [vmem:[%s3 + $0x40] sm:$0xff]
      %1081 = vset.pattern.permute.xlu0 0
      %1082 = vperm.xlu0 %1081, %v1071
      %v1083 = vpop.permute.xlu0 %1082
      %1086 = vset.pattern.permute.xlu0 0
      %1087 = vperm.xlu0 %1086, %v1072
      %v1088 = vpop.permute.xlu0 %1087
      %1091 = vset.pattern.permute.xlu0 0
      %1092 = vperm.xlu0 %1091, %v1073
      %v1093 = vpop.permute.xlu0 %1092
      %1096 = vset.pattern.permute.xlu0 0
      %1097 = vperm.xlu0 %1096, %v1074
      %v1098 = vpop.permute.xlu0 %1097
      %1101 = vset.pattern.permute.xlu0 0
      %1102 = vperm.xlu0 %1101, %v1075
      %v1103 = vpop.permute.xlu0 %1102
      %1106 = vset.pattern.permute.xlu0 0
      %1107 = vperm.xlu0 %1106, %v1076
      %v1108 = vpop.permute.xlu0 %1107
      %1111 = vset.pattern.permute.xlu0 0
      %1112 = vperm.xlu0 %1111, %v1077
      %v1113 = vpop.permute.xlu0 %1112
      %1116 = vset.pattern.permute.xlu0 0
      %1117 = vperm.xlu0 %1116, %v1078
      %v1118 = vpop.permute.xlu0 %1117
      %1121 = vset.pattern.permute.xlu0 0
      %1122 = vperm.xlu0 %1121, %v1079
      %v1123 = vpop.permute.xlu0 %1122
      %v1125 = vmul.f32 %v1062, %v1083
      %v1126 = vmul.f32 %v1063, %v1088
      %v1127 = vmul.f32 %v1064, %v1093
      %v1128 = vmul.f32 %v1065, %v1098
      %v1129 = vmul.f32 %v1066, %v1103
      %v1130 = vmul.f32 %v1067, %v1108
      %v1131 = vmul.f32 %v1068, %v1113
      %v1132 = vmul.f32 %v1069, %v1118
      %v1133 = vmul.f32 %v1070, %v1123
      %v1134 = vadd.f32 %v1125, %v1126
      %v1135 = vadd.f32 %v1134, %v1127
      %v1136 = vadd.f32 %v1135, %v1128
      %v1137 = vadd.f32 %v1136, %v1129
      %v1138 = vadd.f32 %v1137, %v1130
      %v1139 = vadd.f32 %v1138, %v1131
      %v1140 = vadd.f32 %v1139, %v1132
      %v1141 = vadd.f32 %v1140, %v1133
      %v1142 = vrot.slane %v1141, 4
      %v1143 = vadd.f32 %v1141, %v1142
      %v1144 = vrot.slane %v1143, 2
      %v1145 = vadd.f32 %v1143, %v1144
      %v1146 = vrot.slane %v1145, 1
      %v1147 = vadd.f32 %v1145, %v1146
      %v1148 = vmul.f32 %v1147, 0.015625
      %v1149 = vsub.f32 %v1062, %v1148
      %v1150 = vsub.f32 %v1063, %v1148
      %v1151 = vsub.f32 %v1064, %v1148
      %v1152 = vsub.f32 %v1065, %v1148
      %v1153 = vsub.f32 %v1066, %v1148
      %v1154 = vsub.f32 %v1067, %v1148
      %v1155 = vsub.f32 %v1068, %v1148
      %v1156 = vsub.f32 %v1069, %v1148
      %v1157 = vsub.f32 %v1070, %v1148
      %v1158 = vmul.f32 %v1149, %v1083
      %v1159 = vmul.f32 %v1150, %v1088
      %v1160 = vmul.f32 %v1151, %v1093
      %v1161 = vmul.f32 %v1152, %v1098
      %v1162 = vmul.f32 %v1153, %v1103
      %v1163 = vmul.f32 %v1154, %v1108
      %v1164 = vmul.f32 %v1155, %v1113
      %v1165 = vmul.f32 %v1156, %v1118
      %v1166 = vmul.f32 %v1157, %v1123
      %v1167 = vmul.f32 %v1158, %v1158
      %v1168 = vmul.f32 %v1159, %v1159
      %v1169 = vmul.f32 %v1160, %v1160
      %v1170 = vmul.f32 %v1161, %v1161
      %v1171 = vmul.f32 %v1162, %v1162
      %v1172 = vmul.f32 %v1163, %v1163
      %v1173 = vmul.f32 %v1164, %v1164
      %v1174 = vmul.f32 %v1165, %v1165
      %v1175 = vmul.f32 %v1166, %v1166
      %v1176 = vadd.f32 %v1167, %v1168
      %v1177 = vadd.f32 %v1176, %v1169
      %v1178 = vadd.f32 %v1177, %v1170
      %v1179 = vadd.f32 %v1178, %v1171
      %v1180 = vadd.f32 %v1179, %v1172
      %v1181 = vadd.f32 %v1180, %v1173
      %v1182 = vadd.f32 %v1181, %v1174
      %v1183 = vadd.f32 %v1182, %v1175
      %v1184 = vrot.slane %v1183, 4
      %v1185 = vadd.f32 %v1183, %v1184
      %v1186 = vrot.slane %v1185, 2
      %v1187 = vadd.f32 %v1185, %v1186
      %v1188 = vrot.slane %v1187, 1
      %v1189 = vadd.f32 %v1187, %v1188
      %v1190 = vmul.f32 %v1189, 0.015625
      %v1191 = vadd.f32 %v1190, 1e-05
      %v1192 = vrsqrt.pop %v1191
      %v1193 = vmul.f32 %v1149, %v1192
      %v1194 = vmul.f32 %v1150, %v1192
      %v1195 = vmul.f32 %v1151, %v1192
      %v1196 = vmul.f32 %v1152, %v1192
      %v1197 = vmul.f32 %v1153, %v1192
      %v1198 = vmul.f32 %v1154, %v1192
      %v1199 = vmul.f32 %v1155, %v1192
      %v1200 = vmul.f32 %v1156, %v1192
      %v1201 = vmul.f32 %v1157, %v1192
      %vm1202 = vcmp.ge.f32.partialorder %v1193, 0.0
      %vm1203 = vcmp.ge.f32.partialorder %v1194, 0.0
      %vm1204 = vcmp.ge.f32.partialorder %v1195, 0.0
      %vm1205 = vcmp.ge.f32.partialorder %v1196, 0.0
      %vm1206 = vcmp.ge.f32.partialorder %v1197, 0.0
      %vm1207 = vcmp.ge.f32.partialorder %v1198, 0.0
      %vm1208 = vcmp.ge.f32.partialorder %v1199, 0.0
      %vm1209 = vcmp.ge.f32.partialorder %v1200, 0.0
      %vm1210 = vcmp.ge.f32.partialorder %v1201, 0.0
      %v1211 = vmul.f32 %v1193, 0.2
      %v1212 = vmul.f32 %v1194, 0.2
      %v1213 = vmul.f32 %v1195, 0.2
      %v1214 = vmul.f32 %v1196, 0.2
      %v1215 = vmul.f32 %v1197, 0.2
      %v1216 = vmul.f32 %v1198, 0.2
      %v1217 = vmul.f32 %v1199, 0.2
      %v1218 = vmul.f32 %v1200, 0.2
      %v1219 = vmul.f32 %v1201, 0.2
      %v1220 = vsel %vm1202, %v1193, %v1211
      %v1221 = vsel %vm1203, %v1194, %v1212
      %v1222 = vsel %vm1204, %v1195, %v1213
      %v1223 = vsel %vm1205, %v1196, %v1214
      %v1224 = vsel %vm1206, %v1197, %v1215
      %v1225 = vsel %vm1207, %v1198, %v1216
      %v1226 = vsel %vm1208, %v1199, %v1217
      %v1227 = vsel %vm1209, %v1200, %v1218
      %v1228 = vsel %vm1210, %v1201, %v1219
      %v1229 = vpack.c.bf16 %v1221, %v1220
      %v1230 = vpack.c.bf16 %v1223, %v1222
      %v1231 = vpack.c.bf16 %v1225, %v1224
      %v1232 = vpack.c.bf16 %v1227, %v1226
      %v1233 = vpack.c.bf16 %v1228, %v1228
      %v1239 = vunpack.c.l.b16 %v1229
      %v1240 = vunpack.c.h.b16 %v1229
      %v1241 = vunpack.c.l.b16 %v1230
      %v1242 = vunpack.c.h.b16 %v1230
      %v1243 = vunpack.c.l.b16 %v1231
      %v1244 = vunpack.c.h.b16 %v1231
      %v1245 = vunpack.c.l.b16 %v1232
      %v1246 = vunpack.c.h.b16 %v1232
      %v1247 = vunpack.c.l.b16 %v1233
      %v1248 = vpack.c.b16 %v1239, %v1239
      %v1249 = vpack.c.b16 %v1240, %v1240
      %v1250 = vpack.c.b16 %v1241, %v1241
      %v1251 = vpack.c.b16 %v1242, %v1242
      %v1252 = vpack.c.b16 %v1243, %v1243
      %v1253 = vpack.c.b16 %v1244, %v1244
      %v1254 = vpack.c.b16 %v1245, %v1245
      %v1255 = vpack.c.b16 %v1246, %v1246
      %v1256 = vpack.c.b16 %v1247, %v1247
      %1266 = vst [vmem:[%s248] sm:$0xf] %v1248
      %1267 = vst [vmem:[%s248 + $0x4] sm:$0xf] %v1249
      %1268 = vst [vmem:[%s248 + $0x8] sm:$0xf] %v1250
      %1269 = vst [vmem:[%s248 + $0xc] sm:$0xf] %v1251
      %1270 = vst [vmem:[%s248 + $0x10] sm:$0xf] %v1252
      %1271 = vst [vmem:[%s248 + $0x14] sm:$0xf] %v1253
      %1272 = vst [vmem:[%s248 + $0x18] sm:$0xf] %v1254
      %1273 = vst [vmem:[%s248 + $0x1c] sm:$0xf] %v1255
      %1274 = vst [vmem:[%s248 + $0x20] sm:$0xf] %v1256
      %p1275 = scmp.lt.s32.totalorder %s19, 1
      %s1276 = scalar_select %p1275, %s19, 1
      %p1277 = scmp.lt.s32.totalorder %s20, 0
      %s1278 = scalar_select %p1277, %s20, 0
      %s1279 = smul.addr %s1276, 9
      %s1280 = sadd.s32 %s1278, %s1279
      %s1281 = smul.addr %s1280, 4
      %s1282 = scalar_lea.vmem %s4, %s1281
      // Predicated region
      $region37: #{discriminator_forward.6} parent=35 // pred_check
        %p1283 = pneg %p146
      $region38: #{discriminator_forward.6} parent=35 // pred_check_branch
        %1285 = sbr.rel (%p1283) target = $region40
      $region39: #{discriminator_forward.6} parent=35 // pred_region
        _
      $region40: #{discriminator_forward.6} parent=35 // pred_fallthru
        _
    $region36: #{discriminator_forward.6} parent=5 // pred_fallthru
      _
    %p1286 = scmp.le.s32.totalorder 2, %s10
    // Predicated region
    $region41: #{discriminator_forward.6} parent=5 // pred_check
      %p1287 = pneg %p1286
    $region42: #{discriminator_forward.6} parent=5 // pred_check_branch
      %1289 = sbr.rel (%p1287) target = $region44
    $region43: #{discriminator_forward.6} parent=5 // pred_region
      %s1290 = ssub.s32 %s10, 2
      // Predicated region
      $region45: #{discriminator_forward.6} parent=43 // pred_check
        %p1291 = pneg %p152
      $region46: #{discriminator_forward.6} parent=43 // pred_check_branch
        %1293 = sbr.rel (%p1291) target = $region48
      $region47: #{discriminator_forward.6} parent=43 // pred_region
        %p1294 = scmp.lt.s32.totalorder %s21, 1
        %s1295 = scalar_select %p1294, %s21, 1
        %p1296 = scmp.lt.s32.totalorder %s22, 0
        %s1297 = scalar_select %p1296, %s22, 0
        %s1298 = smul.addr %s1295, 9
        %s1299 = sadd.s32 %s1297, %s1298
        %s1300 = smul.addr %s1299, 4
        %s1301 = scalar_lea.vmem %s4, %s1300
      $region48: #{discriminator_forward.6} parent=43 // pred_fallthru
        _
    $region44: #{discriminator_forward.6} parent=5 // pred_fallthru
      _
  $region6: #{discriminator_forward.6} parent=0 // loop_footer
    %s14 = sadd.s32 1, %s10
  $region7: #{discriminator_forward.6} parent=0 // loop_footer_branch
    %9 = sbr.rel target = $region3
  $region8: #{discriminator_forward.6} parent=0 // loop_exit
    _

// kernel: discriminator_forward.7
$region0: #{discriminator_forward.7}
  #allocation0 [shape = 'u32[]', space=smem, size = 0x4, offset = 0x4, fixed_abs, tag = 'smem constant byte address 0x4 - core index']
  #allocation1 [shape = 'u32[144,128]{1,0:T(1,128)}', space=vmem, size = 0x12000, scoped, tag = 'internal scratch']
  #allocation2 [shape = 'f32[20,128]{1,0:T(8,128)}', space=vmem, size = 0x3000, scoped, tag = 'scratch operand']
  %s0 = inlined_call_operand.vmem [shape: bf16[2,26,128], index: 0, kind: input, shape index: {}]
  %s1 = inlined_call_operand.vmem [shape: bf16[4,128,128], index: 1, kind: input, shape index: {}]
  %s2 = inlined_call_operand.vmem [shape: f32[1,128], index: 2, kind: input, shape index: {}]
  %s3 = inlined_call_operand.vmem [shape: f32[20,1], index: 3, kind: input, shape index: {}]
  %s4 = inlined_call_operand.vmem [shape: bf16[2,20,128], index: 4, kind: output, shape index: {}]
  %s5 = sld [smem:[#allocation0]]
  $region49: #{discriminator_forward.7} parent=0
    _
  %s7 = ssub.s32 1, %s5
  %s8 = scalar_select 0, %s7, %s5
  loop: start=0, step=1, limit=4
  $region2: #{discriminator_forward.7} parent=0 // loop_pre_header
    _
  $region3: #{discriminator_forward.7} parent=0 // loop_header
    %s10 = sphi 0, %s14
    %p11 = scmp.ge.s32.totalorder %s10, 4
    %s17 = sphi 0, %s29
    %s18 = sphi 0, %s25
    %s19 = sphi 0, %s17
    %s20 = sphi 0, %s18
    %s21 = sphi 0, %s19
    %s22 = sphi 0, %s20
    %s32 = sphi 0, %s34
    %s35 = sphi 0, %s32
    %s36 = sphi 0, %s35
    %s52 = sphi 0, %s36
    %s58 = sphi 0, %s60
    %s61 = sphi 0, %s58
    %s62 = sphi 0, %s61
    %s78 = sphi 0, %s62
    %s84 = sphi 0, %s86
    %s87 = sphi 0, %s84
    %s88 = sphi 0, %s87
    %s104 = sphi 0, %s88
    %s108 = sphi 0, %s108
    %s110 = sphi 0, %s108
    %s111 = sphi 0, %s110
    %s125 = sphi 0, %s111
    %s133 = sphi 0, %s135
    %s136 = sphi 0, %s133
    %s137 = sphi 0, %s136
    %s153 = sphi 0, %s137
  $region4: #{discriminator_forward.7} parent=0 // loop_header_branch
    %13 = sbr.rel (%p11) target = $region8
  $region5: #{discriminator_forward.7} parent=0 // loop_body
    %s15 = ssub.s32 %s10, 1
    %s16 = ssub.s32 %s10, 2
    %s23 = sadd.s32 1, %s18
    %p24 = scmp.ge.s32.totalorder %s23, 1
    %s25 = scalar_select %p24, 0, %s23
    %s26 = sadd.s32 1, %s17
    %s27 = scalar_select %p24, %s26, %s17
    %p28 = scmp.ge.s32.totalorder %s27, 2
    %s29 = scalar_select %p28, 0, %s27
    %s30 = ssub.s32 %s17, %s29
    %p31 = scmp.eq.s32.totalorder %s30, 0
    %s33 = sadd.s32 %s32, 1
    %s34 = scalar_select %p31, %s32, %s33
    %p37 = pneg %p31
    %p38 = scmp.eq.s32.totalorder %s10, 1
    %p39 = por %p37, %p38
    %p40 = scmp.ne.s32.totalorder %s32, %s35
    %p41 = scmp.eq.s32.totalorder %s10, 0
    %p42 = por %p40, %p41
    %p43 = scmp.ne.s32.totalorder %s32, %s35
    %p44 = scmp.eq.s32.totalorder %s15, 1
    %p45 = por %p43, %p44
    %p46 = scmp.ne.s32.totalorder %s35, %s36
    %p47 = scmp.eq.s32.totalorder %s15, 0
    %p48 = por %p46, %p47
    %p49 = scmp.ne.s32.totalorder %s35, %s36
    %p50 = scmp.eq.s32.totalorder %s16, 1
    %p51 = por %p49, %p50
    %p53 = scmp.ne.s32.totalorder %s36, %s52
    %p54 = scmp.eq.s32.totalorder %s16, 0
    %p55 = por %p53, %p54
    %s56 = ssub.s32 %s18, %s25
    %p57 = scmp.eq.s32.totalorder %s56, 0
    %s59 = sadd.s32 %s58, 1
    %s60 = scalar_select %p57, %s58, %s59
    %p63 = pneg %p57
    %p64 = scmp.eq.s32.totalorder %s10, 1
    %p65 = por %p63, %p64
    %p66 = scmp.ne.s32.totalorder %s58, %s61
    %p67 = scmp.eq.s32.totalorder %s10, 0
    %p68 = por %p66, %p67
    %p69 = scmp.ne.s32.totalorder %s58, %s61
    %p70 = scmp.eq.s32.totalorder %s15, 1
    %p71 = por %p69, %p70
    %p72 = scmp.ne.s32.totalorder %s61, %s62
    %p73 = scmp.eq.s32.totalorder %s15, 0
    %p74 = por %p72, %p73
    %p75 = scmp.ne.s32.totalorder %s61, %s62
    %p76 = scmp.eq.s32.totalorder %s16, 1
    %p77 = por %p75, %p76
    %p79 = scmp.ne.s32.totalorder %s62, %s78
    %p80 = scmp.eq.s32.totalorder %s16, 0
    %p81 = por %p79, %p80
    %s82 = ssub.s32 %s18, %s25
    %p83 = scmp.eq.s32.totalorder %s82, 0
    %s85 = sadd.s32 %s84, 1
    %s86 = scalar_select %p83, %s84, %s85
    %p89 = pneg %p83
    %p90 = scmp.eq.s32.totalorder %s10, 1
    %p91 = por %p89, %p90
    %p92 = scmp.ne.s32.totalorder %s84, %s87
    %p93 = scmp.eq.s32.totalorder %s10, 0
    %p94 = por %p92, %p93
    %p95 = scmp.ne.s32.totalorder %s84, %s87
    %p96 = scmp.eq.s32.totalorder %s15, 1
    %p97 = por %p95, %p96
    %p98 = scmp.ne.s32.totalorder %s87, %s88
    %p99 = scmp.eq.s32.totalorder %s15, 0
    %p100 = por %p98, %p99
    %p101 = scmp.ne.s32.totalorder %s87, %s88
    %p102 = scmp.eq.s32.totalorder %s16, 1
    %p103 = por %p101, %p102
    %p105 = scmp.ne.s32.totalorder %s88, %s104
    %p106 = scmp.eq.s32.totalorder %s16, 0
    %p107 = por %p105, %p106
    %s109 = sadd.s32 %s108, 1
    %p112 = scmp.eq.s32.totalorder %s10, 1
    %p113 = scmp.ne.s32.totalorder %s108, %s110
    %p114 = scmp.eq.s32.totalorder %s10, 0
    %p115 = por %p113, %p114
    %p116 = scmp.ne.s32.totalorder %s108, %s110
    %p117 = scmp.eq.s32.totalorder %s15, 1
    %p118 = por %p116, %p117
    %p119 = scmp.ne.s32.totalorder %s110, %s111
    %p120 = scmp.eq.s32.totalorder %s15, 0
    %p121 = por %p119, %p120
    %p122 = scmp.ne.s32.totalorder %s110, %s111
    %p123 = scmp.eq.s32.totalorder %s16, 1
    %p124 = por %p122, %p123
    %p126 = scmp.ne.s32.totalorder %s111, %s125
    %p127 = scmp.eq.s32.totalorder %s16, 0
    %p128 = por %p126, %p127
    %s129 = ssub.s32 %s17, %s29
    %s130 = ssub.s32 %s18, %s25
    %s131 = sor.u32 %s129, %s130
    %p132 = scmp.eq.s32.totalorder %s131, 0
    %s134 = sadd.s32 %s133, 1
    %s135 = scalar_select %p132, %s133, %s134
    %p138 = pneg %p132
    %p139 = scmp.eq.s32.totalorder %s10, 1
    %p140 = por %p138, %p139
    %p141 = scmp.ne.s32.totalorder %s133, %s136
    %p142 = scmp.eq.s32.totalorder %s10, 0
    %p143 = por %p141, %p142
    %p144 = scmp.ne.s32.totalorder %s133, %s136
    %p145 = scmp.eq.s32.totalorder %s15, 1
    %p146 = por %p144, %p145
    %p147 = scmp.ne.s32.totalorder %s136, %s137
    %p148 = scmp.eq.s32.totalorder %s15, 0
    %p149 = por %p147, %p148
    %p150 = scmp.ne.s32.totalorder %s136, %s137
    %p151 = scmp.eq.s32.totalorder %s16, 1
    %p152 = por %p150, %p151
    %p154 = scmp.ne.s32.totalorder %s137, %s153
    %p155 = scmp.eq.s32.totalorder %s16, 0
    %p156 = por %p154, %p155
    %p157 = scmp.le.s32.totalorder 1, %s10
    %p158 = scmp.lt.s32.totalorder %s10, 3
    %p159 = pnand %p157, %p158
    %p160 = pneg %p159
    // Predicated region
    $region9: #{discriminator_forward.7} parent=5 // pred_check
      _
    $region10: #{discriminator_forward.7} parent=5 // pred_check_branch
      %162 = sbr.rel (%p159) target = $region12
    $region11: #{discriminator_forward.7} parent=5 // pred_region
      %s163 = ssub.s32 %s10, 1
      // Predicated region
      $region13: #{discriminator_forward.7} parent=11 // pred_check
        %p164 = pneg %p74
      $region14: #{discriminator_forward.7} parent=11 // pred_check_branch
        %166 = sbr.rel (%p164) target = $region16
      $region15: #{discriminator_forward.7} parent=11 // pred_region
        %p167 = scmp.lt.s32.totalorder %s20, 0
        %s168 = scalar_select %p167, %s20, 0
        %s169 = smul.addr %s168, 4
        %s170 = scalar_lea.vmem %s1, %s169
      $region16: #{discriminator_forward.7} parent=11 // pred_fallthru
        _
      // Predicated region
      $region17: #{discriminator_forward.7} parent=11 // pred_check
        %p171 = pneg %p100
      $region18: #{discriminator_forward.7} parent=11 // pred_check_branch
        %173 = sbr.rel (%p171) target = $region20
      $region19: #{discriminator_forward.7} parent=11 // pred_region
        %p174 = scmp.lt.s32.totalorder %s20, 0
        %s175 = scalar_select %p174, %s20, 0
        %s176 = scalar_lea.vmem %s2, %s175
      $region20: #{discriminator_forward.7} parent=11 // pred_fallthru
        _
      // Predicated region
      $region21: #{discriminator_forward.7} parent=11 // pred_check
        %p177 = pneg %p121
      $region22: #{discriminator_forward.7} parent=11 // pred_check_branch
        %179 = sbr.rel (%p177) target = $region24
      $region23: #{discriminator_forward.7} parent=11 // pred_region
        _
      $region24: #{discriminator_forward.7} parent=11 // pred_fallthru
        _
    $region12: #{discriminator_forward.7} parent=5 // pred_fallthru
      _
    %p180 = scmp.lt.s32.totalorder %s10, 2
    // Predicated region
    $region25: #{discriminator_forward.7} parent=5 // pred_check
      %p181 = pneg %p180
    $region26: #{discriminator_forward.7} parent=5 // pred_check_branch
      %183 = sbr.rel (%p181) target = $region28
    $region27: #{discriminator_forward.7} parent=5 // pred_region
      // Predicated region
      $region29: #{discriminator_forward.7} parent=27 // pred_check
        %p184 = pneg %p42
      $region30: #{discriminator_forward.7} parent=27 // pred_check_branch
        %186 = sbr.rel (%p184) target = $region32
      $region31: #{discriminator_forward.7} parent=27 // pred_region
        %p187 = scmp.lt.s32.totalorder %s17, 1
        %s188 = scalar_select %p187, %s17, 1
        %s189 = smul.addr %s188, 4
        %s190 = smul.addr %s189, 4
        %s191 = scalar_lea.vmem %s0, %s190
      $region32: #{discriminator_forward.7} parent=27 // pred_fallthru
        _
    $region28: #{discriminator_forward.7} parent=5 // pred_fallthru
      _
    %p192 = scmp.le.s32.totalorder 1, %s10
    %p193 = scmp.lt.s32.totalorder %s10, 3
    %p194 = pnand %p192, %p193
    %p195 = pneg %p194
    // Predicated region
    $region33: #{discriminator_forward.7} parent=5 // pred_check
      _
    $region34: #{discriminator_forward.7} parent=5 // pred_check_branch
      %197 = sbr.rel (%p194) target = $region36
    $region35: #{discriminator_forward.7} parent=5 // pred_region
      %s198 = ssub.s32 %s10, 1
      %p199 = scmp.lt.s32.totalorder %s19, 1
      %s200 = scalar_select %p199, %s19, 1
      %s201 = smul.addr %s200, 4
      %s202 = smul.addr %s201, 4
      %s203 = scalar_lea.vmem %s0, %s202
      %p204 = pneg %p48
      %p205 = pneg %p45
      %p206 = scmp.lt.s32.totalorder %s20, 0
      %s207 = scalar_select %p206, %s20, 0
      %s208 = smul.addr %s207, 4
      %s209 = scalar_lea.vmem %s1, %s208
      %p210 = pneg %p74
      %p211 = pneg %p71
      %p212 = scmp.lt.s32.totalorder %s20, 0
      %s213 = scalar_select %p212, %s20, 0
      %s214 = scalar_lea.vmem %s2, %s213
      %p215 = pneg %p100
      %p216 = pneg %p97
      %p217 = pneg %p121
      %p218 = pneg %p118
      %p219 = pneg %p149
      %p220 = pneg %p146
      %p221 = scmp.lt.s32.totalorder %s19, 1
      %s222 = scalar_select %p221, %s19, 1
      %p223 = scmp.lt.s32.totalorder %s20, 0
      %s224 = scalar_select %p223, %s20, 0
      %s225 = smul.addr %s222, 3
      %s226 = sadd.s32 %s224, %s225
      %s227 = smul.addr %s226, 4
      %s228 = scalar_lea.vmem %s4, %s227
      %p229 = scmp.lt.s32.totalorder %s19, 1
      %s230 = scalar_select %p229, %s19, 1
      %s231 = smul.addr %s230, 4
      %s232 = smul.addr %s231, 4
      %s233 = scalar_lea.vmem %s0, %s232
      %p234 = scmp.lt.s32.totalorder %s20, 0
      %s235 = scalar_select %p234, %s20, 0
      %s236 = smul.addr %s235, 4
      %s237 = scalar_lea.vmem %s1, %s236
      %p238 = scmp.lt.s32.totalorder %s20, 0
      %s239 = scalar_select %p238, %s20, 0
      %s240 = scalar_lea.vmem %s2, %s239
      %p241 = scmp.lt.s32.totalorder %s19, 1
      %s242 = scalar_select %p241, %s19, 1
      %p243 = scmp.lt.s32.totalorder %s20, 0
      %s244 = scalar_select %p243, %s20, 0
      %s245 = smul.addr %s242, 3
      %s246 = sadd.s32 %s244, %s245
      %s247 = smul.addr %s246, 4
      %s248 = scalar_lea.vmem %s4, %s247
      %v250 = vld [vmem:[%s233] sm:$0xf]
      %v251 = vld [vmem:[%s233 + $0x4] sm:$0xf]
      %v252 = vld [vmem:[%s233 + $0x8] sm:$0x3]
      %v253 = vld [vmem:[%s237] sm:$0xf]
      %v254 = vld [vmem:[%s237 + $0x4] sm:$0xf]
      %v255 = vld [vmem:[%s237 + $0x8] sm:$0xf]
      %v256 = vld [vmem:[%s237 + $0xc] sm:$0xf]
      %v257 = vld [vmem:[%s237 + $0x10] sm:$0xf]
      %v258 = vld [vmem:[%s237 + $0x14] sm:$0xf]
      %v259 = vld [vmem:[%s237 + $0x18] sm:$0xf]
      %v260 = vld [vmem:[%s237 + $0x1c] sm:$0xf]
      %v261 = vld [vmem:[%s237 + $0x20] sm:$0xf]
      %v262 = vld [vmem:[%s237 + $0x24] sm:$0xf]
      %v263 = vld [vmem:[%s237 + $0x28] sm:$0xf]
      %v264 = vld [vmem:[%s237 + $0x2c] sm:$0xf]
      %v265 = vld [vmem:[%s237 + $0x30] sm:$0xf]
      %v266 = vld [vmem:[%s237 + $0x34] sm:$0xf]
      %v267 = vld [vmem:[%s237 + $0x38] sm:$0xf]
      %v268 = vld [vmem:[%s237 + $0x3c] sm:$0xf]
      %v272 = vunpack.c.l.b16 %v250
      %v273 = vunpack.c.l.b16 %v251
      %v274 = vunpack.c.l.b16 %v252
      %v275 = vpack.c.b16 %v273, %v272
      %v276 = vpack.c.b16 %v274, %v274
      %v295 = vunpack.c.l.b16 %v253
      %v296 = vunpack.c.l.b16 %v254
      %v297 = vunpack.c.l.b16 %v255
      %v298 = vunpack.c.l.b16 %v256
      %v299 = vunpack.c.l.b16 %v257
      %v300 = vunpack.c.l.b16 %v258
      %v301 = vunpack.c.l.b16 %v259
      %v302 = vunpack.c.l.b16 %v260
      %v303 = vunpack.c.l.b16 %v261
      %v304 = vunpack.c.l.b16 %v262
      %v305 = vunpack.c.l.b16 %v263
      %v306 = vunpack.c.l.b16 %v264
      %v307 = vunpack.c.l.b16 %v265
      %v308 = vunpack.c.l.b16 %v266
      %v309 = vunpack.c.l.b16 %v267
      %v310 = vunpack.c.l.b16 %v268
      %v311 = vpack.c.b16 %v296, %v295
      %v312 = vpack.c.b16 %v298, %v297
      %v313 = vpack.c.b16 %v300, %v299
      %v314 = vpack.c.b16 %v302, %v301
      %v315 = vpack.c.b16 %v304, %v303
      %v316 = vpack.c.b16 %v306, %v305
      %v317 = vpack.c.b16 %v308, %v307
      %v318 = vpack.c.b16 %v310, %v309
      %327 = vmatprep.subr.bf16.mxu0 0
      %328 = vmatpush1.bf16.msra.mxu0 %v311
      %329 = vmatprep.subr.bf16.mxu0 0
      %330 = vmatpush1.bf16.msra.mxu0 %v312
      %331 = vmatprep.subr.bf16.mxu0 0
      %332 = vmatpush1.bf16.msra.mxu0 %v313
      %333 = vmatprep.subr.bf16.mxu0 0
      %334 = vmatpush1.bf16.msra.mxu0 %v314
      %335 = vmatprep.subr.bf16.mxu0 0
      %336 = vmatpush1.bf16.msra.mxu0 %v315
      %337 = vmatprep.subr.bf16.mxu0 0
      %338 = vmatpush1.bf16.msra.mxu0 %v316
      %339 = vmatprep.subr.bf16.mxu0 0
      %340 = vmatpush1.bf16.msra.mxu0 %v317
      %341 = vmatprep.subr.bf16.mxu0 0
      %342 = vmatpush1.bf16.msra.mxu0 %v318
      %343 = vmatprep.subr.bf16.mxu0 0
      %344 = vmatpush1.bf16.msra.mxu0 0
      %345 = vmatprep.subr.bf16.mxu0 0
      %346 = vmatpush1.bf16.msra.mxu0 0
      %347 = vmatprep.subr.bf16.mxu0 0
      %348 = vmatpush1.bf16.msra.mxu0 0
      %349 = vmatprep.subr.bf16.mxu0 0
      %350 = vmatpush1.bf16.msra.mxu0 0
      %351 = vmatprep.subr.bf16.mxu0 0
      %352 = vmatpush1.bf16.msra.mxu0 0
      %353 = vmatprep.subr.bf16.mxu0 0
      %354 = vmatpush1.bf16.msra.mxu0 0
      %355 = vmatprep.subr.bf16.mxu0 0
      %356 = vmatpush1.bf16.msra.mxu0 0
      %357 = vmatprep.subr.bf16.mxu0 0
      %358 = vmatpush1.bf16.msra.mxu0 0
      %359 = vmatprep.mubr.bf16.mxu0 0
      %360 = vmatmul.mubr.bf16.gmra.mrb[0].mxu0 %v275
      %v361 = vpop.f32.mrb[0].mxu0
      %v362 = vadd.f32 0.0, %v361
      %v363 = vpop.f32.mrb[0].mxu0
      %v364 = vpop.f32.mrb[0].mxu0
      %v365 = vadd.f32 0.0, %v364
      %v366 = vpop.f32.mrb[0].mxu0
      %367 = vmatprep.mubr.bf16.mxu0 0
      %368 = vmatmul.mubr.bf16.gmra.mrb[0].mxu0 %v276
      %v369 = vpop.f32.mrb[0].mxu0
      %v370 = vadd.f32 0.0, %v369
      %v371 = vpop.f32.mrb[0].mxu0
      %v372 = vpop.f32.mrb[0].mxu0
      %v373 = vpop.f32.mrb[0].mxu0
      %374 = vdwg.mxu0
      %375 = vst [vmem:[#allocation2] sm:$0xff] %v362
      %376 = vst [vmem:[#allocation2 + $0x8] sm:$0xff] %v365
      %377 = vst [vmem:[#allocation2 + $0x10] sm:$0xf] %v370
      %v378 = vld [vmem:[%s233] sm:$0xf]
      %v379 = vld [vmem:[%s233 + $0x4] sm:$0xf]
      %v380 = vld [vmem:[%s233 + $0x8] sm:$0x7]
      %s381 = scalar_lea.vmem %s237, 64
      %v382 = vld [vmem:[%s381] sm:$0xf]
      %v383 = vld [vmem:[%s381 + $0x4] sm:$0xf]
      %v384 = vld [vmem:[%s381 + $0x8] sm:$0xf]
      %v385 = vld [vmem:[%s381 + $0xc] sm:$0xf]
      %v386 = vld [vmem:[%s381 + $0x10] sm:$0xf]
      %v387 = vld [vmem:[%s381 + $0x14] sm:$0xf]
      %v388 = vld [vmem:[%s381 + $0x18] sm:$0xf]
      %v389 = vld [vmem:[%s381 + $0x1c] sm:$0xf]
      %v390 = vld [vmem:[%s381 + $0x20] sm:$0xf]
      %v391 = vld [vmem:[%s381 + $0x24] sm:$0xf]
      %v392 = vld [vmem:[%s381 + $0x28] sm:$0xf]
      %v393 = vld [vmem:[%s381 + $0x2c] sm:$0xf]
      %v394 = vld [vmem:[%s381 + $0x30] sm:$0xf]
      %v395 = vld [vmem:[%s381 + $0x34] sm:$0xf]
      %v396 = vld [vmem:[%s381 + $0x38] sm:$0xf]
      %v397 = vld [vmem:[%s381 + $0x3c] sm:$0xf]
      %v401 = vunpack.c.l.b16 %v378
      %v402 = vunpack.c.l.b16 %v379
      %v403 = vunpack.c.l.b16 %v380
      %v404 = vpack.c.b16 %v402, %v401
      %v405 = vpack.c.b16 %v403, %v403
      %vm406 = vsmask.f32 7424
      %v408 = vshrl.u32 %v404, 16
      %v410 = vshll.u32 %v404, 16
      %v412 = vrot.slane %v410, 1
      %v413 = vor.u32 %v408, %v412
      %v415 = vshll.u32 %v405, 16
      %v417 = vrot.slane %v415, 1
      %v418 = vsel %vm406, %v413, %v417
      %v419 = vshrl.u32 %v405, 16
      %v421 = vor.u32 %v419, %v417
      %v440 = vunpack.c.l.b16 %v382
      %v441 = vunpack.c.l.b16 %v383
      %v442 = vunpack.c.l.b16 %v384
      %v443 = vunpack.c.l.b16 %v385
      %v444 = vunpack.c.l.b16 %v386
      %v445 = vunpack.c.l.b16 %v387
      %v446 = vunpack.c.l.b16 %v388
      %v447 = vunpack.c.l.b16 %v389
      %v448 = vunpack.c.l.b16 %v390
      %v449 = vunpack.c.l.b16 %v391
      %v450 = vunpack.c.l.b16 %v392
      %v451 = vunpack.c.l.b16 %v393
      %v452 = vunpack.c.l.b16 %v394
      %v453 = vunpack.c.l.b16 %v395
      %v454 = vunpack.c.l.b16 %v396
      %v455 = vunpack.c.l.b16 %v397
      %v456 = vpack.c.b16 %v441, %v440
      %v457 = vpack.c.b16 %v443, %v442
      %v458 = vpack.c.b16 %v445, %v444
      %v459 = vpack.c.b16 %v447, %v446
      %v460 = vpack.c.b16 %v449, %v448
      %v461 = vpack.c.b16 %v451, %v450
      %v462 = vpack.c.b16 %v453, %v452
      %v463 = vpack.c.b16 %v455, %v454
      %472 = vmatprep.subr.bf16.mxu0 0
      %473 = vmatpush1.bf16.msra.mxu0 %v456
      %474 = vmatprep.subr.bf16.mxu0 0
      %475 = vmatpush1.bf16.msra.mxu0 %v457
      %476 = vmatprep.subr.bf16.mxu0 0
      %477 = vmatpush1.bf16.msra.mxu0 %v458
      %478 = vmatprep.subr.bf16.mxu0 0
      %479 = vmatpush1.bf16.msra.mxu0 %v459
      %480 = vmatprep.subr.bf16.mxu0 0
      %481 = vmatpush1.bf16.msra.mxu0 %v460
      %482 = vmatprep.subr.bf16.mxu0 0
      %483 = vmatpush1.bf16.msra.mxu0 %v461
      %484 = vmatprep.subr.bf16.mxu0 0
      %485 = vmatpush1.bf16.msra.mxu0 %v462
      %486 = vmatprep.subr.bf16.mxu0 0
      %487 = vmatpush1.bf16.msra.mxu0 %v463
      %488 = vmatprep.subr.bf16.mxu0 0
      %489 = vmatpush1.bf16.msra.mxu0 0
      %490 = vmatprep.subr.bf16.mxu0 0
      %491 = vmatpush1.bf16.msra.mxu0 0
      %492 = vmatprep.subr.bf16.mxu0 0
      %493 = vmatpush1.bf16.msra.mxu0 0
      %494 = vmatprep.subr.bf16.mxu0 0
      %495 = vmatpush1.bf16.msra.mxu0 0
      %496 = vmatprep.subr.bf16.mxu0 0
      %497 = vmatpush1.bf16.msra.mxu0 0
      %498 = vmatprep.subr.bf16.mxu0 0
      %499 = vmatpush1.bf16.msra.mxu0 0
      %500 = vmatprep.subr.bf16.mxu0 0
      %501 = vmatpush1.bf16.msra.mxu0 0
      %502 = vmatprep.subr.bf16.mxu0 0
      %503 = vmatpush1.bf16.msra.mxu0 0
      %504 = vmatprep.mubr.bf16.mxu0 0
      %505 = vmatmul.mubr.bf16.gmra.mrb[0].mxu0 %v418
      %v506 = vpop.f32.mrb[0].mxu0
      %v507 = vadd.f32 0.0, %v506
      %v508 = vpop.f32.mrb[0].mxu0
      %v509 = vpop.f32.mrb[0].mxu0
      %v510 = vadd.f32 0.0, %v509
      %v511 = vpop.f32.mrb[0].mxu0
      %512 = vmatprep.mubr.bf16.mxu0 0
      %513 = vmatmul.mubr.bf16.gmra.mrb[0].mxu0 %v421
      %v514 = vpop.f32.mrb[0].mxu0
      %v515 = vadd.f32 0.0, %v514
      %v516 = vpop.f32.mrb[0].mxu0
      %v517 = vpop.f32.mrb[0].mxu0
      %v518 = vpop.f32.mrb[0].mxu0
      %519 = vdwg.mxu0
      %v520 = vld [vmem:[#allocation2] sm:$0xff]
      %v521 = vld [vmem:[#allocation2 + $0x8] sm:$0xff]
      %v522 = vld [vmem:[#allocation2 + $0x10] sm:$0xf]
      %v523 = vadd.f32 %v520, %v507
      %v524 = vadd.f32 %v521, %v510
      %v525 = vadd.f32 %v522, %v515
      %526 = vst [vmem:[#allocation2] sm:$0xff] %v523
      %527 = vst [vmem:[#allocation2 + $0x8] sm:$0xff] %v524
      %528 = vst [vmem:[#allocation2 + $0x10] sm:$0xf] %v525
      %v529 = vld [vmem:[%s233] sm:$0xc]
      %v530 = vld [vmem:[%s233 + $0x4] sm:$0xf]
      %v531 = vld [vmem:[%s233 + $0x8] sm:$0xf]
      %v532 = vld [vmem:[%s233 + $0xc] sm:$0x1]
      %s533 = scalar_lea.vmem %s237, 128
      %v534 = vld [vmem:[%s533] sm:$0xf]
      %v535 = vld [vmem:[%s533 + $0x4] sm:$0xf]
      %v536 = vld [vmem:[%s533 + $0x8] sm:$0xf]
      %v537 = vld [vmem:[%s533 + $0xc] sm:$0xf]
      %v538 = vld [vmem:[%s533 + $0x10] sm:$0xf]
      %v539 = vld [vmem:[%s533 + $0x14] sm:$0xf]
      %v540 = vld [vmem:[%s533 + $0x18] sm:$0xf]
      %v541 = vld [vmem:[%s533 + $0x1c] sm:$0xf]
      %v542 = vld [vmem:[%s533 + $0x20] sm:$0xf]
      %v543 = vld [vmem:[%s533 + $0x24] sm:$0xf]
      %v544 = vld [vmem:[%s533 + $0x28] sm:$0xf]
      %v545 = vld [vmem:[%s533 + $0x2c] sm:$0xf]
      %v546 = vld [vmem:[%s533 + $0x30] sm:$0xf]
      %v547 = vld [vmem:[%s533 + $0x34] sm:$0xf]
      %v548 = vld [vmem:[%s533 + $0x38] sm:$0xf]
      %v549 = vld [vmem:[%s533 + $0x3c] sm:$0xf]
      %v554 = vunpack.c.l.b16 %v529
      %v555 = vunpack.c.l.b16 %v530
      %v556 = vunpack.c.l.b16 %v531
      %v557 = vunpack.c.l.b16 %v532
      %v558 = vpack.c.b16 %v555, %v554
      %v559 = vpack.c.b16 %v557, %v556
      %vm560 = vsmask.f32 5376
      %v562 = vshrl.u32 %v558, 16
      %v564 = vrot.slane %v562, 2
      %v565 = vshll.u32 %v558, 16
      %v567 = vrot.slane %v565, 3
      %v568 = vor.u32 %v564, %v567
      %v570 = vshrl.u32 %v559, 16
      %v572 = vrot.slane %v570, 2
      %v573 = vshll.u32 %v559, 16
      %v575 = vrot.slane %v573, 3
      %v576 = vor.u32 %v572, %v575
      %v577 = vsel %vm560, %v568, %v576
      %v596 = vunpack.c.l.b16 %v534
      %v597 = vunpack.c.l.b16 %v535
      %v598 = vunpack.c.l.b16 %v536
      %v599 = vunpack.c.l.b16 %v537
      %v600 = vunpack.c.l.b16 %v538
      %v601 = vunpack.c.l.b16 %v539
      %v602 = vunpack.c.l.b16 %v540
      %v603 = vunpack.c.l.b16 %v541
      %v604 = vunpack.c.l.b16 %v542
      %v605 = vunpack.c.l.b16 %v543
      %v606 = vunpack.c.l.b16 %v544
      %v607 = vunpack.c.l.b16 %v545
      %v608 = vunpack.c.l.b16 %v546
      %v609 = vunpack.c.l.b16 %v547
      %v610 = vunpack.c.l.b16 %v548
      %v611 = vunpack.c.l.b16 %v549
      %v612 = vpack.c.b16 %v597, %v596
      %v613 = vpack.c.b16 %v599, %v598
      %v614 = vpack.c.b16 %v601, %v600
      %v615 = vpack.c.b16 %v603, %v602
      %v616 = vpack.c.b16 %v605, %v604
      %v617 = vpack.c.b16 %v607, %v606
      %v618 = vpack.c.b16 %v609, %v608
      %v619 = vpack.c.b16 %v611, %v610
      %628 = vmatprep.subr.bf16.mxu0 0
      %629 = vmatpush1.bf16.msra.mxu0 %v612
      %630 = vmatprep.subr.bf16.mxu0 0
      %631 = vmatpush1.bf16.msra.mxu0 %v613
      %632 = vmatprep.subr.bf16.mxu0 0
      %633 = vmatpush1.bf16.msra.mxu0 %v614
      %634 = vmatprep.subr.bf16.mxu0 0
      %635 = vmatpush1.bf16.msra.mxu0 %v615
      %636 = vmatprep.subr.bf16.mxu0 0
      %637 = vmatpush1.bf16.msra.mxu0 %v616
      %638 = vmatprep.subr.bf16.mxu0 0
      %639 = vmatpush1.bf16.msra.mxu0 %v617
      %640 = vmatprep.subr.bf16.mxu0 0
      %641 = vmatpush1.bf16.msra.mxu0 %v618
      %642 = vmatprep.subr.bf16.mxu0 0
      %643 = vmatpush1.bf16.msra.mxu0 %v619
      %644 = vmatprep.subr.bf16.mxu0 0
      %645 = vmatpush1.bf16.msra.mxu0 0
      %646 = vmatprep.subr.bf16.mxu0 0
      %647 = vmatpush1.bf16.msra.mxu0 0
      %648 = vmatprep.subr.bf16.mxu0 0
      %649 = vmatpush1.bf16.msra.mxu0 0
      %650 = vmatprep.subr.bf16.mxu0 0
      %651 = vmatpush1.bf16.msra.mxu0 0
      %652 = vmatprep.subr.bf16.mxu0 0
      %653 = vmatpush1.bf16.msra.mxu0 0
      %654 = vmatprep.subr.bf16.mxu0 0
      %655 = vmatpush1.bf16.msra.mxu0 0
      %656 = vmatprep.subr.bf16.mxu0 0
      %657 = vmatpush1.bf16.msra.mxu0 0
      %658 = vmatprep.subr.bf16.mxu0 0
      %659 = vmatpush1.bf16.msra.mxu0 0
      %660 = vmatprep.mubr.bf16.mxu0 0
      %661 = vmatmul.mubr.bf16.gmra.mrb[0].mxu0 %v577
      %v662 = vpop.f32.mrb[0].mxu0
      %v663 = vadd.f32 0.0, %v662
      %v664 = vpop.f32.mrb[0].mxu0
      %v665 = vpop.f32.mrb[0].mxu0
      %v666 = vadd.f32 0.0, %v665
      %v667 = vpop.f32.mrb[0].mxu0
      %668 = vmatprep.mubr.bf16.mxu0 0
      %669 = vmatmul.mubr.bf16.gmra.mrb[0].mxu0 %v576
      %v670 = vpop.f32.mrb[0].mxu0
      %v671 = vadd.f32 0.0, %v670
      %v672 = vpop.f32.mrb[0].mxu0
      %v673 = vpop.f32.mrb[0].mxu0
      %v674 = vpop.f32.mrb[0].mxu0
      %675 = vdwg.mxu0
      %v676 = vld [vmem:[#allocation2] sm:$0xff]
      %v677 = vld [vmem:[#allocation2 + $0x8] sm:$0xff]
      %v678 = vld [vmem:[#allocation2 + $0x10] sm:$0xf]
      %v679 = vadd.f32 %v676, %v663
      %v680 = vadd.f32 %v677, %v666
      %v681 = vadd.f32 %v678, %v671
      %682 = vst [vmem:[#allocation2] sm:$0xff] %v679
      %683 = vst [vmem:[#allocation2 + $0x8] sm:$0xff] %v680
      %684 = vst [vmem:[#allocation2 + $0x10] sm:$0xf] %v681
      %v685 = vld [vmem:[%s233] sm:$0x8]
      %v686 = vld [vmem:[%s233 + $0x4] sm:$0xf]
      %v687 = vld [vmem:[%s233 + $0x8] sm:$0xf]
      %v688 = vld [vmem:[%s233 + $0xc] sm:$0x1]
      %s689 = scalar_lea.vmem %s237, 192
      %v690 = vld [vmem:[%s689] sm:$0xf]
      %v691 = vld [vmem:[%s689 + $0x4] sm:$0xf]
      %v692 = vld [vmem:[%s689 + $0x8] sm:$0xf]
      %v693 = vld [vmem:[%s689 + $0xc] sm:$0xf]
      %v694 = vld [vmem:[%s689 + $0x10] sm:$0xf]
      %v695 = vld [vmem:[%s689 + $0x14] sm:$0xf]
      %v696 = vld [vmem:[%s689 + $0x18] sm:$0xf]
      %v697 = vld [vmem:[%s689 + $0x1c] sm:$0xf]
      %v698 = vld [vmem:[%s689 + $0x20] sm:$0xf]
      %v699 = vld [vmem:[%s689 + $0x24] sm:$0xf]
      %v700 = vld [vmem:[%s689 + $0x28] sm:$0xf]
      %v701 = vld [vmem:[%s689 + $0x2c] sm:$0xf]
      %v702 = vld [vmem:[%s689 + $0x30] sm:$0xf]
      %v703 = vld [vmem:[%s689 + $0x34] sm:$0xf]
      %v704 = vld [vmem:[%s689 + $0x38] sm:$0xf]
      %v705 = vld [vmem:[%s689 + $0x3c] sm:$0xf]
      %v710 = vunpack.c.l.b16 %v685
      %v711 = vunpack.c.l.b16 %v686
      %v712 = vunpack.c.l.b16 %v687
      %v713 = vunpack.c.l.b16 %v688
      %v714 = vpack.c.b16 %v711, %v710
      %v715 = vpack.c.b16 %v713, %v712
      %vm716 = vcmask 1044480
      %v717 = vrot.slane %v714, 3
      %v718 = vrot.slane %v715, 3
      %v719 = vsel %vm716, %v717, %v718
      %v738 = vunpack.c.l.b16 %v690
      %v739 = vunpack.c.l.b16 %v691
      %v740 = vunpack.c.l.b16 %v692
      %v741 = vunpack.c.l.b16 %v693
      %v742 = vunpack.c.l.b16 %v694
      %v743 = vunpack.c.l.b16 %v695
      %v744 = vunpack.c.l.b16 %v696
      %v745 = vunpack.c.l.b16 %v697
      %v746 = vunpack.c.l.b16 %v698
      %v747 = vunpack.c.l.b16 %v699
      %v748 = vunpack.c.l.b16 %v700
      %v749 = vunpack.c.l.b16 %v701
      %v750 = vunpack.c.l.b16 %v702
      %v751 = vunpack.c.l.b16 %v703
      %v752 = vunpack.c.l.b16 %v704
      %v753 = vunpack.c.l.b16 %v705
      %v754 = vpack.c.b16 %v739, %v738
      %v755 = vpack.c.b16 %v741, %v740
      %v756 = vpack.c.b16 %v743, %v742
      %v757 = vpack.c.b16 %v745, %v744
      %v758 = vpack.c.b16 %v747, %v746
      %v759 = vpack.c.b16 %v749, %v748
      %v760 = vpack.c.b16 %v751, %v750
      %v761 = vpack.c.b16 %v753, %v752
      %770 = vmatprep.subr.bf16.mxu0 0
      %771 = vmatpush1.bf16.msra.mxu0 %v754
      %772 = vmatprep.subr.bf16.mxu0 0
      %773 = vmatpush1.bf16.msra.mxu0 %v755
      %774 = vmatprep.subr.bf16.mxu0 0
      %775 = vmatpush1.bf16.msra.mxu0 %v756
      %776 = vmatprep.subr.bf16.mxu0 0
      %777 = vmatpush1.bf16.msra.mxu0 %v757
      %778 = vmatprep.subr.bf16.mxu0 0
      %779 = vmatpush1.bf16.msra.mxu0 %v758
      %780 = vmatprep.subr.bf16.mxu0 0
      %781 = vmatpush1.bf16.msra.mxu0 %v759
      %782 = vmatprep.subr.bf16.mxu0 0
      %783 = vmatpush1.bf16.msra.mxu0 %v760
      %784 = vmatprep.subr.bf16.mxu0 0
      %785 = vmatpush1.bf16.msra.mxu0 %v761
      %786 = vmatprep.subr.bf16.mxu0 0
      %787 = vmatpush1.bf16.msra.mxu0 0
      %788 = vmatprep.subr.bf16.mxu0 0
      %789 = vmatpush1.bf16.msra.mxu0 0
      %790 = vmatprep.subr.bf16.mxu0 0
      %791 = vmatpush1.bf16.msra.mxu0 0
      %792 = vmatprep.subr.bf16.mxu0 0
      %793 = vmatpush1.bf16.msra.mxu0 0
      %794 = vmatprep.subr.bf16.mxu0 0
      %795 = vmatpush1.bf16.msra.mxu0 0
      %796 = vmatprep.subr.bf16.mxu0 0
      %797 = vmatpush1.bf16.msra.mxu0 0
      %798 = vmatprep.subr.bf16.mxu0 0
      %799 = vmatpush1.bf16.msra.mxu0 0
      %800 = vmatprep.subr.bf16.mxu0 0
      %801 = vmatpush1.bf16.msra.mxu0 0
      %802 = vmatprep.mubr.bf16.mxu0 0
      %803 = vmatmul.mubr.bf16.gmra.mrb[0].mxu0 %v719
      %v804 = vpop.f32.mrb[0].mxu0
      %v805 = vadd.f32 0.0, %v804
      %v806 = vpop.f32.mrb[0].mxu0
      %v807 = vpop.f32.mrb[0].mxu0
      %v808 = vadd.f32 0.0, %v807
      %v809 = vpop.f32.mrb[0].mxu0
      %810 = vmatprep.mubr.bf16.mxu0 0
      %811 = vmatmul.mubr.bf16.gmra.mrb[0].mxu0 %v718
      %v812 = vpop.f32.mrb[0].mxu0
      %v813 = vadd.f32 0.0, %v812
      %v814 = vpop.f32.mrb[0].mxu0
      %v815 = vpop.f32.mrb[0].mxu0
      %v816 = vpop.f32.mrb[0].mxu0
      %817 = vdwg.mxu0
      %v818 = vld [vmem:[#allocation2] sm:$0xff]
      %v819 = vld [vmem:[#allocation2 + $0x8] sm:$0xff]
      %v820 = vld [vmem:[#allocation2 + $0x10] sm:$0xf]
      %v821 = vadd.f32 %v818, %v805
      %v822 = vadd.f32 %v819, %v808
      %v823 = vadd.f32 %v820, %v813
      %824 = vst [vmem:[#allocation2] sm:$0xff] %v821
      %825 = vst [vmem:[#allocation2 + $0x8] sm:$0xff] %v822
      %826 = vst [vmem:[#allocation2 + $0x10] sm:$0xf] %v823
      %v827 = vld [vmem:[#allocation2] sm:$0xff]
      %v828 = vld [vmem:[#allocation2 + $0x8] sm:$0xff]
      %v829 = vld [vmem:[#allocation2 + $0x10] sm:$0xf]
      %v830 = vld [vmem:[%s240] sm:$0x1]
      %v832 = vlaneseq
      %v833 = vshrl.u32 %v832, 7
      %v834 = vsub.s32 0, %v833
      %v835 = vrot.slane %v830, %v834
      %v837 = vadd.f32 %v827, %v835
      %v838 = vadd.f32 %v828, %v835
      %v839 = vadd.f32 %v829, %v835
      %v840 = vld [vmem:[%s3] sm:$0xff]
      %v841 = vld [vmem:[%s3 + $0x8] sm:$0xff]
      %v842 = vld [vmem:[%s3 + $0x10] sm:$0xf]
      %844 = vset.pattern.permute.xlu0 0
      %845 = vperm.xlu0 %844, %v840
      %v846 = vpop.permute.xlu0 %845
      %849 = vset.pattern.permute.xlu0 0
      %850 = vperm.xlu0 %849, %v841
      %v851 = vpop.permute.xlu0 %850
      %854 = vset.pattern.permute.xlu0 0
      %855 = vperm.xlu0 %854, %v842
      %v856 = vpop.permute.xlu0 %855
      %v858 = vmul.f32 %v837, %v846
      %v859 = vmul.f32 %v838, %v851
      %v860 = vmul.f32 %v839, %v856
      %v861 = vadd.f32 %v858, %v859
      %vm862 = vcmask 1043456
      %v863 = vsel %vm862, %v860, 0.0
      %v864 = vadd.f32 %v861, %v863
      %v865 = vrot.slane %v864, 4
      %v866 = vadd.f32 %v864, %v865
      %v867 = vrot.slane %v866, 2
      %v868 = vadd.f32 %v866, %v867
      %v869 = vrot.slane %v868, 1
      %v870 = vadd.f32 %v868, %v869
      %v871 = vmul.f32 %v870, 0.0625
      %v872 = vsub.f32 %v837, %v871
      %v873 = vsub.f32 %v838, %v871
      %v874 = vsub.f32 %v839, %v871
      %v875 = vmul.f32 %v872, %v846
      %v876 = vmul.f32 %v873, %v851
      %v877 = vmul.f32 %v874, %v856
      %v878 = vmul.f32 %v875, %v875
      %v879 = vmul.f32 %v876, %v876
      %v880 = vmul.f32 %v877, %v877
      %v881 = vadd.f32 %v878, %v879
      %v882 = vsel %vm862, %v880, 0.0
      %v883 = vadd.f32 %v881, %v882
      %v884 = vrot.slane %v883, 4
      %v885 = vadd.f32 %v883, %v884
      %v886 = vrot.slane %v885, 2
      %v887 = vadd.f32 %v885, %v886
      %v888 = vrot.slane %v887, 1
      %v889 = vadd.f32 %v887, %v888
      %v890 = vmul.f32 %v889, 0.0625
      %v891 = vadd.f32 %v890, 1e-05
      %v892 = vrsqrt.pop %v891
      %v893 = vmul.f32 %v872, %v892
      %v894 = vmul.f32 %v873, %v892
      %v895 = vmul.f32 %v874, %v892
      %vm896 = vcmp.ge.f32.partialorder %v893, 0.0
      %vm897 = vcmp.ge.f32.partialorder %v894, 0.0
      %vm898 = vcmp.ge.f32.partialorder %v895, 0.0
      %v899 = vmul.f32 %v893, 0.2
      %v900 = vmul.f32 %v894, 0.2
      %v901 = vmul.f32 %v895, 0.2
      %v902 = vsel %vm896, %v893, %v899
      %v903 = vsel %vm897, %v894, %v900
      %v904 = vsel %vm898, %v895, %v901
      %v905 = vpack.c.bf16 %v903, %v902
      %v906 = vpack.c.bf16 %v904, %v904
      %v909 = vunpack.c.l.b16 %v905
      %v910 = vunpack.c.h.b16 %v905
      %v911 = vunpack.c.l.b16 %v906
      %v912 = vpack.c.b16 %v909, %v909
      %v913 = vpack.c.b16 %v910, %v910
      %v914 = vpack.c.b16 %v911, %v911
      %918 = vst [vmem:[%s248] sm:$0xf] %v912
      %919 = vst [vmem:[%s248 + $0x4] sm:$0xf] %v913
      %920 = vst [vmem:[%s248 + $0x8] sm:$0x3] %v914
      %p921 = scmp.lt.s32.totalorder %s19, 1
      %s922 = scalar_select %p921, %s19, 1
      %p923 = scmp.lt.s32.totalorder %s20, 0
      %s924 = scalar_select %p923, %s20, 0
      %s925 = smul.addr %s922, 3
      %s926 = sadd.s32 %s924, %s925
      %s927 = smul.addr %s926, 4
      %s928 = scalar_lea.vmem %s4, %s927
      // Predicated region
      $region37: #{discriminator_forward.7} parent=35 // pred_check
        %p929 = pneg %p146
      $region38: #{discriminator_forward.7} parent=35 // pred_check_branch
        %931 = sbr.rel (%p929) target = $region40
      $region39: #{discriminator_forward.7} parent=35 // pred_region
        _
      $region40: #{discriminator_forward.7} parent=35 // pred_fallthru
        _
    $region36: #{discriminator_forward.7} parent=5 // pred_fallthru
      _
    %p932 = scmp.le.s32.totalorder 2, %s10
    // Predicated region
    $region41: #{discriminator_forward.7} parent=5 // pred_check
      %p933 = pneg %p932
    $region42: #{discriminator_forward.7} parent=5 // pred_check_branch
      %935 = sbr.rel (%p933) target = $region44
    $region43: #{discriminator_forward.7} parent=5 // pred_region
      %s936 = ssub.s32 %s10, 2
      // Predicated region
      $region45: #{discriminator_forward.7} parent=43 // pred_check
        %p937 = pneg %p152
      $region46: #{discriminator_forward.7} parent=43 // pred_check_branch
        %939 = sbr.rel (%p937) target = $region48
      $region47: #{discriminator_forward.7} parent=43 // pred_region
        %p940 = scmp.lt.s32.totalorder %s21, 1
        %s941 = scalar_select %p940, %s21, 1
        %p942 = scmp.lt.s32.totalorder %s22, 0
        %s943 = scalar_select %p942, %s22, 0
        %s944 = smul.addr %s941, 3
        %s945 = sadd.s32 %s943, %s944
        %s946 = smul.addr %s945, 4
        %s947 = scalar_lea.vmem %s4, %s946
      $region48: #{discriminator_forward.7} parent=43 // pred_fallthru
        _
    $region44: #{discriminator_forward.7} parent=5 // pred_fallthru
      _
  $region6: #{discriminator_forward.7} parent=0 // loop_footer
    %s14 = sadd.s32 1, %s10
  $region7: #{discriminator_forward.7} parent=0 // loop_footer_branch
    %9 = sbr.rel target = $region3
  $region8: #{discriminator_forward.7} parent=0 // loop_exit
    _

// kernel: discriminator_forward.8
$region0: #{discriminator_forward.8}
  #allocation0 [shape = 'u32[]', space=smem, size = 0x4, offset = 0x4, fixed_abs, tag = 'smem constant byte address 0x4 - core index']
  #allocation1 [shape = 'u32[144,128]{1,0:T(1,128)}', space=vmem, size = 0x12000, scoped, tag = 'internal scratch']
  #allocation2 [shape = 'f32[18,128]{1,0:T(8,128)}', space=vmem, size = 0x3000, scoped, tag = 'scratch operand']
  %s0 = inlined_call_operand.vmem [shape: bf16[2,39,64], index: 0, kind: input, shape index: {}]
  %s1 = inlined_call_operand.vmem [shape: bf16[16,64,128], index: 1, kind: input, shape index: {}]
  %s2 = inlined_call_operand.vmem [shape: f32[1,128], index: 2, kind: input, shape index: {}]
  %s3 = inlined_call_operand.vmem [shape: f32[18,1], index: 3, kind: input, shape index: {}]
  %s4 = inlined_call_operand.vmem [shape: bf16[2,18,128], index: 4, kind: output, shape index: {}]
  %s5 = sld [smem:[#allocation0]]
  $region49: #{discriminator_forward.8} parent=0
    _
  %s7 = ssub.s32 1, %s5
  %s8 = scalar_select 0, %s7, %s5
  loop: start=0, step=1, limit=4
  $region2: #{discriminator_forward.8} parent=0 // loop_pre_header
    _
  $region3: #{discriminator_forward.8} parent=0 // loop_header
    %s10 = sphi 0, %s14
    %p11 = scmp.ge.s32.totalorder %s10, 4
    %s17 = sphi 0, %s29
    %s18 = sphi 0, %s25
    %s19 = sphi 0, %s17
    %s20 = sphi 0, %s18
    %s21 = sphi 0, %s19
    %s22 = sphi 0, %s20
    %s32 = sphi 0, %s34
    %s35 = sphi 0, %s32
    %s36 = sphi 0, %s35
    %s52 = sphi 0, %s36
    %s58 = sphi 0, %s60
    %s61 = sphi 0, %s58
    %s62 = sphi 0, %s61
    %s78 = sphi 0, %s62
    %s84 = sphi 0, %s86
    %s87 = sphi 0, %s84
    %s88 = sphi 0, %s87
    %s104 = sphi 0, %s88
    %s108 = sphi 0, %s108
    %s110 = sphi 0, %s108
    %s111 = sphi 0, %s110
    %s125 = sphi 0, %s111
    %s133 = sphi 0, %s135
    %s136 = sphi 0, %s133
    %s137 = sphi 0, %s136
    %s153 = sphi 0, %s137
  $region4: #{discriminator_forward.8} parent=0 // loop_header_branch
    %13 = sbr.rel (%p11) target = $region8
  $region5: #{discriminator_forward.8} parent=0 // loop_body
    %s15 = ssub.s32 %s10, 1
    %s16 = ssub.s32 %s10, 2
    %s23 = sadd.s32 1, %s18
    %p24 = scmp.ge.s32.totalorder %s23, 1
    %s25 = scalar_select %p24, 0, %s23
    %s26 = sadd.s32 1, %s17
    %s27 = scalar_select %p24, %s26, %s17
    %p28 = scmp.ge.s32.totalorder %s27, 2
    %s29 = scalar_select %p28, 0, %s27
    %s30 = ssub.s32 %s17, %s29
    %p31 = scmp.eq.s32.totalorder %s30, 0
    %s33 = sadd.s32 %s32, 1
    %s34 = scalar_select %p31, %s32, %s33
    %p37 = pneg %p31
    %p38 = scmp.eq.s32.totalorder %s10, 1
    %p39 = por %p37, %p38
    %p40 = scmp.ne.s32.totalorder %s32, %s35
    %p41 = scmp.eq.s32.totalorder %s10, 0
    %p42 = por %p40, %p41
    %p43 = scmp.ne.s32.totalorder %s32, %s35
    %p44 = scmp.eq.s32.totalorder %s15, 1
    %p45 = por %p43, %p44
    %p46 = scmp.ne.s32.totalorder %s35, %s36
    %p47 = scmp.eq.s32.totalorder %s15, 0
    %p48 = por %p46, %p47
    %p49 = scmp.ne.s32.totalorder %s35, %s36
    %p50 = scmp.eq.s32.totalorder %s16, 1
    %p51 = por %p49, %p50
    %p53 = scmp.ne.s32.totalorder %s36, %s52
    %p54 = scmp.eq.s32.totalorder %s16, 0
    %p55 = por %p53, %p54
    %s56 = ssub.s32 %s18, %s25
    %p57 = scmp.eq.s32.totalorder %s56, 0
    %s59 = sadd.s32 %s58, 1
    %s60 = scalar_select %p57, %s58, %s59
    %p63 = pneg %p57
    %p64 = scmp.eq.s32.totalorder %s10, 1
    %p65 = por %p63, %p64
    %p66 = scmp.ne.s32.totalorder %s58, %s61
    %p67 = scmp.eq.s32.totalorder %s10, 0
    %p68 = por %p66, %p67
    %p69 = scmp.ne.s32.totalorder %s58, %s61
    %p70 = scmp.eq.s32.totalorder %s15, 1
    %p71 = por %p69, %p70
    %p72 = scmp.ne.s32.totalorder %s61, %s62
    %p73 = scmp.eq.s32.totalorder %s15, 0
    %p74 = por %p72, %p73
    %p75 = scmp.ne.s32.totalorder %s61, %s62
    %p76 = scmp.eq.s32.totalorder %s16, 1
    %p77 = por %p75, %p76
    %p79 = scmp.ne.s32.totalorder %s62, %s78
    %p80 = scmp.eq.s32.totalorder %s16, 0
    %p81 = por %p79, %p80
    %s82 = ssub.s32 %s18, %s25
    %p83 = scmp.eq.s32.totalorder %s82, 0
    %s85 = sadd.s32 %s84, 1
    %s86 = scalar_select %p83, %s84, %s85
    %p89 = pneg %p83
    %p90 = scmp.eq.s32.totalorder %s10, 1
    %p91 = por %p89, %p90
    %p92 = scmp.ne.s32.totalorder %s84, %s87
    %p93 = scmp.eq.s32.totalorder %s10, 0
    %p94 = por %p92, %p93
    %p95 = scmp.ne.s32.totalorder %s84, %s87
    %p96 = scmp.eq.s32.totalorder %s15, 1
    %p97 = por %p95, %p96
    %p98 = scmp.ne.s32.totalorder %s87, %s88
    %p99 = scmp.eq.s32.totalorder %s15, 0
    %p100 = por %p98, %p99
    %p101 = scmp.ne.s32.totalorder %s87, %s88
    %p102 = scmp.eq.s32.totalorder %s16, 1
    %p103 = por %p101, %p102
    %p105 = scmp.ne.s32.totalorder %s88, %s104
    %p106 = scmp.eq.s32.totalorder %s16, 0
    %p107 = por %p105, %p106
    %s109 = sadd.s32 %s108, 1
    %p112 = scmp.eq.s32.totalorder %s10, 1
    %p113 = scmp.ne.s32.totalorder %s108, %s110
    %p114 = scmp.eq.s32.totalorder %s10, 0
    %p115 = por %p113, %p114
    %p116 = scmp.ne.s32.totalorder %s108, %s110
    %p117 = scmp.eq.s32.totalorder %s15, 1
    %p118 = por %p116, %p117
    %p119 = scmp.ne.s32.totalorder %s110, %s111
    %p120 = scmp.eq.s32.totalorder %s15, 0
    %p121 = por %p119, %p120
    %p122 = scmp.ne.s32.totalorder %s110, %s111
    %p123 = scmp.eq.s32.totalorder %s16, 1
    %p124 = por %p122, %p123
    %p126 = scmp.ne.s32.totalorder %s111, %s125
    %p127 = scmp.eq.s32.totalorder %s16, 0
    %p128 = por %p126, %p127
    %s129 = ssub.s32 %s17, %s29
    %s130 = ssub.s32 %s18, %s25
    %s131 = sor.u32 %s129, %s130
    %p132 = scmp.eq.s32.totalorder %s131, 0
    %s134 = sadd.s32 %s133, 1
    %s135 = scalar_select %p132, %s133, %s134
    %p138 = pneg %p132
    %p139 = scmp.eq.s32.totalorder %s10, 1
    %p140 = por %p138, %p139
    %p141 = scmp.ne.s32.totalorder %s133, %s136
    %p142 = scmp.eq.s32.totalorder %s10, 0
    %p143 = por %p141, %p142
    %p144 = scmp.ne.s32.totalorder %s133, %s136
    %p145 = scmp.eq.s32.totalorder %s15, 1
    %p146 = por %p144, %p145
    %p147 = scmp.ne.s32.totalorder %s136, %s137
    %p148 = scmp.eq.s32.totalorder %s15, 0
    %p149 = por %p147, %p148
    %p150 = scmp.ne.s32.totalorder %s136, %s137
    %p151 = scmp.eq.s32.totalorder %s16, 1
    %p152 = por %p150, %p151
    %p154 = scmp.ne.s32.totalorder %s137, %s153
    %p155 = scmp.eq.s32.totalorder %s16, 0
    %p156 = por %p154, %p155
    %p157 = scmp.le.s32.totalorder 1, %s10
    %p158 = scmp.lt.s32.totalorder %s10, 3
    %p159 = pnand %p157, %p158
    %p160 = pneg %p159
    // Predicated region
    $region9: #{discriminator_forward.8} parent=5 // pred_check
      _
    $region10: #{discriminator_forward.8} parent=5 // pred_check_branch
      %162 = sbr.rel (%p159) target = $region12
    $region11: #{discriminator_forward.8} parent=5 // pred_region
      %s163 = ssub.s32 %s10, 1
      // Predicated region
      $region13: #{discriminator_forward.8} parent=11 // pred_check
        %p164 = pneg %p74
      $region14: #{discriminator_forward.8} parent=11 // pred_check_branch
        %166 = sbr.rel (%p164) target = $region16
      $region15: #{discriminator_forward.8} parent=11 // pred_region
        %p167 = scmp.lt.s32.totalorder %s20, 0
        %s168 = scalar_select %p167, %s20, 0
        %s169 = smul.addr %s168, 4
        %s170 = scalar_lea.vmem %s1, %s169
      $region16: #{discriminator_forward.8} parent=11 // pred_fallthru
        _
      // Predicated region
      $region17: #{discriminator_forward.8} parent=11 // pred_check
        %p171 = pneg %p100
      $region18: #{discriminator_forward.8} parent=11 // pred_check_branch
        %173 = sbr.rel (%p171) target = $region20
      $region19: #{discriminator_forward.8} parent=11 // pred_region
        %p174 = scmp.lt.s32.totalorder %s20, 0
        %s175 = scalar_select %p174, %s20, 0
        %s176 = scalar_lea.vmem %s2, %s175
      $region20: #{discriminator_forward.8} parent=11 // pred_fallthru
        _
      // Predicated region
      $region21: #{discriminator_forward.8} parent=11 // pred_check
        %p177 = pneg %p121
      $region22: #{discriminator_forward.8} parent=11 // pred_check_branch
        %179 = sbr.rel (%p177) target = $region24
      $region23: #{discriminator_forward.8} parent=11 // pred_region
        _
      $region24: #{discriminator_forward.8} parent=11 // pred_fallthru
        _
    $region12: #{discriminator_forward.8} parent=5 // pred_fallthru
      _
    %p180 = scmp.lt.s32.totalorder %s10, 2
    // Predicated region
    $region25: #{discriminator_forward.8} parent=5 // pred_check
      %p181 = pneg %p180
    $region26: #{discriminator_forward.8} parent=5 // pred_check_branch
      %183 = sbr.rel (%p181) target = $region28
    $region27: #{discriminator_forward.8} parent=5 // pred_region
      // Predicated region
      $region29: #{discriminator_forward.8} parent=27 // pred_check
        %p184 = pneg %p42
      $region30: #{discriminator_forward.8} parent=27 // pred_check_branch
        %186 = sbr.rel (%p184) target = $region32
      $region31: #{discriminator_forward.8} parent=27 // pred_region
        %p187 = scmp.lt.s32.totalorder %s17, 1
        %s188 = scalar_select %p187, %s17, 1
        %s189 = smul.addr %s188, 5
        %s190 = smul.addr %s189, 4
        %s191 = scalar_lea.vmem %s0, %s190
      $region32: #{discriminator_forward.8} parent=27 // pred_fallthru
        _
    $region28: #{discriminator_forward.8} parent=5 // pred_fallthru
      _
    %p192 = scmp.le.s32.totalorder 1, %s10
    %p193 = scmp.lt.s32.totalorder %s10, 3
    %p194 = pnand %p192, %p193
    %p195 = pneg %p194
    // Predicated region
    $region33: #{discriminator_forward.8} parent=5 // pred_check
      _
    $region34: #{discriminator_forward.8} parent=5 // pred_check_branch
      %197 = sbr.rel (%p194) target = $region36
    $region35: #{discriminator_forward.8} parent=5 // pred_region
      %s198 = ssub.s32 %s10, 1
      %p199 = scmp.lt.s32.totalorder %s19, 1
      %s200 = scalar_select %p199, %s19, 1
      %s201 = smul.addr %s200, 5
      %s202 = smul.addr %s201, 4
      %s203 = scalar_lea.vmem %s0, %s202
      %p204 = pneg %p48
      %p205 = pneg %p45
      %p206 = scmp.lt.s32.totalorder %s20, 0
      %s207 = scalar_select %p206, %s20, 0
      %s208 = smul.addr %s207, 4
      %s209 = scalar_lea.vmem %s1, %s208
      %p210 = pneg %p74
      %p211 = pneg %p71
      %p212 = scmp.lt.s32.totalorder %s20, 0
      %s213 = scalar_select %p212, %s20, 0
      %s214 = scalar_lea.vmem %s2, %s213
      %p215 = pneg %p100
      %p216 = pneg %p97
      %p217 = pneg %p121
      %p218 = pneg %p118
      %p219 = pneg %p149
      %p220 = pneg %p146
      %p221 = scmp.lt.s32.totalorder %s19, 1
      %s222 = scalar_select %p221, %s19, 1
      %p223 = scmp.lt.s32.totalorder %s20, 0
      %s224 = scalar_select %p223, %s20, 0
      %s225 = smul.addr %s222, 3
      %s226 = sadd.s32 %s224, %s225
      %s227 = smul.addr %s226, 4
      %s228 = scalar_lea.vmem %s4, %s227
      %p229 = scmp.lt.s32.totalorder %s19, 1
      %s230 = scalar_select %p229, %s19, 1
      %s231 = smul.addr %s230, 5
      %s232 = smul.addr %s231, 4
      %s233 = scalar_lea.vmem %s0, %s232
      %p234 = scmp.lt.s32.totalorder %s20, 0
      %s235 = scalar_select %p234, %s20, 0
      %s236 = smul.addr %s235, 4
      %s237 = scalar_lea.vmem %s1, %s236
      %p238 = scmp.lt.s32.totalorder %s20, 0
      %s239 = scalar_select %p238, %s20, 0
      %s240 = scalar_lea.vmem %s2, %s239
      %p241 = scmp.lt.s32.totalorder %s19, 1
      %s242 = scalar_select %p241, %s19, 1
      %p243 = scmp.lt.s32.totalorder %s20, 0
      %s244 = scalar_select %p243, %s20, 0
      %s245 = smul.addr %s242, 3
      %s246 = sadd.s32 %s244, %s245
      %s247 = smul.addr %s246, 4
      %s248 = scalar_lea.vmem %s4, %s247
      %v250 = vld [vmem:[%s233] sm:$0xf]
      %v251 = vld [vmem:[%s233 + $0x4] sm:$0xf]
      %v252 = vld [vmem:[%s233 + $0x8] sm:$0x1]
      %v253 = vld [vmem:[%s237] sm:$0xf]
      %v254 = vld [vmem:[%s237 + $0x4] sm:$0xf]
      %v255 = vld [vmem:[%s237 + $0x8] sm:$0xf]
      %v256 = vld [vmem:[%s237 + $0xc] sm:$0xf]
      %v257 = vld [vmem:[%s237 + $0x10] sm:$0xf]
      %v258 = vld [vmem:[%s237 + $0x14] sm:$0xf]
      %v259 = vld [vmem:[%s237 + $0x18] sm:$0xf]
      %v260 = vld [vmem:[%s237 + $0x1c] sm:$0xf]
      %v264 = vunpack.c.l.b16 %v250
      %v265 = vunpack.c.l.b16 %v251
      %v266 = vunpack.c.l.b16 %v252
      %v267 = vpack.c.b16 %v265, %v264
      %v268 = vpack.c.b16 %v266, %v266
      %v277 = vunpack.c.l.b16 %v253
      %v278 = vunpack.c.l.b16 %v254
      %v279 = vunpack.c.l.b16 %v255
      %v280 = vunpack.c.l.b16 %v256
      %v281 = vunpack.c.l.b16 %v257
      %v282 = vunpack.c.l.b16 %v258
      %v283 = vunpack.c.l.b16 %v259
      %v284 = vunpack.c.l.b16 %v260
      %v285 = vpack.c.b16 %v278, %v277
      %v286 = vpack.c.b16 %v280, %v279
      %v287 = vpack.c.b16 %v282, %v281
      %v288 = vpack.c.b16 %v284, %v283
      %vm293 = vcmask 523264
      %v295 = vsel %vm293, %v267, 0
      %v298 = vsel %vm293, %v268, 0
      %300 = vmatprep.subr.bf16.mxu0 0
      %301 = vmatpush1.bf16.msra.mxu0 %v285
      %302 = vmatprep.subr.bf16.mxu0 0
      %303 = vmatpush1.bf16.msra.mxu0 %v286
      %304 = vmatprep.subr.bf16.mxu0 0
      %305 = vmatpush1.bf16.msra.mxu0 %v287
      %306 = vmatprep.subr.bf16.mxu0 0
      %307 = vmatpush1.bf16.msra.mxu0 %v288
      %308 = vmatprep.subr.bf16.mxu0 0
      %309 = vmatpush1.bf16.msra.mxu0 0
      %310 = vmatprep.subr.bf16.mxu0 0
      %311 = vmatpush1.bf16.msra.mxu0 0
      %312 = vmatprep.subr.bf16.mxu0 0
      %313 = vmatpush1.bf16.msra.mxu0 0
      %314 = vmatprep.subr.bf16.mxu0 0
      %315 = vmatpush1.bf16.msra.mxu0 0
      %316 = vmatprep.subr.bf16.mxu0 0
      %317 = vmatpush1.bf16.msra.mxu0 0
      %318 = vmatprep.subr.bf16.mxu0 0
      %319 = vmatpush1.bf16.msra.mxu0 0
      %320 = vmatprep.subr.bf16.mxu0 0
      %321 = vmatpush1.bf16.msra.mxu0 0
      %322 = vmatprep.subr.bf16.mxu0 0
      %323 = vmatpush1.bf16.msra.mxu0 0
      %324 = vmatprep.subr.bf16.mxu0 0
      %325 = vmatpush1.bf16.msra.mxu0 0
      %326 = vmatprep.subr.bf16.mxu0 0
      %327 = vmatpush1.bf16.msra.mxu0 0
      %328 = vmatprep.subr.bf16.mxu0 0
      %329 = vmatpush1.bf16.msra.mxu0 0
      %330 = vmatprep.subr.bf16.mxu0 0
      %331 = vmatpush1.bf16.msra.mxu0 0
      %332 = vmatprep.mubr.bf16.mxu0 0
      %333 = vmatmul.mubr.bf16.gmra.mrb[0].mxu0 %v295
      %v334 = vpop.f32.mrb[0].mxu0
      %v335 = vadd.f32 0.0, %v334
      %v336 = vpop.f32.mrb[0].mxu0
      %v337 = vpop.f32.mrb[0].mxu0
      %v338 = vadd.f32 0.0, %v337
      %v339 = vpop.f32.mrb[0].mxu0
      %340 = vmatprep.mubr.bf16.mxu0 0
      %341 = vmatmul.mubr.bf16.gmra.mrb[0].mxu0 %v298
      %v342 = vpop.f32.mrb[0].mxu0
      %v343 = vadd.f32 0.0, %v342
      %v344 = vpop.f32.mrb[0].mxu0
      %v345 = vpop.f32.mrb[0].mxu0
      %v346 = vpop.f32.mrb[0].mxu0
      %347 = vdwg.mxu0
      %348 = vst [vmem:[#allocation2] sm:$0xff] %v335
      %349 = vst [vmem:[#allocation2 + $0x8] sm:$0xff] %v338
      %350 = vst [vmem:[#allocation2 + $0x10] sm:$0x3] %v343
      %v351 = vld [vmem:[%s233] sm:$0xf]
      %v352 = vld [vmem:[%s233 + $0x4] sm:$0xf]
      %v353 = vld [vmem:[%s233 + $0x8] sm:$0x3]
      %s354 = scalar_lea.vmem %s237, 32
      %v355 = vld [vmem:[%s354] sm:$0xf]
      %v356 = vld [vmem:[%s354 + $0x4] sm:$0xf]
      %v357 = vld [vmem:[%s354 + $0x8] sm:$0xf]
      %v358 = vld [vmem:[%s354 + $0xc] sm:$0xf]
      %v359 = vld [vmem:[%s354 + $0x10] sm:$0xf]
      %v360 = vld [vmem:[%s354 + $0x14] sm:$0xf]
      %v361 = vld [vmem:[%s354 + $0x18] sm:$0xf]
      %v362 = vld [vmem:[%s354 + $0x1c] sm:$0xf]
      %v366 = vunpack.c.l.b16 %v351
      %v367 = vunpack.c.l.b16 %v352
      %v368 = vunpack.c.l.b16 %v353
      %v369 = vpack.c.b16 %v367, %v366
      %v370 = vpack.c.b16 %v368, %v368
      %vm371 = vsmask.f32 7424
      %v373 = vshrl.u32 %v369, 16
      %v375 = vshll.u32 %v369, 16
      %v377 = vrot.slane %v375, 1
      %v378 = vor.u32 %v373, %v377
      %v380 = vshll.u32 %v370, 16
      %v382 = vrot.slane %v380, 1
      %v383 = vsel %vm371, %v378, %v382
      %v384 = vshrl.u32 %v370, 16
      %v386 = vor.u32 %v384, %v382
      %v395 = vunpack.c.l.b16 %v355
      %v396 = vunpack.c.l.b16 %v356
      %v397 = vunpack.c.l.b16 %v357
      %v398 = vunpack.c.l.b16 %v358
      %v399 = vunpack.c.l.b16 %v359
      %v400 = vunpack.c.l.b16 %v360
      %v401 = vunpack.c.l.b16 %v361
      %v402 = vunpack.c.l.b16 %v362
      %v403 = vpack.c.b16 %v396, %v395
      %v404 = vpack.c.b16 %v398, %v397
      %v405 = vpack.c.b16 %v400, %v399
      %v406 = vpack.c.b16 %v402, %v401
      %v412 = vsel %vm293, %v383, 0
      %v415 = vsel %vm293, %v386, 0
      %417 = vmatprep.subr.bf16.mxu0 0
      %418 = vmatpush1.bf16.msra.mxu0 %v403
      %419 = vmatprep.subr.bf16.mxu0 0
      %420 = vmatpush1.bf16.msra.mxu0 %v404
      %421 = vmatprep.subr.bf16.mxu0 0
      %422 = vmatpush1.bf16.msra.mxu0 %v405
      %423 = vmatprep.subr.bf16.mxu0 0
      %424 = vmatpush1.bf16.msra.mxu0 %v406
      %425 = vmatprep.subr.bf16.mxu0 0
      %426 = vmatpush1.bf16.msra.mxu0 0
      %427 = vmatprep.subr.bf16.mxu0 0
      %428 = vmatpush1.bf16.msra.mxu0 0
      %429 = vmatprep.subr.bf16.mxu0 0
      %430 = vmatpush1.bf16.msra.mxu0 0
      %431 = vmatprep.subr.bf16.mxu0 0
      %432 = vmatpush1.bf16.msra.mxu0 0
      %433 = vmatprep.subr.bf16.mxu0 0
      %434 = vmatpush1.bf16.msra.mxu0 0
      %435 = vmatprep.subr.bf16.mxu0 0
      %436 = vmatpush1.bf16.msra.mxu0 0
      %437 = vmatprep.subr.bf16.mxu0 0
      %438 = vmatpush1.bf16.msra.mxu0 0
      %439 = vmatprep.subr.bf16.mxu0 0
      %440 = vmatpush1.bf16.msra.mxu0 0
      %441 = vmatprep.subr.bf16.mxu0 0
      %442 = vmatpush1.bf16.msra.mxu0 0
      %443 = vmatprep.subr.bf16.mxu0 0
      %444 = vmatpush1.bf16.msra.mxu0 0
      %445 = vmatprep.subr.bf16.mxu0 0
      %446 = vmatpush1.bf16.msra.mxu0 0
      %447 = vmatprep.subr.bf16.mxu0 0
      %448 = vmatpush1.bf16.msra.mxu0 0
      %449 = vmatprep.mubr.bf16.mxu0 0
      %450 = vmatmul.mubr.bf16.gmra.mrb[0].mxu0 %v412
      %v451 = vpop.f32.mrb[0].mxu0
      %v452 = vadd.f32 0.0, %v451
      %v453 = vpop.f32.mrb[0].mxu0
      %v454 = vpop.f32.mrb[0].mxu0
      %v455 = vadd.f32 0.0, %v454
      %v456 = vpop.f32.mrb[0].mxu0
      %457 = vmatprep.mubr.bf16.mxu0 0
      %458 = vmatmul.mubr.bf16.gmra.mrb[0].mxu0 %v415
      %v459 = vpop.f32.mrb[0].mxu0
      %v460 = vadd.f32 0.0, %v459
      %v461 = vpop.f32.mrb[0].mxu0
      %v462 = vpop.f32.mrb[0].mxu0
      %v463 = vpop.f32.mrb[0].mxu0
      %464 = vdwg.mxu0
      %v465 = vld [vmem:[#allocation2] sm:$0xff]
      %v466 = vld [vmem:[#allocation2 + $0x8] sm:$0xff]
      %v467 = vld [vmem:[#allocation2 + $0x10] sm:$0x3]
      %v468 = vadd.f32 %v465, %v452
      %v469 = vadd.f32 %v466, %v455
      %v470 = vadd.f32 %v467, %v460
      %471 = vst [vmem:[#allocation2] sm:$0xff] %v468
      %472 = vst [vmem:[#allocation2 + $0x8] sm:$0xff] %v469
      %473 = vst [vmem:[#allocation2 + $0x10] sm:$0x3] %v470
      %v474 = vld [vmem:[%s233] sm:$0xe]
      %v475 = vld [vmem:[%s233 + $0x4] sm:$0xf]
      %v476 = vld [vmem:[%s233 + $0x8] sm:$0x3]
      %s477 = scalar_lea.vmem %s237, 64
      %v478 = vld [vmem:[%s477] sm:$0xf]
      %v479 = vld [vmem:[%s477 + $0x4] sm:$0xf]
      %v480 = vld [vmem:[%s477 + $0x8] sm:$0xf]
      %v481 = vld [vmem:[%s477 + $0xc] sm:$0xf]
      %v482 = vld [vmem:[%s477 + $0x10] sm:$0xf]
      %v483 = vld [vmem:[%s477 + $0x14] sm:$0xf]
      %v484 = vld [vmem:[%s477 + $0x18] sm:$0xf]
      %v485 = vld [vmem:[%s477 + $0x1c] sm:$0xf]
      %v489 = vunpack.c.l.b16 %v474
      %v490 = vunpack.c.l.b16 %v475
      %v491 = vunpack.c.l.b16 %v476
      %v492 = vpack.c.b16 %v490, %v489
      %v493 = vpack.c.b16 %v491, %v491
      %vm494 = vcmask 1046528
      %v495 = vrot.slane %v492, 1
      %v496 = vrot.slane %v493, 1
      %v497 = vsel %vm494, %v495, %v496
      %v506 = vunpack.c.l.b16 %v478
      %v507 = vunpack.c.l.b16 %v479
      %v508 = vunpack.c.l.b16 %v480
      %v509 = vunpack.c.l.b16 %v481
      %v510 = vunpack.c.l.b16 %v482
      %v511 = vunpack.c.l.b16 %v483
      %v512 = vunpack.c.l.b16 %v484
      %v513 = vunpack.c.l.b16 %v485
      %v514 = vpack.c.b16 %v507, %v506
      %v515 = vpack.c.b16 %v509, %v508
      %v516 = vpack.c.b16 %v511, %v510
      %v517 = vpack.c.b16 %v513, %v512
      %v523 = vsel %vm293, %v497, 0
      %v526 = vsel %vm293, %v496, 0
      %528 = vmatprep.subr.bf16.mxu0 0
      %529 = vmatpush1.bf16.msra.mxu0 %v514
      %530 = vmatprep.subr.bf16.mxu0 0
      %531 = vmatpush1.bf16.msra.mxu0 %v515
      %532 = vmatprep.subr.bf16.mxu0 0
      %533 = vmatpush1.bf16.msra.mxu0 %v516
      %534 = vmatprep.subr.bf16.mxu0 0
      %535 = vmatpush1.bf16.msra.mxu0 %v517
      %536 = vmatprep.subr.bf16.mxu0 0
      %537 = vmatpush1.bf16.msra.mxu0 0
      %538 = vmatprep.subr.bf16.mxu0 0
      %539 = vmatpush1.bf16.msra.mxu0 0
      %540 = vmatprep.subr.bf16.mxu0 0
      %541 = vmatpush1.bf16.msra.mxu0 0
      %542 = vmatprep.subr.bf16.mxu0 0
      %543 = vmatpush1.bf16.msra.mxu0 0
      %544 = vmatprep.subr.bf16.mxu0 0
      %545 = vmatpush1.bf16.msra.mxu0 0
      %546 = vmatprep.subr.bf16.mxu0 0
      %547 = vmatpush1.bf16.msra.mxu0 0
      %548 = vmatprep.subr.bf16.mxu0 0
      %549 = vmatpush1.bf16.msra.mxu0 0
      %550 = vmatprep.subr.bf16.mxu0 0
      %551 = vmatpush1.bf16.msra.mxu0 0
      %552 = vmatprep.subr.bf16.mxu0 0
      %553 = vmatpush1.bf16.msra.mxu0 0
      %554 = vmatprep.subr.bf16.mxu0 0
      %555 = vmatpush1.bf16.msra.mxu0 0
      %556 = vmatprep.subr.bf16.mxu0 0
      %557 = vmatpush1.bf16.msra.mxu0 0
      %558 = vmatprep.subr.bf16.mxu0 0
      %559 = vmatpush1.bf16.msra.mxu0 0
      %560 = vmatprep.mubr.bf16.mxu0 0
      %561 = vmatmul.mubr.bf16.gmra.mrb[0].mxu0 %v523
      %v562 = vpop.f32.mrb[0].mxu0
      %v563 = vadd.f32 0.0, %v562
      %v564 = vpop.f32.mrb[0].mxu0
      %v565 = vpop.f32.mrb[0].mxu0
      %v566 = vadd.f32 0.0, %v565
      %v567 = vpop.f32.mrb[0].mxu0
      %568 = vmatprep.mubr.bf16.mxu0 0
      %569 = vmatmul.mubr.bf16.gmra.mrb[0].mxu0 %v526
      %v570 = vpop.f32.mrb[0].mxu0
      %v571 = vadd.f32 0.0, %v570
      %v572 = vpop.f32.mrb[0].mxu0
      %v573 = vpop.f32.mrb[0].mxu0
      %v574 = vpop.f32.mrb[0].mxu0
      %575 = vdwg.mxu0
      %v576 = vld [vmem:[#allocation2] sm:$0xff]
      %v577 = vld [vmem:[#allocation2 + $0x8] sm:$0xff]
      %v578 = vld [vmem:[#allocation2 + $0x10] sm:$0x3]
      %v579 = vadd.f32 %v576, %v563
      %v580 = vadd.f32 %v577, %v566
      %v581 = vadd.f32 %v578, %v571
      %582 = vst [vmem:[#allocation2] sm:$0xff] %v579
      %583 = vst [vmem:[#allocation2 + $0x8] sm:$0xff] %v580
      %584 = vst [vmem:[#allocation2 + $0x10] sm:$0x3] %v581
      %v585 = vld [vmem:[%s233] sm:$0xe]
      %v586 = vld [vmem:[%s233 + $0x4] sm:$0xf]
      %v587 = vld [vmem:[%s233 + $0x8] sm:$0x7]
      %s588 = scalar_lea.vmem %s237, 96
      %v589 = vld [vmem:[%s588] sm:$0xf]
      %v590 = vld [vmem:[%s588 + $0x4] sm:$0xf]
      %v591 = vld [vmem:[%s588 + $0x8] sm:$0xf]
      %v592 = vld [vmem:[%s588 + $0xc] sm:$0xf]
      %v593 = vld [vmem:[%s588 + $0x10] sm:$0xf]
      %v594 = vld [vmem:[%s588 + $0x14] sm:$0xf]
      %v595 = vld [vmem:[%s588 + $0x18] sm:$0xf]
      %v596 = vld [vmem:[%s588 + $0x1c] sm:$0xf]
      %v600 = vunpack.c.l.b16 %v585
      %v601 = vunpack.c.l.b16 %v586
      %v602 = vunpack.c.l.b16 %v587
      %v603 = vpack.c.b16 %v601, %v600
      %v604 = vpack.c.b16 %v602, %v602
      %vm605 = vsmask.f32 6400
      %v607 = vshrl.u32 %v603, 16
      %v609 = vrot.slane %v607, 1
      %v610 = vshll.u32 %v603, 16
      %v612 = vrot.slane %v610, 2
      %v613 = vor.u32 %v609, %v612
      %v615 = vshrl.u32 %v604, 16
      %v617 = vrot.slane %v615, 1
      %v618 = vshll.u32 %v604, 16
      %v620 = vrot.slane %v618, 2
      %v621 = vor.u32 %v617, %v620
      %v622 = vsel %vm605, %v613, %v621
      %v631 = vunpack.c.l.b16 %v589
      %v632 = vunpack.c.l.b16 %v590
      %v633 = vunpack.c.l.b16 %v591
      %v634 = vunpack.c.l.b16 %v592
      %v635 = vunpack.c.l.b16 %v593
      %v636 = vunpack.c.l.b16 %v594
      %v637 = vunpack.c.l.b16 %v595
      %v638 = vunpack.c.l.b16 %v596
      %v639 = vpack.c.b16 %v632, %v631
      %v640 = vpack.c.b16 %v634, %v633
      %v641 = vpack.c.b16 %v636, %v635
      %v642 = vpack.c.b16 %v638, %v637
      %v648 = vsel %vm293, %v622, 0
      %v651 = vsel %vm293, %v621, 0
      %653 = vmatprep.subr.bf16.mxu0 0
      %654 = vmatpush1.bf16.msra.mxu0 %v639
      %655 = vmatprep.subr.bf16.mxu0 0
      %656 = vmatpush1.bf16.msra.mxu0 %v640
      %657 = vmatprep.subr.bf16.mxu0 0
      %658 = vmatpush1.bf16.msra.mxu0 %v641
      %659 = vmatprep.subr.bf16.mxu0 0
      %660 = vmatpush1.bf16.msra.mxu0 %v642
      %661 = vmatprep.subr.bf16.mxu0 0
      %662 = vmatpush1.bf16.msra.mxu0 0
      %663 = vmatprep.subr.bf16.mxu0 0
      %664 = vmatpush1.bf16.msra.mxu0 0
      %665 = vmatprep.subr.bf16.mxu0 0
      %666 = vmatpush1.bf16.msra.mxu0 0
      %667 = vmatprep.subr.bf16.mxu0 0
      %668 = vmatpush1.bf16.msra.mxu0 0
      %669 = vmatprep.subr.bf16.mxu0 0
      %670 = vmatpush1.bf16.msra.mxu0 0
      %671 = vmatprep.subr.bf16.mxu0 0
      %672 = vmatpush1.bf16.msra.mxu0 0
      %673 = vmatprep.subr.bf16.mxu0 0
      %674 = vmatpush1.bf16.msra.mxu0 0
      %675 = vmatprep.subr.bf16.mxu0 0
      %676 = vmatpush1.bf16.msra.mxu0 0
      %677 = vmatprep.subr.bf16.mxu0 0
      %678 = vmatpush1.bf16.msra.mxu0 0
      %679 = vmatprep.subr.bf16.mxu0 0
      %680 = vmatpush1.bf16.msra.mxu0 0
      %681 = vmatprep.subr.bf16.mxu0 0
      %682 = vmatpush1.bf16.msra.mxu0 0
      %683 = vmatprep.subr.bf16.mxu0 0
      %684 = vmatpush1.bf16.msra.mxu0 0
      %685 = vmatprep.mubr.bf16.mxu0 0
      %686 = vmatmul.mubr.bf16.gmra.mrb[0].mxu0 %v648
      %v687 = vpop.f32.mrb[0].mxu0
      %v688 = vadd.f32 0.0, %v687
      %v689 = vpop.f32.mrb[0].mxu0
      %v690 = vpop.f32.mrb[0].mxu0
      %v691 = vadd.f32 0.0, %v690
      %v692 = vpop.f32.mrb[0].mxu0
      %693 = vmatprep.mubr.bf16.mxu0 0
      %694 = vmatmul.mubr.bf16.gmra.mrb[0].mxu0 %v651
      %v695 = vpop.f32.mrb[0].mxu0
      %v696 = vadd.f32 0.0, %v695
      %v697 = vpop.f32.mrb[0].mxu0
      %v698 = vpop.f32.mrb[0].mxu0
      %v699 = vpop.f32.mrb[0].mxu0
      %700 = vdwg.mxu0
      %v701 = vld [vmem:[#allocation2] sm:$0xff]
      %v702 = vld [vmem:[#allocation2 + $0x8] sm:$0xff]
      %v703 = vld [vmem:[#allocation2 + $0x10] sm:$0x3]
      %v704 = vadd.f32 %v701, %v688
      %v705 = vadd.f32 %v702, %v691
      %v706 = vadd.f32 %v703, %v696
      %707 = vst [vmem:[#allocation2] sm:$0xff] %v704
      %708 = vst [vmem:[#allocation2 + $0x8] sm:$0xff] %v705
      %709 = vst [vmem:[#allocation2 + $0x10] sm:$0x3] %v706
      %v710 = vld [vmem:[%s233] sm:$0x8]
      %v711 = vld [vmem:[%s233 + $0x4] sm:$0xf]
      %v712 = vld [vmem:[%s233 + $0x8] sm:$0xf]
      %s713 = scalar_lea.vmem %s237, 128
      %v714 = vld [vmem:[%s713] sm:$0xf]
      %v715 = vld [vmem:[%s713 + $0x4] sm:$0xf]
      %v716 = vld [vmem:[%s713 + $0x8] sm:$0xf]
      %v717 = vld [vmem:[%s713 + $0xc] sm:$0xf]
      %v718 = vld [vmem:[%s713 + $0x10] sm:$0xf]
      %v719 = vld [vmem:[%s713 + $0x14] sm:$0xf]
      %v720 = vld [vmem:[%s713 + $0x18] sm:$0xf]
      %v721 = vld [vmem:[%s713 + $0x1c] sm:$0xf]
      %v725 = vunpack.c.l.b16 %v710
      %v726 = vunpack.c.l.b16 %v711
      %v727 = vunpack.c.l.b16 %v712
      %v728 = vpack.c.b16 %v726, %v725
      %v729 = vpack.c.b16 %v727, %v727
      %vm730 = vcmask 1044480
      %v731 = vrot.slane %v728, 3
      %v732 = vrot.slane %v729, 3
      %v733 = vsel %vm730, %v731, %v732
      %v742 = vunpack.c.l.b16 %v714
      %v743 = vunpack.c.l.b16 %v715
      %v744 = vunpack.c.l.b16 %v716
      %v745 = vunpack.c.l.b16 %v717
      %v746 = vunpack.c.l.b16 %v718
      %v747 = vunpack.c.l.b16 %v719
      %v748 = vunpack.c.l.b16 %v720
      %v749 = vunpack.c.l.b16 %v721
      %v750 = vpack.c.b16 %v743, %v742
      %v751 = vpack.c.b16 %v745, %v744
      %v752 = vpack.c.b16 %v747, %v746
      %v753 = vpack.c.b16 %v749, %v748
      %v759 = vsel %vm293, %v733, 0
      %v762 = vsel %vm293, %v732, 0
      %764 = vmatprep.subr.bf16.mxu0 0
      %765 = vmatpush1.bf16.msra.mxu0 %v750
      %766 = vmatprep.subr.bf16.mxu0 0
      %767 = vmatpush1.bf16.msra.mxu0 %v751
      %768 = vmatprep.subr.bf16.mxu0 0
      %769 = vmatpush1.bf16.msra.mxu0 %v752
      %770 = vmatprep.subr.bf16.mxu0 0
      %771 = vmatpush1.bf16.msra.mxu0 %v753
      %772 = vmatprep.subr.bf16.mxu0 0
      %773 = vmatpush1.bf16.msra.mxu0 0
      %774 = vmatprep.subr.bf16.mxu0 0
      %775 = vmatpush1.bf16.msra.mxu0 0
      %776 = vmatprep.subr.bf16.mxu0 0
      %777 = vmatpush1.bf16.msra.mxu0 0
      %778 = vmatprep.subr.bf16.mxu0 0
      %779 = vmatpush1.bf16.msra.mxu0 0
      %780 = vmatprep.subr.bf16.mxu0 0
      %781 = vmatpush1.bf16.msra.mxu0 0
      %782 = vmatprep.subr.bf16.mxu0 0
      %783 = vmatpush1.bf16.msra.mxu0 0
      %784 = vmatprep.subr.bf16.mxu0 0
      %785 = vmatpush1.bf16.msra.mxu0 0
      %786 = vmatprep.subr.bf16.mxu0 0
      %787 = vmatpush1.bf16.msra.mxu0 0
      %788 = vmatprep.subr.bf16.mxu0 0
      %789 = vmatpush1.bf16.msra.mxu0 0
      %790 = vmatprep.subr.bf16.mxu0 0
      %791 = vmatpush1.bf16.msra.mxu0 0
      %792 = vmatprep.subr.bf16.mxu0 0
      %793 = vmatpush1.bf16.msra.mxu0 0
      %794 = vmatprep.subr.bf16.mxu0 0
      %795 = vmatpush1.bf16.msra.mxu0 0
      %796 = vmatprep.mubr.bf16.mxu0 0
      %797 = vmatmul.mubr.bf16.gmra.mrb[0].mxu0 %v759
      %v798 = vpop.f32.mrb[0].mxu0
      %v799 = vadd.f32 0.0, %v798
      %v800 = vpop.f32.mrb[0].mxu0
      %v801 = vpop.f32.mrb[0].mxu0
      %v802 = vadd.f32 0.0, %v801
      %v803 = vpop.f32.mrb[0].mxu0
      %804 = vmatprep.mubr.bf16.mxu0 0
      %805 = vmatmul.mubr.bf16.gmra.mrb[0].mxu0 %v762
      %v806 = vpop.f32.mrb[0].mxu0
      %v807 = vadd.f32 0.0, %v806
      %v808 = vpop.f32.mrb[0].mxu0
      %v809 = vpop.f32.mrb[0].mxu0
      %v810 = vpop.f32.mrb[0].mxu0
      %811 = vdwg.mxu0
      %v812 = vld [vmem:[#allocation2] sm:$0xff]
      %v813 = vld [vmem:[#allocation2 + $0x8] sm:$0xff]
      %v814 = vld [vmem:[#allocation2 + $0x10] sm:$0x3]
      %v815 = vadd.f32 %v812, %v799
      %v816 = vadd.f32 %v813, %v802
      %v817 = vadd.f32 %v814, %v807
      %818 = vst [vmem:[#allocation2] sm:$0xff] %v815
      %819 = vst [vmem:[#allocation2 + $0x8] sm:$0xff] %v816
      %820 = vst [vmem:[#allocation2 + $0x10] sm:$0x3] %v817
      %v821 = vld [vmem:[%s233] sm:$0x8]
      %v822 = vld [vmem:[%s233 + $0x4] sm:$0xf]
      %v823 = vld [vmem:[%s233 + $0x8] sm:$0xf]
      %v824 = vld [vmem:[%s233 + $0xc] sm:$0x1]
      %s825 = scalar_lea.vmem %s237, 160
      %v826 = vld [vmem:[%s825] sm:$0xf]
      %v827 = vld [vmem:[%s825 + $0x4] sm:$0xf]
      %v828 = vld [vmem:[%s825 + $0x8] sm:$0xf]
      %v829 = vld [vmem:[%s825 + $0xc] sm:$0xf]
      %v830 = vld [vmem:[%s825 + $0x10] sm:$0xf]
      %v831 = vld [vmem:[%s825 + $0x14] sm:$0xf]
      %v832 = vld [vmem:[%s825 + $0x18] sm:$0xf]
      %v833 = vld [vmem:[%s825 + $0x1c] sm:$0xf]
      %v838 = vunpack.c.l.b16 %v821
      %v839 = vunpack.c.l.b16 %v822
      %v840 = vunpack.c.l.b16 %v823
      %v841 = vunpack.c.l.b16 %v824
      %v842 = vpack.c.b16 %v839, %v838
      %v843 = vpack.c.b16 %v841, %v840
      %vm844 = vsmask.f32 4352
      %v846 = vshrl.u32 %v842, 16
      %v848 = vrot.slane %v846, 3
      %v849 = vshll.u32 %v842, 16
      %v851 = vrot.slane %v849, 4
      %v852 = vor.u32 %v848, %v851
      %v854 = vshrl.u32 %v843, 16
      %v856 = vrot.slane %v854, 3
      %v857 = vshll.u32 %v843, 16
      %v859 = vrot.slane %v857, 4
      %v860 = vor.u32 %v856, %v859
      %v861 = vsel %vm844, %v852, %v860
      %v870 = vunpack.c.l.b16 %v826
      %v871 = vunpack.c.l.b16 %v827
      %v872 = vunpack.c.l.b16 %v828
      %v873 = vunpack.c.l.b16 %v829
      %v874 = vunpack.c.l.b16 %v830
      %v875 = vunpack.c.l.b16 %v831
      %v876 = vunpack.c.l.b16 %v832
      %v877 = vunpack.c.l.b16 %v833
      %v878 = vpack.c.b16 %v871, %v870
      %v879 = vpack.c.b16 %v873, %v872
      %v880 = vpack.c.b16 %v875, %v874
      %v881 = vpack.c.b16 %v877, %v876
      %v887 = vsel %vm293, %v861, 0
      %v890 = vsel %vm293, %v860, 0
      %892 = vmatprep.subr.bf16.mxu0 0
      %893 = vmatpush1.bf16.msra.mxu0 %v878
      %894 = vmatprep.subr.bf16.mxu0 0
      %895 = vmatpush1.bf16.msra.mxu0 %v879
      %896 = vmatprep.subr.bf16.mxu0 0
      %897 = vmatpush1.bf16.msra.mxu0 %v880
      %898 = vmatprep.subr.bf16.mxu0 0
      %899 = vmatpush1.bf16.msra.mxu0 %v881
      %900 = vmatprep.subr.bf16.mxu0 0
      %901 = vmatpush1.bf16.msra.mxu0 0
      %902 = vmatprep.subr.bf16.mxu0 0
      %903 = vmatpush1.bf16.msra.mxu0 0
      %904 = vmatprep.subr.bf16.mxu0 0
      %905 = vmatpush1.bf16.msra.mxu0 0
      %906 = vmatprep.subr.bf16.mxu0 0
      %907 = vmatpush1.bf16.msra.mxu0 0
      %908 = vmatprep.subr.bf16.mxu0 0
      %909 = vmatpush1.bf16.msra.mxu0 0
      %910 = vmatprep.subr.bf16.mxu0 0
      %911 = vmatpush1.bf16.msra.mxu0 0
      %912 = vmatprep.subr.bf16.mxu0 0
      %913 = vmatpush1.bf16.msra.mxu0 0
      %914 = vmatprep.subr.bf16.mxu0 0
      %915 = vmatpush1.bf16.msra.mxu0 0
      %916 = vmatprep.subr.bf16.mxu0 0
      %917 = vmatpush1.bf16.msra.mxu0 0
      %918 = vmatprep.subr.bf16.mxu0 0
      %919 = vmatpush1.bf16.msra.mxu0 0
      %920 = vmatprep.subr.bf16.mxu0 0
      %921 = vmatpush1.bf16.msra.mxu0 0
      %922 = vmatprep.subr.bf16.mxu0 0
      %923 = vmatpush1.bf16.msra.mxu0 0
      %924 = vmatprep.mubr.bf16.mxu0 0
      %925 = vmatmul.mubr.bf16.gmra.mrb[0].mxu0 %v887
      %v926 = vpop.f32.mrb[0].mxu0
      %v927 = vadd.f32 0.0, %v926
      %v928 = vpop.f32.mrb[0].mxu0
      %v929 = vpop.f32.mrb[0].mxu0
      %v930 = vadd.f32 0.0, %v929
      %v931 = vpop.f32.mrb[0].mxu0
      %932 = vmatprep.mubr.bf16.mxu0 0
      %933 = vmatmul.mubr.bf16.gmra.mrb[0].mxu0 %v890
      %v934 = vpop.f32.mrb[0].mxu0
      %v935 = vadd.f32 0.0, %v934
      %v936 = vpop.f32.mrb[0].mxu0
      %v937 = vpop.f32.mrb[0].mxu0
      %v938 = vpop.f32.mrb[0].mxu0
      %939 = vdwg.mxu0
      %v940 = vld [vmem:[#allocation2] sm:$0xff]
      %v941 = vld [vmem:[#allocation2 + $0x8] sm:$0xff]
      %v942 = vld [vmem:[#allocation2 + $0x10] sm:$0x3]
      %v943 = vadd.f32 %v940, %v927
      %v944 = vadd.f32 %v941, %v930
      %v945 = vadd.f32 %v942, %v935
      %946 = vst [vmem:[#allocation2] sm:$0xff] %v943
      %947 = vst [vmem:[#allocation2 + $0x8] sm:$0xff] %v944
      %948 = vst [vmem:[#allocation2 + $0x10] sm:$0x3] %v945
      %v949 = vld [vmem:[%s233 + $0x4] sm:$0xf]
      %v950 = vld [vmem:[%s233 + $0x8] sm:$0xf]
      %v951 = vld [vmem:[%s233 + $0xc] sm:$0x1]
      %s952 = scalar_lea.vmem %s237, 192
      %v953 = vld [vmem:[%s952] sm:$0xf]
      %v954 = vld [vmem:[%s952 + $0x4] sm:$0xf]
      %v955 = vld [vmem:[%s952 + $0x8] sm:$0xf]
      %v956 = vld [vmem:[%s952 + $0xc] sm:$0xf]
      %v957 = vld [vmem:[%s952 + $0x10] sm:$0xf]
      %v958 = vld [vmem:[%s952 + $0x14] sm:$0xf]
      %v959 = vld [vmem:[%s952 + $0x18] sm:$0xf]
      %v960 = vld [vmem:[%s952 + $0x1c] sm:$0xf]
      %v964 = vunpack.c.l.b16 %v949
      %v965 = vunpack.c.l.b16 %v950
      %v966 = vunpack.c.l.b16 %v951
      %v967 = vpack.c.b16 %v965, %v964
      %v968 = vpack.c.b16 %v966, %v966
      %v977 = vunpack.c.l.b16 %v953
      %v978 = vunpack.c.l.b16 %v954
      %v979 = vunpack.c.l.b16 %v955
      %v980 = vunpack.c.l.b16 %v956
      %v981 = vunpack.c.l.b16 %v957
      %v982 = vunpack.c.l.b16 %v958
      %v983 = vunpack.c.l.b16 %v959
      %v984 = vunpack.c.l.b16 %v960
      %v985 = vpack.c.b16 %v978, %v977
      %v986 = vpack.c.b16 %v980, %v979
      %v987 = vpack.c.b16 %v982, %v981
      %v988 = vpack.c.b16 %v984, %v983
      %v994 = vsel %vm293, %v967, 0
      %v997 = vsel %vm293, %v968, 0
      %999 = vmatprep.subr.bf16.mxu0 0
      %1000 = vmatpush1.bf16.msra.mxu0 %v985
      %1001 = vmatprep.subr.bf16.mxu0 0
      %1002 = vmatpush1.bf16.msra.mxu0 %v986
      %1003 = vmatprep.subr.bf16.mxu0 0
      %1004 = vmatpush1.bf16.msra.mxu0 %v987
      %1005 = vmatprep.subr.bf16.mxu0 0
      %1006 = vmatpush1.bf16.msra.mxu0 %v988
      %1007 = vmatprep.subr.bf16.mxu0 0
      %1008 = vmatpush1.bf16.msra.mxu0 0
      %1009 = vmatprep.subr.bf16.mxu0 0
      %1010 = vmatpush1.bf16.msra.mxu0 0
      %1011 = vmatprep.subr.bf16.mxu0 0
      %1012 = vmatpush1.bf16.msra.mxu0 0
      %1013 = vmatprep.subr.bf16.mxu0 0
      %1014 = vmatpush1.bf16.msra.mxu0 0
      %1015 = vmatprep.subr.bf16.mxu0 0
      %1016 = vmatpush1.bf16.msra.mxu0 0
      %1017 = vmatprep.subr.bf16.mxu0 0
      %1018 = vmatpush1.bf16.msra.mxu0 0
      %1019 = vmatprep.subr.bf16.mxu0 0
      %1020 = vmatpush1.bf16.msra.mxu0 0
      %1021 = vmatprep.subr.bf16.mxu0 0
      %1022 = vmatpush1.bf16.msra.mxu0 0
      %1023 = vmatprep.subr.bf16.mxu0 0
      %1024 = vmatpush1.bf16.msra.mxu0 0
      %1025 = vmatprep.subr.bf16.mxu0 0
      %1026 = vmatpush1.bf16.msra.mxu0 0
      %1027 = vmatprep.subr.bf16.mxu0 0
      %1028 = vmatpush1.bf16.msra.mxu0 0
      %1029 = vmatprep.subr.bf16.mxu0 0
      %1030 = vmatpush1.bf16.msra.mxu0 0
      %1031 = vmatprep.mubr.bf16.mxu0 0
      %1032 = vmatmul.mubr.bf16.gmra.mrb[0].mxu0 %v994
      %v1033 = vpop.f32.mrb[0].mxu0
      %v1034 = vadd.f32 0.0, %v1033
      %v1035 = vpop.f32.mrb[0].mxu0
      %v1036 = vpop.f32.mrb[0].mxu0
      %v1037 = vadd.f32 0.0, %v1036
      %v1038 = vpop.f32.mrb[0].mxu0
      %1039 = vmatprep.mubr.bf16.mxu0 0
      %1040 = vmatmul.mubr.bf16.gmra.mrb[0].mxu0 %v997
      %v1041 = vpop.f32.mrb[0].mxu0
      %v1042 = vadd.f32 0.0, %v1041
      %v1043 = vpop.f32.mrb[0].mxu0
      %v1044 = vpop.f32.mrb[0].mxu0
      %v1045 = vpop.f32.mrb[0].mxu0
      %1046 = vdwg.mxu0
      %v1047 = vld [vmem:[#allocation2] sm:$0xff]
      %v1048 = vld [vmem:[#allocation2 + $0x8] sm:$0xff]
      %v1049 = vld [vmem:[#allocation2 + $0x10] sm:$0x3]
      %v1050 = vadd.f32 %v1047, %v1034
      %v1051 = vadd.f32 %v1048, %v1037
      %v1052 = vadd.f32 %v1049, %v1042
      %1053 = vst [vmem:[#allocation2] sm:$0xff] %v1050
      %1054 = vst [vmem:[#allocation2 + $0x8] sm:$0xff] %v1051
      %1055 = vst [vmem:[#allocation2 + $0x10] sm:$0x3] %v1052
      %v1056 = vld [vmem:[%s233 + $0x4] sm:$0xf]
      %v1057 = vld [vmem:[%s233 + $0x8] sm:$0xf]
      %v1058 = vld [vmem:[%s233 + $0xc] sm:$0x3]
      %s1059 = scalar_lea.vmem %s237, 224
      %v1060 = vld [vmem:[%s1059] sm:$0xf]
      %v1061 = vld [vmem:[%s1059 + $0x4] sm:$0xf]
      %v1062 = vld [vmem:[%s1059 + $0x8] sm:$0xf]
      %v1063 = vld [vmem:[%s1059 + $0xc] sm:$0xf]
      %v1064 = vld [vmem:[%s1059 + $0x10] sm:$0xf]
      %v1065 = vld [vmem:[%s1059 + $0x14] sm:$0xf]
      %v1066 = vld [vmem:[%s1059 + $0x18] sm:$0xf]
      %v1067 = vld [vmem:[%s1059 + $0x1c] sm:$0xf]
      %v1071 = vunpack.c.l.b16 %v1056
      %v1072 = vunpack.c.l.b16 %v1057
      %v1073 = vunpack.c.l.b16 %v1058
      %v1074 = vpack.c.b16 %v1072, %v1071
      %v1075 = vpack.c.b16 %v1073, %v1073
      %v1077 = vshrl.u32 %v1074, 16
      %v1079 = vshll.u32 %v1074, 16
      %v1081 = vrot.slane %v1079, 1
      %v1082 = vor.u32 %v1077, %v1081
      %v1084 = vshll.u32 %v1075, 16
      %v1086 = vrot.slane %v1084, 1
      %v1087 = vsel %vm371, %v1082, %v1086
      %v1088 = vshrl.u32 %v1075, 16
      %v1090 = vor.u32 %v1088, %v1086
      %v1099 = vunpack.c.l.b16 %v1060
      %v1100 = vunpack.c.l.b16 %v1061
      %v1101 = vunpack.c.l.b16 %v1062
      %v1102 = vunpack.c.l.b16 %v1063
      %v1103 = vunpack.c.l.b16 %v1064
      %v1104 = vunpack.c.l.b16 %v1065
      %v1105 = vunpack.c.l.b16 %v1066
      %v1106 = vunpack.c.l.b16 %v1067
      %v1107 = vpack.c.b16 %v1100, %v1099
      %v1108 = vpack.c.b16 %v1102, %v1101
      %v1109 = vpack.c.b16 %v1104, %v1103
      %v1110 = vpack.c.b16 %v1106, %v1105
      %v1116 = vsel %vm293, %v1087, 0
      %v1119 = vsel %vm293, %v1090, 0
      %1121 = vmatprep.subr.bf16.mxu0 0
      %1122 = vmatpush1.bf16.msra.mxu0 %v1107
      %1123 = vmatprep.subr.bf16.mxu0 0
      %1124 = vmatpush1.bf16.msra.mxu0 %v1108
      %1125 = vmatprep.subr.bf16.mxu0 0
      %1126 = vmatpush1.bf16.msra.mxu0 %v1109
      %1127 = vmatprep.subr.bf16.mxu0 0
      %1128 = vmatpush1.bf16.msra.mxu0 %v1110
      %1129 = vmatprep.subr.bf16.mxu0 0
      %1130 = vmatpush1.bf16.msra.mxu0 0
      %1131 = vmatprep.subr.bf16.mxu0 0
      %1132 = vmatpush1.bf16.msra.mxu0 0
      %1133 = vmatprep.subr.bf16.mxu0 0
      %1134 = vmatpush1.bf16.msra.mxu0 0
      %1135 = vmatprep.subr.bf16.mxu0 0
      %1136 = vmatpush1.bf16.msra.mxu0 0
      %1137 = vmatprep.subr.bf16.mxu0 0
      %1138 = vmatpush1.bf16.msra.mxu0 0
      %1139 = vmatprep.subr.bf16.mxu0 0
      %1140 = vmatpush1.bf16.msra.mxu0 0
      %1141 = vmatprep.subr.bf16.mxu0 0
      %1142 = vmatpush1.bf16.msra.mxu0 0
      %1143 = vmatprep.subr.bf16.mxu0 0
      %1144 = vmatpush1.bf16.msra.mxu0 0
      %1145 = vmatprep.subr.bf16.mxu0 0
      %1146 = vmatpush1.bf16.msra.mxu0 0
      %1147 = vmatprep.subr.bf16.mxu0 0
      %1148 = vmatpush1.bf16.msra.mxu0 0
      %1149 = vmatprep.subr.bf16.mxu0 0
      %1150 = vmatpush1.bf16.msra.mxu0 0
      %1151 = vmatprep.subr.bf16.mxu0 0
      %1152 = vmatpush1.bf16.msra.mxu0 0
      %1153 = vmatprep.mubr.bf16.mxu0 0
      %1154 = vmatmul.mubr.bf16.gmra.mrb[0].mxu0 %v1116
      %v1155 = vpop.f32.mrb[0].mxu0
      %v1156 = vadd.f32 0.0, %v1155
      %v1157 = vpop.f32.mrb[0].mxu0
      %v1158 = vpop.f32.mrb[0].mxu0
      %v1159 = vadd.f32 0.0, %v1158
      %v1160 = vpop.f32.mrb[0].mxu0
      %1161 = vmatprep.mubr.bf16.mxu0 0
      %1162 = vmatmul.mubr.bf16.gmra.mrb[0].mxu0 %v1119
      %v1163 = vpop.f32.mrb[0].mxu0
      %v1164 = vadd.f32 0.0, %v1163
      %v1165 = vpop.f32.mrb[0].mxu0
      %v1166 = vpop.f32.mrb[0].mxu0
      %v1167 = vpop.f32.mrb[0].mxu0
      %1168 = vdwg.mxu0
      %v1169 = vld [vmem:[#allocation2] sm:$0xff]
      %v1170 = vld [vmem:[#allocation2 + $0x8] sm:$0xff]
      %v1171 = vld [vmem:[#allocation2 + $0x10] sm:$0x3]
      %v1172 = vadd.f32 %v1169, %v1156
      %v1173 = vadd.f32 %v1170, %v1159
      %v1174 = vadd.f32 %v1171, %v1164
      %1175 = vst [vmem:[#allocation2] sm:$0xff] %v1172
      %1176 = vst [vmem:[#allocation2 + $0x8] sm:$0xff] %v1173
      %1177 = vst [vmem:[#allocation2 + $0x10] sm:$0x3] %v1174
      %v1178 = vld [vmem:[%s233 + $0x4] sm:$0xc]
      %v1179 = vld [vmem:[%s233 + $0x8] sm:$0xf]
      %v1180 = vld [vmem:[%s233 + $0xc] sm:$0x7]
      %s1181 = scalar_lea.vmem %s237, 256
      %v1182 = vld [vmem:[%s1181] sm:$0xf]
      %v1183 = vld [vmem:[%s1181 + $0x4] sm:$0xf]
      %v1184 = vld [vmem:[%s1181 + $0x8] sm:$0xf]
      %v1185 = vld [vmem:[%s1181 + $0xc] sm:$0xf]
      %v1186 = vld [vmem:[%s1181 + $0x10] sm:$0xf]
      %v1187 = vld [vmem:[%s1181 + $0x14] sm:$0xf]
      %v1188 = vld [vmem:[%s1181 + $0x18] sm:$0xf]
      %v1189 = vld [vmem:[%s1181 + $0x1c] sm:$0xf]
      %v1193 = vunpack.c.l.b16 %v1178
      %v1194 = vunpack.c.l.b16 %v1179
      %v1195 = vunpack.c.l.b16 %v1180
      %v1196 = vpack.c.b16 %v1194, %v1193
      %v1197 = vpack.c.b16 %v1195, %v1195
      %vm1198 = vcmask 1045504
      %v1199 = vrot.slane %v1196, 2
      %v1200 = vrot.slane %v1197, 2
      %v1201 = vsel %vm1198, %v1199, %v1200
      %v1210 = vunpack.c.l.b16 %v1182
      %v1211 = vunpack.c.l.b16 %v1183
      %v1212 = vunpack.c.l.b16 %v1184
      %v1213 = vunpack.c.l.b16 %v1185
      %v1214 = vunpack.c.l.b16 %v1186
      %v1215 = vunpack.c.l.b16 %v1187
      %v1216 = vunpack.c.l.b16 %v1188
      %v1217 = vunpack.c.l.b16 %v1189
      %v1218 = vpack.c.b16 %v1211, %v1210
      %v1219 = vpack.c.b16 %v1213, %v1212
      %v1220 = vpack.c.b16 %v1215, %v1214
      %v1221 = vpack.c.b16 %v1217, %v1216
      %v1227 = vsel %vm293, %v1201, 0
      %v1230 = vsel %vm293, %v1200, 0
      %1232 = vmatprep.subr.bf16.mxu0 0
      %1233 = vmatpush1.bf16.msra.mxu0 %v1218
      %1234 = vmatprep.subr.bf16.mxu0 0
      %1235 = vmatpush1.bf16.msra.mxu0 %v1219
      %1236 = vmatprep.subr.bf16.mxu0 0
      %1237 = vmatpush1.bf16.msra.mxu0 %v1220
      %1238 = vmatprep.subr.bf16.mxu0 0
      %1239 = vmatpush1.bf16.msra.mxu0 %v1221
      %1240 = vmatprep.subr.bf16.mxu0 0
      %1241 = vmatpush1.bf16.msra.mxu0 0
      %1242 = vmatprep.subr.bf16.mxu0 0
      %1243 = vmatpush1.bf16.msra.mxu0 0
      %1244 = vmatprep.subr.bf16.mxu0 0
      %1245 = vmatpush1.bf16.msra.mxu0 0
      %1246 = vmatprep.subr.bf16.mxu0 0
      %1247 = vmatpush1.bf16.msra.mxu0 0
      %1248 = vmatprep.subr.bf16.mxu0 0
      %1249 = vmatpush1.bf16.msra.mxu0 0
      %1250 = vmatprep.subr.bf16.mxu0 0
      %1251 = vmatpush1.bf16.msra.mxu0 0
      %1252 = vmatprep.subr.bf16.mxu0 0
      %1253 = vmatpush1.bf16.msra.mxu0 0
      %1254 = vmatprep.subr.bf16.mxu0 0
      %1255 = vmatpush1.bf16.msra.mxu0 0
      %1256 = vmatprep.subr.bf16.mxu0 0
      %1257 = vmatpush1.bf16.msra.mxu0 0
      %1258 = vmatprep.subr.bf16.mxu0 0
      %1259 = vmatpush1.bf16.msra.mxu0 0
      %1260 = vmatprep.subr.bf16.mxu0 0
      %1261 = vmatpush1.bf16.msra.mxu0 0
      %1262 = vmatprep.subr.bf16.mxu0 0
      %1263 = vmatpush1.bf16.msra.mxu0 0
      %1264 = vmatprep.mubr.bf16.mxu0 0
      %1265 = vmatmul.mubr.bf16.gmra.mrb[0].mxu0 %v1227
      %v1266 = vpop.f32.mrb[0].mxu0
      %v1267 = vadd.f32 0.0, %v1266
      %v1268 = vpop.f32.mrb[0].mxu0
      %v1269 = vpop.f32.mrb[0].mxu0
      %v1270 = vadd.f32 0.0, %v1269
      %v1271 = vpop.f32.mrb[0].mxu0
      %1272 = vmatprep.mubr.bf16.mxu0 0
      %1273 = vmatmul.mubr.bf16.gmra.mrb[0].mxu0 %v1230
      %v1274 = vpop.f32.mrb[0].mxu0
      %v1275 = vadd.f32 0.0, %v1274
      %v1276 = vpop.f32.mrb[0].mxu0
      %v1277 = vpop.f32.mrb[0].mxu0
      %v1278 = vpop.f32.mrb[0].mxu0
      %1279 = vdwg.mxu0
      %v1280 = vld [vmem:[#allocation2] sm:$0xff]
      %v1281 = vld [vmem:[#allocation2 + $0x8] sm:$0xff]
      %v1282 = vld [vmem:[#allocation2 + $0x10] sm:$0x3]
      %v1283 = vadd.f32 %v1280, %v1267
      %v1284 = vadd.f32 %v1281, %v1270
      %v1285 = vadd.f32 %v1282, %v1275
      %1286 = vst [vmem:[#allocation2] sm:$0xff] %v1283
      %1287 = vst [vmem:[#allocation2 + $0x8] sm:$0xff] %v1284
      %1288 = vst [vmem:[#allocation2 + $0x10] sm:$0x3] %v1285
      %v1289 = vld [vmem:[%s233 + $0x4] sm:$0xc]
      %v1290 = vld [vmem:[%s233 + $0x8] sm:$0xf]
      %v1291 = vld [vmem:[%s233 + $0xc] sm:$0xf]
      %s1292 = scalar_lea.vmem %s237, 288
      %v1293 = vld [vmem:[%s1292] sm:$0xf]
      %v1294 = vld [vmem:[%s1292 + $0x4] sm:$0xf]
      %v1295 = vld [vmem:[%s1292 + $0x8] sm:$0xf]
      %v1296 = vld [vmem:[%s1292 + $0xc] sm:$0xf]
      %v1297 = vld [vmem:[%s1292 + $0x10] sm:$0xf]
      %v1298 = vld [vmem:[%s1292 + $0x14] sm:$0xf]
      %v1299 = vld [vmem:[%s1292 + $0x18] sm:$0xf]
      %v1300 = vld [vmem:[%s1292 + $0x1c] sm:$0xf]
      %v1304 = vunpack.c.l.b16 %v1289
      %v1305 = vunpack.c.l.b16 %v1290
      %v1306 = vunpack.c.l.b16 %v1291
      %v1307 = vpack.c.b16 %v1305, %v1304
      %v1308 = vpack.c.b16 %v1306, %v1306
      %vm1309 = vsmask.f32 5376
      %v1311 = vshrl.u32 %v1307, 16
      %v1313 = vrot.slane %v1311, 2
      %v1314 = vshll.u32 %v1307, 16
      %v1316 = vrot.slane %v1314, 3
      %v1317 = vor.u32 %v1313, %v1316
      %v1319 = vshrl.u32 %v1308, 16
      %v1321 = vrot.slane %v1319, 2
      %v1322 = vshll.u32 %v1308, 16
      %v1324 = vrot.slane %v1322, 3
      %v1325 = vor.u32 %v1321, %v1324
      %v1326 = vsel %vm1309, %v1317, %v1325
      %v1335 = vunpack.c.l.b16 %v1293
      %v1336 = vunpack.c.l.b16 %v1294
      %v1337 = vunpack.c.l.b16 %v1295
      %v1338 = vunpack.c.l.b16 %v1296
      %v1339 = vunpack.c.l.b16 %v1297
      %v1340 = vunpack.c.l.b16 %v1298
      %v1341 = vunpack.c.l.b16 %v1299
      %v1342 = vunpack.c.l.b16 %v1300
      %v1343 = vpack.c.b16 %v1336, %v1335
      %v1344 = vpack.c.b16 %v1338, %v1337
      %v1345 = vpack.c.b16 %v1340, %v1339
      %v1346 = vpack.c.b16 %v1342, %v1341
      %v1352 = vsel %vm293, %v1326, 0
      %v1355 = vsel %vm293, %v1325, 0
      %1357 = vmatprep.subr.bf16.mxu0 0
      %1358 = vmatpush1.bf16.msra.mxu0 %v1343
      %1359 = vmatprep.subr.bf16.mxu0 0
      %1360 = vmatpush1.bf16.msra.mxu0 %v1344
      %1361 = vmatprep.subr.bf16.mxu0 0
      %1362 = vmatpush1.bf16.msra.mxu0 %v1345
      %1363 = vmatprep.subr.bf16.mxu0 0
      %1364 = vmatpush1.bf16.msra.mxu0 %v1346
      %1365 = vmatprep.subr.bf16.mxu0 0
      %1366 = vmatpush1.bf16.msra.mxu0 0
      %1367 = vmatprep.subr.bf16.mxu0 0
      %1368 = vmatpush1.bf16.msra.mxu0 0
      %1369 = vmatprep.subr.bf16.mxu0 0
      %1370 = vmatpush1.bf16.msra.mxu0 0
      %1371 = vmatprep.subr.bf16.mxu0 0
      %1372 = vmatpush1.bf16.msra.mxu0 0
      %1373 = vmatprep.subr.bf16.mxu0 0
      %1374 = vmatpush1.bf16.msra.mxu0 0
      %1375 = vmatprep.subr.bf16.mxu0 0
      %1376 = vmatpush1.bf16.msra.mxu0 0
      %1377 = vmatprep.subr.bf16.mxu0 0
      %1378 = vmatpush1.bf16.msra.mxu0 0
      %1379 = vmatprep.subr.bf16.mxu0 0
      %1380 = vmatpush1.bf16.msra.mxu0 0
      %1381 = vmatprep.subr.bf16.mxu0 0
      %1382 = vmatpush1.bf16.msra.mxu0 0
      %1383 = vmatprep.subr.bf16.mxu0 0
      %1384 = vmatpush1.bf16.msra.mxu0 0
      %1385 = vmatprep.subr.bf16.mxu0 0
      %1386 = vmatpush1.bf16.msra.mxu0 0
      %1387 = vmatprep.subr.bf16.mxu0 0
      %1388 = vmatpush1.bf16.msra.mxu0 0
      %1389 = vmatprep.mubr.bf16.mxu0 0
      %1390 = vmatmul.mubr.bf16.gmra.mrb[0].mxu0 %v1352
      %v1391 = vpop.f32.mrb[0].mxu0
      %v1392 = vadd.f32 0.0, %v1391
      %v1393 = vpop.f32.mrb[0].mxu0
      %v1394 = vpop.f32.mrb[0].mxu0
      %v1395 = vadd.f32 0.0, %v1394
      %v1396 = vpop.f32.mrb[0].mxu0
      %1397 = vmatprep.mubr.bf16.mxu0 0
      %1398 = vmatmul.mubr.bf16.gmra.mrb[0].mxu0 %v1355
      %v1399 = vpop.f32.mrb[0].mxu0
      %v1400 = vadd.f32 0.0, %v1399
      %v1401 = vpop.f32.mrb[0].mxu0
      %v1402 = vpop.f32.mrb[0].mxu0
      %v1403 = vpop.f32.mrb[0].mxu0
      %1404 = vdwg.mxu0
      %v1405 = vld [vmem:[#allocation2] sm:$0xff]
      %v1406 = vld [vmem:[#allocation2 + $0x8] sm:$0xff]
      %v1407 = vld [vmem:[#allocation2 + $0x10] sm:$0x3]
      %v1408 = vadd.f32 %v1405, %v1392
      %v1409 = vadd.f32 %v1406, %v1395
      %v1410 = vadd.f32 %v1407, %v1400
      %1411 = vst [vmem:[#allocation2] sm:$0xff] %v1408
      %1412 = vst [vmem:[#allocation2 + $0x8] sm:$0xff] %v1409
      %1413 = vst [vmem:[#allocation2 + $0x10] sm:$0x3] %v1410
      %v1414 = vld [vmem:[%s233 + $0x4] sm:$0x8]
      %v1415 = vld [vmem:[%s233 + $0x8] sm:$0xf]
      %v1416 = vld [vmem:[%s233 + $0xc] sm:$0xf]
      %s1417 = scalar_lea.vmem %s237, 320
      %v1418 = vld [vmem:[%s1417] sm:$0xf]
      %v1419 = vld [vmem:[%s1417 + $0x4] sm:$0xf]
      %v1420 = vld [vmem:[%s1417 + $0x8] sm:$0xf]
      %v1421 = vld [vmem:[%s1417 + $0xc] sm:$0xf]
      %v1422 = vld [vmem:[%s1417 + $0x10] sm:$0xf]
      %v1423 = vld [vmem:[%s1417 + $0x14] sm:$0xf]
      %v1424 = vld [vmem:[%s1417 + $0x18] sm:$0xf]
      %v1425 = vld [vmem:[%s1417 + $0x1c] sm:$0xf]
      %v1429 = vunpack.c.l.b16 %v1414
      %v1430 = vunpack.c.l.b16 %v1415
      %v1431 = vunpack.c.l.b16 %v1416
      %v1432 = vpack.c.b16 %v1430, %v1429
      %v1433 = vpack.c.b16 %v1431, %v1431
      %v1434 = vrot.slane %v1432, 3
      %v1435 = vrot.slane %v1433, 3
      %v1436 = vsel %vm730, %v1434, %v1435
      %v1445 = vunpack.c.l.b16 %v1418
      %v1446 = vunpack.c.l.b16 %v1419
      %v1447 = vunpack.c.l.b16 %v1420
      %v1448 = vunpack.c.l.b16 %v1421
      %v1449 = vunpack.c.l.b16 %v1422
      %v1450 = vunpack.c.l.b16 %v1423
      %v1451 = vunpack.c.l.b16 %v1424
      %v1452 = vunpack.c.l.b16 %v1425
      %v1453 = vpack.c.b16 %v1446, %v1445
      %v1454 = vpack.c.b16 %v1448, %v1447
      %v1455 = vpack.c.b16 %v1450, %v1449
      %v1456 = vpack.c.b16 %v1452, %v1451
      %v1462 = vsel %vm293, %v1436, 0
      %v1465 = vsel %vm293, %v1435, 0
      %1467 = vmatprep.subr.bf16.mxu0 0
      %1468 = vmatpush1.bf16.msra.mxu0 %v1453
      %1469 = vmatprep.subr.bf16.mxu0 0
      %1470 = vmatpush1.bf16.msra.mxu0 %v1454
      %1471 = vmatprep.subr.bf16.mxu0 0
      %1472 = vmatpush1.bf16.msra.mxu0 %v1455
      %1473 = vmatprep.subr.bf16.mxu0 0
      %1474 = vmatpush1.bf16.msra.mxu0 %v1456
      %1475 = vmatprep.subr.bf16.mxu0 0
      %1476 = vmatpush1.bf16.msra.mxu0 0
      %1477 = vmatprep.subr.bf16.mxu0 0
      %1478 = vmatpush1.bf16.msra.mxu0 0
      %1479 = vmatprep.subr.bf16.mxu0 0
      %1480 = vmatpush1.bf16.msra.mxu0 0
      %1481 = vmatprep.subr.bf16.mxu0 0
      %1482 = vmatpush1.bf16.msra.mxu0 0
      %1483 = vmatprep.subr.bf16.mxu0 0
      %1484 = vmatpush1.bf16.msra.mxu0 0
      %1485 = vmatprep.subr.bf16.mxu0 0
      %1486 = vmatpush1.bf16.msra.mxu0 0
      %1487 = vmatprep.subr.bf16.mxu0 0
      %1488 = vmatpush1.bf16.msra.mxu0 0
      %1489 = vmatprep.subr.bf16.mxu0 0
      %1490 = vmatpush1.bf16.msra.mxu0 0
      %1491 = vmatprep.subr.bf16.mxu0 0
      %1492 = vmatpush1.bf16.msra.mxu0 0
      %1493 = vmatprep.subr.bf16.mxu0 0
      %1494 = vmatpush1.bf16.msra.mxu0 0
      %1495 = vmatprep.subr.bf16.mxu0 0
      %1496 = vmatpush1.bf16.msra.mxu0 0
      %1497 = vmatprep.subr.bf16.mxu0 0
      %1498 = vmatpush1.bf16.msra.mxu0 0
      %1499 = vmatprep.mubr.bf16.mxu0 0
      %1500 = vmatmul.mubr.bf16.gmra.mrb[0].mxu0 %v1462
      %v1501 = vpop.f32.mrb[0].mxu0
      %v1502 = vadd.f32 0.0, %v1501
      %v1503 = vpop.f32.mrb[0].mxu0
      %v1504 = vpop.f32.mrb[0].mxu0
      %v1505 = vadd.f32 0.0, %v1504
      %v1506 = vpop.f32.mrb[0].mxu0
      %1507 = vmatprep.mubr.bf16.mxu0 0
      %1508 = vmatmul.mubr.bf16.gmra.mrb[0].mxu0 %v1465
      %v1509 = vpop.f32.mrb[0].mxu0
      %v1510 = vadd.f32 0.0, %v1509
      %v1511 = vpop.f32.mrb[0].mxu0
      %v1512 = vpop.f32.mrb[0].mxu0
      %v1513 = vpop.f32.mrb[0].mxu0
      %1514 = vdwg.mxu0
      %v1515 = vld [vmem:[#allocation2] sm:$0xff]
      %v1516 = vld [vmem:[#allocation2 + $0x8] sm:$0xff]
      %v1517 = vld [vmem:[#allocation2 + $0x10] sm:$0x3]
      %v1518 = vadd.f32 %v1515, %v1502
      %v1519 = vadd.f32 %v1516, %v1505
      %v1520 = vadd.f32 %v1517, %v1510
      %1521 = vst [vmem:[#allocation2] sm:$0xff] %v1518
      %1522 = vst [vmem:[#allocation2 + $0x8] sm:$0xff] %v1519
      %1523 = vst [vmem:[#allocation2 + $0x10] sm:$0x3] %v1520
      %v1524 = vld [vmem:[%s233 + $0x4] sm:$0x8]
      %v1525 = vld [vmem:[%s233 + $0x8] sm:$0xf]
      %v1526 = vld [vmem:[%s233 + $0xc] sm:$0xf]
      %v1527 = vld [vmem:[%s233 + $0x10] sm:$0x1]
      %s1528 = scalar_lea.vmem %s237, 352
      %v1529 = vld [vmem:[%s1528] sm:$0xf]
      %v1530 = vld [vmem:[%s1528 + $0x4] sm:$0xf]
      %v1531 = vld [vmem:[%s1528 + $0x8] sm:$0xf]
      %v1532 = vld [vmem:[%s1528 + $0xc] sm:$0xf]
      %v1533 = vld [vmem:[%s1528 + $0x10] sm:$0xf]
      %v1534 = vld [vmem:[%s1528 + $0x14] sm:$0xf]
      %v1535 = vld [vmem:[%s1528 + $0x18] sm:$0xf]
      %v1536 = vld [vmem:[%s1528 + $0x1c] sm:$0xf]
      %v1541 = vunpack.c.l.b16 %v1524
      %v1542 = vunpack.c.l.b16 %v1525
      %v1543 = vunpack.c.l.b16 %v1526
      %v1544 = vunpack.c.l.b16 %v1527
      %v1545 = vpack.c.b16 %v1542, %v1541
      %v1546 = vpack.c.b16 %v1544, %v1543
      %v1548 = vshrl.u32 %v1545, 16
      %v1550 = vrot.slane %v1548, 3
      %v1551 = vshll.u32 %v1545, 16
      %v1553 = vrot.slane %v1551, 4
      %v1554 = vor.u32 %v1550, %v1553
      %v1556 = vshrl.u32 %v1546, 16
      %v1558 = vrot.slane %v1556, 3
      %v1559 = vshll.u32 %v1546, 16
      %v1561 = vrot.slane %v1559, 4
      %v1562 = vor.u32 %v1558, %v1561
      %v1563 = vsel %vm844, %v1554, %v1562
      %v1572 = vunpack.c.l.b16 %v1529
      %v1573 = vunpack.c.l.b16 %v1530
      %v1574 = vunpack.c.l.b16 %v1531
      %v1575 = vunpack.c.l.b16 %v1532
      %v1576 = vunpack.c.l.b16 %v1533
      %v1577 = vunpack.c.l.b16 %v1534
      %v1578 = vunpack.c.l.b16 %v1535
      %v1579 = vunpack.c.l.b16 %v1536
      %v1580 = vpack.c.b16 %v1573, %v1572
      %v1581 = vpack.c.b16 %v1575, %v1574
      %v1582 = vpack.c.b16 %v1577, %v1576
      %v1583 = vpack.c.b16 %v1579, %v1578
      %v1589 = vsel %vm293, %v1563, 0
      %v1592 = vsel %vm293, %v1562, 0
      %1594 = vmatprep.subr.bf16.mxu0 0
      %1595 = vmatpush1.bf16.msra.mxu0 %v1580
      %1596 = vmatprep.subr.bf16.mxu0 0
      %1597 = vmatpush1.bf16.msra.mxu0 %v1581
      %1598 = vmatprep.subr.bf16.mxu0 0
      %1599 = vmatpush1.bf16.msra.mxu0 %v1582
      %1600 = vmatprep.subr.bf16.mxu0 0
      %1601 = vmatpush1.bf16.msra.mxu0 %v1583
      %1602 = vmatprep.subr.bf16.mxu0 0
      %1603 = vmatpush1.bf16.msra.mxu0 0
      %1604 = vmatprep.subr.bf16.mxu0 0
      %1605 = vmatpush1.bf16.msra.mxu0 0
      %1606 = vmatprep.subr.bf16.mxu0 0
      %1607 = vmatpush1.bf16.msra.mxu0 0
      %1608 = vmatprep.subr.bf16.mxu0 0
      %1609 = vmatpush1.bf16.msra.mxu0 0
      %1610 = vmatprep.subr.bf16.mxu0 0
      %1611 = vmatpush1.bf16.msra.mxu0 0
      %1612 = vmatprep.subr.bf16.mxu0 0
      %1613 = vmatpush1.bf16.msra.mxu0 0
      %1614 = vmatprep.subr.bf16.mxu0 0
      %1615 = vmatpush1.bf16.msra.mxu0 0
      %1616 = vmatprep.subr.bf16.mxu0 0
      %1617 = vmatpush1.bf16.msra.mxu0 0
      %1618 = vmatprep.subr.bf16.mxu0 0
      %1619 = vmatpush1.bf16.msra.mxu0 0
      %1620 = vmatprep.subr.bf16.mxu0 0
      %1621 = vmatpush1.bf16.msra.mxu0 0
      %1622 = vmatprep.subr.bf16.mxu0 0
      %1623 = vmatpush1.bf16.msra.mxu0 0
      %1624 = vmatprep.subr.bf16.mxu0 0
      %1625 = vmatpush1.bf16.msra.mxu0 0
      %1626 = vmatprep.mubr.bf16.mxu0 0
      %1627 = vmatmul.mubr.bf16.gmra.mrb[0].mxu0 %v1589
      %v1628 = vpop.f32.mrb[0].mxu0
      %v1629 = vadd.f32 0.0, %v1628
      %v1630 = vpop.f32.mrb[0].mxu0
      %v1631 = vpop.f32.mrb[0].mxu0
      %v1632 = vadd.f32 0.0, %v1631
      %v1633 = vpop.f32.mrb[0].mxu0
      %1634 = vmatprep.mubr.bf16.mxu0 0
      %1635 = vmatmul.mubr.bf16.gmra.mrb[0].mxu0 %v1592
      %v1636 = vpop.f32.mrb[0].mxu0
      %v1637 = vadd.f32 0.0, %v1636
      %v1638 = vpop.f32.mrb[0].mxu0
      %v1639 = vpop.f32.mrb[0].mxu0
      %v1640 = vpop.f32.mrb[0].mxu0
      %1641 = vdwg.mxu0
      %v1642 = vld [vmem:[#allocation2] sm:$0xff]
      %v1643 = vld [vmem:[#allocation2 + $0x8] sm:$0xff]
      %v1644 = vld [vmem:[#allocation2 + $0x10] sm:$0x3]
      %v1645 = vadd.f32 %v1642, %v1629
      %v1646 = vadd.f32 %v1643, %v1632
      %v1647 = vadd.f32 %v1644, %v1637
      %1648 = vst [vmem:[#allocation2] sm:$0xff] %v1645
      %1649 = vst [vmem:[#allocation2 + $0x8] sm:$0xff] %v1646
      %1650 = vst [vmem:[#allocation2 + $0x10] sm:$0x3] %v1647
      %v1651 = vld [vmem:[%s233 + $0x8] sm:$0xe]
      %v1652 = vld [vmem:[%s233 + $0xc] sm:$0xf]
      %v1653 = vld [vmem:[%s233 + $0x10] sm:$0x3]
      %s1654 = scalar_lea.vmem %s237, 384
      %v1655 = vld [vmem:[%s1654] sm:$0xf]
      %v1656 = vld [vmem:[%s1654 + $0x4] sm:$0xf]
      %v1657 = vld [vmem:[%s1654 + $0x8] sm:$0xf]
      %v1658 = vld [vmem:[%s1654 + $0xc] sm:$0xf]
      %v1659 = vld [vmem:[%s1654 + $0x10] sm:$0xf]
      %v1660 = vld [vmem:[%s1654 + $0x14] sm:$0xf]
      %v1661 = vld [vmem:[%s1654 + $0x18] sm:$0xf]
      %v1662 = vld [vmem:[%s1654 + $0x1c] sm:$0xf]
      %v1666 = vunpack.c.l.b16 %v1651
      %v1667 = vunpack.c.l.b16 %v1652
      %v1668 = vunpack.c.l.b16 %v1653
      %v1669 = vpack.c.b16 %v1667, %v1666
      %v1670 = vpack.c.b16 %v1668, %v1668
      %v1671 = vrot.slane %v1669, 1
      %v1672 = vrot.slane %v1670, 1
      %v1673 = vsel %vm494, %v1671, %v1672
      %v1682 = vunpack.c.l.b16 %v1655
      %v1683 = vunpack.c.l.b16 %v1656
      %v1684 = vunpack.c.l.b16 %v1657
      %v1685 = vunpack.c.l.b16 %v1658
      %v1686 = vunpack.c.l.b16 %v1659
      %v1687 = vunpack.c.l.b16 %v1660
      %v1688 = vunpack.c.l.b16 %v1661
      %v1689 = vunpack.c.l.b16 %v1662
      %v1690 = vpack.c.b16 %v1683, %v1682
      %v1691 = vpack.c.b16 %v1685, %v1684
      %v1692 = vpack.c.b16 %v1687, %v1686
      %v1693 = vpack.c.b16 %v1689, %v1688
      %v1699 = vsel %vm293, %v1673, 0
      %v1702 = vsel %vm293, %v1672, 0
      %1704 = vmatprep.subr.bf16.mxu0 0
      %1705 = vmatpush1.bf16.msra.mxu0 %v1690
      %1706 = vmatprep.subr.bf16.mxu0 0
      %1707 = vmatpush1.bf16.msra.mxu0 %v1691
      %1708 = vmatprep.subr.bf16.mxu0 0
      %1709 = vmatpush1.bf16.msra.mxu0 %v1692
      %1710 = vmatprep.subr.bf16.mxu0 0
      %1711 = vmatpush1.bf16.msra.mxu0 %v1693
      %1712 = vmatprep.subr.bf16.mxu0 0
      %1713 = vmatpush1.bf16.msra.mxu0 0
      %1714 = vmatprep.subr.bf16.mxu0 0
      %1715 = vmatpush1.bf16.msra.mxu0 0
      %1716 = vmatprep.subr.bf16.mxu0 0
      %1717 = vmatpush1.bf16.msra.mxu0 0
      %1718 = vmatprep.subr.bf16.mxu0 0
      %1719 = vmatpush1.bf16.msra.mxu0 0
      %1720 = vmatprep.subr.bf16.mxu0 0
      %1721 = vmatpush1.bf16.msra.mxu0 0
      %1722 = vmatprep.subr.bf16.mxu0 0
      %1723 = vmatpush1.bf16.msra.mxu0 0
      %1724 = vmatprep.subr.bf16.mxu0 0
      %1725 = vmatpush1.bf16.msra.mxu0 0
      %1726 = vmatprep.subr.bf16.mxu0 0
      %1727 = vmatpush1.bf16.msra.mxu0 0
      %1728 = vmatprep.subr.bf16.mxu0 0
      %1729 = vmatpush1.bf16.msra.mxu0 0
      %1730 = vmatprep.subr.bf16.mxu0 0
      %1731 = vmatpush1.bf16.msra.mxu0 0
      %1732 = vmatprep.subr.bf16.mxu0 0
      %1733 = vmatpush1.bf16.msra.mxu0 0
      %1734 = vmatprep.subr.bf16.mxu0 0
      %1735 = vmatpush1.bf16.msra.mxu0 0
      %1736 = vmatprep.mubr.bf16.mxu0 0
      %1737 = vmatmul.mubr.bf16.gmra.mrb[0].mxu0 %v1699
      %v1738 = vpop.f32.mrb[0].mxu0
      %v1739 = vadd.f32 0.0, %v1738
      %v1740 = vpop.f32.mrb[0].mxu0
      %v1741 = vpop.f32.mrb[0].mxu0
      %v1742 = vadd.f32 0.0, %v1741
      %v1743 = vpop.f32.mrb[0].mxu0
      %1744 = vmatprep.mubr.bf16.mxu0 0
      %1745 = vmatmul.mubr.bf16.gmra.mrb[0].mxu0 %v1702
      %v1746 = vpop.f32.mrb[0].mxu0
      %v1747 = vadd.f32 0.0, %v1746
      %v1748 = vpop.f32.mrb[0].mxu0
      %v1749 = vpop.f32.mrb[0].mxu0
      %v1750 = vpop.f32.mrb[0].mxu0
      %1751 = vdwg.mxu0
      %v1752 = vld [vmem:[#allocation2] sm:$0xff]
      %v1753 = vld [vmem:[#allocation2 + $0x8] sm:$0xff]
      %v1754 = vld [vmem:[#allocation2 + $0x10] sm:$0x3]
      %v1755 = vadd.f32 %v1752, %v1739
      %v1756 = vadd.f32 %v1753, %v1742
      %v1757 = vadd.f32 %v1754, %v1747
      %1758 = vst [vmem:[#allocation2] sm:$0xff] %v1755
      %1759 = vst [vmem:[#allocation2 + $0x8] sm:$0xff] %v1756
      %1760 = vst [vmem:[#allocation2 + $0x10] sm:$0x3] %v1757
      %v1761 = vld [vmem:[%s233 + $0x8] sm:$0xe]
      %v1762 = vld [vmem:[%s233 + $0xc] sm:$0xf]
      %v1763 = vld [vmem:[%s233 + $0x10] sm:$0x7]
      %s1764 = scalar_lea.vmem %s237, 416
      %v1765 = vld [vmem:[%s1764] sm:$0xf]
      %v1766 = vld [vmem:[%s1764 + $0x4] sm:$0xf]
      %v1767 = vld [vmem:[%s1764 + $0x8] sm:$0xf]
      %v1768 = vld [vmem:[%s1764 + $0xc] sm:$0xf]
      %v1769 = vld [vmem:[%s1764 + $0x10] sm:$0xf]
      %v1770 = vld [vmem:[%s1764 + $0x14] sm:$0xf]
      %v1771 = vld [vmem:[%s1764 + $0x18] sm:$0xf]
      %v1772 = vld [vmem:[%s1764 + $0x1c] sm:$0xf]
      %v1776 = vunpack.c.l.b16 %v1761
      %v1777 = vunpack.c.l.b16 %v1762
      %v1778 = vunpack.c.l.b16 %v1763
      %v1779 = vpack.c.b16 %v1777, %v1776
      %v1780 = vpack.c.b16 %v1778, %v1778
      %v1782 = vshrl.u32 %v1779, 16
      %v1784 = vrot.slane %v1782, 1
      %v1785 = vshll.u32 %v1779, 16
      %v1787 = vrot.slane %v1785, 2
      %v1788 = vor.u32 %v1784, %v1787
      %v1790 = vshrl.u32 %v1780, 16
      %v1792 = vrot.slane %v1790, 1
      %v1793 = vshll.u32 %v1780, 16
      %v1795 = vrot.slane %v1793, 2
      %v1796 = vor.u32 %v1792, %v1795
      %v1797 = vsel %vm605, %v1788, %v1796
      %v1806 = vunpack.c.l.b16 %v1765
      %v1807 = vunpack.c.l.b16 %v1766
      %v1808 = vunpack.c.l.b16 %v1767
      %v1809 = vunpack.c.l.b16 %v1768
      %v1810 = vunpack.c.l.b16 %v1769
      %v1811 = vunpack.c.l.b16 %v1770
      %v1812 = vunpack.c.l.b16 %v1771
      %v1813 = vunpack.c.l.b16 %v1772
      %v1814 = vpack.c.b16 %v1807, %v1806
      %v1815 = vpack.c.b16 %v1809, %v1808
      %v1816 = vpack.c.b16 %v1811, %v1810
      %v1817 = vpack.c.b16 %v1813, %v1812
      %v1823 = vsel %vm293, %v1797, 0
      %v1826 = vsel %vm293, %v1796, 0
      %1828 = vmatprep.subr.bf16.mxu0 0
      %1829 = vmatpush1.bf16.msra.mxu0 %v1814
      %1830 = vmatprep.subr.bf16.mxu0 0
      %1831 = vmatpush1.bf16.msra.mxu0 %v1815
      %1832 = vmatprep.subr.bf16.mxu0 0
      %1833 = vmatpush1.bf16.msra.mxu0 %v1816
      %1834 = vmatprep.subr.bf16.mxu0 0
      %1835 = vmatpush1.bf16.msra.mxu0 %v1817
      %1836 = vmatprep.subr.bf16.mxu0 0
      %1837 = vmatpush1.bf16.msra.mxu0 0
      %1838 = vmatprep.subr.bf16.mxu0 0
      %1839 = vmatpush1.bf16.msra.mxu0 0
      %1840 = vmatprep.subr.bf16.mxu0 0
      %1841 = vmatpush1.bf16.msra.mxu0 0
      %1842 = vmatprep.subr.bf16.mxu0 0
      %1843 = vmatpush1.bf16.msra.mxu0 0
      %1844 = vmatprep.subr.bf16.mxu0 0
      %1845 = vmatpush1.bf16.msra.mxu0 0
      %1846 = vmatprep.subr.bf16.mxu0 0
      %1847 = vmatpush1.bf16.msra.mxu0 0
      %1848 = vmatprep.subr.bf16.mxu0 0
      %1849 = vmatpush1.bf16.msra.mxu0 0
      %1850 = vmatprep.subr.bf16.mxu0 0
      %1851 = vmatpush1.bf16.msra.mxu0 0
      %1852 = vmatprep.subr.bf16.mxu0 0
      %1853 = vmatpush1.bf16.msra.mxu0 0
      %1854 = vmatprep.subr.bf16.mxu0 0
      %1855 = vmatpush1.bf16.msra.mxu0 0
      %1856 = vmatprep.subr.bf16.mxu0 0
      %1857 = vmatpush1.bf16.msra.mxu0 0
      %1858 = vmatprep.subr.bf16.mxu0 0
      %1859 = vmatpush1.bf16.msra.mxu0 0
      %1860 = vmatprep.mubr.bf16.mxu0 0
      %1861 = vmatmul.mubr.bf16.gmra.mrb[0].mxu0 %v1823
      %v1862 = vpop.f32.mrb[0].mxu0
      %v1863 = vadd.f32 0.0, %v1862
      %v1864 = vpop.f32.mrb[0].mxu0
      %v1865 = vpop.f32.mrb[0].mxu0
      %v1866 = vadd.f32 0.0, %v1865
      %v1867 = vpop.f32.mrb[0].mxu0
      %1868 = vmatprep.mubr.bf16.mxu0 0
      %1869 = vmatmul.mubr.bf16.gmra.mrb[0].mxu0 %v1826
      %v1870 = vpop.f32.mrb[0].mxu0
      %v1871 = vadd.f32 0.0, %v1870
      %v1872 = vpop.f32.mrb[0].mxu0
      %v1873 = vpop.f32.mrb[0].mxu0
      %v1874 = vpop.f32.mrb[0].mxu0
      %1875 = vdwg.mxu0
      %v1876 = vld [vmem:[#allocation2] sm:$0xff]
      %v1877 = vld [vmem:[#allocation2 + $0x8] sm:$0xff]
      %v1878 = vld [vmem:[#allocation2 + $0x10] sm:$0x3]
      %v1879 = vadd.f32 %v1876, %v1863
      %v1880 = vadd.f32 %v1877, %v1866
      %v1881 = vadd.f32 %v1878, %v1871
      %1882 = vst [vmem:[#allocation2] sm:$0xff] %v1879
      %1883 = vst [vmem:[#allocation2 + $0x8] sm:$0xff] %v1880
      %1884 = vst [vmem:[#allocation2 + $0x10] sm:$0x3] %v1881
      %v1885 = vld [vmem:[%s233 + $0x8] sm:$0xc]
      %v1886 = vld [vmem:[%s233 + $0xc] sm:$0xf]
      %v1887 = vld [vmem:[%s233 + $0x10] sm:$0x7]
      %s1888 = scalar_lea.vmem %s237, 448
      %v1889 = vld [vmem:[%s1888] sm:$0xf]
      %v1890 = vld [vmem:[%s1888 + $0x4] sm:$0xf]
      %v1891 = vld [vmem:[%s1888 + $0x8] sm:$0xf]
      %v1892 = vld [vmem:[%s1888 + $0xc] sm:$0xf]
      %v1893 = vld [vmem:[%s1888 + $0x10] sm:$0xf]
      %v1894 = vld [vmem:[%s1888 + $0x14] sm:$0xf]
      %v1895 = vld [vmem:[%s1888 + $0x18] sm:$0xf]
      %v1896 = vld [vmem:[%s1888 + $0x1c] sm:$0xf]
      %v1900 = vunpack.c.l.b16 %v1885
      %v1901 = vunpack.c.l.b16 %v1886
      %v1902 = vunpack.c.l.b16 %v1887
      %v1903 = vpack.c.b16 %v1901, %v1900
      %v1904 = vpack.c.b16 %v1902, %v1902
      %v1905 = vrot.slane %v1903, 2
      %v1906 = vrot.slane %v1904, 2
      %v1907 = vsel %vm1198, %v1905, %v1906
      %v1916 = vunpack.c.l.b16 %v1889
      %v1917 = vunpack.c.l.b16 %v1890
      %v1918 = vunpack.c.l.b16 %v1891
      %v1919 = vunpack.c.l.b16 %v1892
      %v1920 = vunpack.c.l.b16 %v1893
      %v1921 = vunpack.c.l.b16 %v1894
      %v1922 = vunpack.c.l.b16 %v1895
      %v1923 = vunpack.c.l.b16 %v1896
      %v1924 = vpack.c.b16 %v1917, %v1916
      %v1925 = vpack.c.b16 %v1919, %v1918
      %v1926 = vpack.c.b16 %v1921, %v1920
      %v1927 = vpack.c.b16 %v1923, %v1922
      %v1933 = vsel %vm293, %v1907, 0
      %v1936 = vsel %vm293, %v1906, 0
      %1938 = vmatprep.subr.bf16.mxu0 0
      %1939 = vmatpush1.bf16.msra.mxu0 %v1924
      %1940 = vmatprep.subr.bf16.mxu0 0
      %1941 = vmatpush1.bf16.msra.mxu0 %v1925
      %1942 = vmatprep.subr.bf16.mxu0 0
      %1943 = vmatpush1.bf16.msra.mxu0 %v1926
      %1944 = vmatprep.subr.bf16.mxu0 0
      %1945 = vmatpush1.bf16.msra.mxu0 %v1927
      %1946 = vmatprep.subr.bf16.mxu0 0
      %1947 = vmatpush1.bf16.msra.mxu0 0
      %1948 = vmatprep.subr.bf16.mxu0 0
      %1949 = vmatpush1.bf16.msra.mxu0 0
      %1950 = vmatprep.subr.bf16.mxu0 0
      %1951 = vmatpush1.bf16.msra.mxu0 0
      %1952 = vmatprep.subr.bf16.mxu0 0
      %1953 = vmatpush1.bf16.msra.mxu0 0
      %1954 = vmatprep.subr.bf16.mxu0 0
      %1955 = vmatpush1.bf16.msra.mxu0 0
      %1956 = vmatprep.subr.bf16.mxu0 0
      %1957 = vmatpush1.bf16.msra.mxu0 0
      %1958 = vmatprep.subr.bf16.mxu0 0
      %1959 = vmatpush1.bf16.msra.mxu0 0
      %1960 = vmatprep.subr.bf16.mxu0 0
      %1961 = vmatpush1.bf16.msra.mxu0 0
      %1962 = vmatprep.subr.bf16.mxu0 0
      %1963 = vmatpush1.bf16.msra.mxu0 0
      %1964 = vmatprep.subr.bf16.mxu0 0
      %1965 = vmatpush1.bf16.msra.mxu0 0
      %1966 = vmatprep.subr.bf16.mxu0 0
      %1967 = vmatpush1.bf16.msra.mxu0 0
      %1968 = vmatprep.subr.bf16.mxu0 0
      %1969 = vmatpush1.bf16.msra.mxu0 0
      %1970 = vmatprep.mubr.bf16.mxu0 0
      %1971 = vmatmul.mubr.bf16.gmra.mrb[0].mxu0 %v1933
      %v1972 = vpop.f32.mrb[0].mxu0
      %v1973 = vadd.f32 0.0, %v1972
      %v1974 = vpop.f32.mrb[0].mxu0
      %v1975 = vpop.f32.mrb[0].mxu0
      %v1976 = vadd.f32 0.0, %v1975
      %v1977 = vpop.f32.mrb[0].mxu0
      %1978 = vmatprep.mubr.bf16.mxu0 0
      %1979 = vmatmul.mubr.bf16.gmra.mrb[0].mxu0 %v1936
      %v1980 = vpop.f32.mrb[0].mxu0
      %v1981 = vadd.f32 0.0, %v1980
      %v1982 = vpop.f32.mrb[0].mxu0
      %v1983 = vpop.f32.mrb[0].mxu0
      %v1984 = vpop.f32.mrb[0].mxu0
      %1985 = vdwg.mxu0
      %v1986 = vld [vmem:[#allocation2] sm:$0xff]
      %v1987 = vld [vmem:[#allocation2 + $0x8] sm:$0xff]
      %v1988 = vld [vmem:[#allocation2 + $0x10] sm:$0x3]
      %v1989 = vadd.f32 %v1986, %v1973
      %v1990 = vadd.f32 %v1987, %v1976
      %v1991 = vadd.f32 %v1988, %v1981
      %1992 = vst [vmem:[#allocation2] sm:$0xff] %v1989
      %1993 = vst [vmem:[#allocation2 + $0x8] sm:$0xff] %v1990
      %1994 = vst [vmem:[#allocation2 + $0x10] sm:$0x3] %v1991
      %v1995 = vld [vmem:[%s233 + $0x8] sm:$0xc]
      %v1996 = vld [vmem:[%s233 + $0xc] sm:$0xf]
      %v1997 = vld [vmem:[%s233 + $0x10] sm:$0xf]
      %s1998 = scalar_lea.vmem %s237, 480
      %v1999 = vld [vmem:[%s1998] sm:$0xf]
      %v2000 = vld [vmem:[%s1998 + $0x4] sm:$0xf]
      %v2001 = vld [vmem:[%s1998 + $0x8] sm:$0xf]
      %v2002 = vld [vmem:[%s1998 + $0xc] sm:$0xf]
      %v2003 = vld [vmem:[%s1998 + $0x10] sm:$0xf]
      %v2004 = vld [vmem:[%s1998 + $0x14] sm:$0xf]
      %v2005 = vld [vmem:[%s1998 + $0x18] sm:$0xf]
      %v2006 = vld [vmem:[%s1998 + $0x1c] sm:$0xf]
      %v2010 = vunpack.c.l.b16 %v1995
      %v2011 = vunpack.c.l.b16 %v1996
      %v2012 = vunpack.c.l.b16 %v1997
      %v2013 = vpack.c.b16 %v2011, %v2010
      %v2014 = vpack.c.b16 %v2012, %v2012
      %v2016 = vshrl.u32 %v2013, 16
      %v2018 = vrot.slane %v2016, 2
      %v2019 = vshll.u32 %v2013, 16
      %v2021 = vrot.slane %v2019, 3
      %v2022 = vor.u32 %v2018, %v2021
      %v2024 = vshrl.u32 %v2014, 16
      %v2026 = vrot.slane %v2024, 2
      %v2027 = vshll.u32 %v2014, 16
      %v2029 = vrot.slane %v2027, 3
      %v2030 = vor.u32 %v2026, %v2029
      %v2031 = vsel %vm1309, %v2022, %v2030
      %v2040 = vunpack.c.l.b16 %v1999
      %v2041 = vunpack.c.l.b16 %v2000
      %v2042 = vunpack.c.l.b16 %v2001
      %v2043 = vunpack.c.l.b16 %v2002
      %v2044 = vunpack.c.l.b16 %v2003
      %v2045 = vunpack.c.l.b16 %v2004
      %v2046 = vunpack.c.l.b16 %v2005
      %v2047 = vunpack.c.l.b16 %v2006
      %v2048 = vpack.c.b16 %v2041, %v2040
      %v2049 = vpack.c.b16 %v2043, %v2042
      %v2050 = vpack.c.b16 %v2045, %v2044
      %v2051 = vpack.c.b16 %v2047, %v2046
      %v2057 = vsel %vm293, %v2031, 0
      %v2060 = vsel %vm293, %v2030, 0
      %2062 = vmatprep.subr.bf16.mxu0 0
      %2063 = vmatpush1.bf16.msra.mxu0 %v2048
      %2064 = vmatprep.subr.bf16.mxu0 0
      %2065 = vmatpush1.bf16.msra.mxu0 %v2049
      %2066 = vmatprep.subr.bf16.mxu0 0
      %2067 = vmatpush1.bf16.msra.mxu0 %v2050
      %2068 = vmatprep.subr.bf16.mxu0 0
      %2069 = vmatpush1.bf16.msra.mxu0 %v2051
      %2070 = vmatprep.subr.bf16.mxu0 0
      %2071 = vmatpush1.bf16.msra.mxu0 0
      %2072 = vmatprep.subr.bf16.mxu0 0
      %2073 = vmatpush1.bf16.msra.mxu0 0
      %2074 = vmatprep.subr.bf16.mxu0 0
      %2075 = vmatpush1.bf16.msra.mxu0 0
      %2076 = vmatprep.subr.bf16.mxu0 0
      %2077 = vmatpush1.bf16.msra.mxu0 0
      %2078 = vmatprep.subr.bf16.mxu0 0
      %2079 = vmatpush1.bf16.msra.mxu0 0
      %2080 = vmatprep.subr.bf16.mxu0 0
      %2081 = vmatpush1.bf16.msra.mxu0 0
      %2082 = vmatprep.subr.bf16.mxu0 0
      %2083 = vmatpush1.bf16.msra.mxu0 0
      %2084 = vmatprep.subr.bf16.mxu0 0
      %2085 = vmatpush1.bf16.msra.mxu0 0
      %2086 = vmatprep.subr.bf16.mxu0 0
      %2087 = vmatpush1.bf16.msra.mxu0 0
      %2088 = vmatprep.subr.bf16.mxu0 0
      %2089 = vmatpush1.bf16.msra.mxu0 0
      %2090 = vmatprep.subr.bf16.mxu0 0
      %2091 = vmatpush1.bf16.msra.mxu0 0
      %2092 = vmatprep.subr.bf16.mxu0 0
      %2093 = vmatpush1.bf16.msra.mxu0 0
      %2094 = vmatprep.mubr.bf16.mxu0 0
      %2095 = vmatmul.mubr.bf16.gmra.mrb[0].mxu0 %v2057
      %v2096 = vpop.f32.mrb[0].mxu0
      %v2097 = vadd.f32 0.0, %v2096
      %v2098 = vpop.f32.mrb[0].mxu0
      %v2099 = vpop.f32.mrb[0].mxu0
      %v2100 = vadd.f32 0.0, %v2099
      %v2101 = vpop.f32.mrb[0].mxu0
      %2102 = vmatprep.mubr.bf16.mxu0 0
      %2103 = vmatmul.mubr.bf16.gmra.mrb[0].mxu0 %v2060
      %v2104 = vpop.f32.mrb[0].mxu0
      %v2105 = vadd.f32 0.0, %v2104
      %v2106 = vpop.f32.mrb[0].mxu0
      %v2107 = vpop.f32.mrb[0].mxu0
      %v2108 = vpop.f32.mrb[0].mxu0
      %2109 = vdwg.mxu0
      %v2110 = vld [vmem:[#allocation2] sm:$0xff]
      %v2111 = vld [vmem:[#allocation2 + $0x8] sm:$0xff]
      %v2112 = vld [vmem:[#allocation2 + $0x10] sm:$0x3]
      %v2113 = vadd.f32 %v2110, %v2097
      %v2114 = vadd.f32 %v2111, %v2100
      %v2115 = vadd.f32 %v2112, %v2105
      %2116 = vst [vmem:[#allocation2] sm:$0xff] %v2113
      %2117 = vst [vmem:[#allocation2 + $0x8] sm:$0xff] %v2114
      %2118 = vst [vmem:[#allocation2 + $0x10] sm:$0x3] %v2115
      %v2119 = vld [vmem:[#allocation2] sm:$0xff]
      %v2120 = vld [vmem:[#allocation2 + $0x8] sm:$0xff]
      %v2121 = vld [vmem:[#allocation2 + $0x10] sm:$0x3]
      %v2122 = vld [vmem:[%s240] sm:$0x1]
      %v2124 = vlaneseq
      %v2125 = vshrl.u32 %v2124, 7
      %v2126 = vsub.s32 0, %v2125
      %v2127 = vrot.slane %v2122, %v2126
      %v2129 = vadd.f32 %v2119, %v2127
      %v2130 = vadd.f32 %v2120, %v2127
      %v2131 = vadd.f32 %v2121, %v2127
      %v2132 = vld [vmem:[%s3] sm:$0xff]
      %v2133 = vld [vmem:[%s3 + $0x8] sm:$0xff]
      %v2134 = vld [vmem:[%s3 + $0x10] sm:$0x3]
      %2136 = vset.pattern.permute.xlu0 0
      %2137 = vperm.xlu0 %2136, %v2132
      %v2138 = vpop.permute.xlu0 %2137
      %2141 = vset.pattern.permute.xlu0 0
      %2142 = vperm.xlu0 %2141, %v2133
      %v2143 = vpop.permute.xlu0 %2142
      %2146 = vset.pattern.permute.xlu0 0
      %2147 = vperm.xlu0 %2146, %v2134
      %v2148 = vpop.permute.xlu0 %2147
      %v2150 = vmul.f32 %v2129, %v2138
      %v2151 = vmul.f32 %v2130, %v2143
      %v2152 = vmul.f32 %v2131, %v2148
      %v2153 = vadd.f32 %v2150, %v2151
      %vm2154 = vcmask 1041408
      %v2155 = vsel %vm2154, %v2152, 0.0
      %v2156 = vadd.f32 %v2153, %v2155
      %v2157 = vrot.slane %v2156, 4
      %v2158 = vadd.f32 %v2156, %v2157
      %v2159 = vrot.slane %v2158, 2
      %v2160 = vadd.f32 %v2158, %v2159
      %v2161 = vrot.slane %v2160, 1
      %v2162 = vadd.f32 %v2160, %v2161
      %v2163 = vmul.f32 %v2162, 0.11111111
      %v2164 = vsub.f32 %v2129, %v2163
      %v2165 = vsub.f32 %v2130, %v2163
      %v2166 = vsub.f32 %v2131, %v2163
      %v2167 = vmul.f32 %v2164, %v2138
      %v2168 = vmul.f32 %v2165, %v2143
      %v2169 = vmul.f32 %v2166, %v2148
      %v2170 = vmul.f32 %v2167, %v2167
      %v2171 = vmul.f32 %v2168, %v2168
      %v2172 = vmul.f32 %v2169, %v2169
      %v2173 = vadd.f32 %v2170, %v2171
      %v2174 = vsel %vm2154, %v2172, 0.0
      %v2175 = vadd.f32 %v2173, %v2174
      %v2176 = vrot.slane %v2175, 4
      %v2177 = vadd.f32 %v2175, %v2176
      %v2178 = vrot.slane %v2177, 2
      %v2179 = vadd.f32 %v2177, %v2178
      %v2180 = vrot.slane %v2179, 1
      %v2181 = vadd.f32 %v2179, %v2180
      %v2182 = vmul.f32 %v2181, 0.11111111
      %v2183 = vadd.f32 %v2182, 1e-05
      %v2184 = vrsqrt.pop %v2183
      %v2185 = vmul.f32 %v2164, %v2184
      %v2186 = vmul.f32 %v2165, %v2184
      %v2187 = vmul.f32 %v2166, %v2184
      %vm2188 = vcmp.ge.f32.partialorder %v2185, 0.0
      %vm2189 = vcmp.ge.f32.partialorder %v2186, 0.0
      %vm2190 = vcmp.ge.f32.partialorder %v2187, 0.0
      %v2191 = vmul.f32 %v2185, 0.2
      %v2192 = vmul.f32 %v2186, 0.2
      %v2193 = vmul.f32 %v2187, 0.2
      %v2194 = vsel %vm2188, %v2185, %v2191
      %v2195 = vsel %vm2189, %v2186, %v2192
      %v2196 = vsel %vm2190, %v2187, %v2193
      %v2197 = vpack.c.bf16 %v2195, %v2194
      %v2198 = vpack.c.bf16 %v2196, %v2196
      %v2201 = vunpack.c.l.b16 %v2197
      %v2202 = vunpack.c.h.b16 %v2197
      %v2203 = vunpack.c.l.b16 %v2198
      %v2204 = vpack.c.b16 %v2201, %v2201
      %v2205 = vpack.c.b16 %v2202, %v2202
      %v2206 = vpack.c.b16 %v2203, %v2203
      %2210 = vst [vmem:[%s248] sm:$0xf] %v2204
      %2211 = vst [vmem:[%s248 + $0x4] sm:$0xf] %v2205
      %2212 = vst [vmem:[%s248 + $0x8] sm:$0x1] %v2206
      %p2213 = scmp.lt.s32.totalorder %s19, 1
      %s2214 = scalar_select %p2213, %s19, 1
      %p2215 = scmp.lt.s32.totalorder %s20, 0
      %s2216 = scalar_select %p2215, %s20, 0
      %s2217 = smul.addr %s2214, 3
      %s2218 = sadd.s32 %s2216, %s2217
      %s2219 = smul.addr %s2218, 4
      %s2220 = scalar_lea.vmem %s4, %s2219
      // Predicated region
      $region37: #{discriminator_forward.8} parent=35 // pred_check
        %p2221 = pneg %p146
      $region38: #{discriminator_forward.8} parent=35 // pred_check_branch
        %2223 = sbr.rel (%p2221) target = $region40
      $region39: #{discriminator_forward.8} parent=35 // pred_region
        _
      $region40: #{discriminator_forward.8} parent=35 // pred_fallthru
        _
    $region36: #{discriminator_forward.8} parent=5 // pred_fallthru
      _
    %p2224 = scmp.le.s32.totalorder 2, %s10
    // Predicated region
    $region41: #{discriminator_forward.8} parent=5 // pred_check
      %p2225 = pneg %p2224
    $region42: #{discriminator_forward.8} parent=5 // pred_check_branch
      %2227 = sbr.rel (%p2225) target = $region44
    $region43: #{discriminator_forward.8} parent=5 // pred_region
      %s2228 = ssub.s32 %s10, 2
      // Predicated region
      $region45: #{discriminator_forward.8} parent=43 // pred_check
        %p2229 = pneg %p152
      $region46: #{discriminator_forward.8} parent=43 // pred_check_branch
        %2231 = sbr.rel (%p2229) target = $region48
      $region47: #{discriminator_forward.8} parent=43 // pred_region
        %p2232 = scmp.lt.s32.totalorder %s21, 1
        %s2233 = scalar_select %p2232, %s21, 1
        %p2234 = scmp.lt.s32.totalorder %s22, 0
        %s2235 = scalar_select %p2234, %s22, 0
        %s2236 = smul.addr %s2233, 3
        %s2237 = sadd.s32 %s2235, %s2236
        %s2238 = smul.addr %s2237, 4
        %s2239 = scalar_lea.vmem %s4, %s2238
      $region48: #{discriminator_forward.8} parent=43 // pred_fallthru
        _
    $region44: #{discriminator_forward.8} parent=5 // pred_fallthru
      _
  $region6: #{discriminator_forward.8} parent=0 // loop_footer
    %s14 = sadd.s32 1, %s10
  $region7: #{discriminator_forward.8} parent=0 // loop_footer_branch
    %9 = sbr.rel target = $region3
  $region8: #{discriminator_forward.8} parent=0 // loop_exit
    _

// kernel: discriminator_forward.9
$region0: #{discriminator_forward.9}
  #allocation0 [shape = 'u32[]', space=smem, size = 0x4, offset = 0x4, fixed_abs, tag = 'smem constant byte address 0x4 - core index']
  #allocation1 [shape = 'u32[144,128]{1,0:T(1,128)}', space=vmem, size = 0x12000, scoped, tag = 'internal scratch']
  #allocation2 [shape = 'f32[10,128]{1,0:T(8,128)}', space=vmem, size = 0x2000, scoped, tag = 'scratch operand']
  %s0 = inlined_call_operand.vmem [shape: bf16[2,28,128], index: 0, kind: input, shape index: {}]
  %s1 = inlined_call_operand.vmem [shape: bf16[16,128,128], index: 1, kind: input, shape index: {}]
  %s2 = inlined_call_operand.vmem [shape: f32[1,128], index: 2, kind: input, shape index: {}]
  %s3 = inlined_call_operand.vmem [shape: f32[10,1], index: 3, kind: input, shape index: {}]
  %s4 = inlined_call_operand.vmem [shape: f32[2,10,128], index: 4, kind: output, shape index: {}]
  %s5 = sld [smem:[#allocation0]]
  $region49: #{discriminator_forward.9} parent=0
    _
  %s7 = ssub.s32 1, %s5
  %s8 = scalar_select 0, %s7, %s5
  loop: start=0, step=1, limit=4
  $region2: #{discriminator_forward.9} parent=0 // loop_pre_header
    _
  $region3: #{discriminator_forward.9} parent=0 // loop_header
    %s10 = sphi 0, %s14
    %p11 = scmp.ge.s32.totalorder %s10, 4
    %s17 = sphi 0, %s29
    %s18 = sphi 0, %s25
    %s19 = sphi 0, %s17
    %s20 = sphi 0, %s18
    %s21 = sphi 0, %s19
    %s22 = sphi 0, %s20
    %s32 = sphi 0, %s34
    %s35 = sphi 0, %s32
    %s36 = sphi 0, %s35
    %s52 = sphi 0, %s36
    %s58 = sphi 0, %s60
    %s61 = sphi 0, %s58
    %s62 = sphi 0, %s61
    %s78 = sphi 0, %s62
    %s84 = sphi 0, %s86
    %s87 = sphi 0, %s84
    %s88 = sphi 0, %s87
    %s104 = sphi 0, %s88
    %s108 = sphi 0, %s108
    %s110 = sphi 0, %s108
    %s111 = sphi 0, %s110
    %s125 = sphi 0, %s111
    %s133 = sphi 0, %s135
    %s136 = sphi 0, %s133
    %s137 = sphi 0, %s136
    %s153 = sphi 0, %s137
  $region4: #{discriminator_forward.9} parent=0 // loop_header_branch
    %13 = sbr.rel (%p11) target = $region8
  $region5: #{discriminator_forward.9} parent=0 // loop_body
    %s15 = ssub.s32 %s10, 1
    %s16 = ssub.s32 %s10, 2
    %s23 = sadd.s32 1, %s18
    %p24 = scmp.ge.s32.totalorder %s23, 1
    %s25 = scalar_select %p24, 0, %s23
    %s26 = sadd.s32 1, %s17
    %s27 = scalar_select %p24, %s26, %s17
    %p28 = scmp.ge.s32.totalorder %s27, 2
    %s29 = scalar_select %p28, 0, %s27
    %s30 = ssub.s32 %s17, %s29
    %p31 = scmp.eq.s32.totalorder %s30, 0
    %s33 = sadd.s32 %s32, 1
    %s34 = scalar_select %p31, %s32, %s33
    %p37 = pneg %p31
    %p38 = scmp.eq.s32.totalorder %s10, 1
    %p39 = por %p37, %p38
    %p40 = scmp.ne.s32.totalorder %s32, %s35
    %p41 = scmp.eq.s32.totalorder %s10, 0
    %p42 = por %p40, %p41
    %p43 = scmp.ne.s32.totalorder %s32, %s35
    %p44 = scmp.eq.s32.totalorder %s15, 1
    %p45 = por %p43, %p44
    %p46 = scmp.ne.s32.totalorder %s35, %s36
    %p47 = scmp.eq.s32.totalorder %s15, 0
    %p48 = por %p46, %p47
    %p49 = scmp.ne.s32.totalorder %s35, %s36
    %p50 = scmp.eq.s32.totalorder %s16, 1
    %p51 = por %p49, %p50
    %p53 = scmp.ne.s32.totalorder %s36, %s52
    %p54 = scmp.eq.s32.totalorder %s16, 0
    %p55 = por %p53, %p54
    %s56 = ssub.s32 %s18, %s25
    %p57 = scmp.eq.s32.totalorder %s56, 0
    %s59 = sadd.s32 %s58, 1
    %s60 = scalar_select %p57, %s58, %s59
    %p63 = pneg %p57
    %p64 = scmp.eq.s32.totalorder %s10, 1
    %p65 = por %p63, %p64
    %p66 = scmp.ne.s32.totalorder %s58, %s61
    %p67 = scmp.eq.s32.totalorder %s10, 0
    %p68 = por %p66, %p67
    %p69 = scmp.ne.s32.totalorder %s58, %s61
    %p70 = scmp.eq.s32.totalorder %s15, 1
    %p71 = por %p69, %p70
    %p72 = scmp.ne.s32.totalorder %s61, %s62
    %p73 = scmp.eq.s32.totalorder %s15, 0
    %p74 = por %p72, %p73
    %p75 = scmp.ne.s32.totalorder %s61, %s62
    %p76 = scmp.eq.s32.totalorder %s16, 1
    %p77 = por %p75, %p76
    %p79 = scmp.ne.s32.totalorder %s62, %s78
    %p80 = scmp.eq.s32.totalorder %s16, 0
    %p81 = por %p79, %p80
    %s82 = ssub.s32 %s18, %s25
    %p83 = scmp.eq.s32.totalorder %s82, 0
    %s85 = sadd.s32 %s84, 1
    %s86 = scalar_select %p83, %s84, %s85
    %p89 = pneg %p83
    %p90 = scmp.eq.s32.totalorder %s10, 1
    %p91 = por %p89, %p90
    %p92 = scmp.ne.s32.totalorder %s84, %s87
    %p93 = scmp.eq.s32.totalorder %s10, 0
    %p94 = por %p92, %p93
    %p95 = scmp.ne.s32.totalorder %s84, %s87
    %p96 = scmp.eq.s32.totalorder %s15, 1
    %p97 = por %p95, %p96
    %p98 = scmp.ne.s32.totalorder %s87, %s88
    %p99 = scmp.eq.s32.totalorder %s15, 0
    %p100 = por %p98, %p99
    %p101 = scmp.ne.s32.totalorder %s87, %s88
    %p102 = scmp.eq.s32.totalorder %s16, 1
    %p103 = por %p101, %p102
    %p105 = scmp.ne.s32.totalorder %s88, %s104
    %p106 = scmp.eq.s32.totalorder %s16, 0
    %p107 = por %p105, %p106
    %s109 = sadd.s32 %s108, 1
    %p112 = scmp.eq.s32.totalorder %s10, 1
    %p113 = scmp.ne.s32.totalorder %s108, %s110
    %p114 = scmp.eq.s32.totalorder %s10, 0
    %p115 = por %p113, %p114
    %p116 = scmp.ne.s32.totalorder %s108, %s110
    %p117 = scmp.eq.s32.totalorder %s15, 1
    %p118 = por %p116, %p117
    %p119 = scmp.ne.s32.totalorder %s110, %s111
    %p120 = scmp.eq.s32.totalorder %s15, 0
    %p121 = por %p119, %p120
    %p122 = scmp.ne.s32.totalorder %s110, %s111
    %p123 = scmp.eq.s32.totalorder %s16, 1
    %p124 = por %p122, %p123
    %p126 = scmp.ne.s32.totalorder %s111, %s125
    %p127 = scmp.eq.s32.totalorder %s16, 0
    %p128 = por %p126, %p127
    %s129 = ssub.s32 %s17, %s29
    %s130 = ssub.s32 %s18, %s25
    %s131 = sor.u32 %s129, %s130
    %p132 = scmp.eq.s32.totalorder %s131, 0
    %s134 = sadd.s32 %s133, 1
    %s135 = scalar_select %p132, %s133, %s134
    %p138 = pneg %p132
    %p139 = scmp.eq.s32.totalorder %s10, 1
    %p140 = por %p138, %p139
    %p141 = scmp.ne.s32.totalorder %s133, %s136
    %p142 = scmp.eq.s32.totalorder %s10, 0
    %p143 = por %p141, %p142
    %p144 = scmp.ne.s32.totalorder %s133, %s136
    %p145 = scmp.eq.s32.totalorder %s15, 1
    %p146 = por %p144, %p145
    %p147 = scmp.ne.s32.totalorder %s136, %s137
    %p148 = scmp.eq.s32.totalorder %s15, 0
    %p149 = por %p147, %p148
    %p150 = scmp.ne.s32.totalorder %s136, %s137
    %p151 = scmp.eq.s32.totalorder %s16, 1
    %p152 = por %p150, %p151
    %p154 = scmp.ne.s32.totalorder %s137, %s153
    %p155 = scmp.eq.s32.totalorder %s16, 0
    %p156 = por %p154, %p155
    %p157 = scmp.le.s32.totalorder 1, %s10
    %p158 = scmp.lt.s32.totalorder %s10, 3
    %p159 = pnand %p157, %p158
    %p160 = pneg %p159
    // Predicated region
    $region9: #{discriminator_forward.9} parent=5 // pred_check
      _
    $region10: #{discriminator_forward.9} parent=5 // pred_check_branch
      %162 = sbr.rel (%p159) target = $region12
    $region11: #{discriminator_forward.9} parent=5 // pred_region
      %s163 = ssub.s32 %s10, 1
      // Predicated region
      $region13: #{discriminator_forward.9} parent=11 // pred_check
        %p164 = pneg %p74
      $region14: #{discriminator_forward.9} parent=11 // pred_check_branch
        %166 = sbr.rel (%p164) target = $region16
      $region15: #{discriminator_forward.9} parent=11 // pred_region
        %p167 = scmp.lt.s32.totalorder %s20, 0
        %s168 = scalar_select %p167, %s20, 0
        %s169 = smul.addr %s168, 4
        %s170 = scalar_lea.vmem %s1, %s169
      $region16: #{discriminator_forward.9} parent=11 // pred_fallthru
        _
      // Predicated region
      $region17: #{discriminator_forward.9} parent=11 // pred_check
        %p171 = pneg %p100
      $region18: #{discriminator_forward.9} parent=11 // pred_check_branch
        %173 = sbr.rel (%p171) target = $region20
      $region19: #{discriminator_forward.9} parent=11 // pred_region
        %p174 = scmp.lt.s32.totalorder %s20, 0
        %s175 = scalar_select %p174, %s20, 0
        %s176 = scalar_lea.vmem %s2, %s175
      $region20: #{discriminator_forward.9} parent=11 // pred_fallthru
        _
      // Predicated region
      $region21: #{discriminator_forward.9} parent=11 // pred_check
        %p177 = pneg %p121
      $region22: #{discriminator_forward.9} parent=11 // pred_check_branch
        %179 = sbr.rel (%p177) target = $region24
      $region23: #{discriminator_forward.9} parent=11 // pred_region
        _
      $region24: #{discriminator_forward.9} parent=11 // pred_fallthru
        _
    $region12: #{discriminator_forward.9} parent=5 // pred_fallthru
      _
    %p180 = scmp.lt.s32.totalorder %s10, 2
    // Predicated region
    $region25: #{discriminator_forward.9} parent=5 // pred_check
      %p181 = pneg %p180
    $region26: #{discriminator_forward.9} parent=5 // pred_check_branch
      %183 = sbr.rel (%p181) target = $region28
    $region27: #{discriminator_forward.9} parent=5 // pred_region
      // Predicated region
      $region29: #{discriminator_forward.9} parent=27 // pred_check
        %p184 = pneg %p42
      $region30: #{discriminator_forward.9} parent=27 // pred_check_branch
        %186 = sbr.rel (%p184) target = $region32
      $region31: #{discriminator_forward.9} parent=27 // pred_region
        %p187 = scmp.lt.s32.totalorder %s17, 1
        %s188 = scalar_select %p187, %s17, 1
        %s189 = smul.addr %s188, 4
        %s190 = smul.addr %s189, 4
        %s191 = scalar_lea.vmem %s0, %s190
      $region32: #{discriminator_forward.9} parent=27 // pred_fallthru
        _
    $region28: #{discriminator_forward.9} parent=5 // pred_fallthru
      _
    %p192 = scmp.le.s32.totalorder 1, %s10
    %p193 = scmp.lt.s32.totalorder %s10, 3
    %p194 = pnand %p192, %p193
    %p195 = pneg %p194
    // Predicated region
    $region33: #{discriminator_forward.9} parent=5 // pred_check
      _
    $region34: #{discriminator_forward.9} parent=5 // pred_check_branch
      %197 = sbr.rel (%p194) target = $region36
    $region35: #{discriminator_forward.9} parent=5 // pred_region
      %s198 = ssub.s32 %s10, 1
      %p199 = scmp.lt.s32.totalorder %s19, 1
      %s200 = scalar_select %p199, %s19, 1
      %s201 = smul.addr %s200, 4
      %s202 = smul.addr %s201, 4
      %s203 = scalar_lea.vmem %s0, %s202
      %p204 = pneg %p48
      %p205 = pneg %p45
      %p206 = scmp.lt.s32.totalorder %s20, 0
      %s207 = scalar_select %p206, %s20, 0
      %s208 = smul.addr %s207, 4
      %s209 = scalar_lea.vmem %s1, %s208
      %p210 = pneg %p74
      %p211 = pneg %p71
      %p212 = scmp.lt.s32.totalorder %s20, 0
      %s213 = scalar_select %p212, %s20, 0
      %s214 = scalar_lea.vmem %s2, %s213
      %p215 = pneg %p100
      %p216 = pneg %p97
      %p217 = pneg %p121
      %p218 = pneg %p118
      %p219 = pneg %p149
      %p220 = pneg %p146
      %p221 = scmp.lt.s32.totalorder %s19, 1
      %s222 = scalar_select %p221, %s19, 1
      %p223 = scmp.lt.s32.totalorder %s20, 0
      %s224 = scalar_select %p223, %s20, 0
      %s225 = smul.addr %s222, 2
      %s226 = sadd.s32 %s224, %s225
      %s227 = smul.addr %s226, 8
      %s228 = scalar_lea.vmem %s4, %s227
      %p229 = scmp.lt.s32.totalorder %s19, 1
      %s230 = scalar_select %p229, %s19, 1
      %s231 = smul.addr %s230, 4
      %s232 = smul.addr %s231, 4
      %s233 = scalar_lea.vmem %s0, %s232
      %p234 = scmp.lt.s32.totalorder %s20, 0
      %s235 = scalar_select %p234, %s20, 0
      %s236 = smul.addr %s235, 4
      %s237 = scalar_lea.vmem %s1, %s236
      %p238 = scmp.lt.s32.totalorder %s20, 0
      %s239 = scalar_select %p238, %s20, 0
      %s240 = scalar_lea.vmem %s2, %s239
      %p241 = scmp.lt.s32.totalorder %s19, 1
      %s242 = scalar_select %p241, %s19, 1
      %p243 = scmp.lt.s32.totalorder %s20, 0
      %s244 = scalar_select %p243, %s20, 0
      %s245 = smul.addr %s242, 2
      %s246 = sadd.s32 %s244, %s245
      %s247 = smul.addr %s246, 8
      %s248 = scalar_lea.vmem %s4, %s247
      %v250 = vld [vmem:[%s233] sm:$0xf]
      %v251 = vld [vmem:[%s233 + $0x4] sm:$0x1]
      %v252 = vld [vmem:[%s237] sm:$0xf]
      %v253 = vld [vmem:[%s237 + $0x4] sm:$0xf]
      %v254 = vld [vmem:[%s237 + $0x8] sm:$0xf]
      %v255 = vld [vmem:[%s237 + $0xc] sm:$0xf]
      %v256 = vld [vmem:[%s237 + $0x10] sm:$0xf]
      %v257 = vld [vmem:[%s237 + $0x14] sm:$0xf]
      %v258 = vld [vmem:[%s237 + $0x18] sm:$0xf]
      %v259 = vld [vmem:[%s237 + $0x1c] sm:$0xf]
      %v260 = vld [vmem:[%s237 + $0x20] sm:$0xf]
      %v261 = vld [vmem:[%s237 + $0x24] sm:$0xf]
      %v262 = vld [vmem:[%s237 + $0x28] sm:$0xf]
      %v263 = vld [vmem:[%s237 + $0x2c] sm:$0xf]
      %v264 = vld [vmem:[%s237 + $0x30] sm:$0xf]
      %v265 = vld [vmem:[%s237 + $0x34] sm:$0xf]
      %v266 = vld [vmem:[%s237 + $0x38] sm:$0xf]
      %v267 = vld [vmem:[%s237 + $0x3c] sm:$0xf]
      %v270 = vunpack.c.l.b16 %v250
      %v271 = vunpack.c.l.b16 %v251
      %v272 = vpack.c.b16 %v271, %v270
      %v290 = vunpack.c.l.b16 %v252
      %v291 = vunpack.c.l.b16 %v253
      %v292 = vunpack.c.l.b16 %v254
      %v293 = vunpack.c.l.b16 %v255
      %v294 = vunpack.c.l.b16 %v256
      %v295 = vunpack.c.l.b16 %v257
      %v296 = vunpack.c.l.b16 %v258
      %v297 = vunpack.c.l.b16 %v259
      %v298 = vunpack.c.l.b16 %v260
      %v299 = vunpack.c.l.b16 %v261
      %v300 = vunpack.c.l.b16 %v262
      %v301 = vunpack.c.l.b16 %v263
      %v302 = vunpack.c.l.b16 %v264
      %v303 = vunpack.c.l.b16 %v265
      %v304 = vunpack.c.l.b16 %v266
      %v305 = vunpack.c.l.b16 %v267
      %v306 = vpack.c.b16 %v291, %v290
      %v307 = vpack.c.b16 %v293, %v292
      %v308 = vpack.c.b16 %v295, %v294
      %v309 = vpack.c.b16 %v297, %v296
      %v310 = vpack.c.b16 %v299, %v298
      %v311 = vpack.c.b16 %v301, %v300
      %v312 = vpack.c.b16 %v303, %v302
      %v313 = vpack.c.b16 %v305, %v304
      %322 = vmatprep.subr.bf16.mxu0 0
      %323 = vmatpush1.bf16.msra.mxu0 %v306
      %324 = vmatprep.subr.bf16.mxu0 0
      %325 = vmatpush1.bf16.msra.mxu0 %v307
      %326 = vmatprep.subr.bf16.mxu0 0
      %327 = vmatpush1.bf16.msra.mxu0 %v308
      %328 = vmatprep.subr.bf16.mxu0 0
      %329 = vmatpush1.bf16.msra.mxu0 %v309
      %330 = vmatprep.subr.bf16.mxu0 0
      %331 = vmatpush1.bf16.msra.mxu0 %v310
      %332 = vmatprep.subr.bf16.mxu0 0
      %333 = vmatpush1.bf16.msra.mxu0 %v311
      %334 = vmatprep.subr.bf16.mxu0 0
      %335 = vmatpush1.bf16.msra.mxu0 %v312
      %336 = vmatprep.subr.bf16.mxu0 0
      %337 = vmatpush1.bf16.msra.mxu0 %v313
      %338 = vmatprep.subr.bf16.mxu0 0
      %339 = vmatpush1.bf16.msra.mxu0 0
      %340 = vmatprep.subr.bf16.mxu0 0
      %341 = vmatpush1.bf16.msra.mxu0 0
      %342 = vmatprep.subr.bf16.mxu0 0
      %343 = vmatpush1.bf16.msra.mxu0 0
      %344 = vmatprep.subr.bf16.mxu0 0
      %345 = vmatpush1.bf16.msra.mxu0 0
      %346 = vmatprep.subr.bf16.mxu0 0
      %347 = vmatpush1.bf16.msra.mxu0 0
      %348 = vmatprep.subr.bf16.mxu0 0
      %349 = vmatpush1.bf16.msra.mxu0 0
      %350 = vmatprep.subr.bf16.mxu0 0
      %351 = vmatpush1.bf16.msra.mxu0 0
      %352 = vmatprep.subr.bf16.mxu0 0
      %353 = vmatpush1.bf16.msra.mxu0 0
      %354 = vmatprep.mubr.bf16.mxu0 0
      %355 = vmatmul.mubr.bf16.gmra.mrb[0].mxu0 %v272
      %v356 = vpop.f32.mrb[0].mxu0
      %v357 = vadd.f32 0.0, %v356
      %v358 = vpop.f32.mrb[0].mxu0
      %v359 = vpop.f32.mrb[0].mxu0
      %v360 = vadd.f32 0.0, %v359
      %v361 = vpop.f32.mrb[0].mxu0
      %362 = vdwg.mxu0
      %363 = vst [vmem:[#allocation2] sm:$0xff] %v357
      %364 = vst [vmem:[#allocation2 + $0x8] sm:$0x3] %v360
      %v365 = vld [vmem:[%s233] sm:$0xf]
      %v366 = vld [vmem:[%s233 + $0x4] sm:$0x3]
      %s367 = scalar_lea.vmem %s237, 64
      %v368 = vld [vmem:[%s367] sm:$0xf]
      %v369 = vld [vmem:[%s367 + $0x4] sm:$0xf]
      %v370 = vld [vmem:[%s367 + $0x8] sm:$0xf]
      %v371 = vld [vmem:[%s367 + $0xc] sm:$0xf]
      %v372 = vld [vmem:[%s367 + $0x10] sm:$0xf]
      %v373 = vld [vmem:[%s367 + $0x14] sm:$0xf]
      %v374 = vld [vmem:[%s367 + $0x18] sm:$0xf]
      %v375 = vld [vmem:[%s367 + $0x1c] sm:$0xf]
      %v376 = vld [vmem:[%s367 + $0x20] sm:$0xf]
      %v377 = vld [vmem:[%s367 + $0x24] sm:$0xf]
      %v378 = vld [vmem:[%s367 + $0x28] sm:$0xf]
      %v379 = vld [vmem:[%s367 + $0x2c] sm:$0xf]
      %v380 = vld [vmem:[%s367 + $0x30] sm:$0xf]
      %v381 = vld [vmem:[%s367 + $0x34] sm:$0xf]
      %v382 = vld [vmem:[%s367 + $0x38] sm:$0xf]
      %v383 = vld [vmem:[%s367 + $0x3c] sm:$0xf]
      %v386 = vunpack.c.l.b16 %v365
      %v387 = vunpack.c.l.b16 %v366
      %v388 = vpack.c.b16 %v387, %v386
      %v390 = vshrl.u32 %v388, 16
      %v392 = vshll.u32 %v388, 16
      %v394 = vrot.slane %v392, 1
      %v395 = vor.u32 %v390, %v394
      %v413 = vunpack.c.l.b16 %v368
      %v414 = vunpack.c.l.b16 %v369
      %v415 = vunpack.c.l.b16 %v370
      %v416 = vunpack.c.l.b16 %v371
      %v417 = vunpack.c.l.b16 %v372
      %v418 = vunpack.c.l.b16 %v373
      %v419 = vunpack.c.l.b16 %v374
      %v420 = vunpack.c.l.b16 %v375
      %v421 = vunpack.c.l.b16 %v376
      %v422 = vunpack.c.l.b16 %v377
      %v423 = vunpack.c.l.b16 %v378
      %v424 = vunpack.c.l.b16 %v379
      %v425 = vunpack.c.l.b16 %v380
      %v426 = vunpack.c.l.b16 %v381
      %v427 = vunpack.c.l.b16 %v382
      %v428 = vunpack.c.l.b16 %v383
      %v429 = vpack.c.b16 %v414, %v413
      %v430 = vpack.c.b16 %v416, %v415
      %v431 = vpack.c.b16 %v418, %v417
      %v432 = vpack.c.b16 %v420, %v419
      %v433 = vpack.c.b16 %v422, %v421
      %v434 = vpack.c.b16 %v424, %v423
      %v435 = vpack.c.b16 %v426, %v425
      %v436 = vpack.c.b16 %v428, %v427
      %445 = vmatprep.subr.bf16.mxu0 0
      %446 = vmatpush1.bf16.msra.mxu0 %v429
      %447 = vmatprep.subr.bf16.mxu0 0
      %448 = vmatpush1.bf16.msra.mxu0 %v430
      %449 = vmatprep.subr.bf16.mxu0 0
      %450 = vmatpush1.bf16.msra.mxu0 %v431
      %451 = vmatprep.subr.bf16.mxu0 0
      %452 = vmatpush1.bf16.msra.mxu0 %v432
      %453 = vmatprep.subr.bf16.mxu0 0
      %454 = vmatpush1.bf16.msra.mxu0 %v433
      %455 = vmatprep.subr.bf16.mxu0 0
      %456 = vmatpush1.bf16.msra.mxu0 %v434
      %457 = vmatprep.subr.bf16.mxu0 0
      %458 = vmatpush1.bf16.msra.mxu0 %v435
      %459 = vmatprep.subr.bf16.mxu0 0
      %460 = vmatpush1.bf16.msra.mxu0 %v436
      %461 = vmatprep.subr.bf16.mxu0 0
      %462 = vmatpush1.bf16.msra.mxu0 0
      %463 = vmatprep.subr.bf16.mxu0 0
      %464 = vmatpush1.bf16.msra.mxu0 0
      %465 = vmatprep.subr.bf16.mxu0 0
      %466 = vmatpush1.bf16.msra.mxu0 0
      %467 = vmatprep.subr.bf16.mxu0 0
      %468 = vmatpush1.bf16.msra.mxu0 0
      %469 = vmatprep.subr.bf16.mxu0 0
      %470 = vmatpush1.bf16.msra.mxu0 0
      %471 = vmatprep.subr.bf16.mxu0 0
      %472 = vmatpush1.bf16.msra.mxu0 0
      %473 = vmatprep.subr.bf16.mxu0 0
      %474 = vmatpush1.bf16.msra.mxu0 0
      %475 = vmatprep.subr.bf16.mxu0 0
      %476 = vmatpush1.bf16.msra.mxu0 0
      %477 = vmatprep.mubr.bf16.mxu0 0
      %478 = vmatmul.mubr.bf16.gmra.mrb[0].mxu0 %v395
      %v479 = vpop.f32.mrb[0].mxu0
      %v480 = vadd.f32 0.0, %v479
      %v481 = vpop.f32.mrb[0].mxu0
      %v482 = vpop.f32.mrb[0].mxu0
      %v483 = vadd.f32 0.0, %v482
      %v484 = vpop.f32.mrb[0].mxu0
      %485 = vdwg.mxu0
      %v486 = vld [vmem:[#allocation2] sm:$0xff]
      %v487 = vld [vmem:[#allocation2 + $0x8] sm:$0x3]
      %v488 = vadd.f32 %v486, %v480
      %v489 = vadd.f32 %v487, %v483
      %490 = vst [vmem:[#allocation2] sm:$0xff] %v488
      %491 = vst [vmem:[#allocation2 + $0x8] sm:$0x3] %v489
      %v492 = vld [vmem:[%s233] sm:$0xe]
      %v493 = vld [vmem:[%s233 + $0x4] sm:$0x3]
      %s494 = scalar_lea.vmem %s237, 128
      %v495 = vld [vmem:[%s494] sm:$0xf]
      %v496 = vld [vmem:[%s494 + $0x4] sm:$0xf]
      %v497 = vld [vmem:[%s494 + $0x8] sm:$0xf]
      %v498 = vld [vmem:[%s494 + $0xc] sm:$0xf]
      %v499 = vld [vmem:[%s494 + $0x10] sm:$0xf]
      %v500 = vld [vmem:[%s494 + $0x14] sm:$0xf]
      %v501 = vld [vmem:[%s494 + $0x18] sm:$0xf]
      %v502 = vld [vmem:[%s494 + $0x1c] sm:$0xf]
      %v503 = vld [vmem:[%s494 + $0x20] sm:$0xf]
      %v504 = vld [vmem:[%s494 + $0x24] sm:$0xf]
      %v505 = vld [vmem:[%s494 + $0x28] sm:$0xf]
      %v506 = vld [vmem:[%s494 + $0x2c] sm:$0xf]
      %v507 = vld [vmem:[%s494 + $0x30] sm:$0xf]
      %v508 = vld [vmem:[%s494 + $0x34] sm:$0xf]
      %v509 = vld [vmem:[%s494 + $0x38] sm:$0xf]
      %v510 = vld [vmem:[%s494 + $0x3c] sm:$0xf]
      %v513 = vunpack.c.l.b16 %v492
      %v514 = vunpack.c.l.b16 %v493
      %v515 = vpack.c.b16 %v514, %v513
      %v516 = vrot.slane %v515, 1
      %v534 = vunpack.c.l.b16 %v495
      %v535 = vunpack.c.l.b16 %v496
      %v536 = vunpack.c.l.b16 %v497
      %v537 = vunpack.c.l.b16 %v498
      %v538 = vunpack.c.l.b16 %v499
      %v539 = vunpack.c.l.b16 %v500
      %v540 = vunpack.c.l.b16 %v501
      %v541 = vunpack.c.l.b16 %v502
      %v542 = vunpack.c.l.b16 %v503
      %v543 = vunpack.c.l.b16 %v504
      %v544 = vunpack.c.l.b16 %v505
      %v545 = vunpack.c.l.b16 %v506
      %v546 = vunpack.c.l.b16 %v507
      %v547 = vunpack.c.l.b16 %v508
      %v548 = vunpack.c.l.b16 %v509
      %v549 = vunpack.c.l.b16 %v510
      %v550 = vpack.c.b16 %v535, %v534
      %v551 = vpack.c.b16 %v537, %v536
      %v552 = vpack.c.b16 %v539, %v538
      %v553 = vpack.c.b16 %v541, %v540
      %v554 = vpack.c.b16 %v543, %v542
      %v555 = vpack.c.b16 %v545, %v544
      %v556 = vpack.c.b16 %v547, %v546
      %v557 = vpack.c.b16 %v549, %v548
      %566 = vmatprep.subr.bf16.mxu0 0
      %567 = vmatpush1.bf16.msra.mxu0 %v550
      %568 = vmatprep.subr.bf16.mxu0 0
      %569 = vmatpush1.bf16.msra.mxu0 %v551
      %570 = vmatprep.subr.bf16.mxu0 0
      %571 = vmatpush1.bf16.msra.mxu0 %v552
      %572 = vmatprep.subr.bf16.mxu0 0
      %573 = vmatpush1.bf16.msra.mxu0 %v553
      %574 = vmatprep.subr.bf16.mxu0 0
      %575 = vmatpush1.bf16.msra.mxu0 %v554
      %576 = vmatprep.subr.bf16.mxu0 0
      %577 = vmatpush1.bf16.msra.mxu0 %v555
      %578 = vmatprep.subr.bf16.mxu0 0
      %579 = vmatpush1.bf16.msra.mxu0 %v556
      %580 = vmatprep.subr.bf16.mxu0 0
      %581 = vmatpush1.bf16.msra.mxu0 %v557
      %582 = vmatprep.subr.bf16.mxu0 0
      %583 = vmatpush1.bf16.msra.mxu0 0
      %584 = vmatprep.subr.bf16.mxu0 0
      %585 = vmatpush1.bf16.msra.mxu0 0
      %586 = vmatprep.subr.bf16.mxu0 0
      %587 = vmatpush1.bf16.msra.mxu0 0
      %588 = vmatprep.subr.bf16.mxu0 0
      %589 = vmatpush1.bf16.msra.mxu0 0
      %590 = vmatprep.subr.bf16.mxu0 0
      %591 = vmatpush1.bf16.msra.mxu0 0
      %592 = vmatprep.subr.bf16.mxu0 0
      %593 = vmatpush1.bf16.msra.mxu0 0
      %594 = vmatprep.subr.bf16.mxu0 0
      %595 = vmatpush1.bf16.msra.mxu0 0
      %596 = vmatprep.subr.bf16.mxu0 0
      %597 = vmatpush1.bf16.msra.mxu0 0
      %598 = vmatprep.mubr.bf16.mxu0 0
      %599 = vmatmul.mubr.bf16.gmra.mrb[0].mxu0 %v516
      %v600 = vpop.f32.mrb[0].mxu0
      %v601 = vadd.f32 0.0, %v600
      %v602 = vpop.f32.mrb[0].mxu0
      %v603 = vpop.f32.mrb[0].mxu0
      %v604 = vadd.f32 0.0, %v603
      %v605 = vpop.f32.mrb[0].mxu0
      %606 = vdwg.mxu0
      %v607 = vld [vmem:[#allocation2] sm:$0xff]
      %v608 = vld [vmem:[#allocation2 + $0x8] sm:$0x3]
      %v609 = vadd.f32 %v607, %v601
      %v610 = vadd.f32 %v608, %v604
      %611 = vst [vmem:[#allocation2] sm:$0xff] %v609
      %612 = vst [vmem:[#allocation2 + $0x8] sm:$0x3] %v610
      %v613 = vld [vmem:[%s233] sm:$0xe]
      %v614 = vld [vmem:[%s233 + $0x4] sm:$0x7]
      %s615 = scalar_lea.vmem %s237, 192
      %v616 = vld [vmem:[%s615] sm:$0xf]
      %v617 = vld [vmem:[%s615 + $0x4] sm:$0xf]
      %v618 = vld [vmem:[%s615 + $0x8] sm:$0xf]
      %v619 = vld [vmem:[%s615 + $0xc] sm:$0xf]
      %v620 = vld [vmem:[%s615 + $0x10] sm:$0xf]
      %v621 = vld [vmem:[%s615 + $0x14] sm:$0xf]
      %v622 = vld [vmem:[%s615 + $0x18] sm:$0xf]
      %v623 = vld [vmem:[%s615 + $0x1c] sm:$0xf]
      %v624 = vld [vmem:[%s615 + $0x20] sm:$0xf]
      %v625 = vld [vmem:[%s615 + $0x24] sm:$0xf]
      %v626 = vld [vmem:[%s615 + $0x28] sm:$0xf]
      %v627 = vld [vmem:[%s615 + $0x2c] sm:$0xf]
      %v628 = vld [vmem:[%s615 + $0x30] sm:$0xf]
      %v629 = vld [vmem:[%s615 + $0x34] sm:$0xf]
      %v630 = vld [vmem:[%s615 + $0x38] sm:$0xf]
      %v631 = vld [vmem:[%s615 + $0x3c] sm:$0xf]
      %v634 = vunpack.c.l.b16 %v613
      %v635 = vunpack.c.l.b16 %v614
      %v636 = vpack.c.b16 %v635, %v634
      %v638 = vshrl.u32 %v636, 16
      %v640 = vrot.slane %v638, 1
      %v641 = vshll.u32 %v636, 16
      %v643 = vrot.slane %v641, 2
      %v644 = vor.u32 %v640, %v643
      %v662 = vunpack.c.l.b16 %v616
      %v663 = vunpack.c.l.b16 %v617
      %v664 = vunpack.c.l.b16 %v618
      %v665 = vunpack.c.l.b16 %v619
      %v666 = vunpack.c.l.b16 %v620
      %v667 = vunpack.c.l.b16 %v621
      %v668 = vunpack.c.l.b16 %v622
      %v669 = vunpack.c.l.b16 %v623
      %v670 = vunpack.c.l.b16 %v624
      %v671 = vunpack.c.l.b16 %v625
      %v672 = vunpack.c.l.b16 %v626
      %v673 = vunpack.c.l.b16 %v627
      %v674 = vunpack.c.l.b16 %v628
      %v675 = vunpack.c.l.b16 %v629
      %v676 = vunpack.c.l.b16 %v630
      %v677 = vunpack.c.l.b16 %v631
      %v678 = vpack.c.b16 %v663, %v662
      %v679 = vpack.c.b16 %v665, %v664
      %v680 = vpack.c.b16 %v667, %v666
      %v681 = vpack.c.b16 %v669, %v668
      %v682 = vpack.c.b16 %v671, %v670
      %v683 = vpack.c.b16 %v673, %v672
      %v684 = vpack.c.b16 %v675, %v674
      %v685 = vpack.c.b16 %v677, %v676
      %694 = vmatprep.subr.bf16.mxu0 0
      %695 = vmatpush1.bf16.msra.mxu0 %v678
      %696 = vmatprep.subr.bf16.mxu0 0
      %697 = vmatpush1.bf16.msra.mxu0 %v679
      %698 = vmatprep.subr.bf16.mxu0 0
      %699 = vmatpush1.bf16.msra.mxu0 %v680
      %700 = vmatprep.subr.bf16.mxu0 0
      %701 = vmatpush1.bf16.msra.mxu0 %v681
      %702 = vmatprep.subr.bf16.mxu0 0
      %703 = vmatpush1.bf16.msra.mxu0 %v682
      %704 = vmatprep.subr.bf16.mxu0 0
      %705 = vmatpush1.bf16.msra.mxu0 %v683
      %706 = vmatprep.subr.bf16.mxu0 0
      %707 = vmatpush1.bf16.msra.mxu0 %v684
      %708 = vmatprep.subr.bf16.mxu0 0
      %709 = vmatpush1.bf16.msra.mxu0 %v685
      %710 = vmatprep.subr.bf16.mxu0 0
      %711 = vmatpush1.bf16.msra.mxu0 0
      %712 = vmatprep.subr.bf16.mxu0 0
      %713 = vmatpush1.bf16.msra.mxu0 0
      %714 = vmatprep.subr.bf16.mxu0 0
      %715 = vmatpush1.bf16.msra.mxu0 0
      %716 = vmatprep.subr.bf16.mxu0 0
      %717 = vmatpush1.bf16.msra.mxu0 0
      %718 = vmatprep.subr.bf16.mxu0 0
      %719 = vmatpush1.bf16.msra.mxu0 0
      %720 = vmatprep.subr.bf16.mxu0 0
      %721 = vmatpush1.bf16.msra.mxu0 0
      %722 = vmatprep.subr.bf16.mxu0 0
      %723 = vmatpush1.bf16.msra.mxu0 0
      %724 = vmatprep.subr.bf16.mxu0 0
      %725 = vmatpush1.bf16.msra.mxu0 0
      %726 = vmatprep.mubr.bf16.mxu0 0
      %727 = vmatmul.mubr.bf16.gmra.mrb[0].mxu0 %v644
      %v728 = vpop.f32.mrb[0].mxu0
      %v729 = vadd.f32 0.0, %v728
      %v730 = vpop.f32.mrb[0].mxu0
      %v731 = vpop.f32.mrb[0].mxu0
      %v732 = vadd.f32 0.0, %v731
      %v733 = vpop.f32.mrb[0].mxu0
      %734 = vdwg.mxu0
      %v735 = vld [vmem:[#allocation2] sm:$0xff]
      %v736 = vld [vmem:[#allocation2 + $0x8] sm:$0x3]
      %v737 = vadd.f32 %v735, %v729
      %v738 = vadd.f32 %v736, %v732
      %739 = vst [vmem:[#allocation2] sm:$0xff] %v737
      %740 = vst [vmem:[#allocation2 + $0x8] sm:$0x3] %v738
      %v741 = vld [vmem:[%s233] sm:$0xc]
      %v742 = vld [vmem:[%s233 + $0x4] sm:$0xf]
      %s743 = scalar_lea.vmem %s237, 256
      %v744 = vld [vmem:[%s743] sm:$0xf]
      %v745 = vld [vmem:[%s743 + $0x4] sm:$0xf]
      %v746 = vld [vmem:[%s743 + $0x8] sm:$0xf]
      %v747 = vld [vmem:[%s743 + $0xc] sm:$0xf]
      %v748 = vld [vmem:[%s743 + $0x10] sm:$0xf]
      %v749 = vld [vmem:[%s743 + $0x14] sm:$0xf]
      %v750 = vld [vmem:[%s743 + $0x18] sm:$0xf]
      %v751 = vld [vmem:[%s743 + $0x1c] sm:$0xf]
      %v752 = vld [vmem:[%s743 + $0x20] sm:$0xf]
      %v753 = vld [vmem:[%s743 + $0x24] sm:$0xf]
      %v754 = vld [vmem:[%s743 + $0x28] sm:$0xf]
      %v755 = vld [vmem:[%s743 + $0x2c] sm:$0xf]
      %v756 = vld [vmem:[%s743 + $0x30] sm:$0xf]
      %v757 = vld [vmem:[%s743 + $0x34] sm:$0xf]
      %v758 = vld [vmem:[%s743 + $0x38] sm:$0xf]
      %v759 = vld [vmem:[%s743 + $0x3c] sm:$0xf]
      %v762 = vunpack.c.l.b16 %v741
      %v763 = vunpack.c.l.b16 %v742
      %v764 = vpack.c.b16 %v763, %v762
      %v766 = vshrl.u32 %v764, 16
      %v768 = vrot.slane %v766, 2
      %v769 = vshll.u32 %v764, 16
      %v771 = vrot.slane %v769, 3
      %v772 = vor.u32 %v768, %v771
      %v790 = vunpack.c.l.b16 %v744
      %v791 = vunpack.c.l.b16 %v745
      %v792 = vunpack.c.l.b16 %v746
      %v793 = vunpack.c.l.b16 %v747
      %v794 = vunpack.c.l.b16 %v748
      %v795 = vunpack.c.l.b16 %v749
      %v796 = vunpack.c.l.b16 %v750
      %v797 = vunpack.c.l.b16 %v751
      %v798 = vunpack.c.l.b16 %v752
      %v799 = vunpack.c.l.b16 %v753
      %v800 = vunpack.c.l.b16 %v754
      %v801 = vunpack.c.l.b16 %v755
      %v802 = vunpack.c.l.b16 %v756
      %v803 = vunpack.c.l.b16 %v757
      %v804 = vunpack.c.l.b16 %v758
      %v805 = vunpack.c.l.b16 %v759
      %v806 = vpack.c.b16 %v791, %v790
      %v807 = vpack.c.b16 %v793, %v792
      %v808 = vpack.c.b16 %v795, %v794
      %v809 = vpack.c.b16 %v797, %v796
      %v810 = vpack.c.b16 %v799, %v798
      %v811 = vpack.c.b16 %v801, %v800
      %v812 = vpack.c.b16 %v803, %v802
      %v813 = vpack.c.b16 %v805, %v804
      %822 = vmatprep.subr.bf16.mxu0 0
      %823 = vmatpush1.bf16.msra.mxu0 %v806
      %824 = vmatprep.subr.bf16.mxu0 0
      %825 = vmatpush1.bf16.msra.mxu0 %v807
      %826 = vmatprep.subr.bf16.mxu0 0
      %827 = vmatpush1.bf16.msra.mxu0 %v808
      %828 = vmatprep.subr.bf16.mxu0 0
      %829 = vmatpush1.bf16.msra.mxu0 %v809
      %830 = vmatprep.subr.bf16.mxu0 0
      %831 = vmatpush1.bf16.msra.mxu0 %v810
      %832 = vmatprep.subr.bf16.mxu0 0
      %833 = vmatpush1.bf16.msra.mxu0 %v811
      %834 = vmatprep.subr.bf16.mxu0 0
      %835 = vmatpush1.bf16.msra.mxu0 %v812
      %836 = vmatprep.subr.bf16.mxu0 0
      %837 = vmatpush1.bf16.msra.mxu0 %v813
      %838 = vmatprep.subr.bf16.mxu0 0
      %839 = vmatpush1.bf16.msra.mxu0 0
      %840 = vmatprep.subr.bf16.mxu0 0
      %841 = vmatpush1.bf16.msra.mxu0 0
      %842 = vmatprep.subr.bf16.mxu0 0
      %843 = vmatpush1.bf16.msra.mxu0 0
      %844 = vmatprep.subr.bf16.mxu0 0
      %845 = vmatpush1.bf16.msra.mxu0 0
      %846 = vmatprep.subr.bf16.mxu0 0
      %847 = vmatpush1.bf16.msra.mxu0 0
      %848 = vmatprep.subr.bf16.mxu0 0
      %849 = vmatpush1.bf16.msra.mxu0 0
      %850 = vmatprep.subr.bf16.mxu0 0
      %851 = vmatpush1.bf16.msra.mxu0 0
      %852 = vmatprep.subr.bf16.mxu0 0
      %853 = vmatpush1.bf16.msra.mxu0 0
      %854 = vmatprep.mubr.bf16.mxu0 0
      %855 = vmatmul.mubr.bf16.gmra.mrb[0].mxu0 %v772
      %v856 = vpop.f32.mrb[0].mxu0
      %v857 = vadd.f32 0.0, %v856
      %v858 = vpop.f32.mrb[0].mxu0
      %v859 = vpop.f32.mrb[0].mxu0
      %v860 = vadd.f32 0.0, %v859
      %v861 = vpop.f32.mrb[0].mxu0
      %862 = vdwg.mxu0
      %v863 = vld [vmem:[#allocation2] sm:$0xff]
      %v864 = vld [vmem:[#allocation2 + $0x8] sm:$0x3]
      %v865 = vadd.f32 %v863, %v857
      %v866 = vadd.f32 %v864, %v860
      %867 = vst [vmem:[#allocation2] sm:$0xff] %v865
      %868 = vst [vmem:[#allocation2 + $0x8] sm:$0x3] %v866
      %v869 = vld [vmem:[%s233] sm:$0x8]
      %v870 = vld [vmem:[%s233 + $0x4] sm:$0xf]
      %s871 = scalar_lea.vmem %s237, 320
      %v872 = vld [vmem:[%s871] sm:$0xf]
      %v873 = vld [vmem:[%s871 + $0x4] sm:$0xf]
      %v874 = vld [vmem:[%s871 + $0x8] sm:$0xf]
      %v875 = vld [vmem:[%s871 + $0xc] sm:$0xf]
      %v876 = vld [vmem:[%s871 + $0x10] sm:$0xf]
      %v877 = vld [vmem:[%s871 + $0x14] sm:$0xf]
      %v878 = vld [vmem:[%s871 + $0x18] sm:$0xf]
      %v879 = vld [vmem:[%s871 + $0x1c] sm:$0xf]
      %v880 = vld [vmem:[%s871 + $0x20] sm:$0xf]
      %v881 = vld [vmem:[%s871 + $0x24] sm:$0xf]
      %v882 = vld [vmem:[%s871 + $0x28] sm:$0xf]
      %v883 = vld [vmem:[%s871 + $0x2c] sm:$0xf]
      %v884 = vld [vmem:[%s871 + $0x30] sm:$0xf]
      %v885 = vld [vmem:[%s871 + $0x34] sm:$0xf]
      %v886 = vld [vmem:[%s871 + $0x38] sm:$0xf]
      %v887 = vld [vmem:[%s871 + $0x3c] sm:$0xf]
      %v890 = vunpack.c.l.b16 %v869
      %v891 = vunpack.c.l.b16 %v870
      %v892 = vpack.c.b16 %v891, %v890
      %v893 = vrot.slane %v892, 3
      %v911 = vunpack.c.l.b16 %v872
      %v912 = vunpack.c.l.b16 %v873
      %v913 = vunpack.c.l.b16 %v874
      %v914 = vunpack.c.l.b16 %v875
      %v915 = vunpack.c.l.b16 %v876
      %v916 = vunpack.c.l.b16 %v877
      %v917 = vunpack.c.l.b16 %v878
      %v918 = vunpack.c.l.b16 %v879
      %v919 = vunpack.c.l.b16 %v880
      %v920 = vunpack.c.l.b16 %v881
      %v921 = vunpack.c.l.b16 %v882
      %v922 = vunpack.c.l.b16 %v883
      %v923 = vunpack.c.l.b16 %v884
      %v924 = vunpack.c.l.b16 %v885
      %v925 = vunpack.c.l.b16 %v886
      %v926 = vunpack.c.l.b16 %v887
      %v927 = vpack.c.b16 %v912, %v911
      %v928 = vpack.c.b16 %v914, %v913
      %v929 = vpack.c.b16 %v916, %v915
      %v930 = vpack.c.b16 %v918, %v917
      %v931 = vpack.c.b16 %v920, %v919
      %v932 = vpack.c.b16 %v922, %v921
      %v933 = vpack.c.b16 %v924, %v923
      %v934 = vpack.c.b16 %v926, %v925
      %943 = vmatprep.subr.bf16.mxu0 0
      %944 = vmatpush1.bf16.msra.mxu0 %v927
      %945 = vmatprep.subr.bf16.mxu0 0
      %946 = vmatpush1.bf16.msra.mxu0 %v928
      %947 = vmatprep.subr.bf16.mxu0 0
      %948 = vmatpush1.bf16.msra.mxu0 %v929
      %949 = vmatprep.subr.bf16.mxu0 0
      %950 = vmatpush1.bf16.msra.mxu0 %v930
      %951 = vmatprep.subr.bf16.mxu0 0
      %952 = vmatpush1.bf16.msra.mxu0 %v931
      %953 = vmatprep.subr.bf16.mxu0 0
      %954 = vmatpush1.bf16.msra.mxu0 %v932
      %955 = vmatprep.subr.bf16.mxu0 0
      %956 = vmatpush1.bf16.msra.mxu0 %v933
      %957 = vmatprep.subr.bf16.mxu0 0
      %958 = vmatpush1.bf16.msra.mxu0 %v934
      %959 = vmatprep.subr.bf16.mxu0 0
      %960 = vmatpush1.bf16.msra.mxu0 0
      %961 = vmatprep.subr.bf16.mxu0 0
      %962 = vmatpush1.bf16.msra.mxu0 0
      %963 = vmatprep.subr.bf16.mxu0 0
      %964 = vmatpush1.bf16.msra.mxu0 0
      %965 = vmatprep.subr.bf16.mxu0 0
      %966 = vmatpush1.bf16.msra.mxu0 0
      %967 = vmatprep.subr.bf16.mxu0 0
      %968 = vmatpush1.bf16.msra.mxu0 0
      %969 = vmatprep.subr.bf16.mxu0 0
      %970 = vmatpush1.bf16.msra.mxu0 0
      %971 = vmatprep.subr.bf16.mxu0 0
      %972 = vmatpush1.bf16.msra.mxu0 0
      %973 = vmatprep.subr.bf16.mxu0 0
      %974 = vmatpush1.bf16.msra.mxu0 0
      %975 = vmatprep.mubr.bf16.mxu0 0
      %976 = vmatmul.mubr.bf16.gmra.mrb[0].mxu0 %v893
      %v977 = vpop.f32.mrb[0].mxu0
      %v978 = vadd.f32 0.0, %v977
      %v979 = vpop.f32.mrb[0].mxu0
      %v980 = vpop.f32.mrb[0].mxu0
      %v981 = vadd.f32 0.0, %v980
      %v982 = vpop.f32.mrb[0].mxu0
      %983 = vdwg.mxu0
      %v984 = vld [vmem:[#allocation2] sm:$0xff]
      %v985 = vld [vmem:[#allocation2 + $0x8] sm:$0x3]
      %v986 = vadd.f32 %v984, %v978
      %v987 = vadd.f32 %v985, %v981
      %988 = vst [vmem:[#allocation2] sm:$0xff] %v986
      %989 = vst [vmem:[#allocation2 + $0x8] sm:$0x3] %v987
      %v990 = vld [vmem:[%s233] sm:$0x8]
      %v991 = vld [vmem:[%s233 + $0x4] sm:$0xf]
      %v992 = vld [vmem:[%s233 + $0x8] sm:$0x1]
      %s993 = scalar_lea.vmem %s237, 384
      %v994 = vld [vmem:[%s993] sm:$0xf]
      %v995 = vld [vmem:[%s993 + $0x4] sm:$0xf]
      %v996 = vld [vmem:[%s993 + $0x8] sm:$0xf]
      %v997 = vld [vmem:[%s993 + $0xc] sm:$0xf]
      %v998 = vld [vmem:[%s993 + $0x10] sm:$0xf]
      %v999 = vld [vmem:[%s993 + $0x14] sm:$0xf]
      %v1000 = vld [vmem:[%s993 + $0x18] sm:$0xf]
      %v1001 = vld [vmem:[%s993 + $0x1c] sm:$0xf]
      %v1002 = vld [vmem:[%s993 + $0x20] sm:$0xf]
      %v1003 = vld [vmem:[%s993 + $0x24] sm:$0xf]
      %v1004 = vld [vmem:[%s993 + $0x28] sm:$0xf]
      %v1005 = vld [vmem:[%s993 + $0x2c] sm:$0xf]
      %v1006 = vld [vmem:[%s993 + $0x30] sm:$0xf]
      %v1007 = vld [vmem:[%s993 + $0x34] sm:$0xf]
      %v1008 = vld [vmem:[%s993 + $0x38] sm:$0xf]
      %v1009 = vld [vmem:[%s993 + $0x3c] sm:$0xf]
      %v1013 = vunpack.c.l.b16 %v990
      %v1014 = vunpack.c.l.b16 %v991
      %v1015 = vunpack.c.l.b16 %v992
      %v1016 = vpack.c.b16 %v1014, %v1013
      %v1017 = vpack.c.b16 %v1015, %v1015
      %vm1018 = vsmask.f32 4352
      %v1020 = vshrl.u32 %v1016, 16
      %v1022 = vrot.slane %v1020, 3
      %v1023 = vshll.u32 %v1016, 16
      %v1025 = vrot.slane %v1023, 4
      %v1026 = vor.u32 %v1022, %v1025
      %v1028 = vshll.u32 %v1017, 16
      %v1030 = vrot.slane %v1028, 4
      %v1031 = vsel %vm1018, %v1026, %v1030
      %v1049 = vunpack.c.l.b16 %v994
      %v1050 = vunpack.c.l.b16 %v995
      %v1051 = vunpack.c.l.b16 %v996
      %v1052 = vunpack.c.l.b16 %v997
      %v1053 = vunpack.c.l.b16 %v998
      %v1054 = vunpack.c.l.b16 %v999
      %v1055 = vunpack.c.l.b16 %v1000
      %v1056 = vunpack.c.l.b16 %v1001
      %v1057 = vunpack.c.l.b16 %v1002
      %v1058 = vunpack.c.l.b16 %v1003
      %v1059 = vunpack.c.l.b16 %v1004
      %v1060 = vunpack.c.l.b16 %v1005
      %v1061 = vunpack.c.l.b16 %v1006
      %v1062 = vunpack.c.l.b16 %v1007
      %v1063 = vunpack.c.l.b16 %v1008
      %v1064 = vunpack.c.l.b16 %v1009
      %v1065 = vpack.c.b16 %v1050, %v1049
      %v1066 = vpack.c.b16 %v1052, %v1051
      %v1067 = vpack.c.b16 %v1054, %v1053
      %v1068 = vpack.c.b16 %v1056, %v1055
      %v1069 = vpack.c.b16 %v1058, %v1057
      %v1070 = vpack.c.b16 %v1060, %v1059
      %v1071 = vpack.c.b16 %v1062, %v1061
      %v1072 = vpack.c.b16 %v1064, %v1063
      %1081 = vmatprep.subr.bf16.mxu0 0
      %1082 = vmatpush1.bf16.msra.mxu0 %v1065
      %1083 = vmatprep.subr.bf16.mxu0 0
      %1084 = vmatpush1.bf16.msra.mxu0 %v1066
      %1085 = vmatprep.subr.bf16.mxu0 0
      %1086 = vmatpush1.bf16.msra.mxu0 %v1067
      %1087 = vmatprep.subr.bf16.mxu0 0
      %1088 = vmatpush1.bf16.msra.mxu0 %v1068
      %1089 = vmatprep.subr.bf16.mxu0 0
      %1090 = vmatpush1.bf16.msra.mxu0 %v1069
      %1091 = vmatprep.subr.bf16.mxu0 0
      %1092 = vmatpush1.bf16.msra.mxu0 %v1070
      %1093 = vmatprep.subr.bf16.mxu0 0
      %1094 = vmatpush1.bf16.msra.mxu0 %v1071
      %1095 = vmatprep.subr.bf16.mxu0 0
      %1096 = vmatpush1.bf16.msra.mxu0 %v1072
      %1097 = vmatprep.subr.bf16.mxu0 0
      %1098 = vmatpush1.bf16.msra.mxu0 0
      %1099 = vmatprep.subr.bf16.mxu0 0
      %1100 = vmatpush1.bf16.msra.mxu0 0
      %1101 = vmatprep.subr.bf16.mxu0 0
      %1102 = vmatpush1.bf16.msra.mxu0 0
      %1103 = vmatprep.subr.bf16.mxu0 0
      %1104 = vmatpush1.bf16.msra.mxu0 0
      %1105 = vmatprep.subr.bf16.mxu0 0
      %1106 = vmatpush1.bf16.msra.mxu0 0
      %1107 = vmatprep.subr.bf16.mxu0 0
      %1108 = vmatpush1.bf16.msra.mxu0 0
      %1109 = vmatprep.subr.bf16.mxu0 0
      %1110 = vmatpush1.bf16.msra.mxu0 0
      %1111 = vmatprep.subr.bf16.mxu0 0
      %1112 = vmatpush1.bf16.msra.mxu0 0
      %1113 = vmatprep.mubr.bf16.mxu0 0
      %1114 = vmatmul.mubr.bf16.gmra.mrb[0].mxu0 %v1031
      %v1115 = vpop.f32.mrb[0].mxu0
      %v1116 = vadd.f32 0.0, %v1115
      %v1117 = vpop.f32.mrb[0].mxu0
      %v1118 = vpop.f32.mrb[0].mxu0
      %v1119 = vadd.f32 0.0, %v1118
      %v1120 = vpop.f32.mrb[0].mxu0
      %1121 = vdwg.mxu0
      %v1122 = vld [vmem:[#allocation2] sm:$0xff]
      %v1123 = vld [vmem:[#allocation2 + $0x8] sm:$0x3]
      %v1124 = vadd.f32 %v1122, %v1116
      %v1125 = vadd.f32 %v1123, %v1119
      %1126 = vst [vmem:[#allocation2] sm:$0xff] %v1124
      %1127 = vst [vmem:[#allocation2 + $0x8] sm:$0x3] %v1125
      %v1128 = vld [vmem:[%s233 + $0x4] sm:$0xf]
      %v1129 = vld [vmem:[%s233 + $0x8] sm:$0x1]
      %s1130 = scalar_lea.vmem %s237, 448
      %v1131 = vld [vmem:[%s1130] sm:$0xf]
      %v1132 = vld [vmem:[%s1130 + $0x4] sm:$0xf]
      %v1133 = vld [vmem:[%s1130 + $0x8] sm:$0xf]
      %v1134 = vld [vmem:[%s1130 + $0xc] sm:$0xf]
      %v1135 = vld [vmem:[%s1130 + $0x10] sm:$0xf]
      %v1136 = vld [vmem:[%s1130 + $0x14] sm:$0xf]
      %v1137 = vld [vmem:[%s1130 + $0x18] sm:$0xf]
      %v1138 = vld [vmem:[%s1130 + $0x1c] sm:$0xf]
      %v1139 = vld [vmem:[%s1130 + $0x20] sm:$0xf]
      %v1140 = vld [vmem:[%s1130 + $0x24] sm:$0xf]
      %v1141 = vld [vmem:[%s1130 + $0x28] sm:$0xf]
      %v1142 = vld [vmem:[%s1130 + $0x2c] sm:$0xf]
      %v1143 = vld [vmem:[%s1130 + $0x30] sm:$0xf]
      %v1144 = vld [vmem:[%s1130 + $0x34] sm:$0xf]
      %v1145 = vld [vmem:[%s1130 + $0x38] sm:$0xf]
      %v1146 = vld [vmem:[%s1130 + $0x3c] sm:$0xf]
      %v1149 = vunpack.c.l.b16 %v1128
      %v1150 = vunpack.c.l.b16 %v1129
      %v1151 = vpack.c.b16 %v1150, %v1149
      %v1169 = vunpack.c.l.b16 %v1131
      %v1170 = vunpack.c.l.b16 %v1132
      %v1171 = vunpack.c.l.b16 %v1133
      %v1172 = vunpack.c.l.b16 %v1134
      %v1173 = vunpack.c.l.b16 %v1135
      %v1174 = vunpack.c.l.b16 %v1136
      %v1175 = vunpack.c.l.b16 %v1137
      %v1176 = vunpack.c.l.b16 %v1138
      %v1177 = vunpack.c.l.b16 %v1139
      %v1178 = vunpack.c.l.b16 %v1140
      %v1179 = vunpack.c.l.b16 %v1141
      %v1180 = vunpack.c.l.b16 %v1142
      %v1181 = vunpack.c.l.b16 %v1143
      %v1182 = vunpack.c.l.b16 %v1144
      %v1183 = vunpack.c.l.b16 %v1145
      %v1184 = vunpack.c.l.b16 %v1146
      %v1185 = vpack.c.b16 %v1170, %v1169
      %v1186 = vpack.c.b16 %v1172, %v1171
      %v1187 = vpack.c.b16 %v1174, %v1173
      %v1188 = vpack.c.b16 %v1176, %v1175
      %v1189 = vpack.c.b16 %v1178, %v1177
      %v1190 = vpack.c.b16 %v1180, %v1179
      %v1191 = vpack.c.b16 %v1182, %v1181
      %v1192 = vpack.c.b16 %v1184, %v1183
      %1201 = vmatprep.subr.bf16.mxu0 0
      %1202 = vmatpush1.bf16.msra.mxu0 %v1185
      %1203 = vmatprep.subr.bf16.mxu0 0
      %1204 = vmatpush1.bf16.msra.mxu0 %v1186
      %1205 = vmatprep.subr.bf16.mxu0 0
      %1206 = vmatpush1.bf16.msra.mxu0 %v1187
      %1207 = vmatprep.subr.bf16.mxu0 0
      %1208 = vmatpush1.bf16.msra.mxu0 %v1188
      %1209 = vmatprep.subr.bf16.mxu0 0
      %1210 = vmatpush1.bf16.msra.mxu0 %v1189
      %1211 = vmatprep.subr.bf16.mxu0 0
      %1212 = vmatpush1.bf16.msra.mxu0 %v1190
      %1213 = vmatprep.subr.bf16.mxu0 0
      %1214 = vmatpush1.bf16.msra.mxu0 %v1191
      %1215 = vmatprep.subr.bf16.mxu0 0
      %1216 = vmatpush1.bf16.msra.mxu0 %v1192
      %1217 = vmatprep.subr.bf16.mxu0 0
      %1218 = vmatpush1.bf16.msra.mxu0 0
      %1219 = vmatprep.subr.bf16.mxu0 0
      %1220 = vmatpush1.bf16.msra.mxu0 0
      %1221 = vmatprep.subr.bf16.mxu0 0
      %1222 = vmatpush1.bf16.msra.mxu0 0
      %1223 = vmatprep.subr.bf16.mxu0 0
      %1224 = vmatpush1.bf16.msra.mxu0 0
      %1225 = vmatprep.subr.bf16.mxu0 0
      %1226 = vmatpush1.bf16.msra.mxu0 0
      %1227 = vmatprep.subr.bf16.mxu0 0
      %1228 = vmatpush1.bf16.msra.mxu0 0
      %1229 = vmatprep.subr.bf16.mxu0 0
      %1230 = vmatpush1.bf16.msra.mxu0 0
      %1231 = vmatprep.subr.bf16.mxu0 0
      %1232 = vmatpush1.bf16.msra.mxu0 0
      %1233 = vmatprep.mubr.bf16.mxu0 0
      %1234 = vmatmul.mubr.bf16.gmra.mrb[0].mxu0 %v1151
      %v1235 = vpop.f32.mrb[0].mxu0
      %v1236 = vadd.f32 0.0, %v1235
      %v1237 = vpop.f32.mrb[0].mxu0
      %v1238 = vpop.f32.mrb[0].mxu0
      %v1239 = vadd.f32 0.0, %v1238
      %v1240 = vpop.f32.mrb[0].mxu0
      %1241 = vdwg.mxu0
      %v1242 = vld [vmem:[#allocation2] sm:$0xff]
      %v1243 = vld [vmem:[#allocation2 + $0x8] sm:$0x3]
      %v1244 = vadd.f32 %v1242, %v1236
      %v1245 = vadd.f32 %v1243, %v1239
      %1246 = vst [vmem:[#allocation2] sm:$0xff] %v1244
      %1247 = vst [vmem:[#allocation2 + $0x8] sm:$0x3] %v1245
      %v1248 = vld [vmem:[%s233 + $0x4] sm:$0xe]
      %v1249 = vld [vmem:[%s233 + $0x8] sm:$0x3]
      %s1250 = scalar_lea.vmem %s237, 512
      %v1251 = vld [vmem:[%s1250] sm:$0xf]
      %v1252 = vld [vmem:[%s1250 + $0x4] sm:$0xf]
      %v1253 = vld [vmem:[%s1250 + $0x8] sm:$0xf]
      %v1254 = vld [vmem:[%s1250 + $0xc] sm:$0xf]
      %v1255 = vld [vmem:[%s1250 + $0x10] sm:$0xf]
      %v1256 = vld [vmem:[%s1250 + $0x14] sm:$0xf]
      %v1257 = vld [vmem:[%s1250 + $0x18] sm:$0xf]
      %v1258 = vld [vmem:[%s1250 + $0x1c] sm:$0xf]
      %v1259 = vld [vmem:[%s1250 + $0x20] sm:$0xf]
      %v1260 = vld [vmem:[%s1250 + $0x24] sm:$0xf]
      %v1261 = vld [vmem:[%s1250 + $0x28] sm:$0xf]
      %v1262 = vld [vmem:[%s1250 + $0x2c] sm:$0xf]
      %v1263 = vld [vmem:[%s1250 + $0x30] sm:$0xf]
      %v1264 = vld [vmem:[%s1250 + $0x34] sm:$0xf]
      %v1265 = vld [vmem:[%s1250 + $0x38] sm:$0xf]
      %v1266 = vld [vmem:[%s1250 + $0x3c] sm:$0xf]
      %v1269 = vunpack.c.l.b16 %v1248
      %v1270 = vunpack.c.l.b16 %v1249
      %v1271 = vpack.c.b16 %v1270, %v1269
      %v1272 = vrot.slane %v1271, 1
      %v1290 = vunpack.c.l.b16 %v1251
      %v1291 = vunpack.c.l.b16 %v1252
      %v1292 = vunpack.c.l.b16 %v1253
      %v1293 = vunpack.c.l.b16 %v1254
      %v1294 = vunpack.c.l.b16 %v1255
      %v1295 = vunpack.c.l.b16 %v1256
      %v1296 = vunpack.c.l.b16 %v1257
      %v1297 = vunpack.c.l.b16 %v1258
      %v1298 = vunpack.c.l.b16 %v1259
      %v1299 = vunpack.c.l.b16 %v1260
      %v1300 = vunpack.c.l.b16 %v1261
      %v1301 = vunpack.c.l.b16 %v1262
      %v1302 = vunpack.c.l.b16 %v1263
      %v1303 = vunpack.c.l.b16 %v1264
      %v1304 = vunpack.c.l.b16 %v1265
      %v1305 = vunpack.c.l.b16 %v1266
      %v1306 = vpack.c.b16 %v1291, %v1290
      %v1307 = vpack.c.b16 %v1293, %v1292
      %v1308 = vpack.c.b16 %v1295, %v1294
      %v1309 = vpack.c.b16 %v1297, %v1296
      %v1310 = vpack.c.b16 %v1299, %v1298
      %v1311 = vpack.c.b16 %v1301, %v1300
      %v1312 = vpack.c.b16 %v1303, %v1302
      %v1313 = vpack.c.b16 %v1305, %v1304
      %1322 = vmatprep.subr.bf16.mxu0 0
      %1323 = vmatpush1.bf16.msra.mxu0 %v1306
      %1324 = vmatprep.subr.bf16.mxu0 0
      %1325 = vmatpush1.bf16.msra.mxu0 %v1307
      %1326 = vmatprep.subr.bf16.mxu0 0
      %1327 = vmatpush1.bf16.msra.mxu0 %v1308
      %1328 = vmatprep.subr.bf16.mxu0 0
      %1329 = vmatpush1.bf16.msra.mxu0 %v1309
      %1330 = vmatprep.subr.bf16.mxu0 0
      %1331 = vmatpush1.bf16.msra.mxu0 %v1310
      %1332 = vmatprep.subr.bf16.mxu0 0
      %1333 = vmatpush1.bf16.msra.mxu0 %v1311
      %1334 = vmatprep.subr.bf16.mxu0 0
      %1335 = vmatpush1.bf16.msra.mxu0 %v1312
      %1336 = vmatprep.subr.bf16.mxu0 0
      %1337 = vmatpush1.bf16.msra.mxu0 %v1313
      %1338 = vmatprep.subr.bf16.mxu0 0
      %1339 = vmatpush1.bf16.msra.mxu0 0
      %1340 = vmatprep.subr.bf16.mxu0 0
      %1341 = vmatpush1.bf16.msra.mxu0 0
      %1342 = vmatprep.subr.bf16.mxu0 0
      %1343 = vmatpush1.bf16.msra.mxu0 0
      %1344 = vmatprep.subr.bf16.mxu0 0
      %1345 = vmatpush1.bf16.msra.mxu0 0
      %1346 = vmatprep.subr.bf16.mxu0 0
      %1347 = vmatpush1.bf16.msra.mxu0 0
      %1348 = vmatprep.subr.bf16.mxu0 0
      %1349 = vmatpush1.bf16.msra.mxu0 0
      %1350 = vmatprep.subr.bf16.mxu0 0
      %1351 = vmatpush1.bf16.msra.mxu0 0
      %1352 = vmatprep.subr.bf16.mxu0 0
      %1353 = vmatpush1.bf16.msra.mxu0 0
      %1354 = vmatprep.mubr.bf16.mxu0 0
      %1355 = vmatmul.mubr.bf16.gmra.mrb[0].mxu0 %v1272
      %v1356 = vpop.f32.mrb[0].mxu0
      %v1357 = vadd.f32 0.0, %v1356
      %v1358 = vpop.f32.mrb[0].mxu0
      %v1359 = vpop.f32.mrb[0].mxu0
      %v1360 = vadd.f32 0.0, %v1359
      %v1361 = vpop.f32.mrb[0].mxu0
      %1362 = vdwg.mxu0
      %v1363 = vld [vmem:[#allocation2] sm:$0xff]
      %v1364 = vld [vmem:[#allocation2 + $0x8] sm:$0x3]
      %v1365 = vadd.f32 %v1363, %v1357
      %v1366 = vadd.f32 %v1364, %v1360
      %1367 = vst [vmem:[#allocation2] sm:$0xff] %v1365
      %1368 = vst [vmem:[#allocation2 + $0x8] sm:$0x3] %v1366
      %v1369 = vld [vmem:[%s233 + $0x4] sm:$0xe]
      %v1370 = vld [vmem:[%s233 + $0x8] sm:$0x7]
      %s1371 = scalar_lea.vmem %s237, 576
      %v1372 = vld [vmem:[%s1371] sm:$0xf]
      %v1373 = vld [vmem:[%s1371 + $0x4] sm:$0xf]
      %v1374 = vld [vmem:[%s1371 + $0x8] sm:$0xf]
      %v1375 = vld [vmem:[%s1371 + $0xc] sm:$0xf]
      %v1376 = vld [vmem:[%s1371 + $0x10] sm:$0xf]
      %v1377 = vld [vmem:[%s1371 + $0x14] sm:$0xf]
      %v1378 = vld [vmem:[%s1371 + $0x18] sm:$0xf]
      %v1379 = vld [vmem:[%s1371 + $0x1c] sm:$0xf]
      %v1380 = vld [vmem:[%s1371 + $0x20] sm:$0xf]
      %v1381 = vld [vmem:[%s1371 + $0x24] sm:$0xf]
      %v1382 = vld [vmem:[%s1371 + $0x28] sm:$0xf]
      %v1383 = vld [vmem:[%s1371 + $0x2c] sm:$0xf]
      %v1384 = vld [vmem:[%s1371 + $0x30] sm:$0xf]
      %v1385 = vld [vmem:[%s1371 + $0x34] sm:$0xf]
      %v1386 = vld [vmem:[%s1371 + $0x38] sm:$0xf]
      %v1387 = vld [vmem:[%s1371 + $0x3c] sm:$0xf]
      %v1390 = vunpack.c.l.b16 %v1369
      %v1391 = vunpack.c.l.b16 %v1370
      %v1392 = vpack.c.b16 %v1391, %v1390
      %v1394 = vshrl.u32 %v1392, 16
      %v1396 = vrot.slane %v1394, 1
      %v1397 = vshll.u32 %v1392, 16
      %v1399 = vrot.slane %v1397, 2
      %v1400 = vor.u32 %v1396, %v1399
      %v1418 = vunpack.c.l.b16 %v1372
      %v1419 = vunpack.c.l.b16 %v1373
      %v1420 = vunpack.c.l.b16 %v1374
      %v1421 = vunpack.c.l.b16 %v1375
      %v1422 = vunpack.c.l.b16 %v1376
      %v1423 = vunpack.c.l.b16 %v1377
      %v1424 = vunpack.c.l.b16 %v1378
      %v1425 = vunpack.c.l.b16 %v1379
      %v1426 = vunpack.c.l.b16 %v1380
      %v1427 = vunpack.c.l.b16 %v1381
      %v1428 = vunpack.c.l.b16 %v1382
      %v1429 = vunpack.c.l.b16 %v1383
      %v1430 = vunpack.c.l.b16 %v1384
      %v1431 = vunpack.c.l.b16 %v1385
      %v1432 = vunpack.c.l.b16 %v1386
      %v1433 = vunpack.c.l.b16 %v1387
      %v1434 = vpack.c.b16 %v1419, %v1418
      %v1435 = vpack.c.b16 %v1421, %v1420
      %v1436 = vpack.c.b16 %v1423, %v1422
      %v1437 = vpack.c.b16 %v1425, %v1424
      %v1438 = vpack.c.b16 %v1427, %v1426
      %v1439 = vpack.c.b16 %v1429, %v1428
      %v1440 = vpack.c.b16 %v1431, %v1430
      %v1441 = vpack.c.b16 %v1433, %v1432
      %1450 = vmatprep.subr.bf16.mxu0 0
      %1451 = vmatpush1.bf16.msra.mxu0 %v1434
      %1452 = vmatprep.subr.bf16.mxu0 0
      %1453 = vmatpush1.bf16.msra.mxu0 %v1435
      %1454 = vmatprep.subr.bf16.mxu0 0
      %1455 = vmatpush1.bf16.msra.mxu0 %v1436
      %1456 = vmatprep.subr.bf16.mxu0 0
      %1457 = vmatpush1.bf16.msra.mxu0 %v1437
      %1458 = vmatprep.subr.bf16.mxu0 0
      %1459 = vmatpush1.bf16.msra.mxu0 %v1438
      %1460 = vmatprep.subr.bf16.mxu0 0
      %1461 = vmatpush1.bf16.msra.mxu0 %v1439
      %1462 = vmatprep.subr.bf16.mxu0 0
      %1463 = vmatpush1.bf16.msra.mxu0 %v1440
      %1464 = vmatprep.subr.bf16.mxu0 0
      %1465 = vmatpush1.bf16.msra.mxu0 %v1441
      %1466 = vmatprep.subr.bf16.mxu0 0
      %1467 = vmatpush1.bf16.msra.mxu0 0
      %1468 = vmatprep.subr.bf16.mxu0 0
      %1469 = vmatpush1.bf16.msra.mxu0 0
      %1470 = vmatprep.subr.bf16.mxu0 0
      %1471 = vmatpush1.bf16.msra.mxu0 0
      %1472 = vmatprep.subr.bf16.mxu0 0
      %1473 = vmatpush1.bf16.msra.mxu0 0
      %1474 = vmatprep.subr.bf16.mxu0 0
      %1475 = vmatpush1.bf16.msra.mxu0 0
      %1476 = vmatprep.subr.bf16.mxu0 0
      %1477 = vmatpush1.bf16.msra.mxu0 0
      %1478 = vmatprep.subr.bf16.mxu0 0
      %1479 = vmatpush1.bf16.msra.mxu0 0
      %1480 = vmatprep.subr.bf16.mxu0 0
      %1481 = vmatpush1.bf16.msra.mxu0 0
      %1482 = vmatprep.mubr.bf16.mxu0 0
      %1483 = vmatmul.mubr.bf16.gmra.mrb[0].mxu0 %v1400
      %v1484 = vpop.f32.mrb[0].mxu0
      %v1485 = vadd.f32 0.0, %v1484
      %v1486 = vpop.f32.mrb[0].mxu0
      %v1487 = vpop.f32.mrb[0].mxu0
      %v1488 = vadd.f32 0.0, %v1487
      %v1489 = vpop.f32.mrb[0].mxu0
      %1490 = vdwg.mxu0
      %v1491 = vld [vmem:[#allocation2] sm:$0xff]
      %v1492 = vld [vmem:[#allocation2 + $0x8] sm:$0x3]
      %v1493 = vadd.f32 %v1491, %v1485
      %v1494 = vadd.f32 %v1492, %v1488
      %1495 = vst [vmem:[#allocation2] sm:$0xff] %v1493
      %1496 = vst [vmem:[#allocation2 + $0x8] sm:$0x3] %v1494
      %v1497 = vld [vmem:[%s233 + $0x4] sm:$0xc]
      %v1498 = vld [vmem:[%s233 + $0x8] sm:$0x7]
      %s1499 = scalar_lea.vmem %s237, 640
      %v1500 = vld [vmem:[%s1499] sm:$0xf]
      %v1501 = vld [vmem:[%s1499 + $0x4] sm:$0xf]
      %v1502 = vld [vmem:[%s1499 + $0x8] sm:$0xf]
      %v1503 = vld [vmem:[%s1499 + $0xc] sm:$0xf]
      %v1504 = vld [vmem:[%s1499 + $0x10] sm:$0xf]
      %v1505 = vld [vmem:[%s1499 + $0x14] sm:$0xf]
      %v1506 = vld [vmem:[%s1499 + $0x18] sm:$0xf]
      %v1507 = vld [vmem:[%s1499 + $0x1c] sm:$0xf]
      %v1508 = vld [vmem:[%s1499 + $0x20] sm:$0xf]
      %v1509 = vld [vmem:[%s1499 + $0x24] sm:$0xf]
      %v1510 = vld [vmem:[%s1499 + $0x28] sm:$0xf]
      %v1511 = vld [vmem:[%s1499 + $0x2c] sm:$0xf]
      %v1512 = vld [vmem:[%s1499 + $0x30] sm:$0xf]
      %v1513 = vld [vmem:[%s1499 + $0x34] sm:$0xf]
      %v1514 = vld [vmem:[%s1499 + $0x38] sm:$0xf]
      %v1515 = vld [vmem:[%s1499 + $0x3c] sm:$0xf]
      %v1518 = vunpack.c.l.b16 %v1497
      %v1519 = vunpack.c.l.b16 %v1498
      %v1520 = vpack.c.b16 %v1519, %v1518
      %v1521 = vrot.slane %v1520, 2
      %v1539 = vunpack.c.l.b16 %v1500
      %v1540 = vunpack.c.l.b16 %v1501
      %v1541 = vunpack.c.l.b16 %v1502
      %v1542 = vunpack.c.l.b16 %v1503
      %v1543 = vunpack.c.l.b16 %v1504
      %v1544 = vunpack.c.l.b16 %v1505
      %v1545 = vunpack.c.l.b16 %v1506
      %v1546 = vunpack.c.l.b16 %v1507
      %v1547 = vunpack.c.l.b16 %v1508
      %v1548 = vunpack.c.l.b16 %v1509
      %v1549 = vunpack.c.l.b16 %v1510
      %v1550 = vunpack.c.l.b16 %v1511
      %v1551 = vunpack.c.l.b16 %v1512
      %v1552 = vunpack.c.l.b16 %v1513
      %v1553 = vunpack.c.l.b16 %v1514
      %v1554 = vunpack.c.l.b16 %v1515
      %v1555 = vpack.c.b16 %v1540, %v1539
      %v1556 = vpack.c.b16 %v1542, %v1541
      %v1557 = vpack.c.b16 %v1544, %v1543
      %v1558 = vpack.c.b16 %v1546, %v1545
      %v1559 = vpack.c.b16 %v1548, %v1547
      %v1560 = vpack.c.b16 %v1550, %v1549
      %v1561 = vpack.c.b16 %v1552, %v1551
      %v1562 = vpack.c.b16 %v1554, %v1553
      %1571 = vmatprep.subr.bf16.mxu0 0
      %1572 = vmatpush1.bf16.msra.mxu0 %v1555
      %1573 = vmatprep.subr.bf16.mxu0 0
      %1574 = vmatpush1.bf16.msra.mxu0 %v1556
      %1575 = vmatprep.subr.bf16.mxu0 0
      %1576 = vmatpush1.bf16.msra.mxu0 %v1557
      %1577 = vmatprep.subr.bf16.mxu0 0
      %1578 = vmatpush1.bf16.msra.mxu0 %v1558
      %1579 = vmatprep.subr.bf16.mxu0 0
      %1580 = vmatpush1.bf16.msra.mxu0 %v1559
      %1581 = vmatprep.subr.bf16.mxu0 0
      %1582 = vmatpush1.bf16.msra.mxu0 %v1560
      %1583 = vmatprep.subr.bf16.mxu0 0
      %1584 = vmatpush1.bf16.msra.mxu0 %v1561
      %1585 = vmatprep.subr.bf16.mxu0 0
      %1586 = vmatpush1.bf16.msra.mxu0 %v1562
      %1587 = vmatprep.subr.bf16.mxu0 0
      %1588 = vmatpush1.bf16.msra.mxu0 0
      %1589 = vmatprep.subr.bf16.mxu0 0
      %1590 = vmatpush1.bf16.msra.mxu0 0
      %1591 = vmatprep.subr.bf16.mxu0 0
      %1592 = vmatpush1.bf16.msra.mxu0 0
      %1593 = vmatprep.subr.bf16.mxu0 0
      %1594 = vmatpush1.bf16.msra.mxu0 0
      %1595 = vmatprep.subr.bf16.mxu0 0
      %1596 = vmatpush1.bf16.msra.mxu0 0
      %1597 = vmatprep.subr.bf16.mxu0 0
      %1598 = vmatpush1.bf16.msra.mxu0 0
      %1599 = vmatprep.subr.bf16.mxu0 0
      %1600 = vmatpush1.bf16.msra.mxu0 0
      %1601 = vmatprep.subr.bf16.mxu0 0
      %1602 = vmatpush1.bf16.msra.mxu0 0
      %1603 = vmatprep.mubr.bf16.mxu0 0
      %1604 = vmatmul.mubr.bf16.gmra.mrb[0].mxu0 %v1521
      %v1605 = vpop.f32.mrb[0].mxu0
      %v1606 = vadd.f32 0.0, %v1605
      %v1607 = vpop.f32.mrb[0].mxu0
      %v1608 = vpop.f32.mrb[0].mxu0
      %v1609 = vadd.f32 0.0, %v1608
      %v1610 = vpop.f32.mrb[0].mxu0
      %1611 = vdwg.mxu0
      %v1612 = vld [vmem:[#allocation2] sm:$0xff]
      %v1613 = vld [vmem:[#allocation2 + $0x8] sm:$0x3]
      %v1614 = vadd.f32 %v1612, %v1606
      %v1615 = vadd.f32 %v1613, %v1609
      %1616 = vst [vmem:[#allocation2] sm:$0xff] %v1614
      %1617 = vst [vmem:[#allocation2 + $0x8] sm:$0x3] %v1615
      %v1618 = vld [vmem:[%s233 + $0x4] sm:$0xc]
      %v1619 = vld [vmem:[%s233 + $0x8] sm:$0xf]
      %s1620 = scalar_lea.vmem %s237, 704
      %v1621 = vld [vmem:[%s1620] sm:$0xf]
      %v1622 = vld [vmem:[%s1620 + $0x4] sm:$0xf]
      %v1623 = vld [vmem:[%s1620 + $0x8] sm:$0xf]
      %v1624 = vld [vmem:[%s1620 + $0xc] sm:$0xf]
      %v1625 = vld [vmem:[%s1620 + $0x10] sm:$0xf]
      %v1626 = vld [vmem:[%s1620 + $0x14] sm:$0xf]
      %v1627 = vld [vmem:[%s1620 + $0x18] sm:$0xf]
      %v1628 = vld [vmem:[%s1620 + $0x1c] sm:$0xf]
      %v1629 = vld [vmem:[%s1620 + $0x20] sm:$0xf]
      %v1630 = vld [vmem:[%s1620 + $0x24] sm:$0xf]
      %v1631 = vld [vmem:[%s1620 + $0x28] sm:$0xf]
      %v1632 = vld [vmem:[%s1620 + $0x2c] sm:$0xf]
      %v1633 = vld [vmem:[%s1620 + $0x30] sm:$0xf]
      %v1634 = vld [vmem:[%s1620 + $0x34] sm:$0xf]
      %v1635 = vld [vmem:[%s1620 + $0x38] sm:$0xf]
      %v1636 = vld [vmem:[%s1620 + $0x3c] sm:$0xf]
      %v1639 = vunpack.c.l.b16 %v1618
      %v1640 = vunpack.c.l.b16 %v1619
      %v1641 = vpack.c.b16 %v1640, %v1639
      %v1643 = vshrl.u32 %v1641, 16
      %v1645 = vrot.slane %v1643, 2
      %v1646 = vshll.u32 %v1641, 16
      %v1648 = vrot.slane %v1646, 3
      %v1649 = vor.u32 %v1645, %v1648
      %v1667 = vunpack.c.l.b16 %v1621
      %v1668 = vunpack.c.l.b16 %v1622
      %v1669 = vunpack.c.l.b16 %v1623
      %v1670 = vunpack.c.l.b16 %v1624
      %v1671 = vunpack.c.l.b16 %v1625
      %v1672 = vunpack.c.l.b16 %v1626
      %v1673 = vunpack.c.l.b16 %v1627
      %v1674 = vunpack.c.l.b16 %v1628
      %v1675 = vunpack.c.l.b16 %v1629
      %v1676 = vunpack.c.l.b16 %v1630
      %v1677 = vunpack.c.l.b16 %v1631
      %v1678 = vunpack.c.l.b16 %v1632
      %v1679 = vunpack.c.l.b16 %v1633
      %v1680 = vunpack.c.l.b16 %v1634
      %v1681 = vunpack.c.l.b16 %v1635
      %v1682 = vunpack.c.l.b16 %v1636
      %v1683 = vpack.c.b16 %v1668, %v1667
      %v1684 = vpack.c.b16 %v1670, %v1669
      %v1685 = vpack.c.b16 %v1672, %v1671
      %v1686 = vpack.c.b16 %v1674, %v1673
      %v1687 = vpack.c.b16 %v1676, %v1675
      %v1688 = vpack.c.b16 %v1678, %v1677
      %v1689 = vpack.c.b16 %v1680, %v1679
      %v1690 = vpack.c.b16 %v1682, %v1681
      %1699 = vmatprep.subr.bf16.mxu0 0
      %1700 = vmatpush1.bf16.msra.mxu0 %v1683
      %1701 = vmatprep.subr.bf16.mxu0 0
      %1702 = vmatpush1.bf16.msra.mxu0 %v1684
      %1703 = vmatprep.subr.bf16.mxu0 0
      %1704 = vmatpush1.bf16.msra.mxu0 %v1685
      %1705 = vmatprep.subr.bf16.mxu0 0
      %1706 = vmatpush1.bf16.msra.mxu0 %v1686
      %1707 = vmatprep.subr.bf16.mxu0 0
      %1708 = vmatpush1.bf16.msra.mxu0 %v1687
      %1709 = vmatprep.subr.bf16.mxu0 0
      %1710 = vmatpush1.bf16.msra.mxu0 %v1688
      %1711 = vmatprep.subr.bf16.mxu0 0
      %1712 = vmatpush1.bf16.msra.mxu0 %v1689
      %1713 = vmatprep.subr.bf16.mxu0 0
      %1714 = vmatpush1.bf16.msra.mxu0 %v1690
      %1715 = vmatprep.subr.bf16.mxu0 0
      %1716 = vmatpush1.bf16.msra.mxu0 0
      %1717 = vmatprep.subr.bf16.mxu0 0
      %1718 = vmatpush1.bf16.msra.mxu0 0
      %1719 = vmatprep.subr.bf16.mxu0 0
      %1720 = vmatpush1.bf16.msra.mxu0 0
      %1721 = vmatprep.subr.bf16.mxu0 0
      %1722 = vmatpush1.bf16.msra.mxu0 0
      %1723 = vmatprep.subr.bf16.mxu0 0
      %1724 = vmatpush1.bf16.msra.mxu0 0
      %1725 = vmatprep.subr.bf16.mxu0 0
      %1726 = vmatpush1.bf16.msra.mxu0 0
      %1727 = vmatprep.subr.bf16.mxu0 0
      %1728 = vmatpush1.bf16.msra.mxu0 0
      %1729 = vmatprep.subr.bf16.mxu0 0
      %1730 = vmatpush1.bf16.msra.mxu0 0
      %1731 = vmatprep.mubr.bf16.mxu0 0
      %1732 = vmatmul.mubr.bf16.gmra.mrb[0].mxu0 %v1649
      %v1733 = vpop.f32.mrb[0].mxu0
      %v1734 = vadd.f32 0.0, %v1733
      %v1735 = vpop.f32.mrb[0].mxu0
      %v1736 = vpop.f32.mrb[0].mxu0
      %v1737 = vadd.f32 0.0, %v1736
      %v1738 = vpop.f32.mrb[0].mxu0
      %1739 = vdwg.mxu0
      %v1740 = vld [vmem:[#allocation2] sm:$0xff]
      %v1741 = vld [vmem:[#allocation2 + $0x8] sm:$0x3]
      %v1742 = vadd.f32 %v1740, %v1734
      %v1743 = vadd.f32 %v1741, %v1737
      %1744 = vst [vmem:[#allocation2] sm:$0xff] %v1742
      %1745 = vst [vmem:[#allocation2 + $0x8] sm:$0x3] %v1743
      %v1746 = vld [vmem:[%s233 + $0x4] sm:$0x8]
      %v1747 = vld [vmem:[%s233 + $0x8] sm:$0xf]
      %v1748 = vld [vmem:[%s233 + $0xc] sm:$0x1]
      %s1749 = scalar_lea.vmem %s237, 768
      %v1750 = vld [vmem:[%s1749] sm:$0xf]
      %v1751 = vld [vmem:[%s1749 + $0x4] sm:$0xf]
      %v1752 = vld [vmem:[%s1749 + $0x8] sm:$0xf]
      %v1753 = vld [vmem:[%s1749 + $0xc] sm:$0xf]
      %v1754 = vld [vmem:[%s1749 + $0x10] sm:$0xf]
      %v1755 = vld [vmem:[%s1749 + $0x14] sm:$0xf]
      %v1756 = vld [vmem:[%s1749 + $0x18] sm:$0xf]
      %v1757 = vld [vmem:[%s1749 + $0x1c] sm:$0xf]
      %v1758 = vld [vmem:[%s1749 + $0x20] sm:$0xf]
      %v1759 = vld [vmem:[%s1749 + $0x24] sm:$0xf]
      %v1760 = vld [vmem:[%s1749 + $0x28] sm:$0xf]
      %v1761 = vld [vmem:[%s1749 + $0x2c] sm:$0xf]
      %v1762 = vld [vmem:[%s1749 + $0x30] sm:$0xf]
      %v1763 = vld [vmem:[%s1749 + $0x34] sm:$0xf]
      %v1764 = vld [vmem:[%s1749 + $0x38] sm:$0xf]
      %v1765 = vld [vmem:[%s1749 + $0x3c] sm:$0xf]
      %v1769 = vunpack.c.l.b16 %v1746
      %v1770 = vunpack.c.l.b16 %v1747
      %v1771 = vunpack.c.l.b16 %v1748
      %v1772 = vpack.c.b16 %v1770, %v1769
      %v1773 = vpack.c.b16 %v1771, %v1771
      %v1775 = vshrl.u32 %v1772, 16
      %v1777 = vrot.slane %v1775, 3
      %v1778 = vshll.u32 %v1772, 16
      %v1780 = vrot.slane %v1778, 4
      %v1781 = vor.u32 %v1777, %v1780
      %v1783 = vshll.u32 %v1773, 16
      %v1785 = vrot.slane %v1783, 4
      %v1786 = vsel %vm1018, %v1781, %v1785
      %v1804 = vunpack.c.l.b16 %v1750
      %v1805 = vunpack.c.l.b16 %v1751
      %v1806 = vunpack.c.l.b16 %v1752
      %v1807 = vunpack.c.l.b16 %v1753
      %v1808 = vunpack.c.l.b16 %v1754
      %v1809 = vunpack.c.l.b16 %v1755
      %v1810 = vunpack.c.l.b16 %v1756
      %v1811 = vunpack.c.l.b16 %v1757
      %v1812 = vunpack.c.l.b16 %v1758
      %v1813 = vunpack.c.l.b16 %v1759
      %v1814 = vunpack.c.l.b16 %v1760
      %v1815 = vunpack.c.l.b16 %v1761
      %v1816 = vunpack.c.l.b16 %v1762
      %v1817 = vunpack.c.l.b16 %v1763
      %v1818 = vunpack.c.l.b16 %v1764
      %v1819 = vunpack.c.l.b16 %v1765
      %v1820 = vpack.c.b16 %v1805, %v1804
      %v1821 = vpack.c.b16 %v1807, %v1806
      %v1822 = vpack.c.b16 %v1809, %v1808
      %v1823 = vpack.c.b16 %v1811, %v1810
      %v1824 = vpack.c.b16 %v1813, %v1812
      %v1825 = vpack.c.b16 %v1815, %v1814
      %v1826 = vpack.c.b16 %v1817, %v1816
      %v1827 = vpack.c.b16 %v1819, %v1818
      %1836 = vmatprep.subr.bf16.mxu0 0
      %1837 = vmatpush1.bf16.msra.mxu0 %v1820
      %1838 = vmatprep.subr.bf16.mxu0 0
      %1839 = vmatpush1.bf16.msra.mxu0 %v1821
      %1840 = vmatprep.subr.bf16.mxu0 0
      %1841 = vmatpush1.bf16.msra.mxu0 %v1822
      %1842 = vmatprep.subr.bf16.mxu0 0
      %1843 = vmatpush1.bf16.msra.mxu0 %v1823
      %1844 = vmatprep.subr.bf16.mxu0 0
      %1845 = vmatpush1.bf16.msra.mxu0 %v1824
      %1846 = vmatprep.subr.bf16.mxu0 0
      %1847 = vmatpush1.bf16.msra.mxu0 %v1825
      %1848 = vmatprep.subr.bf16.mxu0 0
      %1849 = vmatpush1.bf16.msra.mxu0 %v1826
      %1850 = vmatprep.subr.bf16.mxu0 0
      %1851 = vmatpush1.bf16.msra.mxu0 %v1827
      %1852 = vmatprep.subr.bf16.mxu0 0
      %1853 = vmatpush1.bf16.msra.mxu0 0
      %1854 = vmatprep.subr.bf16.mxu0 0
      %1855 = vmatpush1.bf16.msra.mxu0 0
      %1856 = vmatprep.subr.bf16.mxu0 0
      %1857 = vmatpush1.bf16.msra.mxu0 0
      %1858 = vmatprep.subr.bf16.mxu0 0
      %1859 = vmatpush1.bf16.msra.mxu0 0
      %1860 = vmatprep.subr.bf16.mxu0 0
      %1861 = vmatpush1.bf16.msra.mxu0 0
      %1862 = vmatprep.subr.bf16.mxu0 0
      %1863 = vmatpush1.bf16.msra.mxu0 0
      %1864 = vmatprep.subr.bf16.mxu0 0
      %1865 = vmatpush1.bf16.msra.mxu0 0
      %1866 = vmatprep.subr.bf16.mxu0 0
      %1867 = vmatpush1.bf16.msra.mxu0 0
      %1868 = vmatprep.mubr.bf16.mxu0 0
      %1869 = vmatmul.mubr.bf16.gmra.mrb[0].mxu0 %v1786
      %v1870 = vpop.f32.mrb[0].mxu0
      %v1871 = vadd.f32 0.0, %v1870
      %v1872 = vpop.f32.mrb[0].mxu0
      %v1873 = vpop.f32.mrb[0].mxu0
      %v1874 = vadd.f32 0.0, %v1873
      %v1875 = vpop.f32.mrb[0].mxu0
      %1876 = vdwg.mxu0
      %v1877 = vld [vmem:[#allocation2] sm:$0xff]
      %v1878 = vld [vmem:[#allocation2 + $0x8] sm:$0x3]
      %v1879 = vadd.f32 %v1877, %v1871
      %v1880 = vadd.f32 %v1878, %v1874
      %1881 = vst [vmem:[#allocation2] sm:$0xff] %v1879
      %1882 = vst [vmem:[#allocation2 + $0x8] sm:$0x3] %v1880
      %v1883 = vld [vmem:[%s233 + $0x8] sm:$0xf]
      %v1884 = vld [vmem:[%s233 + $0xc] sm:$0x1]
      %s1885 = scalar_lea.vmem %s237, 832
      %v1886 = vld [vmem:[%s1885] sm:$0xf]
      %v1887 = vld [vmem:[%s1885 + $0x4] sm:$0xf]
      %v1888 = vld [vmem:[%s1885 + $0x8] sm:$0xf]
      %v1889 = vld [vmem:[%s1885 + $0xc] sm:$0xf]
      %v1890 = vld [vmem:[%s1885 + $0x10] sm:$0xf]
      %v1891 = vld [vmem:[%s1885 + $0x14] sm:$0xf]
      %v1892 = vld [vmem:[%s1885 + $0x18] sm:$0xf]
      %v1893 = vld [vmem:[%s1885 + $0x1c] sm:$0xf]
      %v1894 = vld [vmem:[%s1885 + $0x20] sm:$0xf]
      %v1895 = vld [vmem:[%s1885 + $0x24] sm:$0xf]
      %v1896 = vld [vmem:[%s1885 + $0x28] sm:$0xf]
      %v1897 = vld [vmem:[%s1885 + $0x2c] sm:$0xf]
      %v1898 = vld [vmem:[%s1885 + $0x30] sm:$0xf]
      %v1899 = vld [vmem:[%s1885 + $0x34] sm:$0xf]
      %v1900 = vld [vmem:[%s1885 + $0x38] sm:$0xf]
      %v1901 = vld [vmem:[%s1885 + $0x3c] sm:$0xf]
      %v1904 = vunpack.c.l.b16 %v1883
      %v1905 = vunpack.c.l.b16 %v1884
      %v1906 = vpack.c.b16 %v1905, %v1904
      %v1924 = vunpack.c.l.b16 %v1886
      %v1925 = vunpack.c.l.b16 %v1887
      %v1926 = vunpack.c.l.b16 %v1888
      %v1927 = vunpack.c.l.b16 %v1889
      %v1928 = vunpack.c.l.b16 %v1890
      %v1929 = vunpack.c.l.b16 %v1891
      %v1930 = vunpack.c.l.b16 %v1892
      %v1931 = vunpack.c.l.b16 %v1893
      %v1932 = vunpack.c.l.b16 %v1894
      %v1933 = vunpack.c.l.b16 %v1895
      %v1934 = vunpack.c.l.b16 %v1896
      %v1935 = vunpack.c.l.b16 %v1897
      %v1936 = vunpack.c.l.b16 %v1898
      %v1937 = vunpack.c.l.b16 %v1899
      %v1938 = vunpack.c.l.b16 %v1900
      %v1939 = vunpack.c.l.b16 %v1901
      %v1940 = vpack.c.b16 %v1925, %v1924
      %v1941 = vpack.c.b16 %v1927, %v1926
      %v1942 = vpack.c.b16 %v1929, %v1928
      %v1943 = vpack.c.b16 %v1931, %v1930
      %v1944 = vpack.c.b16 %v1933, %v1932
      %v1945 = vpack.c.b16 %v1935, %v1934
      %v1946 = vpack.c.b16 %v1937, %v1936
      %v1947 = vpack.c.b16 %v1939, %v1938
      %1956 = vmatprep.subr.bf16.mxu0 0
      %1957 = vmatpush1.bf16.msra.mxu0 %v1940
      %1958 = vmatprep.subr.bf16.mxu0 0
      %1959 = vmatpush1.bf16.msra.mxu0 %v1941
      %1960 = vmatprep.subr.bf16.mxu0 0
      %1961 = vmatpush1.bf16.msra.mxu0 %v1942
      %1962 = vmatprep.subr.bf16.mxu0 0
      %1963 = vmatpush1.bf16.msra.mxu0 %v1943
      %1964 = vmatprep.subr.bf16.mxu0 0
      %1965 = vmatpush1.bf16.msra.mxu0 %v1944
      %1966 = vmatprep.subr.bf16.mxu0 0
      %1967 = vmatpush1.bf16.msra.mxu0 %v1945
      %1968 = vmatprep.subr.bf16.mxu0 0
      %1969 = vmatpush1.bf16.msra.mxu0 %v1946
      %1970 = vmatprep.subr.bf16.mxu0 0
      %1971 = vmatpush1.bf16.msra.mxu0 %v1947
      %1972 = vmatprep.subr.bf16.mxu0 0
      %1973 = vmatpush1.bf16.msra.mxu0 0
      %1974 = vmatprep.subr.bf16.mxu0 0
      %1975 = vmatpush1.bf16.msra.mxu0 0
      %1976 = vmatprep.subr.bf16.mxu0 0
      %1977 = vmatpush1.bf16.msra.mxu0 0
      %1978 = vmatprep.subr.bf16.mxu0 0
      %1979 = vmatpush1.bf16.msra.mxu0 0
      %1980 = vmatprep.subr.bf16.mxu0 0
      %1981 = vmatpush1.bf16.msra.mxu0 0
      %1982 = vmatprep.subr.bf16.mxu0 0
      %1983 = vmatpush1.bf16.msra.mxu0 0
      %1984 = vmatprep.subr.bf16.mxu0 0
      %1985 = vmatpush1.bf16.msra.mxu0 0
      %1986 = vmatprep.subr.bf16.mxu0 0
      %1987 = vmatpush1.bf16.msra.mxu0 0
      %1988 = vmatprep.mubr.bf16.mxu0 0
      %1989 = vmatmul.mubr.bf16.gmra.mrb[0].mxu0 %v1906
      %v1990 = vpop.f32.mrb[0].mxu0
      %v1991 = vadd.f32 0.0, %v1990
      %v1992 = vpop.f32.mrb[0].mxu0
      %v1993 = vpop.f32.mrb[0].mxu0
      %v1994 = vadd.f32 0.0, %v1993
      %v1995 = vpop.f32.mrb[0].mxu0
      %1996 = vdwg.mxu0
      %v1997 = vld [vmem:[#allocation2] sm:$0xff]
      %v1998 = vld [vmem:[#allocation2 + $0x8] sm:$0x3]
      %v1999 = vadd.f32 %v1997, %v1991
      %v2000 = vadd.f32 %v1998, %v1994
      %2001 = vst [vmem:[#allocation2] sm:$0xff] %v1999
      %2002 = vst [vmem:[#allocation2 + $0x8] sm:$0x3] %v2000
      %v2003 = vld [vmem:[%s233 + $0x8] sm:$0xf]
      %v2004 = vld [vmem:[%s233 + $0xc] sm:$0x3]
      %s2005 = scalar_lea.vmem %s237, 896
      %v2006 = vld [vmem:[%s2005] sm:$0xf]
      %v2007 = vld [vmem:[%s2005 + $0x4] sm:$0xf]
      %v2008 = vld [vmem:[%s2005 + $0x8] sm:$0xf]
      %v2009 = vld [vmem:[%s2005 + $0xc] sm:$0xf]
      %v2010 = vld [vmem:[%s2005 + $0x10] sm:$0xf]
      %v2011 = vld [vmem:[%s2005 + $0x14] sm:$0xf]
      %v2012 = vld [vmem:[%s2005 + $0x18] sm:$0xf]
      %v2013 = vld [vmem:[%s2005 + $0x1c] sm:$0xf]
      %v2014 = vld [vmem:[%s2005 + $0x20] sm:$0xf]
      %v2015 = vld [vmem:[%s2005 + $0x24] sm:$0xf]
      %v2016 = vld [vmem:[%s2005 + $0x28] sm:$0xf]
      %v2017 = vld [vmem:[%s2005 + $0x2c] sm:$0xf]
      %v2018 = vld [vmem:[%s2005 + $0x30] sm:$0xf]
      %v2019 = vld [vmem:[%s2005 + $0x34] sm:$0xf]
      %v2020 = vld [vmem:[%s2005 + $0x38] sm:$0xf]
      %v2021 = vld [vmem:[%s2005 + $0x3c] sm:$0xf]
      %v2024 = vunpack.c.l.b16 %v2003
      %v2025 = vunpack.c.l.b16 %v2004
      %v2026 = vpack.c.b16 %v2025, %v2024
      %v2028 = vshrl.u32 %v2026, 16
      %v2030 = vshll.u32 %v2026, 16
      %v2032 = vrot.slane %v2030, 1
      %v2033 = vor.u32 %v2028, %v2032
      %v2051 = vunpack.c.l.b16 %v2006
      %v2052 = vunpack.c.l.b16 %v2007
      %v2053 = vunpack.c.l.b16 %v2008
      %v2054 = vunpack.c.l.b16 %v2009
      %v2055 = vunpack.c.l.b16 %v2010
      %v2056 = vunpack.c.l.b16 %v2011
      %v2057 = vunpack.c.l.b16 %v2012
      %v2058 = vunpack.c.l.b16 %v2013
      %v2059 = vunpack.c.l.b16 %v2014
      %v2060 = vunpack.c.l.b16 %v2015
      %v2061 = vunpack.c.l.b16 %v2016
      %v2062 = vunpack.c.l.b16 %v2017
      %v2063 = vunpack.c.l.b16 %v2018
      %v2064 = vunpack.c.l.b16 %v2019
      %v2065 = vunpack.c.l.b16 %v2020
      %v2066 = vunpack.c.l.b16 %v2021
      %v2067 = vpack.c.b16 %v2052, %v2051
      %v2068 = vpack.c.b16 %v2054, %v2053
      %v2069 = vpack.c.b16 %v2056, %v2055
      %v2070 = vpack.c.b16 %v2058, %v2057
      %v2071 = vpack.c.b16 %v2060, %v2059
      %v2072 = vpack.c.b16 %v2062, %v2061
      %v2073 = vpack.c.b16 %v2064, %v2063
      %v2074 = vpack.c.b16 %v2066, %v2065
      %2083 = vmatprep.subr.bf16.mxu0 0
      %2084 = vmatpush1.bf16.msra.mxu0 %v2067
      %2085 = vmatprep.subr.bf16.mxu0 0
      %2086 = vmatpush1.bf16.msra.mxu0 %v2068
      %2087 = vmatprep.subr.bf16.mxu0 0
      %2088 = vmatpush1.bf16.msra.mxu0 %v2069
      %2089 = vmatprep.subr.bf16.mxu0 0
      %2090 = vmatpush1.bf16.msra.mxu0 %v2070
      %2091 = vmatprep.subr.bf16.mxu0 0
      %2092 = vmatpush1.bf16.msra.mxu0 %v2071
      %2093 = vmatprep.subr.bf16.mxu0 0
      %2094 = vmatpush1.bf16.msra.mxu0 %v2072
      %2095 = vmatprep.subr.bf16.mxu0 0
      %2096 = vmatpush1.bf16.msra.mxu0 %v2073
      %2097 = vmatprep.subr.bf16.mxu0 0
      %2098 = vmatpush1.bf16.msra.mxu0 %v2074
      %2099 = vmatprep.subr.bf16.mxu0 0
      %2100 = vmatpush1.bf16.msra.mxu0 0
      %2101 = vmatprep.subr.bf16.mxu0 0
      %2102 = vmatpush1.bf16.msra.mxu0 0
      %2103 = vmatprep.subr.bf16.mxu0 0
      %2104 = vmatpush1.bf16.msra.mxu0 0
      %2105 = vmatprep.subr.bf16.mxu0 0
      %2106 = vmatpush1.bf16.msra.mxu0 0
      %2107 = vmatprep.subr.bf16.mxu0 0
      %2108 = vmatpush1.bf16.msra.mxu0 0
      %2109 = vmatprep.subr.bf16.mxu0 0
      %2110 = vmatpush1.bf16.msra.mxu0 0
      %2111 = vmatprep.subr.bf16.mxu0 0
      %2112 = vmatpush1.bf16.msra.mxu0 0
      %2113 = vmatprep.subr.bf16.mxu0 0
      %2114 = vmatpush1.bf16.msra.mxu0 0
      %2115 = vmatprep.mubr.bf16.mxu0 0
      %2116 = vmatmul.mubr.bf16.gmra.mrb[0].mxu0 %v2033
      %v2117 = vpop.f32.mrb[0].mxu0
      %v2118 = vadd.f32 0.0, %v2117
      %v2119 = vpop.f32.mrb[0].mxu0
      %v2120 = vpop.f32.mrb[0].mxu0
      %v2121 = vadd.f32 0.0, %v2120
      %v2122 = vpop.f32.mrb[0].mxu0
      %2123 = vdwg.mxu0
      %v2124 = vld [vmem:[#allocation2] sm:$0xff]
      %v2125 = vld [vmem:[#allocation2 + $0x8] sm:$0x3]
      %v2126 = vadd.f32 %v2124, %v2118
      %v2127 = vadd.f32 %v2125, %v2121
      %2128 = vst [vmem:[#allocation2] sm:$0xff] %v2126
      %2129 = vst [vmem:[#allocation2 + $0x8] sm:$0x3] %v2127
      %v2130 = vld [vmem:[%s233 + $0x8] sm:$0xe]
      %v2131 = vld [vmem:[%s233 + $0xc] sm:$0x3]
      %s2132 = scalar_lea.vmem %s237, 960
      %v2133 = vld [vmem:[%s2132] sm:$0xf]
      %v2134 = vld [vmem:[%s2132 + $0x4] sm:$0xf]
      %v2135 = vld [vmem:[%s2132 + $0x8] sm:$0xf]
      %v2136 = vld [vmem:[%s2132 + $0xc] sm:$0xf]
      %v2137 = vld [vmem:[%s2132 + $0x10] sm:$0xf]
      %v2138 = vld [vmem:[%s2132 + $0x14] sm:$0xf]
      %v2139 = vld [vmem:[%s2132 + $0x18] sm:$0xf]
      %v2140 = vld [vmem:[%s2132 + $0x1c] sm:$0xf]
      %v2141 = vld [vmem:[%s2132 + $0x20] sm:$0xf]
      %v2142 = vld [vmem:[%s2132 + $0x24] sm:$0xf]
      %v2143 = vld [vmem:[%s2132 + $0x28] sm:$0xf]
      %v2144 = vld [vmem:[%s2132 + $0x2c] sm:$0xf]
      %v2145 = vld [vmem:[%s2132 + $0x30] sm:$0xf]
      %v2146 = vld [vmem:[%s2132 + $0x34] sm:$0xf]
      %v2147 = vld [vmem:[%s2132 + $0x38] sm:$0xf]
      %v2148 = vld [vmem:[%s2132 + $0x3c] sm:$0xf]
      %v2151 = vunpack.c.l.b16 %v2130
      %v2152 = vunpack.c.l.b16 %v2131
      %v2153 = vpack.c.b16 %v2152, %v2151
      %v2154 = vrot.slane %v2153, 1
      %v2172 = vunpack.c.l.b16 %v2133
      %v2173 = vunpack.c.l.b16 %v2134
      %v2174 = vunpack.c.l.b16 %v2135
      %v2175 = vunpack.c.l.b16 %v2136
      %v2176 = vunpack.c.l.b16 %v2137
      %v2177 = vunpack.c.l.b16 %v2138
      %v2178 = vunpack.c.l.b16 %v2139
      %v2179 = vunpack.c.l.b16 %v2140
      %v2180 = vunpack.c.l.b16 %v2141
      %v2181 = vunpack.c.l.b16 %v2142
      %v2182 = vunpack.c.l.b16 %v2143
      %v2183 = vunpack.c.l.b16 %v2144
      %v2184 = vunpack.c.l.b16 %v2145
      %v2185 = vunpack.c.l.b16 %v2146
      %v2186 = vunpack.c.l.b16 %v2147
      %v2187 = vunpack.c.l.b16 %v2148
      %v2188 = vpack.c.b16 %v2173, %v2172
      %v2189 = vpack.c.b16 %v2175, %v2174
      %v2190 = vpack.c.b16 %v2177, %v2176
      %v2191 = vpack.c.b16 %v2179, %v2178
      %v2192 = vpack.c.b16 %v2181, %v2180
      %v2193 = vpack.c.b16 %v2183, %v2182
      %v2194 = vpack.c.b16 %v2185, %v2184
      %v2195 = vpack.c.b16 %v2187, %v2186
      %2204 = vmatprep.subr.bf16.mxu0 0
      %2205 = vmatpush1.bf16.msra.mxu0 %v2188
      %2206 = vmatprep.subr.bf16.mxu0 0
      %2207 = vmatpush1.bf16.msra.mxu0 %v2189
      %2208 = vmatprep.subr.bf16.mxu0 0
      %2209 = vmatpush1.bf16.msra.mxu0 %v2190
      %2210 = vmatprep.subr.bf16.mxu0 0
      %2211 = vmatpush1.bf16.msra.mxu0 %v2191
      %2212 = vmatprep.subr.bf16.mxu0 0
      %2213 = vmatpush1.bf16.msra.mxu0 %v2192
      %2214 = vmatprep.subr.bf16.mxu0 0
      %2215 = vmatpush1.bf16.msra.mxu0 %v2193
      %2216 = vmatprep.subr.bf16.mxu0 0
      %2217 = vmatpush1.bf16.msra.mxu0 %v2194
      %2218 = vmatprep.subr.bf16.mxu0 0
      %2219 = vmatpush1.bf16.msra.mxu0 %v2195
      %2220 = vmatprep.subr.bf16.mxu0 0
      %2221 = vmatpush1.bf16.msra.mxu0 0
      %2222 = vmatprep.subr.bf16.mxu0 0
      %2223 = vmatpush1.bf16.msra.mxu0 0
      %2224 = vmatprep.subr.bf16.mxu0 0
      %2225 = vmatpush1.bf16.msra.mxu0 0
      %2226 = vmatprep.subr.bf16.mxu0 0
      %2227 = vmatpush1.bf16.msra.mxu0 0
      %2228 = vmatprep.subr.bf16.mxu0 0
      %2229 = vmatpush1.bf16.msra.mxu0 0
      %2230 = vmatprep.subr.bf16.mxu0 0
      %2231 = vmatpush1.bf16.msra.mxu0 0
      %2232 = vmatprep.subr.bf16.mxu0 0
      %2233 = vmatpush1.bf16.msra.mxu0 0
      %2234 = vmatprep.subr.bf16.mxu0 0
      %2235 = vmatpush1.bf16.msra.mxu0 0
      %2236 = vmatprep.mubr.bf16.mxu0 0
      %2237 = vmatmul.mubr.bf16.gmra.mrb[0].mxu0 %v2154
      %v2238 = vpop.f32.mrb[0].mxu0
      %v2239 = vadd.f32 0.0, %v2238
      %v2240 = vpop.f32.mrb[0].mxu0
      %v2241 = vpop.f32.mrb[0].mxu0
      %v2242 = vadd.f32 0.0, %v2241
      %v2243 = vpop.f32.mrb[0].mxu0
      %2244 = vdwg.mxu0
      %v2245 = vld [vmem:[#allocation2] sm:$0xff]
      %v2246 = vld [vmem:[#allocation2 + $0x8] sm:$0x3]
      %v2247 = vadd.f32 %v2245, %v2239
      %v2248 = vadd.f32 %v2246, %v2242
      %2249 = vst [vmem:[#allocation2] sm:$0xff] %v2247
      %2250 = vst [vmem:[#allocation2 + $0x8] sm:$0x3] %v2248
      %v2251 = vld [vmem:[#allocation2] sm:$0xff]
      %v2252 = vld [vmem:[#allocation2 + $0x8] sm:$0x3]
      %v2253 = vld [vmem:[%s240] sm:$0x1]
      %v2255 = vlaneseq
      %v2256 = vshrl.u32 %v2255, 7
      %v2257 = vsub.s32 0, %v2256
      %v2258 = vrot.slane %v2253, %v2257
      %v2260 = vadd.f32 %v2251, %v2258
      %v2261 = vadd.f32 %v2252, %v2258
      %2262 = vst [vmem:[%s248] sm:$0xff] %v2260
      %2263 = vst [vmem:[%s248 + $0x8] sm:$0x3] %v2261
      %p2264 = scmp.lt.s32.totalorder %s19, 1
      %s2265 = scalar_select %p2264, %s19, 1
      %p2266 = scmp.lt.s32.totalorder %s20, 0
      %s2267 = scalar_select %p2266, %s20, 0
      %s2268 = smul.addr %s2265, 2
      %s2269 = sadd.s32 %s2267, %s2268
      %s2270 = smul.addr %s2269, 8
      %s2271 = scalar_lea.vmem %s4, %s2270
      // Predicated region
      $region37: #{discriminator_forward.9} parent=35 // pred_check
        %p2272 = pneg %p146
      $region38: #{discriminator_forward.9} parent=35 // pred_check_branch
        %2274 = sbr.rel (%p2272) target = $region40
      $region39: #{discriminator_forward.9} parent=35 // pred_region
        _
      $region40: #{discriminator_forward.9} parent=35 // pred_fallthru
        _
    $region36: #{discriminator_forward.9} parent=5 // pred_fallthru
      _
    %p2275 = scmp.le.s32.totalorder 2, %s10
    // Predicated region
    $region41: #{discriminator_forward.9} parent=5 // pred_check
      %p2276 = pneg %p2275
    $region42: #{discriminator_forward.9} parent=5 // pred_check_branch
      %2278 = sbr.rel (%p2276) target = $region44
    $region43: #{discriminator_forward.9} parent=5 // pred_region
      %s2279 = ssub.s32 %s10, 2
      // Predicated region
      $region45: #{discriminator_forward.9} parent=43 // pred_check
        %p2280 = pneg %p152
      $region46: #{discriminator_forward.9} parent=43 // pred_check_branch
        %2282 = sbr.rel (%p2280) target = $region48
      $region47: #{discriminator_forward.9} parent=43 // pred_region
        %p2283 = scmp.lt.s32.totalorder %s21, 1
        %s2284 = scalar_select %p2283, %s21, 1
        %p2285 = scmp.lt.s32.totalorder %s22, 0
        %s2286 = scalar_select %p2285, %s22, 0
        %s2287 = smul.addr %s2284, 2
        %s2288 = sadd.s32 %s2286, %s2287
        %s2289 = smul.addr %s2288, 8
        %s2290 = scalar_lea.vmem %s4, %s2289
      $region48: #{discriminator_forward.9} parent=43 // pred_fallthru
        _
    $region44: #{discriminator_forward.9} parent=5 // pred_fallthru
      _
  $region6: #{discriminator_forward.9} parent=0 // loop_footer
    %s14 = sadd.s32 1, %s10
  $region7: #{discriminator_forward.9} parent=0 // loop_footer_branch
    %9 = sbr.rel target = $region3
  $region8: #{discriminator_forward.9} parent=0 // loop_exit
    _

</llo_original>
